<compile_context>
chip_gen: v5e
topology: v5e:2x2
jax: 0.10.0
libtpu: 0.0.40
codegen_flags: <defaults>
</compile_context>

<pallas_src>
import functools

import jax
import jax.numpy as jnp
from jax.experimental import pallas as pl
from jax.experimental.pallas import tpu as pltpu

EPS = 1e-5  # nn.GroupNorm default eps

_TAPS = [(kd - 1, kh - 1, kw - 1)
         for kd in range(3) for kh in range(3) for kw in range(3)]
_CENTER_TAP = 13   # (0, 0, 0): always in range, never needs a mask


def _round_up(x, m):
    return (x + m - 1) // m * m


# ---------------------------------------------------------------------------
# Fused kernel: `NB` batch elements (packed on the lane axis) per grid step
# ---------------------------------------------------------------------------
def _double_conv_kernel(x_ref, w1_ref, w2_ref, p_ref, m_ref, o_ref,
                        ext_ref, col_ref, *, num_groups, NB, D, H, W, PAD):
    S = D * H * W
    HW = H * W
    Stot = NB * S
    Cin = x_ref.shape[1]
    Cout = o_ref.shape[1]
    Cext = ext_ref.shape[0]
    col_dtype = col_ref.dtype

    # Zero only the two lane-aligned 128-lane halo slabs of the flat staging
    # buffer.  Redone every grid step so it is correct under "parallel"
    # (megacore) scratch semantics.
    ext_ref[:, 0:PAD] = jnp.zeros((Cext, PAD), jnp.float32)
    ext_ref[:, PAD + Stot:PAD + Stot + PAD] = jnp.zeros((Cext, PAD), jnp.float32)

    def conv(C, w_ref):
        """im2col (input already staged in ext_ref[0:C]) + one fused MXU matmul.

        Returns (Cout, Stot) f32.  The conv bias is folded into the matmul via
        ones rows at col rows [27*C, Kp) and a bias column in w_ref.
        """
        Kp = w_ref.shape[1]                    # 27*C+1 rounded up to 16
        # Pair taps into full 16-row bf16 tiles when the 8-row f32 pieces are
        # native-tile aligned; otherwise fall back to per-tap stores.
        group = 2 if C % 8 == 0 else 1

        def tap_cols(k):
            dd, dh, dw = _TAPS[k]
            off = dd * HW + dh * W + dw
            v = ext_ref[0:C, PAD + off:PAD + off + Stot]      # f32, lane shift
            if k != _CENTER_TAP:
                # Mask kills h/w wrap-around AND depth / cross-sample
                # out-of-range reads (required because NB samples share the
                # packed lane axis).
                v = v * m_ref[k:k + 1, :]
            return v

        for g0 in range(0, 27, group):
            g = min(group, 27 - g0)
            pieces = [tap_cols(g0 + j) for j in range(g)]
            blk = pieces[0] if g == 1 else jnp.concatenate(pieces, axis=0)
            col_ref[g0 * C:(g0 + g) * C, :] = blk.astype(col_dtype)
        # Bias rows: all ones; only weight column 27*C is the bias, the padding
        # columns of w_ref are zero, so the extra rows contribute nothing.
        col_ref[27 * C:Kp, :] = jnp.ones((Kp - 27 * C, Stot), col_dtype)

        # Single fused MXU matmul: (Cout, Kp) @ (Kp, NB*S), bf16 operands,
        # f32 accumulation.
        return jnp.dot(w_ref[...], col_ref[0:Kp, :],
                       preferred_element_type=jnp.float32)

    def gn_relu(y, gamma, beta):
        """One-pass GroupNorm (single sample) + ReLU on a (Cout, S) f32 slab."""
        cg = Cout // num_groups
        inv_cnt = 1.0 / float(cg * S)
        s1 = jnp.sum(y, axis=1, keepdims=True)          # (Cout, 1)
        s2 = jnp.sum(y * y, axis=1, keepdims=True)      # (Cout, 1)
        ch = jax.lax.broadcasted_iota(jnp.int32, (Cout, 1), 0)
        mean_c = jnp.zeros((Cout, 1), jnp.float32)
        var_c = jnp.zeros((Cout, 1), jnp.float32)
        for g in range(num_groups):
            m = jnp.sum(s1[g * cg:(g + 1) * cg, :], keepdims=True) * inv_cnt
            ex2 = jnp.sum(s2[g * cg:(g + 1) * cg, :], keepdims=True) * inv_cnt
            v = ex2 - m * m                              # biased var, f32
            in_g = jnp.logical_and(ch >= g * cg, ch < (g + 1) * cg)
            mean_c = jnp.where(in_g, m, mean_c)
            var_c = jnp.where(in_g, v, var_c)
        yn = (y - mean_c) * jax.lax.rsqrt(var_c + EPS)
        return jnp.maximum(yn * gamma + beta, 0.0)

    # ---- conv1: stage x (per packed sample) into the flat halo buffer.
    # Interior rows Cin..Cext-1 are never read during conv1, so they may hold
    # stale data; conv2 overwrites rows 0..Cout-1 before reading them.
    for b in range(NB):
        ext_ref[0:Cin, PAD + b * S:PAD + (b + 1) * S] = (
            x_ref[b, :, :].astype(jnp.float32))
    y1 = conv(Cin, w1_ref)                               # (Cout, NB*S) f32

    # ---- GN1 + ReLU per packed sample, staged straight back into ext.
    for b in range(NB):
        a1 = gn_relu(y1[:, b * S:(b + 1) * S], p_ref[:, 0:1], p_ref[:, 1:2])
        ext_ref[0:Cout, PAD + b * S:PAD + (b + 1) * S] = a1

    # ---- conv2 + GN2 + ReLU, written out per packed sample (lane-dense).
    y2 = conv(Cout, w2_ref)
    for b in range(NB):
        a2 = gn_relu(y2[:, b * S:(b + 1) * S], p_ref[:, 2:3], p_ref[:, 3:4])
        o_ref[b, :, :] = a2.astype(o_ref.dtype)


# ---------------------------------------------------------------------------
# Host-side helpers / wrapper
# ---------------------------------------------------------------------------
def _tap_masks(D, H, W):
    """(27, D*H*W) f32: 1 where the (dd,dh,dw) neighbour is inside the volume."""
    idx = jnp.arange(D * H * W)
    d = idx // (H * W)
    h = (idx // W) % H
    w = idx % W
    rows = []
    for kd in range(3):
        for kh in range(3):
            for kw in range(3):
                dd, dh, dw = kd - 1, kh - 1, kw - 1
                ok = ((d + dd >= 0) & (d + dd < D)
                      & (h + dh >= 0) & (h + dh < H)
                      & (w + dw >= 0) & (w + dw < W))
                rows.append(ok)
    return jnp.stack(rows, axis=0).astype(jnp.float32)


def double_conv(x_ncdhw, params, num_groups=2, batch_block=None,
                col_dtype=jnp.bfloat16):
    w1, b1, g1, bt1, w2, b2, g2, bt2 = params   # w: (3,3,3,Cin,Cout)
    N, Cin, D, H, W = x_ncdhw.shape
    Cout = w1.shape[-1]
    assert Cout % num_groups == 0
    S = D * H * W
    HW = H * W
    PAD = _round_up(HW + W + 1, 128)            # lane-aligned halo width

    if batch_block is None:
        # Pack 2 samples per step when possible; keeps >= 2 grid steps for
        # v7x's two TensorCores at N >= 4.
        batch_block = 2 if N % 2 == 0 else 1
    NB = batch_block
    assert N % NB == 0
    Stot = NB * S
    Cmax = max(Cin, Cout)

    # NCDHW -> (N, C, D*H*W): free, contiguous reshape (channel-major).
    x_flat = x_ncdhw.reshape(N, Cin, S).astype(jnp.float32)

    # Weights flattened so one matmul contracts all 27 taps x channels; the
    # bias is appended as an extra column and K is padded to a multiple of 16
    # (padding columns are zero) so the in-kernel ones-row store is aligned.
    def aug_weight(w, bias, C):
        K = 27 * C + 1
        Kp = _round_up(K, 16)
        w2d = jnp.transpose(w.reshape(27 * C, Cout))            # (Cout, 27*C)
        return jnp.concatenate(
            [w2d, bias[:, None], jnp.zeros((Cout, Kp - K), jnp.float32)],
            axis=1).astype(col_dtype)                            # (Cout, Kp)

    w1_aug = aug_weight(w1, b1, Cin)
    w2_aug = aug_weight(w2, b2, Cout)
    K1p = w1_aug.shape[1]
    K2p = w2_aug.shape[1]

    # GroupNorm affine params merged into one (Cout, 4) f32 operand.
    pvec = jnp.stack([g1, bt1, g2, bt2], axis=1).astype(jnp.float32)
    # Per-tap validity masks, tiled across the NB packed samples.
    masks = jnp.tile(_tap_masks(D, H, W), (1, NB))               # (27, NB*S)

    kernel = functools.partial(_double_conv_kernel, num_groups=num_groups,
                               NB=NB, D=D, H=H, W=W, PAD=PAD)

    out_flat = pl.pallas_call(
        kernel,
        out_shape=jax.ShapeDtypeStruct((N, Cout, S), jnp.float32),
        grid_spec=pltpu.PrefetchScalarGridSpec(
            num_scalar_prefetch=0,
            grid=(N // NB,),
            in_specs=[
                pl.BlockSpec((NB, Cin, S), lambda n: (n, 0, 0)),   # x
                pl.BlockSpec((Cout, K1p), lambda n: (0, 0)),       # w1 (+bias)
                pl.BlockSpec((Cout, K2p), lambda n: (0, 0)),       # w2 (+bias)
                pl.BlockSpec((Cout, 4), lambda n: (0, 0)),         # gamma/beta
                pl.BlockSpec((27, Stot), lambda n: (0, 0)),        # tap masks
            ],
            out_specs=pl.BlockSpec((NB, Cout, S), lambda n: (n, 0, 0)),
            scratch_shapes=[
                pltpu.VMEM((Cmax, Stot + 2 * PAD), jnp.float32),   # halo buffer
                pltpu.VMEM((max(K1p, K2p), Stot), col_dtype),      # shared im2col
            ],
        ),
        compiler_params=pltpu.CompilerParams(
            dimension_semantics=("parallel",)),
    )(x_flat, w1_aug, w2_aug, pvec, masks)

    # (N, Cout, D*H*W) is already NC-major: reshape to NCDHW is free.
    return out_flat.reshape(N, Cout, D, H, W)


# ---------------------------------------------------------------------------
# Pure-JAX reference (for correctness check)
# ---------------------------------------------------------------------------
def ref_double_conv(x, params, num_groups=2):
    w1, b1, g1, bt1, w2, b2, g2, bt2 = params

    def conv3d(x, w, b):
        w_oidhw = jnp.transpose(w, (4, 3, 0, 1, 2))
        y = jax.lax.conv_general_dilated(
            x, w_oidhw, window_strides=(1, 1, 1), padding=((1, 1),) * 3,
            dimension_numbers=("NCDHW", "OIDHW", "NCDHW"))
        return y + b[None, :, None, None, None]

    def gn_relu(x, gamma, beta):
        N = x.shape[0]
        xg = x.reshape(N, num_groups, -1)
        m = xg.mean(axis=2, keepdims=True)
        v = ((xg - m) ** 2).mean(axis=2, keepdims=True)
        xn = ((xg - m) * jax.lax.rsqrt(v + EPS)).reshape(x.shape)
        xn = xn * gamma[None, :, None, None, None] + beta[None, :, None, None, None]
        return jnp.maximum(xn, 0.0)

    y = gn_relu(conv3d(x, w1, b1), g1, bt1)
    return gn_relu(conv3d(y, w2, b2), g2, bt2)


if __name__ == "__main__":
    N, Cin, Cout, D, H, W = 4, 4, 8, 8, 8, 8
    num_groups = 2

    key = jax.random.PRNGKey(0)
    ks = jax.random.split(key, 9)
    x = jax.random.normal(ks[0], (N, Cin, D, H, W), jnp.float32)

    params = (
        0.1 * jax.random.normal(ks[1], (3, 3, 3, Cin, Cout), jnp.float32),   # w1
        0.1 * jax.random.normal(ks[2], (Cout,), jnp.float32),                # b1
        1.0 + 0.1 * jax.random.normal(ks[3], (Cout,), jnp.float32),          # gamma1
        0.1 * jax.random.normal(ks[4], (Cout,), jnp.float32),                # beta1
        0.1 * jax.random.normal(ks[5], (3, 3, 3, Cout, Cout), jnp.float32),  # w2
        0.1 * jax.random.normal(ks[6], (Cout,), jnp.float32),                # b2
        1.0 + 0.1 * jax.random.normal(ks[7], (Cout,), jnp.float32),          # gamma2
        0.1 * jax.random.normal(ks[8], (Cout,), jnp.float32),                # beta2
    )

    out = jax.block_until_ready(double_conv(x, params, num_groups))
    ref = jax.block_until_ready(ref_double_conv(x, params, num_groups))

    assert out.shape == (N, Cout, D, H, W), out.shape
    # bf16 matmul operands (f32 accumulation) -> loosened tolerance vs pure f32.
    max_err = float(jnp.max(jnp.abs(out - ref)))
    assert jnp.allclose(out, ref, atol=5e-2, rtol=5e-2), max_err

    print("KERNEL_OK")
</pallas_src>

<mosaic_0001>
module attributes {stable_mosaic.version = 11 : i64} {
  func.func @_double_conv_kernel(%arg0: i32, %arg1: memref<2x4x512xf32, #tpu.memory_space<vmem>>, %arg2: memref<8x112xbf16, #tpu.memory_space<vmem>>, %arg3: memref<8x224xbf16, #tpu.memory_space<vmem>>, %arg4: memref<8x4xf32, #tpu.memory_space<vmem>>, %arg5: memref<27x1024xf32, #tpu.memory_space<vmem>>, %arg6: memref<2x8x512xf32, #tpu.memory_space<vmem>>, %arg7: memref<8x1280xf32, #tpu.memory_space<vmem>>, %arg8: memref<224x1024xbf16, #tpu.memory_space<vmem>>) attributes {dimension_semantics = [#tpu.dimension_semantics<parallel>], iteration_bounds = array<i64: 2>, scalar_prefetch = 0 : i64, scratch_operands = 2 : i64, tpu.core_type = #tpu.core_type<tc>, window_params = [{transform_indices = @transform_0, window_bounds = array<i64: 2, 4, 512>}, {pipeline_mode = #tpu.pipeline_mode<synchronous>, transform_indices = @transform_1, window_bounds = array<i64: 8, 112>}, {pipeline_mode = #tpu.pipeline_mode<synchronous>, transform_indices = @transform_2, window_bounds = array<i64: 8, 224>}, {pipeline_mode = #tpu.pipeline_mode<synchronous>, transform_indices = @transform_3, window_bounds = array<i64: 8, 4>}, {pipeline_mode = #tpu.pipeline_mode<synchronous>, transform_indices = @transform_4, window_bounds = array<i64: 27, 1024>}, {transform_indices = @transform_5, window_bounds = array<i64: 2, 8, 512>}]} {
    %cst = arith.constant 0.000000e+00 : f32
    %0 = vector.broadcast %cst : f32 to vector<8x128xf32>
    %c0 = arith.constant 0 : index
    %c0_0 = arith.constant 0 : index
    %1 = vector.load %arg7[%c0, %c0_0] : memref<8x1280xf32, #tpu.memory_space<vmem>>, vector<8x128xf32>
    tpu.vector_store %arg7[%c0, %c0_0], %0 {strides = array<i32>} : memref<8x1280xf32, #tpu.memory_space<vmem>>, vector<8x128xf32>,
    %cst_1 = arith.constant 0.000000e+00 : f32
    %2 = vector.broadcast %cst_1 : f32 to vector<8x128xf32>
    %c0_2 = arith.constant 0 : index
    %c1152 = arith.constant 1152 : index
    %3 = vector.load %arg7[%c0_2, %c1152] : memref<8x1280xf32, #tpu.memory_space<vmem>>, vector<8x128xf32>
    tpu.vector_store %arg7[%c0_2, %c1152], %2 {strides = array<i32>} : memref<8x1280xf32, #tpu.memory_space<vmem>>, vector<8x128xf32>,
    %c0_3 = arith.constant 0 : index
    %c0_4 = arith.constant 0 : index
    %c0_5 = arith.constant 0 : index
    %4 = vector.load %arg1[%c0_3, %c0_4, %c0_5] : memref<2x4x512xf32, #tpu.memory_space<vmem>>, vector<1x4x512xf32>
    %5 = vector.shape_cast %4 : vector<1x4x512xf32> to vector<4x512xf32>
    %c0_6 = arith.constant 0 : index
    %c128 = arith.constant 128 : index
    %6 = vector.load %arg7[%c0_6, %c128] : memref<8x1280xf32, #tpu.memory_space<vmem>>, vector<4x512xf32>
    tpu.vector_store %arg7[%c0_6, %c128], %5 {strides = array<i32>} : memref<8x1280xf32, #tpu.memory_space<vmem>>, vector<4x512xf32>,
    %c1 = arith.constant 1 : index
    %c0_7 = arith.constant 0 : index
    %c0_8 = arith.constant 0 : index
    %7 = vector.load %arg1[%c1, %c0_7, %c0_8] : memref<2x4x512xf32, #tpu.memory_space<vmem>>, vector<1x4x512xf32>
    %8 = vector.shape_cast %7 : vector<1x4x512xf32> to vector<4x512xf32>
    %c0_9 = arith.constant 0 : index
    %c640 = arith.constant 640 : index
    %9 = vector.load %arg7[%c0_9, %c640] : memref<8x1280xf32, #tpu.memory_space<vmem>>, vector<4x512xf32>
    tpu.vector_store %arg7[%c0_9, %c640], %8 {strides = array<i32>} : memref<8x1280xf32, #tpu.memory_space<vmem>>, vector<4x512xf32>,
    %c0_10 = arith.constant 0 : index
    %c55 = arith.constant 55 : index
    %10 = vector.load %arg7[%c0_10, %c55] : memref<8x1280xf32, #tpu.memory_space<vmem>>, vector<4x1024xf32>
    %c0_11 = arith.constant 0 : index
    %c0_12 = arith.constant 0 : index
    %11 = vector.load %arg5[%c0_11, %c0_12] : memref<27x1024xf32, #tpu.memory_space<vmem>>, vector<1x1024xf32>
    %12 = vector.broadcast %11 : vector<1x1024xf32> to vector<4x1024xf32>
    %13 = arith.mulf %10, %12 : vector<4x1024xf32>
    %14 = arith.truncf %13 : vector<4x1024xf32> to vector<4x1024xbf16>
    %c0_13 = arith.constant 0 : index
    %c0_14 = arith.constant 0 : index
    %15 = vector.load %arg8[%c0_13, %c0_14] : memref<224x1024xbf16, #tpu.memory_space<vmem>>, vector<4x1024xbf16>
    tpu.vector_store %arg8[%c0_13, %c0_14], %14 {strides = array<i32>} : memref<224x1024xbf16, #tpu.memory_space<vmem>>, vector<4x1024xbf16>,
    %c0_15 = arith.constant 0 : index
    %c56 = arith.constant 56 : index
    %16 = vector.load %arg7[%c0_15, %c56] : memref<8x1280xf32, #tpu.memory_space<vmem>>, vector<4x1024xf32>
    %c1_16 = arith.constant 1 : index
    %c0_17 = arith.constant 0 : index
    %17 = vector.load %arg5[%c1_16, %c0_17] : memref<27x1024xf32, #tpu.memory_space<vmem>>, vector<1x1024xf32>
    %18 = vector.broadcast %17 : vector<1x1024xf32> to vector<4x1024xf32>
    %19 = arith.mulf %16, %18 : vector<4x1024xf32>
    %20 = arith.truncf %19 : vector<4x1024xf32> to vector<4x1024xbf16>
    %c4 = arith.constant 4 : index
    %c0_18 = arith.constant 0 : index
    %21 = vector.load %arg8[%c4, %c0_18] : memref<224x1024xbf16, #tpu.memory_space<vmem>>, vector<4x1024xbf16>
    tpu.vector_store %arg8[%c4, %c0_18], %20 {strides = array<i32>} : memref<224x1024xbf16, #tpu.memory_space<vmem>>, vector<4x1024xbf16>,
    %c0_19 = arith.constant 0 : index
    %c57 = arith.constant 57 : index
    %22 = vector.load %arg7[%c0_19, %c57] : memref<8x1280xf32, #tpu.memory_space<vmem>>, vector<4x1024xf32>
    %c2 = arith.constant 2 : index
    %c0_20 = arith.constant 0 : index
    %23 = vector.load %arg5[%c2, %c0_20] : memref<27x1024xf32, #tpu.memory_space<vmem>>, vector<1x1024xf32>
    %24 = vector.broadcast %23 : vector<1x1024xf32> to vector<4x1024xf32>
    %25 = arith.mulf %22, %24 : vector<4x1024xf32>
    %26 = arith.truncf %25 : vector<4x1024xf32> to vector<4x1024xbf16>
    %c8 = arith.constant 8 : index
    %c0_21 = arith.constant 0 : index
    %27 = vector.load %arg8[%c8, %c0_21] : memref<224x1024xbf16, #tpu.memory_space<vmem>>, vector<4x1024xbf16>
    tpu.vector_store %arg8[%c8, %c0_21], %26 {strides = array<i32>} : memref<224x1024xbf16, #tpu.memory_space<vmem>>, vector<4x1024xbf16>,
    %c0_22 = arith.constant 0 : index
    %c63 = arith.constant 63 : index
    %28 = vector.load %arg7[%c0_22, %c63] : memref<8x1280xf32, #tpu.memory_space<vmem>>, vector<4x1024xf32>
    %c3 = arith.constant 3 : index
    %c0_23 = arith.constant 0 : index
    %29 = vector.load %arg5[%c3, %c0_23] : memref<27x1024xf32, #tpu.memory_space<vmem>>, vector<1x1024xf32>
    %30 = vector.broadcast %29 : vector<1x1024xf32> to vector<4x1024xf32>
    %31 = arith.mulf %28, %30 : vector<4x1024xf32>
    %32 = arith.truncf %31 : vector<4x1024xf32> to vector<4x1024xbf16>
    %c12 = arith.constant 12 : index
    %c0_24 = arith.constant 0 : index
    %33 = vector.load %arg8[%c12, %c0_24] : memref<224x1024xbf16, #tpu.memory_space<vmem>>, vector<4x1024xbf16>
    tpu.vector_store %arg8[%c12, %c0_24], %32 {strides = array<i32>} : memref<224x1024xbf16, #tpu.memory_space<vmem>>, vector<4x1024xbf16>,
    %c0_25 = arith.constant 0 : index
    %c64 = arith.constant 64 : index
    %34 = vector.load %arg7[%c0_25, %c64] : memref<8x1280xf32, #tpu.memory_space<vmem>>, vector<4x1024xf32>
    %c4_26 = arith.constant 4 : index
    %c0_27 = arith.constant 0 : index
    %35 = vector.load %arg5[%c4_26, %c0_27] : memref<27x1024xf32, #tpu.memory_space<vmem>>, vector<1x1024xf32>
    %36 = vector.broadcast %35 : vector<1x1024xf32> to vector<4x1024xf32>
    %37 = arith.mulf %34, %36 : vector<4x1024xf32>
    %38 = arith.truncf %37 : vector<4x1024xf32> to vector<4x1024xbf16>
    %c16 = arith.constant 16 : index
    %c0_28 = arith.constant 0 : index
    %39 = vector.load %arg8[%c16, %c0_28] : memref<224x1024xbf16, #tpu.memory_space<vmem>>, vector<4x1024xbf16>
    tpu.vector_store %arg8[%c16, %c0_28], %38 {strides = array<i32>} : memref<224x1024xbf16, #tpu.memory_space<vmem>>, vector<4x1024xbf16>,
    %c0_29 = arith.constant 0 : index
    %c65 = arith.constant 65 : index
    %40 = vector.load %arg7[%c0_29, %c65] : memref<8x1280xf32, #tpu.memory_space<vmem>>, vector<4x1024xf32>
    %c5 = arith.constant 5 : index
    %c0_30 = arith.constant 0 : index
    %41 = vector.load %arg5[%c5, %c0_30] : memref<27x1024xf32, #tpu.memory_space<vmem>>, vector<1x1024xf32>
    %42 = vector.broadcast %41 : vector<1x1024xf32> to vector<4x1024xf32>
    %43 = arith.mulf %40, %42 : vector<4x1024xf32>
    %44 = arith.truncf %43 : vector<4x1024xf32> to vector<4x1024xbf16>
    %c20 = arith.constant 20 : index
    %c0_31 = arith.constant 0 : index
    %45 = vector.load %arg8[%c20, %c0_31] : memref<224x1024xbf16, #tpu.memory_space<vmem>>, vector<4x1024xbf16>
    tpu.vector_store %arg8[%c20, %c0_31], %44 {strides = array<i32>} : memref<224x1024xbf16, #tpu.memory_space<vmem>>, vector<4x1024xbf16>,
    %c0_32 = arith.constant 0 : index
    %c71 = arith.constant 71 : index
    %46 = vector.load %arg7[%c0_32, %c71] : memref<8x1280xf32, #tpu.memory_space<vmem>>, vector<4x1024xf32>
    %c6 = arith.constant 6 : index
    %c0_33 = arith.constant 0 : index
    %47 = vector.load %arg5[%c6, %c0_33] : memref<27x1024xf32, #tpu.memory_space<vmem>>, vector<1x1024xf32>
    %48 = vector.broadcast %47 : vector<1x1024xf32> to vector<4x1024xf32>
    %49 = arith.mulf %46, %48 : vector<4x1024xf32>
    %50 = arith.truncf %49 : vector<4x1024xf32> to vector<4x1024xbf16>
    %c24 = arith.constant 24 : index
    %c0_34 = arith.constant 0 : index
    %51 = vector.load %arg8[%c24, %c0_34] : memref<224x1024xbf16, #tpu.memory_space<vmem>>, vector<4x1024xbf16>
    tpu.vector_store %arg8[%c24, %c0_34], %50 {strides = array<i32>} : memref<224x1024xbf16, #tpu.memory_space<vmem>>, vector<4x1024xbf16>,
    %c0_35 = arith.constant 0 : index
    %c72 = arith.constant 72 : index
    %52 = vector.load %arg7[%c0_35, %c72] : memref<8x1280xf32, #tpu.memory_space<vmem>>, vector<4x1024xf32>
    %c7 = arith.constant 7 : index
    %c0_36 = arith.constant 0 : index
    %53 = vector.load %arg5[%c7, %c0_36] : memref<27x1024xf32, #tpu.memory_space<vmem>>, vector<1x1024xf32>
    %54 = vector.broadcast %53 : vector<1x1024xf32> to vector<4x1024xf32>
    %55 = arith.mulf %52, %54 : vector<4x1024xf32>
    %56 = arith.truncf %55 : vector<4x1024xf32> to vector<4x1024xbf16>
    %c28 = arith.constant 28 : index
    %c0_37 = arith.constant 0 : index
    %57 = vector.load %arg8[%c28, %c0_37] : memref<224x1024xbf16, #tpu.memory_space<vmem>>, vector<4x1024xbf16>
    tpu.vector_store %arg8[%c28, %c0_37], %56 {strides = array<i32>} : memref<224x1024xbf16, #tpu.memory_space<vmem>>, vector<4x1024xbf16>,
    %c0_38 = arith.constant 0 : index
    %c73 = arith.constant 73 : index
    %58 = vector.load %arg7[%c0_38, %c73] : memref<8x1280xf32, #tpu.memory_space<vmem>>, vector<4x1024xf32>
    %c8_39 = arith.constant 8 : index
    %c0_40 = arith.constant 0 : index
    %59 = vector.load %arg5[%c8_39, %c0_40] : memref<27x1024xf32, #tpu.memory_space<vmem>>, vector<1x1024xf32>
    %60 = vector.broadcast %59 : vector<1x1024xf32> to vector<4x1024xf32>
    %61 = arith.mulf %58, %60 : vector<4x1024xf32>
    %62 = arith.truncf %61 : vector<4x1024xf32> to vector<4x1024xbf16>
    %c32 = arith.constant 32 : index
    %c0_41 = arith.constant 0 : index
    %63 = vector.load %arg8[%c32, %c0_41] : memref<224x1024xbf16, #tpu.memory_space<vmem>>, vector<4x1024xbf16>
    tpu.vector_store %arg8[%c32, %c0_41], %62 {strides = array<i32>} : memref<224x1024xbf16, #tpu.memory_space<vmem>>, vector<4x1024xbf16>,
    %c0_42 = arith.constant 0 : index
    %c119 = arith.constant 119 : index
    %64 = vector.load %arg7[%c0_42, %c119] : memref<8x1280xf32, #tpu.memory_space<vmem>>, vector<4x1024xf32>
    %c9 = arith.constant 9 : index
    %c0_43 = arith.constant 0 : index
    %65 = vector.load %arg5[%c9, %c0_43] : memref<27x1024xf32, #tpu.memory_space<vmem>>, vector<1x1024xf32>
    %66 = vector.broadcast %65 : vector<1x1024xf32> to vector<4x1024xf32>
    %67 = arith.mulf %64, %66 : vector<4x1024xf32>
    %68 = arith.truncf %67 : vector<4x1024xf32> to vector<4x1024xbf16>
    %c36 = arith.constant 36 : index
    %c0_44 = arith.constant 0 : index
    %69 = vector.load %arg8[%c36, %c0_44] : memref<224x1024xbf16, #tpu.memory_space<vmem>>, vector<4x1024xbf16>
    tpu.vector_store %arg8[%c36, %c0_44], %68 {strides = array<i32>} : memref<224x1024xbf16, #tpu.memory_space<vmem>>, vector<4x1024xbf16>,
    %c0_45 = arith.constant 0 : index
    %c120 = arith.constant 120 : index
    %70 = vector.load %arg7[%c0_45, %c120] : memref<8x1280xf32, #tpu.memory_space<vmem>>, vector<4x1024xf32>
    %c10 = arith.constant 10 : index
    %c0_46 = arith.constant 0 : index
    %71 = vector.load %arg5[%c10, %c0_46] : memref<27x1024xf32, #tpu.memory_space<vmem>>, vector<1x1024xf32>
    %72 = vector.broadcast %71 : vector<1x1024xf32> to vector<4x1024xf32>
    %73 = arith.mulf %70, %72 : vector<4x1024xf32>
    %74 = arith.truncf %73 : vector<4x1024xf32> to vector<4x1024xbf16>
    %c40 = arith.constant 40 : index
    %c0_47 = arith.constant 0 : index
    %75 = vector.load %arg8[%c40, %c0_47] : memref<224x1024xbf16, #tpu.memory_space<vmem>>, vector<4x1024xbf16>
    tpu.vector_store %arg8[%c40, %c0_47], %74 {strides = array<i32>} : memref<224x1024xbf16, #tpu.memory_space<vmem>>, vector<4x1024xbf16>,
    %c0_48 = arith.constant 0 : index
    %c121 = arith.constant 121 : index
    %76 = vector.load %arg7[%c0_48, %c121] : memref<8x1280xf32, #tpu.memory_space<vmem>>, vector<4x1024xf32>
    %c11 = arith.constant 11 : index
    %c0_49 = arith.constant 0 : index
    %77 = vector.load %arg5[%c11, %c0_49] : memref<27x1024xf32, #tpu.memory_space<vmem>>, vector<1x1024xf32>
    %78 = vector.broadcast %77 : vector<1x1024xf32> to vector<4x1024xf32>
    %79 = arith.mulf %76, %78 : vector<4x1024xf32>
    %80 = arith.truncf %79 : vector<4x1024xf32> to vector<4x1024xbf16>
    %c44 = arith.constant 44 : index
    %c0_50 = arith.constant 0 : index
    %81 = vector.load %arg8[%c44, %c0_50] : memref<224x1024xbf16, #tpu.memory_space<vmem>>, vector<4x1024xbf16>
    tpu.vector_store %arg8[%c44, %c0_50], %80 {strides = array<i32>} : memref<224x1024xbf16, #tpu.memory_space<vmem>>, vector<4x1024xbf16>,
    %c0_51 = arith.constant 0 : index
    %c127 = arith.constant 127 : index
    %82 = vector.load %arg7[%c0_51, %c127] : memref<8x1280xf32, #tpu.memory_space<vmem>>, vector<4x1024xf32>
    %c12_52 = arith.constant 12 : index
    %c0_53 = arith.constant 0 : index
    %83 = vector.load %arg5[%c12_52, %c0_53] : memref<27x1024xf32, #tpu.memory_space<vmem>>, vector<1x1024xf32>
    %84 = vector.broadcast %83 : vector<1x1024xf32> to vector<4x1024xf32>
    %85 = arith.mulf %82, %84 : vector<4x1024xf32>
    %86 = arith.truncf %85 : vector<4x1024xf32> to vector<4x1024xbf16>
    %c48 = arith.constant 48 : index
    %c0_54 = arith.constant 0 : index
    %87 = vector.load %arg8[%c48, %c0_54] : memref<224x1024xbf16, #tpu.memory_space<vmem>>, vector<4x1024xbf16>
    tpu.vector_store %arg8[%c48, %c0_54], %86 {strides = array<i32>} : memref<224x1024xbf16, #tpu.memory_space<vmem>>, vector<4x1024xbf16>,
    %c0_55 = arith.constant 0 : index
    %c128_56 = arith.constant 128 : index
    %88 = vector.load %arg7[%c0_55, %c128_56] : memref<8x1280xf32, #tpu.memory_space<vmem>>, vector<4x1024xf32>
    %89 = arith.truncf %88 : vector<4x1024xf32> to vector<4x1024xbf16>
    %c52 = arith.constant 52 : index
    %c0_57 = arith.constant 0 : index
    %90 = vector.load %arg8[%c52, %c0_57] : memref<224x1024xbf16, #tpu.memory_space<vmem>>, vector<4x1024xbf16>
    tpu.vector_store %arg8[%c52, %c0_57], %89 {strides = array<i32>} : memref<224x1024xbf16, #tpu.memory_space<vmem>>, vector<4x1024xbf16>,
    %c0_58 = arith.constant 0 : index
    %c129 = arith.constant 129 : index
    %91 = vector.load %arg7[%c0_58, %c129] : memref<8x1280xf32, #tpu.memory_space<vmem>>, vector<4x1024xf32>
    %c14 = arith.constant 14 : index
    %c0_59 = arith.constant 0 : index
    %92 = vector.load %arg5[%c14, %c0_59] : memref<27x1024xf32, #tpu.memory_space<vmem>>, vector<1x1024xf32>
    %93 = vector.broadcast %92 : vector<1x1024xf32> to vector<4x1024xf32>
    %94 = arith.mulf %91, %93 : vector<4x1024xf32>
    %95 = arith.truncf %94 : vector<4x1024xf32> to vector<4x1024xbf16>
    %c56_60 = arith.constant 56 : index
    %c0_61 = arith.constant 0 : index
    %96 = vector.load %arg8[%c56_60, %c0_61] : memref<224x1024xbf16, #tpu.memory_space<vmem>>, vector<4x1024xbf16>
    tpu.vector_store %arg8[%c56_60, %c0_61], %95 {strides = array<i32>} : memref<224x1024xbf16, #tpu.memory_space<vmem>>, vector<4x1024xbf16>,
    %c0_62 = arith.constant 0 : index
    %c135 = arith.constant 135 : index
    %97 = vector.load %arg7[%c0_62, %c135] : memref<8x1280xf32, #tpu.memory_space<vmem>>, vector<4x1024xf32>
    %c15 = arith.constant 15 : index
    %c0_63 = arith.constant 0 : index
    %98 = vector.load %arg5[%c15, %c0_63] : memref<27x1024xf32, #tpu.memory_space<vmem>>, vector<1x1024xf32>
    %99 = vector.broadcast %98 : vector<1x1024xf32> to vector<4x1024xf32>
    %100 = arith.mulf %97, %99 : vector<4x1024xf32>
    %101 = arith.truncf %100 : vector<4x1024xf32> to vector<4x1024xbf16>
    %c60 = arith.constant 60 : index
    %c0_64 = arith.constant 0 : index
    %102 = vector.load %arg8[%c60, %c0_64] : memref<224x1024xbf16, #tpu.memory_space<vmem>>, vector<4x1024xbf16>
    tpu.vector_store %arg8[%c60, %c0_64], %101 {strides = array<i32>} : memref<224x1024xbf16, #tpu.memory_space<vmem>>, vector<4x1024xbf16>,
    %c0_65 = arith.constant 0 : index
    %c136 = arith.constant 136 : index
    %103 = vector.load %arg7[%c0_65, %c136] : memref<8x1280xf32, #tpu.memory_space<vmem>>, vector<4x1024xf32>
    %c16_66 = arith.constant 16 : index
    %c0_67 = arith.constant 0 : index
    %104 = vector.load %arg5[%c16_66, %c0_67] : memref<27x1024xf32, #tpu.memory_space<vmem>>, vector<1x1024xf32>
    %105 = vector.broadcast %104 : vector<1x1024xf32> to vector<4x1024xf32>
    %106 = arith.mulf %103, %105 : vector<4x1024xf32>
    %107 = arith.truncf %106 : vector<4x1024xf32> to vector<4x1024xbf16>
    %c64_68 = arith.constant 64 : index
    %c0_69 = arith.constant 0 : index
    %108 = vector.load %arg8[%c64_68, %c0_69] : memref<224x1024xbf16, #tpu.memory_space<vmem>>, vector<4x1024xbf16>
    tpu.vector_store %arg8[%c64_68, %c0_69], %107 {strides = array<i32>} : memref<224x1024xbf16, #tpu.memory_space<vmem>>, vector<4x1024xbf16>,
    %c0_70 = arith.constant 0 : index
    %c137 = arith.constant 137 : index
    %109 = vector.load %arg7[%c0_70, %c137] : memref<8x1280xf32, #tpu.memory_space<vmem>>, vector<4x1024xf32>
    %c17 = arith.constant 17 : index
    %c0_71 = arith.constant 0 : index
    %110 = vector.load %arg5[%c17, %c0_71] : memref<27x1024xf32, #tpu.memory_space<vmem>>, vector<1x1024xf32>
    %111 = vector.broadcast %110 : vector<1x1024xf32> to vector<4x1024xf32>
    %112 = arith.mulf %109, %111 : vector<4x1024xf32>
    %113 = arith.truncf %112 : vector<4x1024xf32> to vector<4x1024xbf16>
    %c68 = arith.constant 68 : index
    %c0_72 = arith.constant 0 : index
    %114 = vector.load %arg8[%c68, %c0_72] : memref<224x1024xbf16, #tpu.memory_space<vmem>>, vector<4x1024xbf16>
    tpu.vector_store %arg8[%c68, %c0_72], %113 {strides = array<i32>} : memref<224x1024xbf16, #tpu.memory_space<vmem>>, vector<4x1024xbf16>,
    %c0_73 = arith.constant 0 : index
    %c183 = arith.constant 183 : index
    %115 = vector.load %arg7[%c0_73, %c183] : memref<8x1280xf32, #tpu.memory_space<vmem>>, vector<4x1024xf32>
    %c18 = arith.constant 18 : index
    %c0_74 = arith.constant 0 : index
    %116 = vector.load %arg5[%c18, %c0_74] : memref<27x1024xf32, #tpu.memory_space<vmem>>, vector<1x1024xf32>
    %117 = vector.broadcast %116 : vector<1x1024xf32> to vector<4x1024xf32>
    %118 = arith.mulf %115, %117 : vector<4x1024xf32>
    %119 = arith.truncf %118 : vector<4x1024xf32> to vector<4x1024xbf16>
    %c72_75 = arith.constant 72 : index
    %c0_76 = arith.constant 0 : index
    %120 = vector.load %arg8[%c72_75, %c0_76] : memref<224x1024xbf16, #tpu.memory_space<vmem>>, vector<4x1024xbf16>
    tpu.vector_store %arg8[%c72_75, %c0_76], %119 {strides = array<i32>} : memref<224x1024xbf16, #tpu.memory_space<vmem>>, vector<4x1024xbf16>,
    %c0_77 = arith.constant 0 : index
    %c184 = arith.constant 184 : index
    %121 = vector.load %arg7[%c0_77, %c184] : memref<8x1280xf32, #tpu.memory_space<vmem>>, vector<4x1024xf32>
    %c19 = arith.constant 19 : index
    %c0_78 = arith.constant 0 : index
    %122 = vector.load %arg5[%c19, %c0_78] : memref<27x1024xf32, #tpu.memory_space<vmem>>, vector<1x1024xf32>
    %123 = vector.broadcast %122 : vector<1x1024xf32> to vector<4x1024xf32>
    %124 = arith.mulf %121, %123 : vector<4x1024xf32>
    %125 = arith.truncf %124 : vector<4x1024xf32> to vector<4x1024xbf16>
    %c76 = arith.constant 76 : index
    %c0_79 = arith.constant 0 : index
    %126 = vector.load %arg8[%c76, %c0_79] : memref<224x1024xbf16, #tpu.memory_space<vmem>>, vector<4x1024xbf16>
    tpu.vector_store %arg8[%c76, %c0_79], %125 {strides = array<i32>} : memref<224x1024xbf16, #tpu.memory_space<vmem>>, vector<4x1024xbf16>,
    %c0_80 = arith.constant 0 : index
    %c185 = arith.constant 185 : index
    %127 = vector.load %arg7[%c0_80, %c185] : memref<8x1280xf32, #tpu.memory_space<vmem>>, vector<4x1024xf32>
    %c20_81 = arith.constant 20 : index
    %c0_82 = arith.constant 0 : index
    %128 = vector.load %arg5[%c20_81, %c0_82] : memref<27x1024xf32, #tpu.memory_space<vmem>>, vector<1x1024xf32>
    %129 = vector.broadcast %128 : vector<1x1024xf32> to vector<4x1024xf32>
    %130 = arith.mulf %127, %129 : vector<4x1024xf32>
    %131 = arith.truncf %130 : vector<4x1024xf32> to vector<4x1024xbf16>
    %c80 = arith.constant 80 : index
    %c0_83 = arith.constant 0 : index
    %132 = vector.load %arg8[%c80, %c0_83] : memref<224x1024xbf16, #tpu.memory_space<vmem>>, vector<4x1024xbf16>
    tpu.vector_store %arg8[%c80, %c0_83], %131 {strides = array<i32>} : memref<224x1024xbf16, #tpu.memory_space<vmem>>, vector<4x1024xbf16>,
    %c0_84 = arith.constant 0 : index
    %c191 = arith.constant 191 : index
    %133 = vector.load %arg7[%c0_84, %c191] : memref<8x1280xf32, #tpu.memory_space<vmem>>, vector<4x1024xf32>
    %c21 = arith.constant 21 : index
    %c0_85 = arith.constant 0 : index
    %134 = vector.load %arg5[%c21, %c0_85] : memref<27x1024xf32, #tpu.memory_space<vmem>>, vector<1x1024xf32>
    %135 = vector.broadcast %134 : vector<1x1024xf32> to vector<4x1024xf32>
    %136 = arith.mulf %133, %135 : vector<4x1024xf32>
    %137 = arith.truncf %136 : vector<4x1024xf32> to vector<4x1024xbf16>
    %c84 = arith.constant 84 : index
    %c0_86 = arith.constant 0 : index
    %138 = vector.load %arg8[%c84, %c0_86] : memref<224x1024xbf16, #tpu.memory_space<vmem>>, vector<4x1024xbf16>
    tpu.vector_store %arg8[%c84, %c0_86], %137 {strides = array<i32>} : memref<224x1024xbf16, #tpu.memory_space<vmem>>, vector<4x1024xbf16>,
    %c0_87 = arith.constant 0 : index
    %c192 = arith.constant 192 : index
    %139 = vector.load %arg7[%c0_87, %c192] : memref<8x1280xf32, #tpu.memory_space<vmem>>, vector<4x1024xf32>
    %c22 = arith.constant 22 : index
    %c0_88 = arith.constant 0 : index
    %140 = vector.load %arg5[%c22, %c0_88] : memref<27x1024xf32, #tpu.memory_space<vmem>>, vector<1x1024xf32>
    %141 = vector.broadcast %140 : vector<1x1024xf32> to vector<4x1024xf32>
    %142 = arith.mulf %139, %141 : vector<4x1024xf32>
    %143 = arith.truncf %142 : vector<4x1024xf32> to vector<4x1024xbf16>
    %c88 = arith.constant 88 : index
    %c0_89 = arith.constant 0 : index
    %144 = vector.load %arg8[%c88, %c0_89] : memref<224x1024xbf16, #tpu.memory_space<vmem>>, vector<4x1024xbf16>
    tpu.vector_store %arg8[%c88, %c0_89], %143 {strides = array<i32>} : memref<224x1024xbf16, #tpu.memory_space<vmem>>, vector<4x1024xbf16>,
    %c0_90 = arith.constant 0 : index
    %c193 = arith.constant 193 : index
    %145 = vector.load %arg7[%c0_90, %c193] : memref<8x1280xf32, #tpu.memory_space<vmem>>, vector<4x1024xf32>
    %c23 = arith.constant 23 : index
    %c0_91 = arith.constant 0 : index
    %146 = vector.load %arg5[%c23, %c0_91] : memref<27x1024xf32, #tpu.memory_space<vmem>>, vector<1x1024xf32>
    %147 = vector.broadcast %146 : vector<1x1024xf32> to vector<4x1024xf32>
    %148 = arith.mulf %145, %147 : vector<4x1024xf32>
    %149 = arith.truncf %148 : vector<4x1024xf32> to vector<4x1024xbf16>
    %c92 = arith.constant 92 : index
    %c0_92 = arith.constant 0 : index
    %150 = vector.load %arg8[%c92, %c0_92] : memref<224x1024xbf16, #tpu.memory_space<vmem>>, vector<4x1024xbf16>
    tpu.vector_store %arg8[%c92, %c0_92], %149 {strides = array<i32>} : memref<224x1024xbf16, #tpu.memory_space<vmem>>, vector<4x1024xbf16>,
    %c0_93 = arith.constant 0 : index
    %c199 = arith.constant 199 : index
    %151 = vector.load %arg7[%c0_93, %c199] : memref<8x1280xf32, #tpu.memory_space<vmem>>, vector<4x1024xf32>
    %c24_94 = arith.constant 24 : index
    %c0_95 = arith.constant 0 : index
    %152 = vector.load %arg5[%c24_94, %c0_95] : memref<27x1024xf32, #tpu.memory_space<vmem>>, vector<1x1024xf32>
    %153 = vector.broadcast %152 : vector<1x1024xf32> to vector<4x1024xf32>
    %154 = arith.mulf %151, %153 : vector<4x1024xf32>
    %155 = arith.truncf %154 : vector<4x1024xf32> to vector<4x1024xbf16>
    %c96 = arith.constant 96 : index
    %c0_96 = arith.constant 0 : index
    %156 = vector.load %arg8[%c96, %c0_96] : memref<224x1024xbf16, #tpu.memory_space<vmem>>, vector<4x1024xbf16>
    tpu.vector_store %arg8[%c96, %c0_96], %155 {strides = array<i32>} : memref<224x1024xbf16, #tpu.memory_space<vmem>>, vector<4x1024xbf16>,
    %c0_97 = arith.constant 0 : index
    %c200 = arith.constant 200 : index
    %157 = vector.load %arg7[%c0_97, %c200] : memref<8x1280xf32, #tpu.memory_space<vmem>>, vector<4x1024xf32>
    %c25 = arith.constant 25 : index
    %c0_98 = arith.constant 0 : index
    %158 = vector.load %arg5[%c25, %c0_98] : memref<27x1024xf32, #tpu.memory_space<vmem>>, vector<1x1024xf32>
    %159 = vector.broadcast %158 : vector<1x1024xf32> to vector<4x1024xf32>
    %160 = arith.mulf %157, %159 : vector<4x1024xf32>
    %161 = arith.truncf %160 : vector<4x1024xf32> to vector<4x1024xbf16>
    %c100 = arith.constant 100 : index
    %c0_99 = arith.constant 0 : index
    %162 = vector.load %arg8[%c100, %c0_99] : memref<224x1024xbf16, #tpu.memory_space<vmem>>, vector<4x1024xbf16>
    tpu.vector_store %arg8[%c100, %c0_99], %161 {strides = array<i32>} : memref<224x1024xbf16, #tpu.memory_space<vmem>>, vector<4x1024xbf16>,
    %c0_100 = arith.constant 0 : index
    %c201 = arith.constant 201 : index
    %163 = vector.load %arg7[%c0_100, %c201] : memref<8x1280xf32, #tpu.memory_space<vmem>>, vector<4x1024xf32>
    %c26 = arith.constant 26 : index
    %c0_101 = arith.constant 0 : index
    %164 = vector.load %arg5[%c26, %c0_101] : memref<27x1024xf32, #tpu.memory_space<vmem>>, vector<1x1024xf32>
    %165 = vector.broadcast %164 : vector<1x1024xf32> to vector<4x1024xf32>
    %166 = arith.mulf %163, %165 : vector<4x1024xf32>
    %167 = arith.truncf %166 : vector<4x1024xf32> to vector<4x1024xbf16>
    %c104 = arith.constant 104 : index
    %c0_102 = arith.constant 0 : index
    %168 = vector.load %arg8[%c104, %c0_102] : memref<224x1024xbf16, #tpu.memory_space<vmem>>, vector<4x1024xbf16>
    tpu.vector_store %arg8[%c104, %c0_102], %167 {strides = array<i32>} : memref<224x1024xbf16, #tpu.memory_space<vmem>>, vector<4x1024xbf16>,
    %cst_103 = arith.constant 1.000000e+00 : bf16
    %169 = vector.broadcast %cst_103 : bf16 to vector<4x1024xbf16>
    %c108 = arith.constant 108 : index
    %c0_104 = arith.constant 0 : index
    %170 = vector.load %arg8[%c108, %c0_104] : memref<224x1024xbf16, #tpu.memory_space<vmem>>, vector<4x1024xbf16>
    tpu.vector_store %arg8[%c108, %c0_104], %169 {strides = array<i32>} : memref<224x1024xbf16, #tpu.memory_space<vmem>>, vector<4x1024xbf16>,
    %c0_105 = arith.constant 0 : index
    %c0_106 = arith.constant 0 : index
    %171 = vector.load %arg2[%c0_105, %c0_106] : memref<8x112xbf16, #tpu.memory_space<vmem>>, vector<8x112xbf16>
    %c0_107 = arith.constant 0 : index
    %c0_108 = arith.constant 0 : index
    %172 = vector.load %arg8[%c0_107, %c0_108] : memref<224x1024xbf16, #tpu.memory_space<vmem>>, vector<112x1024xbf16>
    %cst_109 = arith.constant dense<0.000000e+00> : vector<8x1024xf32>
    %173 = tpu.matmul %171, %172, %cst_109 {dimension_numbers = #tpu.dot_dimension_numbers<[1], [0], [0], [1], [0, 0, 1, 1], [], []>} : vector<8x112xbf16>, vector<112x1024xbf16>, vector<8x1024xf32> -> vector<8x1024xf32>
    %174 = vector.extract_strided_slice %173 {offsets = [0, 0], sizes = [8, 512], strides = [1, 1]} : vector<8x1024xf32> to vector<8x512xf32>
    %c0_110 = arith.constant 0 : index
    %c0_111 = arith.constant 0 : index
    %175 = vector.load %arg4[%c0_110, %c0_111] : memref<8x4xf32, #tpu.memory_space<vmem>>, vector<8x1xf32>
    %c0_112 = arith.constant 0 : index
    %c1_113 = arith.constant 1 : index
    %176 = vector.load %arg4[%c0_112, %c1_113] : memref<8x4xf32, #tpu.memory_space<vmem>>, vector<8x1xf32>
    %cst_114 = arith.constant dense<0.000000e+00> : vector<8xf32>
    %177 = vector.multi_reduction <add>, %174, %cst_114 [1] : vector<8x512xf32> to vector<8xf32>
    %178 = vector.shape_cast %177 : vector<8xf32> to vector<8x1xf32>
    %179 = arith.mulf %174, %174 : vector<8x512xf32>
    %cst_115 = arith.constant dense<0.000000e+00> : vector<8xf32>
    %180 = vector.multi_reduction <add>, %179, %cst_115 [1] : vector<8x512xf32> to vector<8xf32>
    %181 = vector.shape_cast %180 : vector<8xf32> to vector<8x1xf32>
    %182 = tpu.iota {dimensions = array<i32: 0>} : vector<8x1xi32>
    %cst_116 = arith.constant 0.000000e+00 : f32
    %183 = vector.broadcast %cst_116 : f32 to vector<8x1xf32>
    %cst_117 = arith.constant 0.000000e+00 : f32
    %184 = vector.broadcast %cst_117 : f32 to vector<8x1xf32>
    %185 = vector.extract_strided_slice %178 {offsets = [0, 0], sizes = [4, 1], strides = [1, 1]} : vector<8x1xf32> to vector<4x1xf32>
    %186 = vector.shape_cast %185 : vector<4x1xf32> to vector<1x4x1xf32>
    %cst_118 = arith.constant dense<0.000000e+00> : vector<1xf32>
    %187 = vector.multi_reduction <add>, %186, %cst_118 [1, 2] : vector<1x4x1xf32> to vector<1xf32>
    %188 = vector.shape_cast %187 : vector<1xf32> to vector<1x1x1xf32>
    %189 = vector.extract %188[0, 0, 0] : f32 from vector<1x1x1xf32>
    %190 = vector.broadcast %189 : f32 to vector<1x1xf32>
    %cst_119 = arith.constant 4.8828125E-4 : f32
    %191 = vector.broadcast %cst_119 : f32 to vector<1x1xf32>
    %192 = arith.mulf %190, %191 : vector<1x1xf32>
    %193 = vector.extract_strided_slice %181 {offsets = [0, 0], sizes = [4, 1], strides = [1, 1]} : vector<8x1xf32> to vector<4x1xf32>
    %194 = vector.shape_cast %193 : vector<4x1xf32> to vector<1x4x1xf32>
    %cst_120 = arith.constant dense<0.000000e+00> : vector<1xf32>
    %195 = vector.multi_reduction <add>, %194, %cst_120 [1, 2] : vector<1x4x1xf32> to vector<1xf32>
    %196 = vector.shape_cast %195 : vector<1xf32> to vector<1x1x1xf32>
    %197 = vector.extract %196[0, 0, 0] : f32 from vector<1x1x1xf32>
    %198 = vector.broadcast %197 : f32 to vector<1x1xf32>
    %cst_121 = arith.constant 4.8828125E-4 : f32
    %199 = vector.broadcast %cst_121 : f32 to vector<1x1xf32>
    %200 = arith.mulf %198, %199 : vector<1x1xf32>
    %201 = arith.mulf %192, %192 : vector<1x1xf32>
    %202 = arith.subf %200, %201 : vector<1x1xf32>
    %c0_i32 = arith.constant 0 : i32
    %203 = vector.broadcast %c0_i32 : i32 to vector<8x1xi32>
    %204 = arith.cmpi sge, %182, %203 : vector<8x1xi32>
    %c4_i32 = arith.constant 4 : i32
    %205 = vector.broadcast %c4_i32 : i32 to vector<8x1xi32>
    %206 = arith.cmpi slt, %182, %205 : vector<8x1xi32>
    %207 = arith.andi %204, %206 : vector<8x1xi1>
    %208 = vector.shape_cast %192 : vector<1x1xf32> to vector<1x1xf32>
    %209 = vector.broadcast %208 : vector<1x1xf32> to vector<8x1xf32>
    %210 = arith.select %207, %209, %183 : vector<8x1xi1>, vector<8x1xf32>
    %211 = vector.shape_cast %202 : vector<1x1xf32> to vector<1x1xf32>
    %212 = vector.broadcast %211 : vector<1x1xf32> to vector<8x1xf32>
    %213 = arith.select %207, %212, %184 : vector<8x1xi1>, vector<8x1xf32>
    %214 = vector.extract_strided_slice %178 {offsets = [4, 0], sizes = [4, 1], strides = [1, 1]} : vector<8x1xf32> to vector<4x1xf32>
    %215 = vector.shape_cast %214 : vector<4x1xf32> to vector<1x4x1xf32>
    %cst_122 = arith.constant dense<0.000000e+00> : vector<1xf32>
    %216 = vector.multi_reduction <add>, %215, %cst_122 [1, 2] : vector<1x4x1xf32> to vector<1xf32>
    %217 = vector.shape_cast %216 : vector<1xf32> to vector<1x1x1xf32>
    %218 = vector.extract %217[0, 0, 0] : f32 from vector<1x1x1xf32>
    %219 = vector.broadcast %218 : f32 to vector<1x1xf32>
    %cst_123 = arith.constant 4.8828125E-4 : f32
    %220 = vector.broadcast %cst_123 : f32 to vector<1x1xf32>
    %221 = arith.mulf %219, %220 : vector<1x1xf32>
    %222 = vector.extract_strided_slice %181 {offsets = [4, 0], sizes = [4, 1], strides = [1, 1]} : vector<8x1xf32> to vector<4x1xf32>
    %223 = vector.shape_cast %222 : vector<4x1xf32> to vector<1x4x1xf32>
    %cst_124 = arith.constant dense<0.000000e+00> : vector<1xf32>
    %224 = vector.multi_reduction <add>, %223, %cst_124 [1, 2] : vector<1x4x1xf32> to vector<1xf32>
    %225 = vector.shape_cast %224 : vector<1xf32> to vector<1x1x1xf32>
    %226 = vector.extract %225[0, 0, 0] : f32 from vector<1x1x1xf32>
    %227 = vector.broadcast %226 : f32 to vector<1x1xf32>
    %cst_125 = arith.constant 4.8828125E-4 : f32
    %228 = vector.broadcast %cst_125 : f32 to vector<1x1xf32>
    %229 = arith.mulf %227, %228 : vector<1x1xf32>
    %230 = arith.mulf %221, %221 : vector<1x1xf32>
    %231 = arith.subf %229, %230 : vector<1x1xf32>
    %c4_i32_126 = arith.constant 4 : i32
    %232 = vector.broadcast %c4_i32_126 : i32 to vector<8x1xi32>
    %233 = arith.cmpi sge, %182, %232 : vector<8x1xi32>
    %c8_i32 = arith.constant 8 : i32
    %234 = vector.broadcast %c8_i32 : i32 to vector<8x1xi32>
    %235 = arith.cmpi slt, %182, %234 : vector<8x1xi32>
    %236 = arith.andi %233, %235 : vector<8x1xi1>
    %237 = vector.shape_cast %221 : vector<1x1xf32> to vector<1x1xf32>
    %238 = vector.broadcast %237 : vector<1x1xf32> to vector<8x1xf32>
    %239 = arith.select %236, %238, %210 : vector<8x1xi1>, vector<8x1xf32>
    %240 = vector.shape_cast %231 : vector<1x1xf32> to vector<1x1xf32>
    %241 = vector.broadcast %240 : vector<1x1xf32> to vector<8x1xf32>
    %242 = arith.select %236, %241, %213 : vector<8x1xi1>, vector<8x1xf32>
    %243 = vector.broadcast %239 : vector<8x1xf32> to vector<8x512xf32>
    %244 = arith.subf %174, %243 : vector<8x512xf32>
    %cst_127 = arith.constant 9.99999974E-6 : f32
    %245 = vector.broadcast %cst_127 : f32 to vector<8x1xf32>
    %246 = arith.addf %242, %245 : vector<8x1xf32>
    %247 = math.rsqrt %246 : vector<8x1xf32>
    %248 = vector.broadcast %247 : vector<8x1xf32> to vector<8x512xf32>
    %249 = arith.mulf %244, %248 : vector<8x512xf32>
    %250 = vector.broadcast %175 : vector<8x1xf32> to vector<8x512xf32>
    %251 = arith.mulf %249, %250 : vector<8x512xf32>
    %252 = vector.broadcast %176 : vector<8x1xf32> to vector<8x512xf32>
    %253 = arith.addf %251, %252 : vector<8x512xf32>
    %cst_128 = arith.constant 0.000000e+00 : f32
    %254 = vector.broadcast %cst_128 : f32 to vector<8x512xf32>
    %255 = arith.maximumf %253, %254 : vector<8x512xf32>
    %c0_129 = arith.constant 0 : index
    %c128_130 = arith.constant 128 : index
    %256 = vector.load %arg7[%c0_129, %c128_130] : memref<8x1280xf32, #tpu.memory_space<vmem>>, vector<8x512xf32>
    tpu.vector_store %arg7[%c0_129, %c128_130], %255 {strides = array<i32>} : memref<8x1280xf32, #tpu.memory_space<vmem>>, vector<8x512xf32>,
    %257 = vector.extract_strided_slice %173 {offsets = [0, 512], sizes = [8, 512], strides = [1, 1]} : vector<8x1024xf32> to vector<8x512xf32>
    %c0_131 = arith.constant 0 : index
    %c0_132 = arith.constant 0 : index
    %258 = vector.load %arg4[%c0_131, %c0_132] : memref<8x4xf32, #tpu.memory_space<vmem>>, vector<8x1xf32>
    %c0_133 = arith.constant 0 : index
    %c1_134 = arith.constant 1 : index
    %259 = vector.load %arg4[%c0_133, %c1_134] : memref<8x4xf32, #tpu.memory_space<vmem>>, vector<8x1xf32>
    %cst_135 = arith.constant dense<0.000000e+00> : vector<8xf32>
    %260 = vector.multi_reduction <add>, %257, %cst_135 [1] : vector<8x512xf32> to vector<8xf32>
    %261 = vector.shape_cast %260 : vector<8xf32> to vector<8x1xf32>
    %262 = arith.mulf %257, %257 : vector<8x512xf32>
    %cst_136 = arith.constant dense<0.000000e+00> : vector<8xf32>
    %263 = vector.multi_reduction <add>, %262, %cst_136 [1] : vector<8x512xf32> to vector<8xf32>
    %264 = vector.shape_cast %263 : vector<8xf32> to vector<8x1xf32>
    %265 = tpu.iota {dimensions = array<i32: 0>} : vector<8x1xi32>
    %cst_137 = arith.constant 0.000000e+00 : f32
    %266 = vector.broadcast %cst_137 : f32 to vector<8x1xf32>
    %cst_138 = arith.constant 0.000000e+00 : f32
    %267 = vector.broadcast %cst_138 : f32 to vector<8x1xf32>
    %268 = vector.extract_strided_slice %261 {offsets = [0, 0], sizes = [4, 1], strides = [1, 1]} : vector<8x1xf32> to vector<4x1xf32>
    %269 = vector.shape_cast %268 : vector<4x1xf32> to vector<1x4x1xf32>
    %cst_139 = arith.constant dense<0.000000e+00> : vector<1xf32>
    %270 = vector.multi_reduction <add>, %269, %cst_139 [1, 2] : vector<1x4x1xf32> to vector<1xf32>
    %271 = vector.shape_cast %270 : vector<1xf32> to vector<1x1x1xf32>
    %272 = vector.extract %271[0, 0, 0] : f32 from vector<1x1x1xf32>
    %273 = vector.broadcast %272 : f32 to vector<1x1xf32>
    %cst_140 = arith.constant 4.8828125E-4 : f32
    %274 = vector.broadcast %cst_140 : f32 to vector<1x1xf32>
    %275 = arith.mulf %273, %274 : vector<1x1xf32>
    %276 = vector.extract_strided_slice %264 {offsets = [0, 0], sizes = [4, 1], strides = [1, 1]} : vector<8x1xf32> to vector<4x1xf32>
    %277 = vector.shape_cast %276 : vector<4x1xf32> to vector<1x4x1xf32>
    %cst_141 = arith.constant dense<0.000000e+00> : vector<1xf32>
    %278 = vector.multi_reduction <add>, %277, %cst_141 [1, 2] : vector<1x4x1xf32> to vector<1xf32>
    %279 = vector.shape_cast %278 : vector<1xf32> to vector<1x1x1xf32>
    %280 = vector.extract %279[0, 0, 0] : f32 from vector<1x1x1xf32>
    %281 = vector.broadcast %280 : f32 to vector<1x1xf32>
    %cst_142 = arith.constant 4.8828125E-4 : f32
    %282 = vector.broadcast %cst_142 : f32 to vector<1x1xf32>
    %283 = arith.mulf %281, %282 : vector<1x1xf32>
    %284 = arith.mulf %275, %275 : vector<1x1xf32>
    %285 = arith.subf %283, %284 : vector<1x1xf32>
    %c0_i32_143 = arith.constant 0 : i32
    %286 = vector.broadcast %c0_i32_143 : i32 to vector<8x1xi32>
    %287 = arith.cmpi sge, %265, %286 : vector<8x1xi32>
    %c4_i32_144 = arith.constant 4 : i32
    %288 = vector.broadcast %c4_i32_144 : i32 to vector<8x1xi32>
    %289 = arith.cmpi slt, %265, %288 : vector<8x1xi32>
    %290 = arith.andi %287, %289 : vector<8x1xi1>
    %291 = vector.shape_cast %275 : vector<1x1xf32> to vector<1x1xf32>
    %292 = vector.broadcast %291 : vector<1x1xf32> to vector<8x1xf32>
    %293 = arith.select %290, %292, %266 : vector<8x1xi1>, vector<8x1xf32>
    %294 = vector.shape_cast %285 : vector<1x1xf32> to vector<1x1xf32>
    %295 = vector.broadcast %294 : vector<1x1xf32> to vector<8x1xf32>
    %296 = arith.select %290, %295, %267 : vector<8x1xi1>, vector<8x1xf32>
    %297 = vector.extract_strided_slice %261 {offsets = [4, 0], sizes = [4, 1], strides = [1, 1]} : vector<8x1xf32> to vector<4x1xf32>
    %298 = vector.shape_cast %297 : vector<4x1xf32> to vector<1x4x1xf32>
    %cst_145 = arith.constant dense<0.000000e+00> : vector<1xf32>
    %299 = vector.multi_reduction <add>, %298, %cst_145 [1, 2] : vector<1x4x1xf32> to vector<1xf32>
    %300 = vector.shape_cast %299 : vector<1xf32> to vector<1x1x1xf32>
    %301 = vector.extract %300[0, 0, 0] : f32 from vector<1x1x1xf32>
    %302 = vector.broadcast %301 : f32 to vector<1x1xf32>
    %cst_146 = arith.constant 4.8828125E-4 : f32
    %303 = vector.broadcast %cst_146 : f32 to vector<1x1xf32>
    %304 = arith.mulf %302, %303 : vector<1x1xf32>
    %305 = vector.extract_strided_slice %264 {offsets = [4, 0], sizes = [4, 1], strides = [1, 1]} : vector<8x1xf32> to vector<4x1xf32>
    %306 = vector.shape_cast %305 : vector<4x1xf32> to vector<1x4x1xf32>
    %cst_147 = arith.constant dense<0.000000e+00> : vector<1xf32>
    %307 = vector.multi_reduction <add>, %306, %cst_147 [1, 2] : vector<1x4x1xf32> to vector<1xf32>
    %308 = vector.shape_cast %307 : vector<1xf32> to vector<1x1x1xf32>
    %309 = vector.extract %308[0, 0, 0] : f32 from vector<1x1x1xf32>
    %310 = vector.broadcast %309 : f32 to vector<1x1xf32>
    %cst_148 = arith.constant 4.8828125E-4 : f32
    %311 = vector.broadcast %cst_148 : f32 to vector<1x1xf32>
    %312 = arith.mulf %310, %311 : vector<1x1xf32>
    %313 = arith.mulf %304, %304 : vector<1x1xf32>
    %314 = arith.subf %312, %313 : vector<1x1xf32>
    %c4_i32_149 = arith.constant 4 : i32
    %315 = vector.broadcast %c4_i32_149 : i32 to vector<8x1xi32>
    %316 = arith.cmpi sge, %265, %315 : vector<8x1xi32>
    %c8_i32_150 = arith.constant 8 : i32
    %317 = vector.broadcast %c8_i32_150 : i32 to vector<8x1xi32>
    %318 = arith.cmpi slt, %265, %317 : vector<8x1xi32>
    %319 = arith.andi %316, %318 : vector<8x1xi1>
    %320 = vector.shape_cast %304 : vector<1x1xf32> to vector<1x1xf32>
    %321 = vector.broadcast %320 : vector<1x1xf32> to vector<8x1xf32>
    %322 = arith.select %319, %321, %293 : vector<8x1xi1>, vector<8x1xf32>
    %323 = vector.shape_cast %314 : vector<1x1xf32> to vector<1x1xf32>
    %324 = vector.broadcast %323 : vector<1x1xf32> to vector<8x1xf32>
    %325 = arith.select %319, %324, %296 : vector<8x1xi1>, vector<8x1xf32>
    %326 = vector.broadcast %322 : vector<8x1xf32> to vector<8x512xf32>
    %327 = arith.subf %257, %326 : vector<8x512xf32>
    %cst_151 = arith.constant 9.99999974E-6 : f32
    %328 = vector.broadcast %cst_151 : f32 to vector<8x1xf32>
    %329 = arith.addf %325, %328 : vector<8x1xf32>
    %330 = math.rsqrt %329 : vector<8x1xf32>
    %331 = vector.broadcast %330 : vector<8x1xf32> to vector<8x512xf32>
    %332 = arith.mulf %327, %331 : vector<8x512xf32>
    %333 = vector.broadcast %258 : vector<8x1xf32> to vector<8x512xf32>
    %334 = arith.mulf %332, %333 : vector<8x512xf32>
    %335 = vector.broadcast %259 : vector<8x1xf32> to vector<8x512xf32>
    %336 = arith.addf %334, %335 : vector<8x512xf32>
    %cst_152 = arith.constant 0.000000e+00 : f32
    %337 = vector.broadcast %cst_152 : f32 to vector<8x512xf32>
    %338 = arith.maximumf %336, %337 : vector<8x512xf32>
    %c0_153 = arith.constant 0 : index
    %c640_154 = arith.constant 640 : index
    %339 = vector.load %arg7[%c0_153, %c640_154] : memref<8x1280xf32, #tpu.memory_space<vmem>>, vector<8x512xf32>
    tpu.vector_store %arg7[%c0_153, %c640_154], %338 {strides = array<i32>} : memref<8x1280xf32, #tpu.memory_space<vmem>>, vector<8x512xf32>,
    %c0_155 = arith.constant 0 : index
    %c55_156 = arith.constant 55 : index
    %340 = vector.load %arg7[%c0_155, %c55_156] : memref<8x1280xf32, #tpu.memory_space<vmem>>, vector<8x1024xf32>
    %c0_157 = arith.constant 0 : index
    %c0_158 = arith.constant 0 : index
    %341 = vector.load %arg5[%c0_157, %c0_158] : memref<27x1024xf32, #tpu.memory_space<vmem>>, vector<1x1024xf32>
    %342 = vector.broadcast %341 : vector<1x1024xf32> to vector<8x1024xf32>
    %343 = arith.mulf %340, %342 : vector<8x1024xf32>
    %c0_159 = arith.constant 0 : index
    %c56_160 = arith.constant 56 : index
    %344 = vector.load %arg7[%c0_159, %c56_160] : memref<8x1280xf32, #tpu.memory_space<vmem>>, vector<8x1024xf32>
    %c1_161 = arith.constant 1 : index
    %c0_162 = arith.constant 0 : index
    %345 = vector.load %arg5[%c1_161, %c0_162] : memref<27x1024xf32, #tpu.memory_space<vmem>>, vector<1x1024xf32>
    %346 = vector.broadcast %345 : vector<1x1024xf32> to vector<8x1024xf32>
    %347 = arith.mulf %344, %346 : vector<8x1024xf32>
    %348 = tpu.concatenate %343, %347 in 0 : vector<8x1024xf32>, vector<8x1024xf32> -> vector<16x1024xf32>
    %349 = arith.truncf %348 : vector<16x1024xf32> to vector<16x1024xbf16>
    %c0_163 = arith.constant 0 : index
    %c0_164 = arith.constant 0 : index
    %350 = vector.load %arg8[%c0_163, %c0_164] : memref<224x1024xbf16, #tpu.memory_space<vmem>>, vector<16x1024xbf16>
    tpu.vector_store %arg8[%c0_163, %c0_164], %349 {strides = array<i32>} : memref<224x1024xbf16, #tpu.memory_space<vmem>>, vector<16x1024xbf16>,
    %c0_165 = arith.constant 0 : index
    %c57_166 = arith.constant 57 : index
    %351 = vector.load %arg7[%c0_165, %c57_166] : memref<8x1280xf32, #tpu.memory_space<vmem>>, vector<8x1024xf32>
    %c2_167 = arith.constant 2 : index
    %c0_168 = arith.constant 0 : index
    %352 = vector.load %arg5[%c2_167, %c0_168] : memref<27x1024xf32, #tpu.memory_space<vmem>>, vector<1x1024xf32>
    %353 = vector.broadcast %352 : vector<1x1024xf32> to vector<8x1024xf32>
    %354 = arith.mulf %351, %353 : vector<8x1024xf32>
    %c0_169 = arith.constant 0 : index
    %c63_170 = arith.constant 63 : index
    %355 = vector.load %arg7[%c0_169, %c63_170] : memref<8x1280xf32, #tpu.memory_space<vmem>>, vector<8x1024xf32>
    %c3_171 = arith.constant 3 : index
    %c0_172 = arith.constant 0 : index
    %356 = vector.load %arg5[%c3_171, %c0_172] : memref<27x1024xf32, #tpu.memory_space<vmem>>, vector<1x1024xf32>
    %357 = vector.broadcast %356 : vector<1x1024xf32> to vector<8x1024xf32>
    %358 = arith.mulf %355, %357 : vector<8x1024xf32>
    %359 = tpu.concatenate %354, %358 in 0 : vector<8x1024xf32>, vector<8x1024xf32> -> vector<16x1024xf32>
    %360 = arith.truncf %359 : vector<16x1024xf32> to vector<16x1024xbf16>
    %c16_173 = arith.constant 16 : index
    %c0_174 = arith.constant 0 : index
    %361 = vector.load %arg8[%c16_173, %c0_174] : memref<224x1024xbf16, #tpu.memory_space<vmem>>, vector<16x1024xbf16>
    tpu.vector_store %arg8[%c16_173, %c0_174], %360 {strides = array<i32>} : memref<224x1024xbf16, #tpu.memory_space<vmem>>, vector<16x1024xbf16>,
    %c0_175 = arith.constant 0 : index
    %c64_176 = arith.constant 64 : index
    %362 = vector.load %arg7[%c0_175, %c64_176] : memref<8x1280xf32, #tpu.memory_space<vmem>>, vector<8x1024xf32>
    %c4_177 = arith.constant 4 : index
    %c0_178 = arith.constant 0 : index
    %363 = vector.load %arg5[%c4_177, %c0_178] : memref<27x1024xf32, #tpu.memory_space<vmem>>, vector<1x1024xf32>
    %364 = vector.broadcast %363 : vector<1x1024xf32> to vector<8x1024xf32>
    %365 = arith.mulf %362, %364 : vector<8x1024xf32>
    %c0_179 = arith.constant 0 : index
    %c65_180 = arith.constant 65 : index
    %366 = vector.load %arg7[%c0_179, %c65_180] : memref<8x1280xf32, #tpu.memory_space<vmem>>, vector<8x1024xf32>
    %c5_181 = arith.constant 5 : index
    %c0_182 = arith.constant 0 : index
    %367 = vector.load %arg5[%c5_181, %c0_182] : memref<27x1024xf32, #tpu.memory_space<vmem>>, vector<1x1024xf32>
    %368 = vector.broadcast %367 : vector<1x1024xf32> to vector<8x1024xf32>
    %369 = arith.mulf %366, %368 : vector<8x1024xf32>
    %370 = tpu.concatenate %365, %369 in 0 : vector<8x1024xf32>, vector<8x1024xf32> -> vector<16x1024xf32>
    %371 = arith.truncf %370 : vector<16x1024xf32> to vector<16x1024xbf16>
    %c32_183 = arith.constant 32 : index
    %c0_184 = arith.constant 0 : index
    %372 = vector.load %arg8[%c32_183, %c0_184] : memref<224x1024xbf16, #tpu.memory_space<vmem>>, vector<16x1024xbf16>
    tpu.vector_store %arg8[%c32_183, %c0_184], %371 {strides = array<i32>} : memref<224x1024xbf16, #tpu.memory_space<vmem>>, vector<16x1024xbf16>,
    %c0_185 = arith.constant 0 : index
    %c71_186 = arith.constant 71 : index
    %373 = vector.load %arg7[%c0_185, %c71_186] : memref<8x1280xf32, #tpu.memory_space<vmem>>, vector<8x1024xf32>
    %c6_187 = arith.constant 6 : index
    %c0_188 = arith.constant 0 : index
    %374 = vector.load %arg5[%c6_187, %c0_188] : memref<27x1024xf32, #tpu.memory_space<vmem>>, vector<1x1024xf32>
    %375 = vector.broadcast %374 : vector<1x1024xf32> to vector<8x1024xf32>
    %376 = arith.mulf %373, %375 : vector<8x1024xf32>
    %c0_189 = arith.constant 0 : index
    %c72_190 = arith.constant 72 : index
    %377 = vector.load %arg7[%c0_189, %c72_190] : memref<8x1280xf32, #tpu.memory_space<vmem>>, vector<8x1024xf32>
    %c7_191 = arith.constant 7 : index
    %c0_192 = arith.constant 0 : index
    %378 = vector.load %arg5[%c7_191, %c0_192] : memref<27x1024xf32, #tpu.memory_space<vmem>>, vector<1x1024xf32>
    %379 = vector.broadcast %378 : vector<1x1024xf32> to vector<8x1024xf32>
    %380 = arith.mulf %377, %379 : vector<8x1024xf32>
    %381 = tpu.concatenate %376, %380 in 0 : vector<8x1024xf32>, vector<8x1024xf32> -> vector<16x1024xf32>
    %382 = arith.truncf %381 : vector<16x1024xf32> to vector<16x1024xbf16>
    %c48_193 = arith.constant 48 : index
    %c0_194 = arith.constant 0 : index
    %383 = vector.load %arg8[%c48_193, %c0_194] : memref<224x1024xbf16, #tpu.memory_space<vmem>>, vector<16x1024xbf16>
    tpu.vector_store %arg8[%c48_193, %c0_194], %382 {strides = array<i32>} : memref<224x1024xbf16, #tpu.memory_space<vmem>>, vector<16x1024xbf16>,
    %c0_195 = arith.constant 0 : index
    %c73_196 = arith.constant 73 : index
    %384 = vector.load %arg7[%c0_195, %c73_196] : memref<8x1280xf32, #tpu.memory_space<vmem>>, vector<8x1024xf32>
    %c8_197 = arith.constant 8 : index
    %c0_198 = arith.constant 0 : index
    %385 = vector.load %arg5[%c8_197, %c0_198] : memref<27x1024xf32, #tpu.memory_space<vmem>>, vector<1x1024xf32>
    %386 = vector.broadcast %385 : vector<1x1024xf32> to vector<8x1024xf32>
    %387 = arith.mulf %384, %386 : vector<8x1024xf32>
    %c0_199 = arith.constant 0 : index
    %c119_200 = arith.constant 119 : index
    %388 = vector.load %arg7[%c0_199, %c119_200] : memref<8x1280xf32, #tpu.memory_space<vmem>>, vector<8x1024xf32>
    %c9_201 = arith.constant 9 : index
    %c0_202 = arith.constant 0 : index
    %389 = vector.load %arg5[%c9_201, %c0_202] : memref<27x1024xf32, #tpu.memory_space<vmem>>, vector<1x1024xf32>
    %390 = vector.broadcast %389 : vector<1x1024xf32> to vector<8x1024xf32>
    %391 = arith.mulf %388, %390 : vector<8x1024xf32>
    %392 = tpu.concatenate %387, %391 in 0 : vector<8x1024xf32>, vector<8x1024xf32> -> vector<16x1024xf32>
    %393 = arith.truncf %392 : vector<16x1024xf32> to vector<16x1024xbf16>
    %c64_203 = arith.constant 64 : index
    %c0_204 = arith.constant 0 : index
    %394 = vector.load %arg8[%c64_203, %c0_204] : memref<224x1024xbf16, #tpu.memory_space<vmem>>, vector<16x1024xbf16>
    tpu.vector_store %arg8[%c64_203, %c0_204], %393 {strides = array<i32>} : memref<224x1024xbf16, #tpu.memory_space<vmem>>, vector<16x1024xbf16>,
    %c0_205 = arith.constant 0 : index
    %c120_206 = arith.constant 120 : index
    %395 = vector.load %arg7[%c0_205, %c120_206] : memref<8x1280xf32, #tpu.memory_space<vmem>>, vector<8x1024xf32>
    %c10_207 = arith.constant 10 : index
    %c0_208 = arith.constant 0 : index
    %396 = vector.load %arg5[%c10_207, %c0_208] : memref<27x1024xf32, #tpu.memory_space<vmem>>, vector<1x1024xf32>
    %397 = vector.broadcast %396 : vector<1x1024xf32> to vector<8x1024xf32>
    %398 = arith.mulf %395, %397 : vector<8x1024xf32>
    %c0_209 = arith.constant 0 : index
    %c121_210 = arith.constant 121 : index
    %399 = vector.load %arg7[%c0_209, %c121_210] : memref<8x1280xf32, #tpu.memory_space<vmem>>, vector<8x1024xf32>
    %c11_211 = arith.constant 11 : index
    %c0_212 = arith.constant 0 : index
    %400 = vector.load %arg5[%c11_211, %c0_212] : memref<27x1024xf32, #tpu.memory_space<vmem>>, vector<1x1024xf32>
    %401 = vector.broadcast %400 : vector<1x1024xf32> to vector<8x1024xf32>
    %402 = arith.mulf %399, %401 : vector<8x1024xf32>
    %403 = tpu.concatenate %398, %402 in 0 : vector<8x1024xf32>, vector<8x1024xf32> -> vector<16x1024xf32>
    %404 = arith.truncf %403 : vector<16x1024xf32> to vector<16x1024xbf16>
    %c80_213 = arith.constant 80 : index
    %c0_214 = arith.constant 0 : index
    %405 = vector.load %arg8[%c80_213, %c0_214] : memref<224x1024xbf16, #tpu.memory_space<vmem>>, vector<16x1024xbf16>
    tpu.vector_store %arg8[%c80_213, %c0_214], %404 {strides = array<i32>} : memref<224x1024xbf16, #tpu.memory_space<vmem>>, vector<16x1024xbf16>,
    %c0_215 = arith.constant 0 : index
    %c127_216 = arith.constant 127 : index
    %406 = vector.load %arg7[%c0_215, %c127_216] : memref<8x1280xf32, #tpu.memory_space<vmem>>, vector<8x1024xf32>
    %c12_217 = arith.constant 12 : index
    %c0_218 = arith.constant 0 : index
    %407 = vector.load %arg5[%c12_217, %c0_218] : memref<27x1024xf32, #tpu.memory_space<vmem>>, vector<1x1024xf32>
    %408 = vector.broadcast %407 : vector<1x1024xf32> to vector<8x1024xf32>
    %409 = arith.mulf %406, %408 : vector<8x1024xf32>
    %c0_219 = arith.constant 0 : index
    %c128_220 = arith.constant 128 : index
    %410 = vector.load %arg7[%c0_219, %c128_220] : memref<8x1280xf32, #tpu.memory_space<vmem>>, vector<8x1024xf32>
    %411 = tpu.concatenate %409, %410 in 0 : vector<8x1024xf32>, vector<8x1024xf32> -> vector<16x1024xf32>
    %412 = arith.truncf %411 : vector<16x1024xf32> to vector<16x1024xbf16>
    %c96_221 = arith.constant 96 : index
    %c0_222 = arith.constant 0 : index
    %413 = vector.load %arg8[%c96_221, %c0_222] : memref<224x1024xbf16, #tpu.memory_space<vmem>>, vector<16x1024xbf16>
    tpu.vector_store %arg8[%c96_221, %c0_222], %412 {strides = array<i32>} : memref<224x1024xbf16, #tpu.memory_space<vmem>>, vector<16x1024xbf16>,
    %c0_223 = arith.constant 0 : index
    %c129_224 = arith.constant 129 : index
    %414 = vector.load %arg7[%c0_223, %c129_224] : memref<8x1280xf32, #tpu.memory_space<vmem>>, vector<8x1024xf32>
    %c14_225 = arith.constant 14 : index
    %c0_226 = arith.constant 0 : index
    %415 = vector.load %arg5[%c14_225, %c0_226] : memref<27x1024xf32, #tpu.memory_space<vmem>>, vector<1x1024xf32>
    %416 = vector.broadcast %415 : vector<1x1024xf32> to vector<8x1024xf32>
    %417 = arith.mulf %414, %416 : vector<8x1024xf32>
    %c0_227 = arith.constant 0 : index
    %c135_228 = arith.constant 135 : index
    %418 = vector.load %arg7[%c0_227, %c135_228] : memref<8x1280xf32, #tpu.memory_space<vmem>>, vector<8x1024xf32>
    %c15_229 = arith.constant 15 : index
    %c0_230 = arith.constant 0 : index
    %419 = vector.load %arg5[%c15_229, %c0_230] : memref<27x1024xf32, #tpu.memory_space<vmem>>, vector<1x1024xf32>
    %420 = vector.broadcast %419 : vector<1x1024xf32> to vector<8x1024xf32>
    %421 = arith.mulf %418, %420 : vector<8x1024xf32>
    %422 = tpu.concatenate %417, %421 in 0 : vector<8x1024xf32>, vector<8x1024xf32> -> vector<16x1024xf32>
    %423 = arith.truncf %422 : vector<16x1024xf32> to vector<16x1024xbf16>
    %c112 = arith.constant 112 : index
    %c0_231 = arith.constant 0 : index
    %424 = vector.load %arg8[%c112, %c0_231] : memref<224x1024xbf16, #tpu.memory_space<vmem>>, vector<16x1024xbf16>
    tpu.vector_store %arg8[%c112, %c0_231], %423 {strides = array<i32>} : memref<224x1024xbf16, #tpu.memory_space<vmem>>, vector<16x1024xbf16>,
    %c0_232 = arith.constant 0 : index
    %c136_233 = arith.constant 136 : index
    %425 = vector.load %arg7[%c0_232, %c136_233] : memref<8x1280xf32, #tpu.memory_space<vmem>>, vector<8x1024xf32>
    %c16_234 = arith.constant 16 : index
    %c0_235 = arith.constant 0 : index
    %426 = vector.load %arg5[%c16_234, %c0_235] : memref<27x1024xf32, #tpu.memory_space<vmem>>, vector<1x1024xf32>
    %427 = vector.broadcast %426 : vector<1x1024xf32> to vector<8x1024xf32>
    %428 = arith.mulf %425, %427 : vector<8x1024xf32>
    %c0_236 = arith.constant 0 : index
    %c137_237 = arith.constant 137 : index
    %429 = vector.load %arg7[%c0_236, %c137_237] : memref<8x1280xf32, #tpu.memory_space<vmem>>, vector<8x1024xf32>
    %c17_238 = arith.constant 17 : index
    %c0_239 = arith.constant 0 : index
    %430 = vector.load %arg5[%c17_238, %c0_239] : memref<27x1024xf32, #tpu.memory_space<vmem>>, vector<1x1024xf32>
    %431 = vector.broadcast %430 : vector<1x1024xf32> to vector<8x1024xf32>
    %432 = arith.mulf %429, %431 : vector<8x1024xf32>
    %433 = tpu.concatenate %428, %432 in 0 : vector<8x1024xf32>, vector<8x1024xf32> -> vector<16x1024xf32>
    %434 = arith.truncf %433 : vector<16x1024xf32> to vector<16x1024xbf16>
    %c128_240 = arith.constant 128 : index
    %c0_241 = arith.constant 0 : index
    %435 = vector.load %arg8[%c128_240, %c0_241] : memref<224x1024xbf16, #tpu.memory_space<vmem>>, vector<16x1024xbf16>
    tpu.vector_store %arg8[%c128_240, %c0_241], %434 {strides = array<i32>} : memref<224x1024xbf16, #tpu.memory_space<vmem>>, vector<16x1024xbf16>,
    %c0_242 = arith.constant 0 : index
    %c183_243 = arith.constant 183 : index
    %436 = vector.load %arg7[%c0_242, %c183_243] : memref<8x1280xf32, #tpu.memory_space<vmem>>, vector<8x1024xf32>
    %c18_244 = arith.constant 18 : index
    %c0_245 = arith.constant 0 : index
    %437 = vector.load %arg5[%c18_244, %c0_245] : memref<27x1024xf32, #tpu.memory_space<vmem>>, vector<1x1024xf32>
    %438 = vector.broadcast %437 : vector<1x1024xf32> to vector<8x1024xf32>
    %439 = arith.mulf %436, %438 : vector<8x1024xf32>
    %c0_246 = arith.constant 0 : index
    %c184_247 = arith.constant 184 : index
    %440 = vector.load %arg7[%c0_246, %c184_247] : memref<8x1280xf32, #tpu.memory_space<vmem>>, vector<8x1024xf32>
    %c19_248 = arith.constant 19 : index
    %c0_249 = arith.constant 0 : index
    %441 = vector.load %arg5[%c19_248, %c0_249] : memref<27x1024xf32, #tpu.memory_space<vmem>>, vector<1x1024xf32>
    %442 = vector.broadcast %441 : vector<1x1024xf32> to vector<8x1024xf32>
    %443 = arith.mulf %440, %442 : vector<8x1024xf32>
    %444 = tpu.concatenate %439, %443 in 0 : vector<8x1024xf32>, vector<8x1024xf32> -> vector<16x1024xf32>
    %445 = arith.truncf %444 : vector<16x1024xf32> to vector<16x1024xbf16>
    %c144 = arith.constant 144 : index
    %c0_250 = arith.constant 0 : index
    %446 = vector.load %arg8[%c144, %c0_250] : memref<224x1024xbf16, #tpu.memory_space<vmem>>, vector<16x1024xbf16>
    tpu.vector_store %arg8[%c144, %c0_250], %445 {strides = array<i32>} : memref<224x1024xbf16, #tpu.memory_space<vmem>>, vector<16x1024xbf16>,
    %c0_251 = arith.constant 0 : index
    %c185_252 = arith.constant 185 : index
    %447 = vector.load %arg7[%c0_251, %c185_252] : memref<8x1280xf32, #tpu.memory_space<vmem>>, vector<8x1024xf32>
    %c20_253 = arith.constant 20 : index
    %c0_254 = arith.constant 0 : index
    %448 = vector.load %arg5[%c20_253, %c0_254] : memref<27x1024xf32, #tpu.memory_space<vmem>>, vector<1x1024xf32>
    %449 = vector.broadcast %448 : vector<1x1024xf32> to vector<8x1024xf32>
    %450 = arith.mulf %447, %449 : vector<8x1024xf32>
    %c0_255 = arith.constant 0 : index
    %c191_256 = arith.constant 191 : index
    %451 = vector.load %arg7[%c0_255, %c191_256] : memref<8x1280xf32, #tpu.memory_space<vmem>>, vector<8x1024xf32>
    %c21_257 = arith.constant 21 : index
    %c0_258 = arith.constant 0 : index
    %452 = vector.load %arg5[%c21_257, %c0_258] : memref<27x1024xf32, #tpu.memory_space<vmem>>, vector<1x1024xf32>
    %453 = vector.broadcast %452 : vector<1x1024xf32> to vector<8x1024xf32>
    %454 = arith.mulf %451, %453 : vector<8x1024xf32>
    %455 = tpu.concatenate %450, %454 in 0 : vector<8x1024xf32>, vector<8x1024xf32> -> vector<16x1024xf32>
    %456 = arith.truncf %455 : vector<16x1024xf32> to vector<16x1024xbf16>
    %c160 = arith.constant 160 : index
    %c0_259 = arith.constant 0 : index
    %457 = vector.load %arg8[%c160, %c0_259] : memref<224x1024xbf16, #tpu.memory_space<vmem>>, vector<16x1024xbf16>
    tpu.vector_store %arg8[%c160, %c0_259], %456 {strides = array<i32>} : memref<224x1024xbf16, #tpu.memory_space<vmem>>, vector<16x1024xbf16>,
    %c0_260 = arith.constant 0 : index
    %c192_261 = arith.constant 192 : index
    %458 = vector.load %arg7[%c0_260, %c192_261] : memref<8x1280xf32, #tpu.memory_space<vmem>>, vector<8x1024xf32>
    %c22_262 = arith.constant 22 : index
    %c0_263 = arith.constant 0 : index
    %459 = vector.load %arg5[%c22_262, %c0_263] : memref<27x1024xf32, #tpu.memory_space<vmem>>, vector<1x1024xf32>
    %460 = vector.broadcast %459 : vector<1x1024xf32> to vector<8x1024xf32>
    %461 = arith.mulf %458, %460 : vector<8x1024xf32>
    %c0_264 = arith.constant 0 : index
    %c193_265 = arith.constant 193 : index
    %462 = vector.load %arg7[%c0_264, %c193_265] : memref<8x1280xf32, #tpu.memory_space<vmem>>, vector<8x1024xf32>
    %c23_266 = arith.constant 23 : index
    %c0_267 = arith.constant 0 : index
    %463 = vector.load %arg5[%c23_266, %c0_267] : memref<27x1024xf32, #tpu.memory_space<vmem>>, vector<1x1024xf32>
    %464 = vector.broadcast %463 : vector<1x1024xf32> to vector<8x1024xf32>
    %465 = arith.mulf %462, %464 : vector<8x1024xf32>
    %466 = tpu.concatenate %461, %465 in 0 : vector<8x1024xf32>, vector<8x1024xf32> -> vector<16x1024xf32>
    %467 = arith.truncf %466 : vector<16x1024xf32> to vector<16x1024xbf16>
    %c176 = arith.constant 176 : index
    %c0_268 = arith.constant 0 : index
    %468 = vector.load %arg8[%c176, %c0_268] : memref<224x1024xbf16, #tpu.memory_space<vmem>>, vector<16x1024xbf16>
    tpu.vector_store %arg8[%c176, %c0_268], %467 {strides = array<i32>} : memref<224x1024xbf16, #tpu.memory_space<vmem>>, vector<16x1024xbf16>,
    %c0_269 = arith.constant 0 : index
    %c199_270 = arith.constant 199 : index
    %469 = vector.load %arg7[%c0_269, %c199_270] : memref<8x1280xf32, #tpu.memory_space<vmem>>, vector<8x1024xf32>
    %c24_271 = arith.constant 24 : index
    %c0_272 = arith.constant 0 : index
    %470 = vector.load %arg5[%c24_271, %c0_272] : memref<27x1024xf32, #tpu.memory_space<vmem>>, vector<1x1024xf32>
    %471 = vector.broadcast %470 : vector<1x1024xf32> to vector<8x1024xf32>
    %472 = arith.mulf %469, %471 : vector<8x1024xf32>
    %c0_273 = arith.constant 0 : index
    %c200_274 = arith.constant 200 : index
    %473 = vector.load %arg7[%c0_273, %c200_274] : memref<8x1280xf32, #tpu.memory_space<vmem>>, vector<8x1024xf32>
    %c25_275 = arith.constant 25 : index
    %c0_276 = arith.constant 0 : index
    %474 = vector.load %arg5[%c25_275, %c0_276] : memref<27x1024xf32, #tpu.memory_space<vmem>>, vector<1x1024xf32>
    %475 = vector.broadcast %474 : vector<1x1024xf32> to vector<8x1024xf32>
    %476 = arith.mulf %473, %475 : vector<8x1024xf32>
    %477 = tpu.concatenate %472, %476 in 0 : vector<8x1024xf32>, vector<8x1024xf32> -> vector<16x1024xf32>
    %478 = arith.truncf %477 : vector<16x1024xf32> to vector<16x1024xbf16>
    %c192_277 = arith.constant 192 : index
    %c0_278 = arith.constant 0 : index
    %479 = vector.load %arg8[%c192_277, %c0_278] : memref<224x1024xbf16, #tpu.memory_space<vmem>>, vector<16x1024xbf16>
    tpu.vector_store %arg8[%c192_277, %c0_278], %478 {strides = array<i32>} : memref<224x1024xbf16, #tpu.memory_space<vmem>>, vector<16x1024xbf16>,
    %c0_279 = arith.constant 0 : index
    %c201_280 = arith.constant 201 : index
    %480 = vector.load %arg7[%c0_279, %c201_280] : memref<8x1280xf32, #tpu.memory_space<vmem>>, vector<8x1024xf32>
    %c26_281 = arith.constant 26 : index
    %c0_282 = arith.constant 0 : index
    %481 = vector.load %arg5[%c26_281, %c0_282] : memref<27x1024xf32, #tpu.memory_space<vmem>>, vector<1x1024xf32>
    %482 = vector.broadcast %481 : vector<1x1024xf32> to vector<8x1024xf32>
    %483 = arith.mulf %480, %482 : vector<8x1024xf32>
    %484 = arith.truncf %483 : vector<8x1024xf32> to vector<8x1024xbf16>
    %c208 = arith.constant 208 : index
    %c0_283 = arith.constant 0 : index
    %485 = vector.load %arg8[%c208, %c0_283] : memref<224x1024xbf16, #tpu.memory_space<vmem>>, vector<8x1024xbf16>
    tpu.vector_store %arg8[%c208, %c0_283], %484 {strides = array<i32>} : memref<224x1024xbf16, #tpu.memory_space<vmem>>, vector<8x1024xbf16>,
    %cst_284 = arith.constant 1.000000e+00 : bf16
    %486 = vector.broadcast %cst_284 : bf16 to vector<8x1024xbf16>
    %c216 = arith.constant 216 : index
    %c0_285 = arith.constant 0 : index
    %487 = vector.load %arg8[%c216, %c0_285] : memref<224x1024xbf16, #tpu.memory_space<vmem>>, vector<8x1024xbf16>
    tpu.vector_store %arg8[%c216, %c0_285], %486 {strides = array<i32>} : memref<224x1024xbf16, #tpu.memory_space<vmem>>, vector<8x1024xbf16>,
    %c0_286 = arith.constant 0 : index
    %c0_287 = arith.constant 0 : index
    %488 = vector.load %arg3[%c0_286, %c0_287] : memref<8x224xbf16, #tpu.memory_space<vmem>>, vector<8x224xbf16>
    %c0_288 = arith.constant 0 : index
    %c0_289 = arith.constant 0 : index
    %489 = vector.load %arg8[%c0_288, %c0_289] : memref<224x1024xbf16, #tpu.memory_space<vmem>>, vector<224x1024xbf16>
    %cst_290 = arith.constant dense<0.000000e+00> : vector<8x1024xf32>
    %490 = tpu.matmul %488, %489, %cst_290 {dimension_numbers = #tpu.dot_dimension_numbers<[1], [0], [0], [1], [0, 0, 1, 1], [], []>} : vector<8x224xbf16>, vector<224x1024xbf16>, vector<8x1024xf32> -> vector<8x1024xf32>
    %491 = vector.extract_strided_slice %490 {offsets = [0, 0], sizes = [8, 512], strides = [1, 1]} : vector<8x1024xf32> to vector<8x512xf32>
    %c0_291 = arith.constant 0 : index
    %c2_292 = arith.constant 2 : index
    %492 = vector.load %arg4[%c0_291, %c2_292] : memref<8x4xf32, #tpu.memory_space<vmem>>, vector<8x1xf32>
    %c0_293 = arith.constant 0 : index
    %c3_294 = arith.constant 3 : index
    %493 = vector.load %arg4[%c0_293, %c3_294] : memref<8x4xf32, #tpu.memory_space<vmem>>, vector<8x1xf32>
    %cst_295 = arith.constant dense<0.000000e+00> : vector<8xf32>
    %494 = vector.multi_reduction <add>, %491, %cst_295 [1] : vector<8x512xf32> to vector<8xf32>
    %495 = vector.shape_cast %494 : vector<8xf32> to vector<8x1xf32>
    %496 = arith.mulf %491, %491 : vector<8x512xf32>
    %cst_296 = arith.constant dense<0.000000e+00> : vector<8xf32>
    %497 = vector.multi_reduction <add>, %496, %cst_296 [1] : vector<8x512xf32> to vector<8xf32>
    %498 = vector.shape_cast %497 : vector<8xf32> to vector<8x1xf32>
    %499 = tpu.iota {dimensions = array<i32: 0>} : vector<8x1xi32>
    %cst_297 = arith.constant 0.000000e+00 : f32
    %500 = vector.broadcast %cst_297 : f32 to vector<8x1xf32>
    %cst_298 = arith.constant 0.000000e+00 : f32
    %501 = vector.broadcast %cst_298 : f32 to vector<8x1xf32>
    %502 = vector.extract_strided_slice %495 {offsets = [0, 0], sizes = [4, 1], strides = [1, 1]} : vector<8x1xf32> to vector<4x1xf32>
    %503 = vector.shape_cast %502 : vector<4x1xf32> to vector<1x4x1xf32>
    %cst_299 = arith.constant dense<0.000000e+00> : vector<1xf32>
    %504 = vector.multi_reduction <add>, %503, %cst_299 [1, 2] : vector<1x4x1xf32> to vector<1xf32>
    %505 = vector.shape_cast %504 : vector<1xf32> to vector<1x1x1xf32>
    %506 = vector.extract %505[0, 0, 0] : f32 from vector<1x1x1xf32>
    %507 = vector.broadcast %506 : f32 to vector<1x1xf32>
    %cst_300 = arith.constant 4.8828125E-4 : f32
    %508 = vector.broadcast %cst_300 : f32 to vector<1x1xf32>
    %509 = arith.mulf %507, %508 : vector<1x1xf32>
    %510 = vector.extract_strided_slice %498 {offsets = [0, 0], sizes = [4, 1], strides = [1, 1]} : vector<8x1xf32> to vector<4x1xf32>
    %511 = vector.shape_cast %510 : vector<4x1xf32> to vector<1x4x1xf32>
    %cst_301 = arith.constant dense<0.000000e+00> : vector<1xf32>
    %512 = vector.multi_reduction <add>, %511, %cst_301 [1, 2] : vector<1x4x1xf32> to vector<1xf32>
    %513 = vector.shape_cast %512 : vector<1xf32> to vector<1x1x1xf32>
    %514 = vector.extract %513[0, 0, 0] : f32 from vector<1x1x1xf32>
    %515 = vector.broadcast %514 : f32 to vector<1x1xf32>
    %cst_302 = arith.constant 4.8828125E-4 : f32
    %516 = vector.broadcast %cst_302 : f32 to vector<1x1xf32>
    %517 = arith.mulf %515, %516 : vector<1x1xf32>
    %518 = arith.mulf %509, %509 : vector<1x1xf32>
    %519 = arith.subf %517, %518 : vector<1x1xf32>
    %c0_i32_303 = arith.constant 0 : i32
    %520 = vector.broadcast %c0_i32_303 : i32 to vector<8x1xi32>
    %521 = arith.cmpi sge, %499, %520 : vector<8x1xi32>
    %c4_i32_304 = arith.constant 4 : i32
    %522 = vector.broadcast %c4_i32_304 : i32 to vector<8x1xi32>
    %523 = arith.cmpi slt, %499, %522 : vector<8x1xi32>
    %524 = arith.andi %521, %523 : vector<8x1xi1>
    %525 = vector.shape_cast %509 : vector<1x1xf32> to vector<1x1xf32>
    %526 = vector.broadcast %525 : vector<1x1xf32> to vector<8x1xf32>
    %527 = arith.select %524, %526, %500 : vector<8x1xi1>, vector<8x1xf32>
    %528 = vector.shape_cast %519 : vector<1x1xf32> to vector<1x1xf32>
    %529 = vector.broadcast %528 : vector<1x1xf32> to vector<8x1xf32>
    %530 = arith.select %524, %529, %501 : vector<8x1xi1>, vector<8x1xf32>
    %531 = vector.extract_strided_slice %495 {offsets = [4, 0], sizes = [4, 1], strides = [1, 1]} : vector<8x1xf32> to vector<4x1xf32>
    %532 = vector.shape_cast %531 : vector<4x1xf32> to vector<1x4x1xf32>
    %cst_305 = arith.constant dense<0.000000e+00> : vector<1xf32>
    %533 = vector.multi_reduction <add>, %532, %cst_305 [1, 2] : vector<1x4x1xf32> to vector<1xf32>
    %534 = vector.shape_cast %533 : vector<1xf32> to vector<1x1x1xf32>
    %535 = vector.extract %534[0, 0, 0] : f32 from vector<1x1x1xf32>
    %536 = vector.broadcast %535 : f32 to vector<1x1xf32>
    %cst_306 = arith.constant 4.8828125E-4 : f32
    %537 = vector.broadcast %cst_306 : f32 to vector<1x1xf32>
    %538 = arith.mulf %536, %537 : vector<1x1xf32>
    %539 = vector.extract_strided_slice %498 {offsets = [4, 0], sizes = [4, 1], strides = [1, 1]} : vector<8x1xf32> to vector<4x1xf32>
    %540 = vector.shape_cast %539 : vector<4x1xf32> to vector<1x4x1xf32>
    %cst_307 = arith.constant dense<0.000000e+00> : vector<1xf32>
    %541 = vector.multi_reduction <add>, %540, %cst_307 [1, 2] : vector<1x4x1xf32> to vector<1xf32>
    %542 = vector.shape_cast %541 : vector<1xf32> to vector<1x1x1xf32>
    %543 = vector.extract %542[0, 0, 0] : f32 from vector<1x1x1xf32>
    %544 = vector.broadcast %543 : f32 to vector<1x1xf32>
    %cst_308 = arith.constant 4.8828125E-4 : f32
    %545 = vector.broadcast %cst_308 : f32 to vector<1x1xf32>
    %546 = arith.mulf %544, %545 : vector<1x1xf32>
    %547 = arith.mulf %538, %538 : vector<1x1xf32>
    %548 = arith.subf %546, %547 : vector<1x1xf32>
    %c4_i32_309 = arith.constant 4 : i32
    %549 = vector.broadcast %c4_i32_309 : i32 to vector<8x1xi32>
    %550 = arith.cmpi sge, %499, %549 : vector<8x1xi32>
    %c8_i32_310 = arith.constant 8 : i32
    %551 = vector.broadcast %c8_i32_310 : i32 to vector<8x1xi32>
    %552 = arith.cmpi slt, %499, %551 : vector<8x1xi32>
    %553 = arith.andi %550, %552 : vector<8x1xi1>
    %554 = vector.shape_cast %538 : vector<1x1xf32> to vector<1x1xf32>
    %555 = vector.broadcast %554 : vector<1x1xf32> to vector<8x1xf32>
    %556 = arith.select %553, %555, %527 : vector<8x1xi1>, vector<8x1xf32>
    %557 = vector.shape_cast %548 : vector<1x1xf32> to vector<1x1xf32>
    %558 = vector.broadcast %557 : vector<1x1xf32> to vector<8x1xf32>
    %559 = arith.select %553, %558, %530 : vector<8x1xi1>, vector<8x1xf32>
    %560 = vector.broadcast %556 : vector<8x1xf32> to vector<8x512xf32>
    %561 = arith.subf %491, %560 : vector<8x512xf32>
    %cst_311 = arith.constant 9.99999974E-6 : f32
    %562 = vector.broadcast %cst_311 : f32 to vector<8x1xf32>
    %563 = arith.addf %559, %562 : vector<8x1xf32>
    %564 = math.rsqrt %563 : vector<8x1xf32>
    %565 = vector.broadcast %564 : vector<8x1xf32> to vector<8x512xf32>
    %566 = arith.mulf %561, %565 : vector<8x512xf32>
    %567 = vector.broadcast %492 : vector<8x1xf32> to vector<8x512xf32>
    %568 = arith.mulf %566, %567 : vector<8x512xf32>
    %569 = vector.broadcast %493 : vector<8x1xf32> to vector<8x512xf32>
    %570 = arith.addf %568, %569 : vector<8x512xf32>
    %cst_312 = arith.constant 0.000000e+00 : f32
    %571 = vector.broadcast %cst_312 : f32 to vector<8x512xf32>
    %572 = arith.maximumf %570, %571 : vector<8x512xf32>
    %c0_313 = arith.constant 0 : index
    %c0_314 = arith.constant 0 : index
    %c0_315 = arith.constant 0 : index
    %573 = vector.load %arg6[%c0_313, %c0_314, %c0_315] : memref<2x8x512xf32, #tpu.memory_space<vmem>>, vector<1x8x512xf32>
    %574 = vector.shape_cast %573 : vector<1x8x512xf32> to vector<8x512xf32>
    %575 = vector.shape_cast %572 : vector<8x512xf32> to vector<1x8x512xf32>
    tpu.vector_store %arg6[%c0_313, %c0_314, %c0_315], %575 {strides = array<i32>} : memref<2x8x512xf32, #tpu.memory_space<vmem>>, vector<1x8x512xf32>,
    %576 = vector.extract_strided_slice %490 {offsets = [0, 512], sizes = [8, 512], strides = [1, 1]} : vector<8x1024xf32> to vector<8x512xf32>
    %c0_316 = arith.constant 0 : index
    %c2_317 = arith.constant 2 : index
    %577 = vector.load %arg4[%c0_316, %c2_317] : memref<8x4xf32, #tpu.memory_space<vmem>>, vector<8x1xf32>
    %c0_318 = arith.constant 0 : index
    %c3_319 = arith.constant 3 : index
    %578 = vector.load %arg4[%c0_318, %c3_319] : memref<8x4xf32, #tpu.memory_space<vmem>>, vector<8x1xf32>
    %cst_320 = arith.constant dense<0.000000e+00> : vector<8xf32>
    %579 = vector.multi_reduction <add>, %576, %cst_320 [1] : vector<8x512xf32> to vector<8xf32>
    %580 = vector.shape_cast %579 : vector<8xf32> to vector<8x1xf32>
    %581 = arith.mulf %576, %576 : vector<8x512xf32>
    %cst_321 = arith.constant dense<0.000000e+00> : vector<8xf32>
    %582 = vector.multi_reduction <add>, %581, %cst_321 [1] : vector<8x512xf32> to vector<8xf32>
    %583 = vector.shape_cast %582 : vector<8xf32> to vector<8x1xf32>
    %584 = tpu.iota {dimensions = array<i32: 0>} : vector<8x1xi32>
    %cst_322 = arith.constant 0.000000e+00 : f32
    %585 = vector.broadcast %cst_322 : f32 to vector<8x1xf32>
    %cst_323 = arith.constant 0.000000e+00 : f32
    %586 = vector.broadcast %cst_323 : f32 to vector<8x1xf32>
    %587 = vector.extract_strided_slice %580 {offsets = [0, 0], sizes = [4, 1], strides = [1, 1]} : vector<8x1xf32> to vector<4x1xf32>
    %588 = vector.shape_cast %587 : vector<4x1xf32> to vector<1x4x1xf32>
    %cst_324 = arith.constant dense<0.000000e+00> : vector<1xf32>
    %589 = vector.multi_reduction <add>, %588, %cst_324 [1, 2] : vector<1x4x1xf32> to vector<1xf32>
    %590 = vector.shape_cast %589 : vector<1xf32> to vector<1x1x1xf32>
    %591 = vector.extract %590[0, 0, 0] : f32 from vector<1x1x1xf32>
    %592 = vector.broadcast %591 : f32 to vector<1x1xf32>
    %cst_325 = arith.constant 4.8828125E-4 : f32
    %593 = vector.broadcast %cst_325 : f32 to vector<1x1xf32>
    %594 = arith.mulf %592, %593 : vector<1x1xf32>
    %595 = vector.extract_strided_slice %583 {offsets = [0, 0], sizes = [4, 1], strides = [1, 1]} : vector<8x1xf32> to vector<4x1xf32>
    %596 = vector.shape_cast %595 : vector<4x1xf32> to vector<1x4x1xf32>
    %cst_326 = arith.constant dense<0.000000e+00> : vector<1xf32>
    %597 = vector.multi_reduction <add>, %596, %cst_326 [1, 2] : vector<1x4x1xf32> to vector<1xf32>
    %598 = vector.shape_cast %597 : vector<1xf32> to vector<1x1x1xf32>
    %599 = vector.extract %598[0, 0, 0] : f32 from vector<1x1x1xf32>
    %600 = vector.broadcast %599 : f32 to vector<1x1xf32>
    %cst_327 = arith.constant 4.8828125E-4 : f32
    %601 = vector.broadcast %cst_327 : f32 to vector<1x1xf32>
    %602 = arith.mulf %600, %601 : vector<1x1xf32>
    %603 = arith.mulf %594, %594 : vector<1x1xf32>
    %604 = arith.subf %602, %603 : vector<1x1xf32>
    %c0_i32_328 = arith.constant 0 : i32
    %605 = vector.broadcast %c0_i32_328 : i32 to vector<8x1xi32>
    %606 = arith.cmpi sge, %584, %605 : vector<8x1xi32>
    %c4_i32_329 = arith.constant 4 : i32
    %607 = vector.broadcast %c4_i32_329 : i32 to vector<8x1xi32>
    %608 = arith.cmpi slt, %584, %607 : vector<8x1xi32>
    %609 = arith.andi %606, %608 : vector<8x1xi1>
    %610 = vector.shape_cast %594 : vector<1x1xf32> to vector<1x1xf32>
    %611 = vector.broadcast %610 : vector<1x1xf32> to vector<8x1xf32>
    %612 = arith.select %609, %611, %585 : vector<8x1xi1>, vector<8x1xf32>
    %613 = vector.shape_cast %604 : vector<1x1xf32> to vector<1x1xf32>
    %614 = vector.broadcast %613 : vector<1x1xf32> to vector<8x1xf32>
    %615 = arith.select %609, %614, %586 : vector<8x1xi1>, vector<8x1xf32>
    %616 = vector.extract_strided_slice %580 {offsets = [4, 0], sizes = [4, 1], strides = [1, 1]} : vector<8x1xf32> to vector<4x1xf32>
    %617 = vector.shape_cast %616 : vector<4x1xf32> to vector<1x4x1xf32>
    %cst_330 = arith.constant dense<0.000000e+00> : vector<1xf32>
    %618 = vector.multi_reduction <add>, %617, %cst_330 [1, 2] : vector<1x4x1xf32> to vector<1xf32>
    %619 = vector.shape_cast %618 : vector<1xf32> to vector<1x1x1xf32>
    %620 = vector.extract %619[0, 0, 0] : f32 from vector<1x1x1xf32>
    %621 = vector.broadcast %620 : f32 to vector<1x1xf32>
    %cst_331 = arith.constant 4.8828125E-4 : f32
    %622 = vector.broadcast %cst_331 : f32 to vector<1x1xf32>
    %623 = arith.mulf %621, %622 : vector<1x1xf32>
    %624 = vector.extract_strided_slice %583 {offsets = [4, 0], sizes = [4, 1], strides = [1, 1]} : vector<8x1xf32> to vector<4x1xf32>
    %625 = vector.shape_cast %624 : vector<4x1xf32> to vector<1x4x1xf32>
    %cst_332 = arith.constant dense<0.000000e+00> : vector<1xf32>
    %626 = vector.multi_reduction <add>, %625, %cst_332 [1, 2] : vector<1x4x1xf32> to vector<1xf32>
    %627 = vector.shape_cast %626 : vector<1xf32> to vector<1x1x1xf32>
    %628 = vector.extract %627[0, 0, 0] : f32 from vector<1x1x1xf32>
    %629 = vector.broadcast %628 : f32 to vector<1x1xf32>
    %cst_333 = arith.constant 4.8828125E-4 : f32
    %630 = vector.broadcast %cst_333 : f32 to vector<1x1xf32>
    %631 = arith.mulf %629, %630 : vector<1x1xf32>
    %632 = arith.mulf %623, %623 : vector<1x1xf32>
    %633 = arith.subf %631, %632 : vector<1x1xf32>
    %c4_i32_334 = arith.constant 4 : i32
    %634 = vector.broadcast %c4_i32_334 : i32 to vector<8x1xi32>
    %635 = arith.cmpi sge, %584, %634 : vector<8x1xi32>
    %c8_i32_335 = arith.constant 8 : i32
    %636 = vector.broadcast %c8_i32_335 : i32 to vector<8x1xi32>
    %637 = arith.cmpi slt, %584, %636 : vector<8x1xi32>
    %638 = arith.andi %635, %637 : vector<8x1xi1>
    %639 = vector.shape_cast %623 : vector<1x1xf32> to vector<1x1xf32>
    %640 = vector.broadcast %639 : vector<1x1xf32> to vector<8x1xf32>
    %641 = arith.select %638, %640, %612 : vector<8x1xi1>, vector<8x1xf32>
    %642 = vector.shape_cast %633 : vector<1x1xf32> to vector<1x1xf32>
    %643 = vector.broadcast %642 : vector<1x1xf32> to vector<8x1xf32>
    %644 = arith.select %638, %643, %615 : vector<8x1xi1>, vector<8x1xf32>
    %645 = vector.broadcast %641 : vector<8x1xf32> to vector<8x512xf32>
    %646 = arith.subf %576, %645 : vector<8x512xf32>
    %cst_336 = arith.constant 9.99999974E-6 : f32
    %647 = vector.broadcast %cst_336 : f32 to vector<8x1xf32>
    %648 = arith.addf %644, %647 : vector<8x1xf32>
    %649 = math.rsqrt %648 : vector<8x1xf32>
    %650 = vector.broadcast %649 : vector<8x1xf32> to vector<8x512xf32>
    %651 = arith.mulf %646, %650 : vector<8x512xf32>
    %652 = vector.broadcast %577 : vector<8x1xf32> to vector<8x512xf32>
    %653 = arith.mulf %651, %652 : vector<8x512xf32>
    %654 = vector.broadcast %578 : vector<8x1xf32> to vector<8x512xf32>
    %655 = arith.addf %653, %654 : vector<8x512xf32>
    %cst_337 = arith.constant 0.000000e+00 : f32
    %656 = vector.broadcast %cst_337 : f32 to vector<8x512xf32>
    %657 = arith.maximumf %655, %656 : vector<8x512xf32>
    %c1_338 = arith.constant 1 : index
    %c0_339 = arith.constant 0 : index
    %c0_340 = arith.constant 0 : index
    %658 = vector.load %arg6[%c1_338, %c0_339, %c0_340] : memref<2x8x512xf32, #tpu.memory_space<vmem>>, vector<1x8x512xf32>
    %659 = vector.shape_cast %658 : vector<1x8x512xf32> to vector<8x512xf32>
    %660 = vector.shape_cast %657 : vector<8x512xf32> to vector<1x8x512xf32>
    tpu.vector_store %arg6[%c1_338, %c0_339, %c0_340], %660 {strides = array<i32>} : memref<2x8x512xf32, #tpu.memory_space<vmem>>, vector<1x8x512xf32>,
    return
  }
  func.func @transform_0(%arg0: i32) -> (i32, i32, i32) {
    %c0_i32 = arith.constant 0 : i32
    %c0_i32_0 = arith.constant 0 : i32
    %c0_i32_1 = arith.constant 0 : i32
    return %arg0, %c0_i32, %c0_i32_0 : i32, i32, i32
  }
  func.func @transform_1(%arg0: i32) -> (i32, i32) {
    %c0_i32 = arith.constant 0 : i32
    %c0_i32_0 = arith.constant 0 : i32
    %c0_i32_1 = arith.constant 0 : i32
    return %c0_i32, %c0_i32_0 : i32, i32
  }
  func.func @transform_2(%arg0: i32) -> (i32, i32) {
    %c0_i32 = arith.constant 0 : i32
    %c0_i32_0 = arith.constant 0 : i32
    %c0_i32_1 = arith.constant 0 : i32
    return %c0_i32, %c0_i32_0 : i32, i32
  }
  func.func @transform_3(%arg0: i32) -> (i32, i32) {
    %c0_i32 = arith.constant 0 : i32
    %c0_i32_0 = arith.constant 0 : i32
    %c0_i32_1 = arith.constant 0 : i32
    return %c0_i32, %c0_i32_0 : i32, i32
  }
  func.func @transform_4(%arg0: i32) -> (i32, i32) {
    %c0_i32 = arith.constant 0 : i32
    %c0_i32_0 = arith.constant 0 : i32
    %c0_i32_1 = arith.constant 0 : i32
    return %c0_i32, %c0_i32_0 : i32, i32
  }
  func.func @transform_5(%arg0: i32) -> (i32, i32, i32) {
    %c0_i32 = arith.constant 0 : i32
    %c0_i32_0 = arith.constant 0 : i32
    %c0_i32_1 = arith.constant 0 : i32
    return %arg0, %c0_i32, %c0_i32_0 : i32, i32, i32
  }
}

</mosaic_0001>

<llo_original>
// kernel: tpu_custom_call.1
$region0: #{tpu_custom_call.1}
  #allocation0 [shape = 'u32[]', space=smem, size = 0x4, offset = 0x4, fixed_abs, tag = 'smem constant byte address 0x4 - core index']
  #allocation1 [shape = 'u32[72,128]{1,0:T(1,128)}', space=vmem, size = 0x9000, scoped, tag = 'internal scratch']
  #allocation2 [shape = 'f32[8,1280]{1,0:T(8,128)}', space=vmem, size = 0xa000, scoped, tag = 'scratch operand']
  #allocation3 [shape = 'bf16[224,1024]{1,0:T(8,128)(2,1)}', space=vmem, size = 0x70000, scoped, tag = 'scratch operand']
  %s0 = inlined_call_operand.hbm [shape: f32[4,4,512], index: 0, kind: input, shape index: {}]
  %s1 = inlined_call_operand.vmem [shape: bf16[8,112], index: 1, kind: input, shape index: {}]
  %s2 = inlined_call_operand.vmem [shape: bf16[8,224], index: 2, kind: input, shape index: {}]
  %s3 = inlined_call_operand.vmem [shape: f32[8,4], index: 3, kind: input, shape index: {}]
  %s4 = inlined_call_operand.hbm [shape: f32[27,1024], index: 4, kind: input, shape index: {}]
  %s5 = inlined_call_operand.hbm [shape: f32[4,8,512], index: 5, kind: output, shape index: {}]
  %s6 = sld [smem:[#allocation0]]
  $region61: #{tpu_custom_call.1} parent=0
    _
  %s8 = ssub.s32 1, %s6
  %s9 = scalar_select 0, %s8, %s6
  $region1: #{tpu_custom_call.1} parent=0
    #allocation4 [shape = 'u8[32768]{0}', space=vmem, size = 0x8000, scoped, tag = 'input window, operand 0']
    #allocation5 [shape = 's32[2]{0}', space=sflag, size = 0x8, scoped, tag = 'scoped memory for tpu_custom_call.1']
    #allocation6 [shape = 's32[2]{0}', space=sflag, size = 0x8, scoped, tag = 'scoped memory for tpu_custom_call.1']
    #allocation7 [shape = 'u8[131072]{0}', space=vmem, size = 0x20000, scoped, tag = 'input window, operand 4, single buffered']
    #allocation8 [shape = 's32[1]{0}', space=sflag, size = 0x4, scoped, tag = 'scoped memory for tpu_custom_call.1']
    #allocation9 [shape = 'u8[65536]{0}', space=vmem, size = 0x10000, scoped, tag = 'output window, operand 0']
    %10 = vsyncpa [#allocation5], 0
    %s11 = scalar_lea.sflag [#allocation5], 1
    %12 = vsyncpa %s11, 0
    %13 = vsyncpa [#allocation8], 0
    %14 = vsyncpa [#allocation6], 0
    %s15 = scalar_lea.sflag [#allocation6], 1
    %16 = vsyncpa %s15, 0
    loop: start=0, step=1, limit=4
    $region2: #{tpu_custom_call.1} parent=1 // loop_pre_header
      _
    $region3: #{tpu_custom_call.1} parent=1 // loop_header
      %s18 = sphi 0, %s22
      %p19 = scmp.ge.s32.totalorder %s18, 4
      %s28 = sphi 0, %s30
      %s31 = sphi 0, %s28
      %s32 = sphi 0, %s31
      %s48 = sphi 0, %s32
      %s52 = sphi 0, %s52
      %s54 = sphi 0, %s52
      %s55 = sphi 0, %s54
      %s69 = sphi 0, %s55
      %s73 = sphi 0, %s73
      %s75 = sphi 0, %s73
      %s76 = sphi 0, %s75
      %s90 = sphi 0, %s76
      %s94 = sphi 0, %s94
      %s96 = sphi 0, %s94
      %s97 = sphi 0, %s96
      %s111 = sphi 0, %s97
      %s115 = sphi 0, %s115
      %s117 = sphi 0, %s115
      %s118 = sphi 0, %s117
      %s132 = sphi 0, %s118
      %s138 = sphi 0, %s140
      %s141 = sphi 0, %s138
      %s142 = sphi 0, %s141
      %s158 = sphi 0, %s142
    $region4: #{tpu_custom_call.1} parent=1 // loop_header_branch
      %21 = sbr.rel (%p19) target = $region8
    $region5: #{tpu_custom_call.1} parent=1 // loop_body
      %s23 = ssub.s32 %s18, 1
      %s24 = ssub.s32 %s18, 2
      %s25 = sadd.s32 %s18, 1
      %s26 = ssub.s32 %s18, %s25
      %p27 = scmp.eq.s32.totalorder %s26, 0
      %s29 = sadd.s32 %s28, 1
      %s30 = scalar_select %p27, %s28, %s29
      %p33 = pneg %p27
      %p34 = scmp.eq.s32.totalorder %s18, 1
      %p35 = por %p33, %p34
      %p36 = scmp.ne.s32.totalorder %s28, %s31
      %p37 = scmp.eq.s32.totalorder %s18, 0
      %p38 = por %p36, %p37
      %p39 = scmp.ne.s32.totalorder %s28, %s31
      %p40 = scmp.eq.s32.totalorder %s23, 1
      %p41 = por %p39, %p40
      %p42 = scmp.ne.s32.totalorder %s31, %s32
      %p43 = scmp.eq.s32.totalorder %s23, 0
      %p44 = por %p42, %p43
      %p45 = scmp.ne.s32.totalorder %s31, %s32
      %p46 = scmp.eq.s32.totalorder %s24, 1
      %p47 = por %p45, %p46
      %p49 = scmp.ne.s32.totalorder %s32, %s48
      %p50 = scmp.eq.s32.totalorder %s24, 0
      %p51 = por %p49, %p50
      %s53 = sadd.s32 %s52, 1
      %p56 = scmp.eq.s32.totalorder %s18, 1
      %p57 = scmp.ne.s32.totalorder %s52, %s54
      %p58 = scmp.eq.s32.totalorder %s18, 0
      %p59 = por %p57, %p58
      %p60 = scmp.ne.s32.totalorder %s52, %s54
      %p61 = scmp.eq.s32.totalorder %s23, 1
      %p62 = por %p60, %p61
      %p63 = scmp.ne.s32.totalorder %s54, %s55
      %p64 = scmp.eq.s32.totalorder %s23, 0
      %p65 = por %p63, %p64
      %p66 = scmp.ne.s32.totalorder %s54, %s55
      %p67 = scmp.eq.s32.totalorder %s24, 1
      %p68 = por %p66, %p67
      %p70 = scmp.ne.s32.totalorder %s55, %s69
      %p71 = scmp.eq.s32.totalorder %s24, 0
      %p72 = por %p70, %p71
      %s74 = sadd.s32 %s73, 1
      %p77 = scmp.eq.s32.totalorder %s18, 1
      %p78 = scmp.ne.s32.totalorder %s73, %s75
      %p79 = scmp.eq.s32.totalorder %s18, 0
      %p80 = por %p78, %p79
      %p81 = scmp.ne.s32.totalorder %s73, %s75
      %p82 = scmp.eq.s32.totalorder %s23, 1
      %p83 = por %p81, %p82
      %p84 = scmp.ne.s32.totalorder %s75, %s76
      %p85 = scmp.eq.s32.totalorder %s23, 0
      %p86 = por %p84, %p85
      %p87 = scmp.ne.s32.totalorder %s75, %s76
      %p88 = scmp.eq.s32.totalorder %s24, 1
      %p89 = por %p87, %p88
      %p91 = scmp.ne.s32.totalorder %s76, %s90
      %p92 = scmp.eq.s32.totalorder %s24, 0
      %p93 = por %p91, %p92
      %s95 = sadd.s32 %s94, 1
      %p98 = scmp.eq.s32.totalorder %s18, 1
      %p99 = scmp.ne.s32.totalorder %s94, %s96
      %p100 = scmp.eq.s32.totalorder %s18, 0
      %p101 = por %p99, %p100
      %p102 = scmp.ne.s32.totalorder %s94, %s96
      %p103 = scmp.eq.s32.totalorder %s23, 1
      %p104 = por %p102, %p103
      %p105 = scmp.ne.s32.totalorder %s96, %s97
      %p106 = scmp.eq.s32.totalorder %s23, 0
      %p107 = por %p105, %p106
      %p108 = scmp.ne.s32.totalorder %s96, %s97
      %p109 = scmp.eq.s32.totalorder %s24, 1
      %p110 = por %p108, %p109
      %p112 = scmp.ne.s32.totalorder %s97, %s111
      %p113 = scmp.eq.s32.totalorder %s24, 0
      %p114 = por %p112, %p113
      %s116 = sadd.s32 %s115, 1
      %p119 = scmp.eq.s32.totalorder %s18, 1
      %p120 = scmp.ne.s32.totalorder %s115, %s117
      %p121 = scmp.eq.s32.totalorder %s18, 0
      %p122 = por %p120, %p121
      %p123 = scmp.ne.s32.totalorder %s115, %s117
      %p124 = scmp.eq.s32.totalorder %s23, 1
      %p125 = por %p123, %p124
      %p126 = scmp.ne.s32.totalorder %s117, %s118
      %p127 = scmp.eq.s32.totalorder %s23, 0
      %p128 = por %p126, %p127
      %p129 = scmp.ne.s32.totalorder %s117, %s118
      %p130 = scmp.eq.s32.totalorder %s24, 1
      %p131 = por %p129, %p130
      %p133 = scmp.ne.s32.totalorder %s118, %s132
      %p134 = scmp.eq.s32.totalorder %s24, 0
      %p135 = por %p133, %p134
      %s136 = ssub.s32 %s18, %s25
      %p137 = scmp.eq.s32.totalorder %s136, 0
      %s139 = sadd.s32 %s138, 1
      %s140 = scalar_select %p137, %s138, %s139
      %p143 = pneg %p137
      %p144 = scmp.eq.s32.totalorder %s18, 1
      %p145 = por %p143, %p144
      %p146 = scmp.ne.s32.totalorder %s138, %s141
      %p147 = scmp.eq.s32.totalorder %s18, 0
      %p148 = por %p146, %p147
      %p149 = scmp.ne.s32.totalorder %s138, %s141
      %p150 = scmp.eq.s32.totalorder %s23, 1
      %p151 = por %p149, %p150
      %p152 = scmp.ne.s32.totalorder %s141, %s142
      %p153 = scmp.eq.s32.totalorder %s23, 0
      %p154 = por %p152, %p153
      %p155 = scmp.ne.s32.totalorder %s141, %s142
      %p156 = scmp.eq.s32.totalorder %s24, 1
      %p157 = por %p155, %p156
      %p159 = scmp.ne.s32.totalorder %s142, %s158
      %p160 = scmp.eq.s32.totalorder %s24, 0
      %p161 = por %p159, %p160
      %p162 = scmp.le.s32.totalorder 1, %s18
      %p163 = scmp.lt.s32.totalorder %s18, 3
      %p164 = pnand %p162, %p163
      %p165 = pneg %p164
      // Predicated region
      $region9: #{tpu_custom_call.1} parent=5 // pred_check
        _
      $region10: #{tpu_custom_call.1} parent=5 // pred_check_branch
        %167 = sbr.rel (%p164) target = $region12
      $region11: #{tpu_custom_call.1} parent=5 // pred_region
        %s168 = ssub.s32 %s18, 1
        // Predicated region
        $region13: #{tpu_custom_call.1} parent=11 // pred_check
          %p169 = pneg %p65
        $region14: #{tpu_custom_call.1} parent=11 // pred_check_branch
          %171 = sbr.rel (%p169) target = $region16
        $region15: #{tpu_custom_call.1} parent=11 // pred_region
          _
        $region16: #{tpu_custom_call.1} parent=11 // pred_fallthru
          _
        // Predicated region
        $region17: #{tpu_custom_call.1} parent=11 // pred_check
          %p172 = pneg %p86
        $region18: #{tpu_custom_call.1} parent=11 // pred_check_branch
          %174 = sbr.rel (%p172) target = $region20
        $region19: #{tpu_custom_call.1} parent=11 // pred_region
          _
        $region20: #{tpu_custom_call.1} parent=11 // pred_fallthru
          _
        // Predicated region
        $region21: #{tpu_custom_call.1} parent=11 // pred_check
          %p175 = pneg %p107
        $region22: #{tpu_custom_call.1} parent=11 // pred_check_branch
          %177 = sbr.rel (%p175) target = $region24
        $region23: #{tpu_custom_call.1} parent=11 // pred_region
          _
        $region24: #{tpu_custom_call.1} parent=11 // pred_fallthru
          _
        // Predicated region
        $region25: #{tpu_custom_call.1} parent=11 // pred_check
          %p178 = pneg %p128
        $region26: #{tpu_custom_call.1} parent=11 // pred_check_branch
          %180 = sbr.rel (%p178) target = $region28
        $region27: #{tpu_custom_call.1} parent=11 // pred_region
          %182 = vsyncadd [#allocation8], 0
          %s183 = sshll.u32 %s4, 4
          %s184 = int_to_ptr.hbm [resolvable:$true] %s183
          %s185 = sshll.u32 [#allocation7], 4
          %s186 = int_to_ptr.vmem [resolvable:$true] %s185
          %191 = dma.hbm_to_vmem [thread:$0]  %s184, 4096, %s186, [#allocation8], 1024, 1024, 64
        $region28: #{tpu_custom_call.1} parent=11 // pred_fallthru
          _
      $region12: #{tpu_custom_call.1} parent=5 // pred_fallthru
        _
      %p192 = scmp.lt.s32.totalorder %s18, 2
      // Predicated region
      $region29: #{tpu_custom_call.1} parent=5 // pred_check
        %p193 = pneg %p192
      $region30: #{tpu_custom_call.1} parent=5 // pred_check_branch
        %195 = sbr.rel (%p193) target = $region32
      $region31: #{tpu_custom_call.1} parent=5 // pred_region
        // Predicated region
        $region33: #{tpu_custom_call.1} parent=31 // pred_check
          %p196 = pneg %p38
        $region34: #{tpu_custom_call.1} parent=31 // pred_check_branch
          %198 = sbr.rel (%p196) target = $region36
        $region35: #{tpu_custom_call.1} parent=31 // pred_region
          %s199 = sand.u32 %s28, 1
          %s200 = scalar_lea.sflag [#allocation5], %s199
          %s201 = sand.u32 %s28, 1
          %s202 = smul.addr %s201, 32
          %s203 = scalar_lea.vmem [#allocation4], %s202
          %s204 = smul.u32 2, %s18
          %206 = vsyncadd %s200, 0
          %s207 = smul.addr %s204, 4
          %s208 = smul.addr %s207, 4
          %s209 = scalar_lea.hbm %s0, %s208
          %s210 = sshll.u32 %s209, 4
          %s211 = int_to_ptr.hbm [resolvable:$true] %s210
          %s212 = sshll.u32 %s203, 4
          %s213 = int_to_ptr.vmem [resolvable:$true] %s212
          %218 = dma.hbm_to_vmem [thread:$0]  %s211, 512, %s213, %s200, 256, 256, 16
        $region36: #{tpu_custom_call.1} parent=31 // pred_fallthru
          _
      $region32: #{tpu_custom_call.1} parent=5 // pred_fallthru
        _
      %p219 = scmp.le.s32.totalorder 1, %s18
      %p220 = scmp.lt.s32.totalorder %s18, 3
      %p221 = pnand %p219, %p220
      %p222 = pneg %p221
      // Predicated region
      $region37: #{tpu_custom_call.1} parent=5 // pred_check
        _
      $region38: #{tpu_custom_call.1} parent=5 // pred_check_branch
        %224 = sbr.rel (%p221) target = $region40
      $region39: #{tpu_custom_call.1} parent=5 // pred_region
        %s225 = ssub.s32 %s18, 1
        %s226 = sand.u32 %s31, 1
        %s227 = scalar_lea.sflag [#allocation5], %s226
        %s228 = sand.u32 %s31, 1
        %s229 = smul.addr %s228, 32
        %s230 = scalar_lea.vmem [#allocation4], %s229
        // Predicated region
        $region41: #{tpu_custom_call.1} parent=39 // pred_check
          %p231 = pneg %p44
        $region42: #{tpu_custom_call.1} parent=39 // pred_check_branch
          %233 = sbr.rel (%p231) target = $region44
        $region43: #{tpu_custom_call.1} parent=39 // pred_region
          %235 = dma.done %s227, 512
        $region44: #{tpu_custom_call.1} parent=39 // pred_fallthru
          _
        // Predicated region
        $region45: #{tpu_custom_call.1} parent=39 // pred_check
          %p236 = pneg %p128
        $region46: #{tpu_custom_call.1} parent=39 // pred_check_branch
          %238 = sbr.rel (%p236) target = $region48
        $region47: #{tpu_custom_call.1} parent=39 // pred_region
          %240 = dma.done [#allocation8], 4096
        $region48: #{tpu_custom_call.1} parent=39 // pred_fallthru
          _
        %s241 = sand.u32 %s31, 1
        %s242 = scalar_lea.sflag [#allocation5], %s241
        %s243 = sand.u32 %s31, 1
        %s244 = smul.addr %s243, 32
        %s245 = scalar_lea.vmem [#allocation4], %s244
        %p246 = pneg %p44
        %p247 = pneg %p41
        %p248 = pneg %p65
        %p249 = pneg %p62
        %p250 = pneg %p86
        %p251 = pneg %p83
        %p252 = pneg %p107
        %p253 = pneg %p104
        %p254 = pneg %p128
        %p255 = pneg %p125
        %p256 = pneg %p154
        %p257 = pneg %p151
        %s258 = sand.u32 %s141, 1
        %s259 = scalar_lea.sflag [#allocation6], %s258
        %s260 = sand.u32 %s141, 1
        %s261 = smul.addr %s260, 64
        %s262 = scalar_lea.vmem [#allocation9], %s261
        %s263 = smul.u32 2, %s23
        %s264 = smul.u32 2, %s23
        %267 = vst [vmem:[#allocation2] sm:$0xff] 0.0
        %268 = vst [vmem:[#allocation2 + $0x48] sm:$0xff] 0.0
        %v269 = vld [vmem:[%s230] sm:$0xff]
        %v270 = vld [vmem:[%s230 + $0x8] sm:$0xff]
        %273 = vst [vmem:[#allocation1] ss:$2 sm:$0xff] %v269
        %s274 = scalar_lea.vmem [#allocation1], 16
        %275 = vst [vmem:[%s274] ss:$2 sm:$0xff] %v270
        %v276 = vld.sshfl [vmem:[#allocation1] sm:$0xff pattern:$0x75316420]
        %v277 = vld.sshfl [vmem:[#allocation1 + $0x8] sm:$0xff pattern:$0x75316420]
        %v278 = vld.sshfl [vmem:[#allocation1 + $0x10] sm:$0xff pattern:$0x75316420]
        %v279 = vld.sshfl [vmem:[#allocation1 + $0x18] sm:$0xff pattern:$0x75316420]
        %284 = vst [vmem:[#allocation2 + $0x8] sm:$0xf] %v276
        %285 = vst [vmem:[#allocation2 + $0x10] sm:$0xf] %v277
        %286 = vst [vmem:[#allocation2 + $0x18] sm:$0xf] %v278
        %287 = vst [vmem:[#allocation2 + $0x20] sm:$0xf] %v279
        %s288 = scalar_lea.vmem %s230, 16 [#allocation4]
        %v289 = vld [vmem:[%s288] sm:$0xff]
        %v290 = vld [vmem:[%s288 + $0x8] sm:$0xff]
        %293 = vst [vmem:[#allocation1] ss:$2 sm:$0xff] %v289
        %s294 = scalar_lea.vmem [#allocation1], 16
        %295 = vst [vmem:[%s294] ss:$2 sm:$0xff] %v290
        %v296 = vld.sshfl [vmem:[#allocation1] sm:$0xff pattern:$0x75316420]
        %v297 = vld.sshfl [vmem:[#allocation1 + $0x8] sm:$0xff pattern:$0x75316420]
        %v298 = vld.sshfl [vmem:[#allocation1 + $0x10] sm:$0xff pattern:$0x75316420]
        %v299 = vld.sshfl [vmem:[#allocation1 + $0x18] sm:$0xff pattern:$0x75316420]
        %304 = vst [vmem:[#allocation2 + $0x28] sm:$0xf] %v296
        %305 = vst [vmem:[#allocation2 + $0x30] sm:$0xf] %v297
        %306 = vst [vmem:[#allocation2 + $0x38] sm:$0xf] %v298
        %307 = vst [vmem:[#allocation2 + $0x40] sm:$0xf] %v299
        %v308 = vld [vmem:[#allocation2] sm:$0xf]
        %v309 = vld [vmem:[#allocation2 + $0x8] sm:$0xf]
        %v310 = vld [vmem:[#allocation2 + $0x10] sm:$0xf]
        %v311 = vld [vmem:[#allocation2 + $0x18] sm:$0xf]
        %v312 = vld [vmem:[#allocation2 + $0x20] sm:$0xf]
        %v313 = vld [vmem:[#allocation2 + $0x28] sm:$0xf]
        %v314 = vld [vmem:[#allocation2 + $0x30] sm:$0xf]
        %v315 = vld [vmem:[#allocation2 + $0x38] sm:$0xf]
        %v316 = vld [vmem:[#allocation2 + $0x40] sm:$0xf]
        %v317 = vld [vmem:[#allocation7] ss:$8 sm:$0xf]
        %v318 = vld [vmem:[#allocation7] ss:$8 sm:$0xf0]
        %v319 = vor.u32 %v317, %v318
        %v321 = vperm.slane %v319, 0
        %v322 = vperm.slane %v319, 1
        %v323 = vperm.slane %v319, 2
        %v324 = vperm.slane %v319, 3
        %v325 = vperm.slane %v319, 4
        %v326 = vperm.slane %v319, 5
        %v327 = vperm.slane %v319, 6
        %v328 = vperm.slane %v319, 7
        %329 = vrot.lane.b32.xlu0 %v321, 55
        %v330 = vpop.permute.xlu0 %329
        %331 = vrot.lane.b32.xlu0 %v322, 55
        %v332 = vpop.permute.xlu0 %331
        %333 = vrot.lane.b32.xlu0 %v323, 55
        %v334 = vpop.permute.xlu0 %333
        %335 = vrot.lane.b32.xlu0 %v324, 55
        %v336 = vpop.permute.xlu0 %335
        %337 = vrot.lane.b32.xlu0 %v325, 55
        %v338 = vpop.permute.xlu0 %337
        %339 = vrot.lane.b32.xlu0 %v326, 55
        %v340 = vpop.permute.xlu0 %339
        %341 = vrot.lane.b32.xlu0 %v327, 55
        %v342 = vpop.permute.xlu0 %341
        %343 = vrot.lane.b32.xlu0 %v328, 55
        %v344 = vpop.permute.xlu0 %343
        %vm345 = vcmask 449536
        %v346 = vsel %vm345, %v330, %v332
        %v347 = vsel %vm345, %v332, %v334
        %v348 = vsel %vm345, %v334, %v336
        %v349 = vsel %vm345, %v336, %v338
        %v350 = vsel %vm345, %v338, %v340
        %v351 = vsel %vm345, %v340, %v342
        %v352 = vsel %vm345, %v342, %v344
        %v362 = vmul.f32 %v308, %v330
        %v363 = vmul.f32 %v309, %v346
        %v364 = vmul.f32 %v310, %v347
        %v365 = vmul.f32 %v311, %v348
        %v366 = vmul.f32 %v312, %v349
        %v367 = vmul.f32 %v313, %v350
        %v368 = vmul.f32 %v314, %v351
        %v369 = vmul.f32 %v315, %v352
        %v370 = vmul.f32 %v316, %v344
        %v371 = vpack.c.bf16 %v363, %v362
        %v372 = vpack.c.bf16 %v365, %v364
        %v373 = vpack.c.bf16 %v367, %v366
        %v374 = vpack.c.bf16 %v369, %v368
        %v375 = vpack.c.bf16 %v370, %v370
        %381 = vrot.lane.b32.xlu0 %v371, 73
        %v382 = vpop.permute.xlu0 %381
        %383 = vrot.lane.b32.xlu0 %v372, 73
        %v384 = vpop.permute.xlu0 %383
        %385 = vrot.lane.b32.xlu0 %v373, 73
        %v386 = vpop.permute.xlu0 %385
        %387 = vrot.lane.b32.xlu0 %v374, 73
        %v388 = vpop.permute.xlu0 %387
        %389 = vrot.lane.b32.xlu0 %v375, 73
        %v390 = vpop.permute.xlu0 %389
        %v391 = vrot.slane %v382, 4
        %v392 = vrot.slane %v384, 4
        %v393 = vrot.slane %v386, 4
        %v394 = vrot.slane %v388, 4
        %v395 = vrot.slane %v390, 4
        %vm396 = vcmask 1043456
        %v397 = vsel %vm396, %v391, %v392
        %vm398 = vcmask 596992
        %v399 = vsel %vm398, %v382, %v397
        %v400 = vsel %vm396, %v392, %v393
        %v401 = vsel %vm398, %v384, %v400
        %v402 = vsel %vm396, %v393, %v394
        %v403 = vsel %vm398, %v386, %v402
        %v404 = vsel %vm396, %v394, %v395
        %v405 = vsel %vm398, %v388, %v404
        %410 = vst [vmem:[#allocation3] sm:$0x33] %v399
        %411 = vst [vmem:[#allocation3 + $0x8] sm:$0x33] %v401
        %412 = vst [vmem:[#allocation3 + $0x10] sm:$0x33] %v403
        %413 = vst [vmem:[#allocation3 + $0x18] sm:$0x33] %v405
        %v414 = vld [vmem:[#allocation2] sm:$0xf]
        %v415 = vld [vmem:[#allocation2 + $0x8] sm:$0xf]
        %v416 = vld [vmem:[#allocation2 + $0x10] sm:$0xf]
        %v417 = vld [vmem:[#allocation2 + $0x18] sm:$0xf]
        %v418 = vld [vmem:[#allocation2 + $0x20] sm:$0xf]
        %v419 = vld [vmem:[#allocation2 + $0x28] sm:$0xf]
        %v420 = vld [vmem:[#allocation2 + $0x30] sm:$0xf]
        %v421 = vld [vmem:[#allocation2 + $0x38] sm:$0xf]
        %v422 = vld [vmem:[#allocation2 + $0x40] sm:$0xf]
        %s423 = scalar_lea.vmem [#allocation7], 1
        %v424 = vld [vmem:[%s423] ss:$8 sm:$0xf]
        %v425 = vld [vmem:[%s423] ss:$8 sm:$0xf0]
        %v426 = vor.u32 %v424, %v425
        %v428 = vperm.slane %v426, 0
        %v429 = vperm.slane %v426, 1
        %v430 = vperm.slane %v426, 2
        %v431 = vperm.slane %v426, 3
        %v432 = vperm.slane %v426, 4
        %v433 = vperm.slane %v426, 5
        %v434 = vperm.slane %v426, 6
        %v435 = vperm.slane %v426, 7
        %436 = vrot.lane.b32.xlu0 %v428, 56
        %v437 = vpop.permute.xlu0 %436
        %438 = vrot.lane.b32.xlu0 %v429, 56
        %v439 = vpop.permute.xlu0 %438
        %440 = vrot.lane.b32.xlu0 %v430, 56
        %v441 = vpop.permute.xlu0 %440
        %442 = vrot.lane.b32.xlu0 %v431, 56
        %v443 = vpop.permute.xlu0 %442
        %444 = vrot.lane.b32.xlu0 %v432, 56
        %v445 = vpop.permute.xlu0 %444
        %446 = vrot.lane.b32.xlu0 %v433, 56
        %v447 = vpop.permute.xlu0 %446
        %448 = vrot.lane.b32.xlu0 %v434, 56
        %v449 = vpop.permute.xlu0 %448
        %450 = vrot.lane.b32.xlu0 %v435, 56
        %v451 = vpop.permute.xlu0 %450
        %vm452 = vcmask 457728
        %v453 = vsel %vm452, %v437, %v439
        %v454 = vsel %vm452, %v439, %v441
        %v455 = vsel %vm452, %v441, %v443
        %v456 = vsel %vm452, %v443, %v445
        %v457 = vsel %vm452, %v445, %v447
        %v458 = vsel %vm452, %v447, %v449
        %v459 = vsel %vm452, %v449, %v451
        %v469 = vmul.f32 %v414, %v437
        %v470 = vmul.f32 %v415, %v453
        %v471 = vmul.f32 %v416, %v454
        %v472 = vmul.f32 %v417, %v455
        %v473 = vmul.f32 %v418, %v456
        %v474 = vmul.f32 %v419, %v457
        %v475 = vmul.f32 %v420, %v458
        %v476 = vmul.f32 %v421, %v459
        %v477 = vmul.f32 %v422, %v451
        %v478 = vpack.c.bf16 %v470, %v469
        %v479 = vpack.c.bf16 %v472, %v471
        %v480 = vpack.c.bf16 %v474, %v473
        %v481 = vpack.c.bf16 %v476, %v475
        %v482 = vpack.c.bf16 %v477, %v477
        %v488 = vrot.slane %v478, 6
        %v489 = vrot.slane %v479, 6
        %v490 = vrot.slane %v480, 6
        %v491 = vrot.slane %v481, 6
        %v492 = vrot.slane %v482, 6
        %493 = vrot.lane.b32.xlu0 %v488, 72
        %v494 = vpop.permute.xlu0 %493
        %495 = vrot.lane.b32.xlu0 %v489, 72
        %v496 = vpop.permute.xlu0 %495
        %497 = vrot.lane.b32.xlu0 %v490, 72
        %v498 = vpop.permute.xlu0 %497
        %499 = vrot.lane.b32.xlu0 %v491, 72
        %v500 = vpop.permute.xlu0 %499
        %501 = vrot.lane.b32.xlu0 %v492, 72
        %v502 = vpop.permute.xlu0 %501
        %v503 = vrot.slane %v494, 4
        %v504 = vrot.slane %v496, 4
        %v505 = vrot.slane %v498, 4
        %v506 = vrot.slane %v500, 4
        %v507 = vrot.slane %v502, 4
        %v508 = vsel %vm396, %v503, %v504
        %vm509 = vcmask 588800
        %v510 = vsel %vm509, %v494, %v508
        %v511 = vsel %vm396, %v504, %v505
        %v512 = vsel %vm509, %v496, %v511
        %v513 = vsel %vm396, %v505, %v506
        %v514 = vsel %vm509, %v498, %v513
        %v515 = vsel %vm396, %v506, %v507
        %v516 = vsel %vm509, %v500, %v515
        %521 = vst [vmem:[#allocation3] sm:$0xcc] %v510
        %522 = vst [vmem:[#allocation3 + $0x8] sm:$0xcc] %v512
        %523 = vst [vmem:[#allocation3 + $0x10] sm:$0xcc] %v514
        %524 = vst [vmem:[#allocation3 + $0x18] sm:$0xcc] %v516
        %v525 = vld [vmem:[#allocation2] sm:$0xf]
        %v526 = vld [vmem:[#allocation2 + $0x8] sm:$0xf]
        %v527 = vld [vmem:[#allocation2 + $0x10] sm:$0xf]
        %v528 = vld [vmem:[#allocation2 + $0x18] sm:$0xf]
        %v529 = vld [vmem:[#allocation2 + $0x20] sm:$0xf]
        %v530 = vld [vmem:[#allocation2 + $0x28] sm:$0xf]
        %v531 = vld [vmem:[#allocation2 + $0x30] sm:$0xf]
        %v532 = vld [vmem:[#allocation2 + $0x38] sm:$0xf]
        %v533 = vld [vmem:[#allocation2 + $0x40] sm:$0xf]
        %s534 = scalar_lea.vmem [#allocation7], 2
        %v535 = vld [vmem:[%s534] ss:$8 sm:$0xf]
        %v536 = vld [vmem:[%s534] ss:$8 sm:$0xf0]
        %v537 = vor.u32 %v535, %v536
        %v539 = vperm.slane %v537, 0
        %v540 = vperm.slane %v537, 1
        %v541 = vperm.slane %v537, 2
        %v542 = vperm.slane %v537, 3
        %v543 = vperm.slane %v537, 4
        %v544 = vperm.slane %v537, 5
        %v545 = vperm.slane %v537, 6
        %v546 = vperm.slane %v537, 7
        %547 = vrot.lane.b32.xlu0 %v539, 57
        %v548 = vpop.permute.xlu0 %547
        %549 = vrot.lane.b32.xlu0 %v540, 57
        %v550 = vpop.permute.xlu0 %549
        %551 = vrot.lane.b32.xlu0 %v541, 57
        %v552 = vpop.permute.xlu0 %551
        %553 = vrot.lane.b32.xlu0 %v542, 57
        %v554 = vpop.permute.xlu0 %553
        %555 = vrot.lane.b32.xlu0 %v543, 57
        %v556 = vpop.permute.xlu0 %555
        %557 = vrot.lane.b32.xlu0 %v544, 57
        %v558 = vpop.permute.xlu0 %557
        %559 = vrot.lane.b32.xlu0 %v545, 57
        %v560 = vpop.permute.xlu0 %559
        %561 = vrot.lane.b32.xlu0 %v546, 57
        %v562 = vpop.permute.xlu0 %561
        %vm563 = vcmask 465920
        %v564 = vsel %vm563, %v548, %v550
        %v565 = vsel %vm563, %v550, %v552
        %v566 = vsel %vm563, %v552, %v554
        %v567 = vsel %vm563, %v554, %v556
        %v568 = vsel %vm563, %v556, %v558
        %v569 = vsel %vm563, %v558, %v560
        %v570 = vsel %vm563, %v560, %v562
        %v580 = vmul.f32 %v525, %v548
        %v581 = vmul.f32 %v526, %v564
        %v582 = vmul.f32 %v527, %v565
        %v583 = vmul.f32 %v528, %v566
        %v584 = vmul.f32 %v529, %v567
        %v585 = vmul.f32 %v530, %v568
        %v586 = vmul.f32 %v531, %v569
        %v587 = vmul.f32 %v532, %v570
        %v588 = vmul.f32 %v533, %v562
        %v589 = vpack.c.bf16 %v581, %v580
        %v590 = vpack.c.bf16 %v583, %v582
        %v591 = vpack.c.bf16 %v585, %v584
        %v592 = vpack.c.bf16 %v587, %v586
        %v593 = vpack.c.bf16 %v588, %v588
        %599 = vrot.lane.b32.xlu0 %v589, 71
        %v600 = vpop.permute.xlu0 %599
        %601 = vrot.lane.b32.xlu0 %v590, 71
        %v602 = vpop.permute.xlu0 %601
        %603 = vrot.lane.b32.xlu0 %v591, 71
        %v604 = vpop.permute.xlu0 %603
        %605 = vrot.lane.b32.xlu0 %v592, 71
        %v606 = vpop.permute.xlu0 %605
        %607 = vrot.lane.b32.xlu0 %v593, 71
        %v608 = vpop.permute.xlu0 %607
        %v609 = vrot.slane %v600, 4
        %v610 = vrot.slane %v602, 4
        %v611 = vrot.slane %v604, 4
        %v612 = vrot.slane %v606, 4
        %v613 = vrot.slane %v608, 4
        %v614 = vsel %vm396, %v609, %v610
        %vm615 = vcmask 580608
        %v616 = vsel %vm615, %v600, %v614
        %v617 = vsel %vm396, %v610, %v611
        %v618 = vsel %vm615, %v602, %v617
        %v619 = vsel %vm396, %v611, %v612
        %v620 = vsel %vm615, %v604, %v619
        %v621 = vsel %vm396, %v612, %v613
        %v622 = vsel %vm615, %v606, %v621
        %627 = vst [vmem:[#allocation3 + $0x20] sm:$0x33] %v616
        %628 = vst [vmem:[#allocation3 + $0x28] sm:$0x33] %v618
        %629 = vst [vmem:[#allocation3 + $0x30] sm:$0x33] %v620
        %630 = vst [vmem:[#allocation3 + $0x38] sm:$0x33] %v622
        %v631 = vld [vmem:[#allocation2] sm:$0xf]
        %v632 = vld [vmem:[#allocation2 + $0x8] sm:$0xf]
        %v633 = vld [vmem:[#allocation2 + $0x10] sm:$0xf]
        %v634 = vld [vmem:[#allocation2 + $0x18] sm:$0xf]
        %v635 = vld [vmem:[#allocation2 + $0x20] sm:$0xf]
        %v636 = vld [vmem:[#allocation2 + $0x28] sm:$0xf]
        %v637 = vld [vmem:[#allocation2 + $0x30] sm:$0xf]
        %v638 = vld [vmem:[#allocation2 + $0x38] sm:$0xf]
        %v639 = vld [vmem:[#allocation2 + $0x40] sm:$0xf]
        %s640 = scalar_lea.vmem [#allocation7], 3
        %v641 = vld [vmem:[%s640] ss:$8 sm:$0xf]
        %v642 = vld [vmem:[%s640] ss:$8 sm:$0xf0]
        %v643 = vor.u32 %v641, %v642
        %v645 = vperm.slane %v643, 0
        %v646 = vperm.slane %v643, 1
        %v647 = vperm.slane %v643, 2
        %v648 = vperm.slane %v643, 3
        %v649 = vperm.slane %v643, 4
        %v650 = vperm.slane %v643, 5
        %v651 = vperm.slane %v643, 6
        %v652 = vperm.slane %v643, 7
        %653 = vrot.lane.b32.xlu0 %v645, 63
        %v654 = vpop.permute.xlu0 %653
        %655 = vrot.lane.b32.xlu0 %v646, 63
        %v656 = vpop.permute.xlu0 %655
        %657 = vrot.lane.b32.xlu0 %v647, 63
        %v658 = vpop.permute.xlu0 %657
        %659 = vrot.lane.b32.xlu0 %v648, 63
        %v660 = vpop.permute.xlu0 %659
        %661 = vrot.lane.b32.xlu0 %v649, 63
        %v662 = vpop.permute.xlu0 %661
        %663 = vrot.lane.b32.xlu0 %v650, 63
        %v664 = vpop.permute.xlu0 %663
        %665 = vrot.lane.b32.xlu0 %v651, 63
        %v666 = vpop.permute.xlu0 %665
        %667 = vrot.lane.b32.xlu0 %v652, 63
        %v668 = vpop.permute.xlu0 %667
        %vm669 = vcmask 515072
        %v670 = vsel %vm669, %v654, %v656
        %v671 = vsel %vm669, %v656, %v658
        %v672 = vsel %vm669, %v658, %v660
        %v673 = vsel %vm669, %v660, %v662
        %v674 = vsel %vm669, %v662, %v664
        %v675 = vsel %vm669, %v664, %v666
        %v676 = vsel %vm669, %v666, %v668
        %v686 = vmul.f32 %v631, %v654
        %v687 = vmul.f32 %v632, %v670
        %v688 = vmul.f32 %v633, %v671
        %v689 = vmul.f32 %v634, %v672
        %v690 = vmul.f32 %v635, %v673
        %v691 = vmul.f32 %v636, %v674
        %v692 = vmul.f32 %v637, %v675
        %v693 = vmul.f32 %v638, %v676
        %v694 = vmul.f32 %v639, %v668
        %v695 = vpack.c.bf16 %v687, %v686
        %v696 = vpack.c.bf16 %v689, %v688
        %v697 = vpack.c.bf16 %v691, %v690
        %v698 = vpack.c.bf16 %v693, %v692
        %v699 = vpack.c.bf16 %v694, %v694
        %v705 = vrot.slane %v695, 6
        %v706 = vrot.slane %v696, 6
        %v707 = vrot.slane %v697, 6
        %v708 = vrot.slane %v698, 6
        %v709 = vrot.slane %v699, 6
        %710 = vrot.lane.b32.xlu0 %v705, 65
        %v711 = vpop.permute.xlu0 %710
        %712 = vrot.lane.b32.xlu0 %v706, 65
        %v713 = vpop.permute.xlu0 %712
        %714 = vrot.lane.b32.xlu0 %v707, 65
        %v715 = vpop.permute.xlu0 %714
        %716 = vrot.lane.b32.xlu0 %v708, 65
        %v717 = vpop.permute.xlu0 %716
        %718 = vrot.lane.b32.xlu0 %v709, 65
        %v719 = vpop.permute.xlu0 %718
        %v720 = vrot.slane %v711, 4
        %v721 = vrot.slane %v713, 4
        %v722 = vrot.slane %v715, 4
        %v723 = vrot.slane %v717, 4
        %v724 = vrot.slane %v719, 4
        %v725 = vsel %vm396, %v720, %v721
        %vm726 = vcmask 531456
        %v727 = vsel %vm726, %v711, %v725
        %v728 = vsel %vm396, %v721, %v722
        %v729 = vsel %vm726, %v713, %v728
        %v730 = vsel %vm396, %v722, %v723
        %v731 = vsel %vm726, %v715, %v730
        %v732 = vsel %vm396, %v723, %v724
        %v733 = vsel %vm726, %v717, %v732
        %738 = vst [vmem:[#allocation3 + $0x20] sm:$0xcc] %v727
        %739 = vst [vmem:[#allocation3 + $0x28] sm:$0xcc] %v729
        %740 = vst [vmem:[#allocation3 + $0x30] sm:$0xcc] %v731
        %741 = vst [vmem:[#allocation3 + $0x38] sm:$0xcc] %v733
        %v742 = vld [vmem:[#allocation2] sm:$0xf]
        %v743 = vld [vmem:[#allocation2 + $0x8] sm:$0xf]
        %v744 = vld [vmem:[#allocation2 + $0x10] sm:$0xf]
        %v745 = vld [vmem:[#allocation2 + $0x18] sm:$0xf]
        %v746 = vld [vmem:[#allocation2 + $0x20] sm:$0xf]
        %v747 = vld [vmem:[#allocation2 + $0x28] sm:$0xf]
        %v748 = vld [vmem:[#allocation2 + $0x30] sm:$0xf]
        %v749 = vld [vmem:[#allocation2 + $0x38] sm:$0xf]
        %v750 = vld [vmem:[#allocation2 + $0x40] sm:$0xf]
        %s751 = scalar_lea.vmem [#allocation7], 4
        %v752 = vld [vmem:[%s751] ss:$8 sm:$0xf]
        %v753 = vld [vmem:[%s751] ss:$8 sm:$0xf0]
        %v754 = vor.u32 %v752, %v753
        %v756 = vperm.slane %v754, 0
        %v757 = vperm.slane %v754, 1
        %v758 = vperm.slane %v754, 2
        %v759 = vperm.slane %v754, 3
        %v760 = vperm.slane %v754, 4
        %v761 = vperm.slane %v754, 5
        %v762 = vperm.slane %v754, 6
        %v763 = vperm.slane %v754, 7
        %764 = vrot.lane.b32.xlu0 %v756, 64
        %v765 = vpop.permute.xlu0 %764
        %766 = vrot.lane.b32.xlu0 %v757, 64
        %v767 = vpop.permute.xlu0 %766
        %768 = vrot.lane.b32.xlu0 %v758, 64
        %v769 = vpop.permute.xlu0 %768
        %770 = vrot.lane.b32.xlu0 %v759, 64
        %v771 = vpop.permute.xlu0 %770
        %772 = vrot.lane.b32.xlu0 %v760, 64
        %v773 = vpop.permute.xlu0 %772
        %774 = vrot.lane.b32.xlu0 %v761, 64
        %v775 = vpop.permute.xlu0 %774
        %776 = vrot.lane.b32.xlu0 %v762, 64
        %v777 = vpop.permute.xlu0 %776
        %778 = vrot.lane.b32.xlu0 %v763, 64
        %v779 = vpop.permute.xlu0 %778
        %vm780 = vcmask 523264
        %v781 = vsel %vm780, %v765, %v767
        %v782 = vsel %vm780, %v767, %v769
        %v783 = vsel %vm780, %v769, %v771
        %v784 = vsel %vm780, %v771, %v773
        %v785 = vsel %vm780, %v773, %v775
        %v786 = vsel %vm780, %v775, %v777
        %v787 = vsel %vm780, %v777, %v779
        %v797 = vmul.f32 %v742, %v765
        %v798 = vmul.f32 %v743, %v781
        %v799 = vmul.f32 %v744, %v782
        %v800 = vmul.f32 %v745, %v783
        %v801 = vmul.f32 %v746, %v784
        %v802 = vmul.f32 %v747, %v785
        %v803 = vmul.f32 %v748, %v786
        %v804 = vmul.f32 %v749, %v787
        %v805 = vmul.f32 %v750, %v779
        %v806 = vpack.c.bf16 %v798, %v797
        %v807 = vpack.c.bf16 %v800, %v799
        %v808 = vpack.c.bf16 %v802, %v801
        %v809 = vpack.c.bf16 %v804, %v803
        %v810 = vpack.c.bf16 %v805, %v805
        %816 = vrot.lane.b32.xlu0 %v806, 64
        %v817 = vpop.permute.xlu0 %816
        %818 = vrot.lane.b32.xlu0 %v807, 64
        %v819 = vpop.permute.xlu0 %818
        %820 = vrot.lane.b32.xlu0 %v808, 64
        %v821 = vpop.permute.xlu0 %820
        %822 = vrot.lane.b32.xlu0 %v809, 64
        %v823 = vpop.permute.xlu0 %822
        %824 = vrot.lane.b32.xlu0 %v810, 64
        %v825 = vpop.permute.xlu0 %824
        %v826 = vrot.slane %v817, 4
        %v827 = vrot.slane %v819, 4
        %v828 = vrot.slane %v821, 4
        %v829 = vrot.slane %v823, 4
        %v830 = vrot.slane %v825, 4
        %v831 = vsel %vm396, %v826, %v827
        %vm832 = vcmask 523264
        %v833 = vsel %vm832, %v817, %v831
        %v834 = vsel %vm396, %v827, %v828
        %v835 = vsel %vm832, %v819, %v834
        %v836 = vsel %vm396, %v828, %v829
        %v837 = vsel %vm832, %v821, %v836
        %v838 = vsel %vm396, %v829, %v830
        %v839 = vsel %vm832, %v823, %v838
        %844 = vst [vmem:[#allocation3 + $0x40] sm:$0x33] %v833
        %845 = vst [vmem:[#allocation3 + $0x48] sm:$0x33] %v835
        %846 = vst [vmem:[#allocation3 + $0x50] sm:$0x33] %v837
        %847 = vst [vmem:[#allocation3 + $0x58] sm:$0x33] %v839
        %v848 = vld [vmem:[#allocation2] sm:$0xf]
        %v849 = vld [vmem:[#allocation2 + $0x8] sm:$0xf]
        %v850 = vld [vmem:[#allocation2 + $0x10] sm:$0xf]
        %v851 = vld [vmem:[#allocation2 + $0x18] sm:$0xf]
        %v852 = vld [vmem:[#allocation2 + $0x20] sm:$0xf]
        %v853 = vld [vmem:[#allocation2 + $0x28] sm:$0xf]
        %v854 = vld [vmem:[#allocation2 + $0x30] sm:$0xf]
        %v855 = vld [vmem:[#allocation2 + $0x38] sm:$0xf]
        %v856 = vld [vmem:[#allocation2 + $0x40] sm:$0xf]
        %s857 = scalar_lea.vmem [#allocation7], 5
        %v858 = vld [vmem:[%s857] ss:$8 sm:$0xf]
        %v859 = vld [vmem:[%s857] ss:$8 sm:$0xf0]
        %v860 = vor.u32 %v858, %v859
        %v862 = vperm.slane %v860, 0
        %v863 = vperm.slane %v860, 1
        %v864 = vperm.slane %v860, 2
        %v865 = vperm.slane %v860, 3
        %v866 = vperm.slane %v860, 4
        %v867 = vperm.slane %v860, 5
        %v868 = vperm.slane %v860, 6
        %v869 = vperm.slane %v860, 7
        %870 = vrot.lane.b32.xlu0 %v862, 65
        %v871 = vpop.permute.xlu0 %870
        %872 = vrot.lane.b32.xlu0 %v863, 65
        %v873 = vpop.permute.xlu0 %872
        %874 = vrot.lane.b32.xlu0 %v864, 65
        %v875 = vpop.permute.xlu0 %874
        %876 = vrot.lane.b32.xlu0 %v865, 65
        %v877 = vpop.permute.xlu0 %876
        %878 = vrot.lane.b32.xlu0 %v866, 65
        %v879 = vpop.permute.xlu0 %878
        %880 = vrot.lane.b32.xlu0 %v867, 65
        %v881 = vpop.permute.xlu0 %880
        %882 = vrot.lane.b32.xlu0 %v868, 65
        %v883 = vpop.permute.xlu0 %882
        %884 = vrot.lane.b32.xlu0 %v869, 65
        %v885 = vpop.permute.xlu0 %884
        %vm886 = vcmask 531456
        %v887 = vsel %vm886, %v871, %v873
        %v888 = vsel %vm886, %v873, %v875
        %v889 = vsel %vm886, %v875, %v877
        %v890 = vsel %vm886, %v877, %v879
        %v891 = vsel %vm886, %v879, %v881
        %v892 = vsel %vm886, %v881, %v883
        %v893 = vsel %vm886, %v883, %v885
        %v903 = vmul.f32 %v848, %v871
        %v904 = vmul.f32 %v849, %v887
        %v905 = vmul.f32 %v850, %v888
        %v906 = vmul.f32 %v851, %v889
        %v907 = vmul.f32 %v852, %v890
        %v908 = vmul.f32 %v853, %v891
        %v909 = vmul.f32 %v854, %v892
        %v910 = vmul.f32 %v855, %v893
        %v911 = vmul.f32 %v856, %v885
        %v912 = vpack.c.bf16 %v904, %v903
        %v913 = vpack.c.bf16 %v906, %v905
        %v914 = vpack.c.bf16 %v908, %v907
        %v915 = vpack.c.bf16 %v910, %v909
        %v916 = vpack.c.bf16 %v911, %v911
        %v922 = vrot.slane %v912, 6
        %v923 = vrot.slane %v913, 6
        %v924 = vrot.slane %v914, 6
        %v925 = vrot.slane %v915, 6
        %v926 = vrot.slane %v916, 6
        %927 = vrot.lane.b32.xlu0 %v922, 63
        %v928 = vpop.permute.xlu0 %927
        %929 = vrot.lane.b32.xlu0 %v923, 63
        %v930 = vpop.permute.xlu0 %929
        %931 = vrot.lane.b32.xlu0 %v924, 63
        %v932 = vpop.permute.xlu0 %931
        %933 = vrot.lane.b32.xlu0 %v925, 63
        %v934 = vpop.permute.xlu0 %933
        %935 = vrot.lane.b32.xlu0 %v926, 63
        %v936 = vpop.permute.xlu0 %935
        %v937 = vrot.slane %v928, 4
        %v938 = vrot.slane %v930, 4
        %v939 = vrot.slane %v932, 4
        %v940 = vrot.slane %v934, 4
        %v941 = vrot.slane %v936, 4
        %v942 = vsel %vm396, %v937, %v938
        %vm943 = vcmask 515072
        %v944 = vsel %vm943, %v928, %v942
        %v945 = vsel %vm396, %v938, %v939
        %v946 = vsel %vm943, %v930, %v945
        %v947 = vsel %vm396, %v939, %v940
        %v948 = vsel %vm943, %v932, %v947
        %v949 = vsel %vm396, %v940, %v941
        %v950 = vsel %vm943, %v934, %v949
        %955 = vst [vmem:[#allocation3 + $0x40] sm:$0xcc] %v944
        %956 = vst [vmem:[#allocation3 + $0x48] sm:$0xcc] %v946
        %957 = vst [vmem:[#allocation3 + $0x50] sm:$0xcc] %v948
        %958 = vst [vmem:[#allocation3 + $0x58] sm:$0xcc] %v950
        %v959 = vld [vmem:[#allocation2] sm:$0xf]
        %v960 = vld [vmem:[#allocation2 + $0x8] sm:$0xf]
        %v961 = vld [vmem:[#allocation2 + $0x10] sm:$0xf]
        %v962 = vld [vmem:[#allocation2 + $0x18] sm:$0xf]
        %v963 = vld [vmem:[#allocation2 + $0x20] sm:$0xf]
        %v964 = vld [vmem:[#allocation2 + $0x28] sm:$0xf]
        %v965 = vld [vmem:[#allocation2 + $0x30] sm:$0xf]
        %v966 = vld [vmem:[#allocation2 + $0x38] sm:$0xf]
        %v967 = vld [vmem:[#allocation2 + $0x40] sm:$0xf]
        %s968 = scalar_lea.vmem [#allocation7], 6
        %v969 = vld [vmem:[%s968] ss:$8 sm:$0xf]
        %v970 = vld [vmem:[%s968] ss:$8 sm:$0xf0]
        %v971 = vor.u32 %v969, %v970
        %v973 = vperm.slane %v971, 0
        %v974 = vperm.slane %v971, 1
        %v975 = vperm.slane %v971, 2
        %v976 = vperm.slane %v971, 3
        %v977 = vperm.slane %v971, 4
        %v978 = vperm.slane %v971, 5
        %v979 = vperm.slane %v971, 6
        %v980 = vperm.slane %v971, 7
        %981 = vrot.lane.b32.xlu0 %v973, 71
        %v982 = vpop.permute.xlu0 %981
        %983 = vrot.lane.b32.xlu0 %v974, 71
        %v984 = vpop.permute.xlu0 %983
        %985 = vrot.lane.b32.xlu0 %v975, 71
        %v986 = vpop.permute.xlu0 %985
        %987 = vrot.lane.b32.xlu0 %v976, 71
        %v988 = vpop.permute.xlu0 %987
        %989 = vrot.lane.b32.xlu0 %v977, 71
        %v990 = vpop.permute.xlu0 %989
        %991 = vrot.lane.b32.xlu0 %v978, 71
        %v992 = vpop.permute.xlu0 %991
        %993 = vrot.lane.b32.xlu0 %v979, 71
        %v994 = vpop.permute.xlu0 %993
        %995 = vrot.lane.b32.xlu0 %v980, 71
        %v996 = vpop.permute.xlu0 %995
        %vm997 = vcmask 580608
        %v998 = vsel %vm997, %v982, %v984
        %v999 = vsel %vm997, %v984, %v986
        %v1000 = vsel %vm997, %v986, %v988
        %v1001 = vsel %vm997, %v988, %v990
        %v1002 = vsel %vm997, %v990, %v992
        %v1003 = vsel %vm997, %v992, %v994
        %v1004 = vsel %vm997, %v994, %v996
        %v1014 = vmul.f32 %v959, %v982
        %v1015 = vmul.f32 %v960, %v998
        %v1016 = vmul.f32 %v961, %v999
        %v1017 = vmul.f32 %v962, %v1000
        %v1018 = vmul.f32 %v963, %v1001
        %v1019 = vmul.f32 %v964, %v1002
        %v1020 = vmul.f32 %v965, %v1003
        %v1021 = vmul.f32 %v966, %v1004
        %v1022 = vmul.f32 %v967, %v996
        %v1023 = vpack.c.bf16 %v1015, %v1014
        %v1024 = vpack.c.bf16 %v1017, %v1016
        %v1025 = vpack.c.bf16 %v1019, %v1018
        %v1026 = vpack.c.bf16 %v1021, %v1020
        %v1027 = vpack.c.bf16 %v1022, %v1022
        %1033 = vrot.lane.b32.xlu0 %v1023, 57
        %v1034 = vpop.permute.xlu0 %1033
        %1035 = vrot.lane.b32.xlu0 %v1024, 57
        %v1036 = vpop.permute.xlu0 %1035
        %1037 = vrot.lane.b32.xlu0 %v1025, 57
        %v1038 = vpop.permute.xlu0 %1037
        %1039 = vrot.lane.b32.xlu0 %v1026, 57
        %v1040 = vpop.permute.xlu0 %1039
        %1041 = vrot.lane.b32.xlu0 %v1027, 57
        %v1042 = vpop.permute.xlu0 %1041
        %v1043 = vrot.slane %v1034, 4
        %v1044 = vrot.slane %v1036, 4
        %v1045 = vrot.slane %v1038, 4
        %v1046 = vrot.slane %v1040, 4
        %v1047 = vrot.slane %v1042, 4
        %v1048 = vsel %vm396, %v1043, %v1044
        %vm1049 = vcmask 465920
        %v1050 = vsel %vm1049, %v1034, %v1048
        %v1051 = vsel %vm396, %v1044, %v1045
        %v1052 = vsel %vm1049, %v1036, %v1051
        %v1053 = vsel %vm396, %v1045, %v1046
        %v1054 = vsel %vm1049, %v1038, %v1053
        %v1055 = vsel %vm396, %v1046, %v1047
        %v1056 = vsel %vm1049, %v1040, %v1055
        %1061 = vst [vmem:[#allocation3 + $0x60] sm:$0x33] %v1050
        %1062 = vst [vmem:[#allocation3 + $0x68] sm:$0x33] %v1052
        %1063 = vst [vmem:[#allocation3 + $0x70] sm:$0x33] %v1054
        %1064 = vst [vmem:[#allocation3 + $0x78] sm:$0x33] %v1056
        %v1065 = vld [vmem:[#allocation2] sm:$0xf]
        %v1066 = vld [vmem:[#allocation2 + $0x8] sm:$0xf]
        %v1067 = vld [vmem:[#allocation2 + $0x10] sm:$0xf]
        %v1068 = vld [vmem:[#allocation2 + $0x18] sm:$0xf]
        %v1069 = vld [vmem:[#allocation2 + $0x20] sm:$0xf]
        %v1070 = vld [vmem:[#allocation2 + $0x28] sm:$0xf]
        %v1071 = vld [vmem:[#allocation2 + $0x30] sm:$0xf]
        %v1072 = vld [vmem:[#allocation2 + $0x38] sm:$0xf]
        %v1073 = vld [vmem:[#allocation2 + $0x40] sm:$0xf]
        %s1074 = scalar_lea.vmem [#allocation7], 7
        %v1075 = vld [vmem:[%s1074] ss:$8 sm:$0xf]
        %v1076 = vld [vmem:[%s1074] ss:$8 sm:$0xf0]
        %v1077 = vor.u32 %v1075, %v1076
        %v1079 = vperm.slane %v1077, 0
        %v1080 = vperm.slane %v1077, 1
        %v1081 = vperm.slane %v1077, 2
        %v1082 = vperm.slane %v1077, 3
        %v1083 = vperm.slane %v1077, 4
        %v1084 = vperm.slane %v1077, 5
        %v1085 = vperm.slane %v1077, 6
        %v1086 = vperm.slane %v1077, 7
        %1087 = vrot.lane.b32.xlu0 %v1079, 72
        %v1088 = vpop.permute.xlu0 %1087
        %1089 = vrot.lane.b32.xlu0 %v1080, 72
        %v1090 = vpop.permute.xlu0 %1089
        %1091 = vrot.lane.b32.xlu0 %v1081, 72
        %v1092 = vpop.permute.xlu0 %1091
        %1093 = vrot.lane.b32.xlu0 %v1082, 72
        %v1094 = vpop.permute.xlu0 %1093
        %1095 = vrot.lane.b32.xlu0 %v1083, 72
        %v1096 = vpop.permute.xlu0 %1095
        %1097 = vrot.lane.b32.xlu0 %v1084, 72
        %v1098 = vpop.permute.xlu0 %1097
        %1099 = vrot.lane.b32.xlu0 %v1085, 72
        %v1100 = vpop.permute.xlu0 %1099
        %1101 = vrot.lane.b32.xlu0 %v1086, 72
        %v1102 = vpop.permute.xlu0 %1101
        %vm1103 = vcmask 588800
        %v1104 = vsel %vm1103, %v1088, %v1090
        %v1105 = vsel %vm1103, %v1090, %v1092
        %v1106 = vsel %vm1103, %v1092, %v1094
        %v1107 = vsel %vm1103, %v1094, %v1096
        %v1108 = vsel %vm1103, %v1096, %v1098
        %v1109 = vsel %vm1103, %v1098, %v1100
        %v1110 = vsel %vm1103, %v1100, %v1102
        %v1120 = vmul.f32 %v1065, %v1088
        %v1121 = vmul.f32 %v1066, %v1104
        %v1122 = vmul.f32 %v1067, %v1105
        %v1123 = vmul.f32 %v1068, %v1106
        %v1124 = vmul.f32 %v1069, %v1107
        %v1125 = vmul.f32 %v1070, %v1108
        %v1126 = vmul.f32 %v1071, %v1109
        %v1127 = vmul.f32 %v1072, %v1110
        %v1128 = vmul.f32 %v1073, %v1102
        %v1129 = vpack.c.bf16 %v1121, %v1120
        %v1130 = vpack.c.bf16 %v1123, %v1122
        %v1131 = vpack.c.bf16 %v1125, %v1124
        %v1132 = vpack.c.bf16 %v1127, %v1126
        %v1133 = vpack.c.bf16 %v1128, %v1128
        %v1139 = vrot.slane %v1129, 6
        %v1140 = vrot.slane %v1130, 6
        %v1141 = vrot.slane %v1131, 6
        %v1142 = vrot.slane %v1132, 6
        %v1143 = vrot.slane %v1133, 6
        %1144 = vrot.lane.b32.xlu0 %v1139, 56
        %v1145 = vpop.permute.xlu0 %1144
        %1146 = vrot.lane.b32.xlu0 %v1140, 56
        %v1147 = vpop.permute.xlu0 %1146
        %1148 = vrot.lane.b32.xlu0 %v1141, 56
        %v1149 = vpop.permute.xlu0 %1148
        %1150 = vrot.lane.b32.xlu0 %v1142, 56
        %v1151 = vpop.permute.xlu0 %1150
        %1152 = vrot.lane.b32.xlu0 %v1143, 56
        %v1153 = vpop.permute.xlu0 %1152
        %v1154 = vrot.slane %v1145, 4
        %v1155 = vrot.slane %v1147, 4
        %v1156 = vrot.slane %v1149, 4
        %v1157 = vrot.slane %v1151, 4
        %v1158 = vrot.slane %v1153, 4
        %v1159 = vsel %vm396, %v1154, %v1155
        %vm1160 = vcmask 457728
        %v1161 = vsel %vm1160, %v1145, %v1159
        %v1162 = vsel %vm396, %v1155, %v1156
        %v1163 = vsel %vm1160, %v1147, %v1162
        %v1164 = vsel %vm396, %v1156, %v1157
        %v1165 = vsel %vm1160, %v1149, %v1164
        %v1166 = vsel %vm396, %v1157, %v1158
        %v1167 = vsel %vm1160, %v1151, %v1166
        %1172 = vst [vmem:[#allocation3 + $0x60] sm:$0xcc] %v1161
        %1173 = vst [vmem:[#allocation3 + $0x68] sm:$0xcc] %v1163
        %1174 = vst [vmem:[#allocation3 + $0x70] sm:$0xcc] %v1165
        %1175 = vst [vmem:[#allocation3 + $0x78] sm:$0xcc] %v1167
        %v1176 = vld [vmem:[#allocation2] sm:$0xf]
        %v1177 = vld [vmem:[#allocation2 + $0x8] sm:$0xf]
        %v1178 = vld [vmem:[#allocation2 + $0x10] sm:$0xf]
        %v1179 = vld [vmem:[#allocation2 + $0x18] sm:$0xf]
        %v1180 = vld [vmem:[#allocation2 + $0x20] sm:$0xf]
        %v1181 = vld [vmem:[#allocation2 + $0x28] sm:$0xf]
        %v1182 = vld [vmem:[#allocation2 + $0x30] sm:$0xf]
        %v1183 = vld [vmem:[#allocation2 + $0x38] sm:$0xf]
        %v1184 = vld [vmem:[#allocation2 + $0x40] sm:$0xf]
        %s1185 = scalar_lea.vmem [#allocation7], 64
        %v1186 = vld [vmem:[%s1185] ss:$8 sm:$0xf]
        %v1187 = vld [vmem:[%s1185] ss:$8 sm:$0xf0]
        %v1188 = vor.u32 %v1186, %v1187
        %v1190 = vperm.slane %v1188, 0
        %v1191 = vperm.slane %v1188, 1
        %v1192 = vperm.slane %v1188, 2
        %v1193 = vperm.slane %v1188, 3
        %v1194 = vperm.slane %v1188, 4
        %v1195 = vperm.slane %v1188, 5
        %v1196 = vperm.slane %v1188, 6
        %v1197 = vperm.slane %v1188, 7
        %1198 = vrot.lane.b32.xlu0 %v1190, 73
        %v1199 = vpop.permute.xlu0 %1198
        %1200 = vrot.lane.b32.xlu0 %v1191, 73
        %v1201 = vpop.permute.xlu0 %1200
        %1202 = vrot.lane.b32.xlu0 %v1192, 73
        %v1203 = vpop.permute.xlu0 %1202
        %1204 = vrot.lane.b32.xlu0 %v1193, 73
        %v1205 = vpop.permute.xlu0 %1204
        %1206 = vrot.lane.b32.xlu0 %v1194, 73
        %v1207 = vpop.permute.xlu0 %1206
        %1208 = vrot.lane.b32.xlu0 %v1195, 73
        %v1209 = vpop.permute.xlu0 %1208
        %1210 = vrot.lane.b32.xlu0 %v1196, 73
        %v1211 = vpop.permute.xlu0 %1210
        %1212 = vrot.lane.b32.xlu0 %v1197, 73
        %v1213 = vpop.permute.xlu0 %1212
        %vm1214 = vcmask 596992
        %v1215 = vsel %vm1214, %v1199, %v1201
        %v1216 = vsel %vm1214, %v1201, %v1203
        %v1217 = vsel %vm1214, %v1203, %v1205
        %v1218 = vsel %vm1214, %v1205, %v1207
        %v1219 = vsel %vm1214, %v1207, %v1209
        %v1220 = vsel %vm1214, %v1209, %v1211
        %v1221 = vsel %vm1214, %v1211, %v1213
        %v1231 = vmul.f32 %v1176, %v1199
        %v1232 = vmul.f32 %v1177, %v1215
        %v1233 = vmul.f32 %v1178, %v1216
        %v1234 = vmul.f32 %v1179, %v1217
        %v1235 = vmul.f32 %v1180, %v1218
        %v1236 = vmul.f32 %v1181, %v1219
        %v1237 = vmul.f32 %v1182, %v1220
        %v1238 = vmul.f32 %v1183, %v1221
        %v1239 = vmul.f32 %v1184, %v1213
        %v1240 = vpack.c.bf16 %v1232, %v1231
        %v1241 = vpack.c.bf16 %v1234, %v1233
        %v1242 = vpack.c.bf16 %v1236, %v1235
        %v1243 = vpack.c.bf16 %v1238, %v1237
        %v1244 = vpack.c.bf16 %v1239, %v1239
        %1250 = vrot.lane.b32.xlu0 %v1240, 55
        %v1251 = vpop.permute.xlu0 %1250
        %1252 = vrot.lane.b32.xlu0 %v1241, 55
        %v1253 = vpop.permute.xlu0 %1252
        %1254 = vrot.lane.b32.xlu0 %v1242, 55
        %v1255 = vpop.permute.xlu0 %1254
        %1256 = vrot.lane.b32.xlu0 %v1243, 55
        %v1257 = vpop.permute.xlu0 %1256
        %1258 = vrot.lane.b32.xlu0 %v1244, 55
        %v1259 = vpop.permute.xlu0 %1258
        %v1260 = vrot.slane %v1251, 4
        %v1261 = vrot.slane %v1253, 4
        %v1262 = vrot.slane %v1255, 4
        %v1263 = vrot.slane %v1257, 4
        %v1264 = vrot.slane %v1259, 4
        %v1265 = vsel %vm396, %v1260, %v1261
        %vm1266 = vcmask 449536
        %v1267 = vsel %vm1266, %v1251, %v1265
        %v1268 = vsel %vm396, %v1261, %v1262
        %v1269 = vsel %vm1266, %v1253, %v1268
        %v1270 = vsel %vm396, %v1262, %v1263
        %v1271 = vsel %vm1266, %v1255, %v1270
        %v1272 = vsel %vm396, %v1263, %v1264
        %v1273 = vsel %vm1266, %v1257, %v1272
        %1278 = vst [vmem:[#allocation3 + $0x80] sm:$0x33] %v1267
        %1279 = vst [vmem:[#allocation3 + $0x88] sm:$0x33] %v1269
        %1280 = vst [vmem:[#allocation3 + $0x90] sm:$0x33] %v1271
        %1281 = vst [vmem:[#allocation3 + $0x98] sm:$0x33] %v1273
        %v1282 = vld [vmem:[#allocation2] sm:$0xf]
        %v1283 = vld [vmem:[#allocation2 + $0x8] sm:$0xf]
        %v1284 = vld [vmem:[#allocation2 + $0x10] sm:$0xf]
        %v1285 = vld [vmem:[#allocation2 + $0x18] sm:$0xf]
        %v1286 = vld [vmem:[#allocation2 + $0x20] sm:$0xf]
        %v1287 = vld [vmem:[#allocation2 + $0x28] sm:$0xf]
        %v1288 = vld [vmem:[#allocation2 + $0x30] sm:$0xf]
        %v1289 = vld [vmem:[#allocation2 + $0x38] sm:$0xf]
        %v1290 = vld [vmem:[#allocation2 + $0x40] sm:$0xf]
        %s1291 = scalar_lea.vmem [#allocation7], 65
        %v1292 = vld [vmem:[%s1291] ss:$8 sm:$0xf]
        %v1293 = vld [vmem:[%s1291] ss:$8 sm:$0xf0]
        %v1294 = vor.u32 %v1292, %v1293
        %v1296 = vperm.slane %v1294, 0
        %v1297 = vperm.slane %v1294, 1
        %v1298 = vperm.slane %v1294, 2
        %v1299 = vperm.slane %v1294, 3
        %v1300 = vperm.slane %v1294, 4
        %v1301 = vperm.slane %v1294, 5
        %v1302 = vperm.slane %v1294, 6
        %v1303 = vperm.slane %v1294, 7
        %1304 = vrot.lane.b32.xlu0 %v1296, 119
        %v1305 = vpop.permute.xlu0 %1304
        %1306 = vrot.lane.b32.xlu0 %v1297, 119
        %v1307 = vpop.permute.xlu0 %1306
        %1308 = vrot.lane.b32.xlu0 %v1298, 119
        %v1309 = vpop.permute.xlu0 %1308
        %1310 = vrot.lane.b32.xlu0 %v1299, 119
        %v1311 = vpop.permute.xlu0 %1310
        %1312 = vrot.lane.b32.xlu0 %v1300, 119
        %v1313 = vpop.permute.xlu0 %1312
        %1314 = vrot.lane.b32.xlu0 %v1301, 119
        %v1315 = vpop.permute.xlu0 %1314
        %1316 = vrot.lane.b32.xlu0 %v1302, 119
        %v1317 = vpop.permute.xlu0 %1316
        %1318 = vrot.lane.b32.xlu0 %v1303, 119
        %v1319 = vpop.permute.xlu0 %1318
        %vm1320 = vcmask 973824
        %v1321 = vsel %vm1320, %v1305, %v1307
        %v1322 = vsel %vm1320, %v1307, %v1309
        %v1323 = vsel %vm1320, %v1309, %v1311
        %v1324 = vsel %vm1320, %v1311, %v1313
        %v1325 = vsel %vm1320, %v1313, %v1315
        %v1326 = vsel %vm1320, %v1315, %v1317
        %v1327 = vsel %vm1320, %v1317, %v1319
        %v1337 = vmul.f32 %v1282, %v1305
        %v1338 = vmul.f32 %v1283, %v1321
        %v1339 = vmul.f32 %v1284, %v1322
        %v1340 = vmul.f32 %v1285, %v1323
        %v1341 = vmul.f32 %v1286, %v1324
        %v1342 = vmul.f32 %v1287, %v1325
        %v1343 = vmul.f32 %v1288, %v1326
        %v1344 = vmul.f32 %v1289, %v1327
        %v1345 = vmul.f32 %v1290, %v1319
        %v1346 = vpack.c.bf16 %v1338, %v1337
        %v1347 = vpack.c.bf16 %v1340, %v1339
        %v1348 = vpack.c.bf16 %v1342, %v1341
        %v1349 = vpack.c.bf16 %v1344, %v1343
        %v1350 = vpack.c.bf16 %v1345, %v1345
        %v1356 = vrot.slane %v1346, 6
        %v1357 = vrot.slane %v1347, 6
        %v1358 = vrot.slane %v1348, 6
        %v1359 = vrot.slane %v1349, 6
        %v1360 = vrot.slane %v1350, 6
        %1361 = vrot.lane.b32.xlu0 %v1356, 9
        %v1362 = vpop.permute.xlu0 %1361
        %1363 = vrot.lane.b32.xlu0 %v1357, 9
        %v1364 = vpop.permute.xlu0 %1363
        %1365 = vrot.lane.b32.xlu0 %v1358, 9
        %v1366 = vpop.permute.xlu0 %1365
        %1367 = vrot.lane.b32.xlu0 %v1359, 9
        %v1368 = vpop.permute.xlu0 %1367
        %1369 = vrot.lane.b32.xlu0 %v1360, 9
        %v1370 = vpop.permute.xlu0 %1369
        %v1371 = vrot.slane %v1362, 4
        %v1372 = vrot.slane %v1364, 4
        %v1373 = vrot.slane %v1366, 4
        %v1374 = vrot.slane %v1368, 4
        %v1375 = vrot.slane %v1370, 4
        %v1376 = vsel %vm396, %v1371, %v1372
        %vm1377 = vcmask 72704
        %v1378 = vsel %vm1377, %v1362, %v1376
        %v1379 = vsel %vm396, %v1372, %v1373
        %v1380 = vsel %vm1377, %v1364, %v1379
        %v1381 = vsel %vm396, %v1373, %v1374
        %v1382 = vsel %vm1377, %v1366, %v1381
        %v1383 = vsel %vm396, %v1374, %v1375
        %v1384 = vsel %vm1377, %v1368, %v1383
        %1389 = vst [vmem:[#allocation3 + $0x80] sm:$0xcc] %v1378
        %1390 = vst [vmem:[#allocation3 + $0x88] sm:$0xcc] %v1380
        %1391 = vst [vmem:[#allocation3 + $0x90] sm:$0xcc] %v1382
        %1392 = vst [vmem:[#allocation3 + $0x98] sm:$0xcc] %v1384
        %v1393 = vld [vmem:[#allocation2] sm:$0xf]
        %v1394 = vld [vmem:[#allocation2 + $0x8] sm:$0xf]
        %v1395 = vld [vmem:[#allocation2 + $0x10] sm:$0xf]
        %v1396 = vld [vmem:[#allocation2 + $0x18] sm:$0xf]
        %v1397 = vld [vmem:[#allocation2 + $0x20] sm:$0xf]
        %v1398 = vld [vmem:[#allocation2 + $0x28] sm:$0xf]
        %v1399 = vld [vmem:[#allocation2 + $0x30] sm:$0xf]
        %v1400 = vld [vmem:[#allocation2 + $0x38] sm:$0xf]
        %v1401 = vld [vmem:[#allocation2 + $0x40] sm:$0xf]
        %s1402 = scalar_lea.vmem [#allocation7], 66
        %v1403 = vld [vmem:[%s1402] ss:$8 sm:$0xf]
        %v1404 = vld [vmem:[%s1402] ss:$8 sm:$0xf0]
        %v1405 = vor.u32 %v1403, %v1404
        %v1407 = vperm.slane %v1405, 0
        %v1408 = vperm.slane %v1405, 1
        %v1409 = vperm.slane %v1405, 2
        %v1410 = vperm.slane %v1405, 3
        %v1411 = vperm.slane %v1405, 4
        %v1412 = vperm.slane %v1405, 5
        %v1413 = vperm.slane %v1405, 6
        %v1414 = vperm.slane %v1405, 7
        %1415 = vrot.lane.b32.xlu0 %v1407, 120
        %v1416 = vpop.permute.xlu0 %1415
        %1417 = vrot.lane.b32.xlu0 %v1408, 120
        %v1418 = vpop.permute.xlu0 %1417
        %1419 = vrot.lane.b32.xlu0 %v1409, 120
        %v1420 = vpop.permute.xlu0 %1419
        %1421 = vrot.lane.b32.xlu0 %v1410, 120
        %v1422 = vpop.permute.xlu0 %1421
        %1423 = vrot.lane.b32.xlu0 %v1411, 120
        %v1424 = vpop.permute.xlu0 %1423
        %1425 = vrot.lane.b32.xlu0 %v1412, 120
        %v1426 = vpop.permute.xlu0 %1425
        %1427 = vrot.lane.b32.xlu0 %v1413, 120
        %v1428 = vpop.permute.xlu0 %1427
        %1429 = vrot.lane.b32.xlu0 %v1414, 120
        %v1430 = vpop.permute.xlu0 %1429
        %vm1431 = vcmask 982016
        %v1432 = vsel %vm1431, %v1416, %v1418
        %v1433 = vsel %vm1431, %v1418, %v1420
        %v1434 = vsel %vm1431, %v1420, %v1422
        %v1435 = vsel %vm1431, %v1422, %v1424
        %v1436 = vsel %vm1431, %v1424, %v1426
        %v1437 = vsel %vm1431, %v1426, %v1428
        %v1438 = vsel %vm1431, %v1428, %v1430
        %v1448 = vmul.f32 %v1393, %v1416
        %v1449 = vmul.f32 %v1394, %v1432
        %v1450 = vmul.f32 %v1395, %v1433
        %v1451 = vmul.f32 %v1396, %v1434
        %v1452 = vmul.f32 %v1397, %v1435
        %v1453 = vmul.f32 %v1398, %v1436
        %v1454 = vmul.f32 %v1399, %v1437
        %v1455 = vmul.f32 %v1400, %v1438
        %v1456 = vmul.f32 %v1401, %v1430
        %v1457 = vpack.c.bf16 %v1449, %v1448
        %v1458 = vpack.c.bf16 %v1451, %v1450
        %v1459 = vpack.c.bf16 %v1453, %v1452
        %v1460 = vpack.c.bf16 %v1455, %v1454
        %v1461 = vpack.c.bf16 %v1456, %v1456
        %1467 = vrot.lane.b32.xlu0 %v1457, 8
        %v1468 = vpop.permute.xlu0 %1467
        %1469 = vrot.lane.b32.xlu0 %v1458, 8
        %v1470 = vpop.permute.xlu0 %1469
        %1471 = vrot.lane.b32.xlu0 %v1459, 8
        %v1472 = vpop.permute.xlu0 %1471
        %1473 = vrot.lane.b32.xlu0 %v1460, 8
        %v1474 = vpop.permute.xlu0 %1473
        %1475 = vrot.lane.b32.xlu0 %v1461, 8
        %v1476 = vpop.permute.xlu0 %1475
        %v1477 = vrot.slane %v1468, 4
        %v1478 = vrot.slane %v1470, 4
        %v1479 = vrot.slane %v1472, 4
        %v1480 = vrot.slane %v1474, 4
        %v1481 = vrot.slane %v1476, 4
        %v1482 = vsel %vm396, %v1477, %v1478
        %vm1483 = vcmask 64512
        %v1484 = vsel %vm1483, %v1468, %v1482
        %v1485 = vsel %vm396, %v1478, %v1479
        %v1486 = vsel %vm1483, %v1470, %v1485
        %v1487 = vsel %vm396, %v1479, %v1480
        %v1488 = vsel %vm1483, %v1472, %v1487
        %v1489 = vsel %vm396, %v1480, %v1481
        %v1490 = vsel %vm1483, %v1474, %v1489
        %1495 = vst [vmem:[#allocation3 + $0xa0] sm:$0x33] %v1484
        %1496 = vst [vmem:[#allocation3 + $0xa8] sm:$0x33] %v1486
        %1497 = vst [vmem:[#allocation3 + $0xb0] sm:$0x33] %v1488
        %1498 = vst [vmem:[#allocation3 + $0xb8] sm:$0x33] %v1490
        %v1499 = vld [vmem:[#allocation2] sm:$0xf]
        %v1500 = vld [vmem:[#allocation2 + $0x8] sm:$0xf]
        %v1501 = vld [vmem:[#allocation2 + $0x10] sm:$0xf]
        %v1502 = vld [vmem:[#allocation2 + $0x18] sm:$0xf]
        %v1503 = vld [vmem:[#allocation2 + $0x20] sm:$0xf]
        %v1504 = vld [vmem:[#allocation2 + $0x28] sm:$0xf]
        %v1505 = vld [vmem:[#allocation2 + $0x30] sm:$0xf]
        %v1506 = vld [vmem:[#allocation2 + $0x38] sm:$0xf]
        %v1507 = vld [vmem:[#allocation2 + $0x40] sm:$0xf]
        %s1508 = scalar_lea.vmem [#allocation7], 67
        %v1509 = vld [vmem:[%s1508] ss:$8 sm:$0xf]
        %v1510 = vld [vmem:[%s1508] ss:$8 sm:$0xf0]
        %v1511 = vor.u32 %v1509, %v1510
        %v1513 = vperm.slane %v1511, 0
        %v1514 = vperm.slane %v1511, 1
        %v1515 = vperm.slane %v1511, 2
        %v1516 = vperm.slane %v1511, 3
        %v1517 = vperm.slane %v1511, 4
        %v1518 = vperm.slane %v1511, 5
        %v1519 = vperm.slane %v1511, 6
        %v1520 = vperm.slane %v1511, 7
        %1521 = vrot.lane.b32.xlu0 %v1513, 121
        %v1522 = vpop.permute.xlu0 %1521
        %1523 = vrot.lane.b32.xlu0 %v1514, 121
        %v1524 = vpop.permute.xlu0 %1523
        %1525 = vrot.lane.b32.xlu0 %v1515, 121
        %v1526 = vpop.permute.xlu0 %1525
        %1527 = vrot.lane.b32.xlu0 %v1516, 121
        %v1528 = vpop.permute.xlu0 %1527
        %1529 = vrot.lane.b32.xlu0 %v1517, 121
        %v1530 = vpop.permute.xlu0 %1529
        %1531 = vrot.lane.b32.xlu0 %v1518, 121
        %v1532 = vpop.permute.xlu0 %1531
        %1533 = vrot.lane.b32.xlu0 %v1519, 121
        %v1534 = vpop.permute.xlu0 %1533
        %1535 = vrot.lane.b32.xlu0 %v1520, 121
        %v1536 = vpop.permute.xlu0 %1535
        %vm1537 = vcmask 990208
        %v1538 = vsel %vm1537, %v1522, %v1524
        %v1539 = vsel %vm1537, %v1524, %v1526
        %v1540 = vsel %vm1537, %v1526, %v1528
        %v1541 = vsel %vm1537, %v1528, %v1530
        %v1542 = vsel %vm1537, %v1530, %v1532
        %v1543 = vsel %vm1537, %v1532, %v1534
        %v1544 = vsel %vm1537, %v1534, %v1536
        %v1554 = vmul.f32 %v1499, %v1522
        %v1555 = vmul.f32 %v1500, %v1538
        %v1556 = vmul.f32 %v1501, %v1539
        %v1557 = vmul.f32 %v1502, %v1540
        %v1558 = vmul.f32 %v1503, %v1541
        %v1559 = vmul.f32 %v1504, %v1542
        %v1560 = vmul.f32 %v1505, %v1543
        %v1561 = vmul.f32 %v1506, %v1544
        %v1562 = vmul.f32 %v1507, %v1536
        %v1563 = vpack.c.bf16 %v1555, %v1554
        %v1564 = vpack.c.bf16 %v1557, %v1556
        %v1565 = vpack.c.bf16 %v1559, %v1558
        %v1566 = vpack.c.bf16 %v1561, %v1560
        %v1567 = vpack.c.bf16 %v1562, %v1562
        %v1573 = vrot.slane %v1563, 6
        %v1574 = vrot.slane %v1564, 6
        %v1575 = vrot.slane %v1565, 6
        %v1576 = vrot.slane %v1566, 6
        %v1577 = vrot.slane %v1567, 6
        %1578 = vrot.lane.b32.xlu0 %v1573, 7
        %v1579 = vpop.permute.xlu0 %1578
        %1580 = vrot.lane.b32.xlu0 %v1574, 7
        %v1581 = vpop.permute.xlu0 %1580
        %1582 = vrot.lane.b32.xlu0 %v1575, 7
        %v1583 = vpop.permute.xlu0 %1582
        %1584 = vrot.lane.b32.xlu0 %v1576, 7
        %v1585 = vpop.permute.xlu0 %1584
        %1586 = vrot.lane.b32.xlu0 %v1577, 7
        %v1587 = vpop.permute.xlu0 %1586
        %v1588 = vrot.slane %v1579, 4
        %v1589 = vrot.slane %v1581, 4
        %v1590 = vrot.slane %v1583, 4
        %v1591 = vrot.slane %v1585, 4
        %v1592 = vrot.slane %v1587, 4
        %v1593 = vsel %vm396, %v1588, %v1589
        %vm1594 = vcmask 56320
        %v1595 = vsel %vm1594, %v1579, %v1593
        %v1596 = vsel %vm396, %v1589, %v1590
        %v1597 = vsel %vm1594, %v1581, %v1596
        %v1598 = vsel %vm396, %v1590, %v1591
        %v1599 = vsel %vm1594, %v1583, %v1598
        %v1600 = vsel %vm396, %v1591, %v1592
        %v1601 = vsel %vm1594, %v1585, %v1600
        %1606 = vst [vmem:[#allocation3 + $0xa0] sm:$0xcc] %v1595
        %1607 = vst [vmem:[#allocation3 + $0xa8] sm:$0xcc] %v1597
        %1608 = vst [vmem:[#allocation3 + $0xb0] sm:$0xcc] %v1599
        %1609 = vst [vmem:[#allocation3 + $0xb8] sm:$0xcc] %v1601
        %v1610 = vld [vmem:[#allocation2] sm:$0xf]
        %v1611 = vld [vmem:[#allocation2 + $0x8] sm:$0xf]
        %v1612 = vld [vmem:[#allocation2 + $0x10] sm:$0xf]
        %v1613 = vld [vmem:[#allocation2 + $0x18] sm:$0xf]
        %v1614 = vld [vmem:[#allocation2 + $0x20] sm:$0xf]
        %v1615 = vld [vmem:[#allocation2 + $0x28] sm:$0xf]
        %v1616 = vld [vmem:[#allocation2 + $0x30] sm:$0xf]
        %v1617 = vld [vmem:[#allocation2 + $0x38] sm:$0xf]
        %v1618 = vld [vmem:[#allocation2 + $0x40] sm:$0xf]
        %s1619 = scalar_lea.vmem [#allocation7], 68
        %v1620 = vld [vmem:[%s1619] ss:$8 sm:$0xf]
        %v1621 = vld [vmem:[%s1619] ss:$8 sm:$0xf0]
        %v1622 = vor.u32 %v1620, %v1621
        %v1624 = vperm.slane %v1622, 0
        %v1625 = vperm.slane %v1622, 1
        %v1626 = vperm.slane %v1622, 2
        %v1627 = vperm.slane %v1622, 3
        %v1628 = vperm.slane %v1622, 4
        %v1629 = vperm.slane %v1622, 5
        %v1630 = vperm.slane %v1622, 6
        %v1631 = vperm.slane %v1622, 7
        %1632 = vrot.lane.b32.xlu0 %v1624, 127
        %v1633 = vpop.permute.xlu0 %1632
        %1634 = vrot.lane.b32.xlu0 %v1625, 127
        %v1635 = vpop.permute.xlu0 %1634
        %1636 = vrot.lane.b32.xlu0 %v1626, 127
        %v1637 = vpop.permute.xlu0 %1636
        %1638 = vrot.lane.b32.xlu0 %v1627, 127
        %v1639 = vpop.permute.xlu0 %1638
        %1640 = vrot.lane.b32.xlu0 %v1628, 127
        %v1641 = vpop.permute.xlu0 %1640
        %1642 = vrot.lane.b32.xlu0 %v1629, 127
        %v1643 = vpop.permute.xlu0 %1642
        %1644 = vrot.lane.b32.xlu0 %v1630, 127
        %v1645 = vpop.permute.xlu0 %1644
        %1646 = vrot.lane.b32.xlu0 %v1631, 127
        %v1647 = vpop.permute.xlu0 %1646
        %vm1648 = vcmask 1039360
        %v1649 = vsel %vm1648, %v1633, %v1635
        %v1650 = vsel %vm1648, %v1635, %v1637
        %v1651 = vsel %vm1648, %v1637, %v1639
        %v1652 = vsel %vm1648, %v1639, %v1641
        %v1653 = vsel %vm1648, %v1641, %v1643
        %v1654 = vsel %vm1648, %v1643, %v1645
        %v1655 = vsel %vm1648, %v1645, %v1647
        %v1665 = vmul.f32 %v1610, %v1633
        %v1666 = vmul.f32 %v1611, %v1649
        %v1667 = vmul.f32 %v1612, %v1650
        %v1668 = vmul.f32 %v1613, %v1651
        %v1669 = vmul.f32 %v1614, %v1652
        %v1670 = vmul.f32 %v1615, %v1653
        %v1671 = vmul.f32 %v1616, %v1654
        %v1672 = vmul.f32 %v1617, %v1655
        %v1673 = vmul.f32 %v1618, %v1647
        %v1674 = vpack.c.bf16 %v1666, %v1665
        %v1675 = vpack.c.bf16 %v1668, %v1667
        %v1676 = vpack.c.bf16 %v1670, %v1669
        %v1677 = vpack.c.bf16 %v1672, %v1671
        %v1678 = vpack.c.bf16 %v1673, %v1673
        %1684 = vrot.lane.b32.xlu0 %v1674, 1
        %v1685 = vpop.permute.xlu0 %1684
        %1686 = vrot.lane.b32.xlu0 %v1675, 1
        %v1687 = vpop.permute.xlu0 %1686
        %1688 = vrot.lane.b32.xlu0 %v1676, 1
        %v1689 = vpop.permute.xlu0 %1688
        %1690 = vrot.lane.b32.xlu0 %v1677, 1
        %v1691 = vpop.permute.xlu0 %1690
        %1692 = vrot.lane.b32.xlu0 %v1678, 1
        %v1693 = vpop.permute.xlu0 %1692
        %v1694 = vrot.slane %v1685, 4
        %v1695 = vrot.slane %v1687, 4
        %v1696 = vrot.slane %v1689, 4
        %v1697 = vrot.slane %v1691, 4
        %v1698 = vrot.slane %v1693, 4
        %v1699 = vsel %vm396, %v1694, %v1695
        %vm1700 = vcmask 7168
        %v1701 = vsel %vm1700, %v1685, %v1699
        %v1702 = vsel %vm396, %v1695, %v1696
        %v1703 = vsel %vm1700, %v1687, %v1702
        %v1704 = vsel %vm396, %v1696, %v1697
        %v1705 = vsel %vm1700, %v1689, %v1704
        %v1706 = vsel %vm396, %v1697, %v1698
        %v1707 = vsel %vm1700, %v1691, %v1706
        %1712 = vst [vmem:[#allocation3 + $0xc0] sm:$0x33] %v1701
        %1713 = vst [vmem:[#allocation3 + $0xc8] sm:$0x33] %v1703
        %1714 = vst [vmem:[#allocation3 + $0xd0] sm:$0x33] %v1705
        %1715 = vst [vmem:[#allocation3 + $0xd8] sm:$0x33] %v1707
        %v1716 = vld [vmem:[#allocation2 + $0x8] sm:$0xf]
        %v1717 = vld [vmem:[#allocation2 + $0x10] sm:$0xf]
        %v1718 = vld [vmem:[#allocation2 + $0x18] sm:$0xf]
        %v1719 = vld [vmem:[#allocation2 + $0x20] sm:$0xf]
        %v1720 = vld [vmem:[#allocation2 + $0x28] sm:$0xf]
        %v1721 = vld [vmem:[#allocation2 + $0x30] sm:$0xf]
        %v1722 = vld [vmem:[#allocation2 + $0x38] sm:$0xf]
        %v1723 = vld [vmem:[#allocation2 + $0x40] sm:$0xf]
        %v1724 = vpack.c.bf16 %v1717, %v1716
        %v1725 = vpack.c.bf16 %v1719, %v1718
        %v1726 = vpack.c.bf16 %v1721, %v1720
        %v1727 = vpack.c.bf16 %v1723, %v1722
        %v1732 = vrot.slane %v1724, 6
        %v1733 = vrot.slane %v1725, 6
        %v1734 = vrot.slane %v1726, 6
        %v1735 = vrot.slane %v1727, 6
        %1740 = vst [vmem:[#allocation3 + $0xc0] sm:$0xcc] %v1732
        %1741 = vst [vmem:[#allocation3 + $0xc8] sm:$0xcc] %v1733
        %1742 = vst [vmem:[#allocation3 + $0xd0] sm:$0xcc] %v1734
        %1743 = vst [vmem:[#allocation3 + $0xd8] sm:$0xcc] %v1735
        %v1744 = vld [vmem:[#allocation2 + $0x8] sm:$0xf]
        %v1745 = vld [vmem:[#allocation2 + $0x10] sm:$0xf]
        %v1746 = vld [vmem:[#allocation2 + $0x18] sm:$0xf]
        %v1747 = vld [vmem:[#allocation2 + $0x20] sm:$0xf]
        %v1748 = vld [vmem:[#allocation2 + $0x28] sm:$0xf]
        %v1749 = vld [vmem:[#allocation2 + $0x30] sm:$0xf]
        %v1750 = vld [vmem:[#allocation2 + $0x38] sm:$0xf]
        %v1751 = vld [vmem:[#allocation2 + $0x40] sm:$0xf]
        %v1752 = vld [vmem:[#allocation2 + $0x48] sm:$0xf]
        %s1753 = scalar_lea.vmem [#allocation7], 70
        %v1754 = vld [vmem:[%s1753] ss:$8 sm:$0xf]
        %v1755 = vld [vmem:[%s1753] ss:$8 sm:$0xf0]
        %v1756 = vor.u32 %v1754, %v1755
        %v1758 = vperm.slane %v1756, 0
        %v1759 = vperm.slane %v1756, 1
        %v1760 = vperm.slane %v1756, 2
        %v1761 = vperm.slane %v1756, 3
        %v1762 = vperm.slane %v1756, 4
        %v1763 = vperm.slane %v1756, 5
        %v1764 = vperm.slane %v1756, 6
        %v1765 = vperm.slane %v1756, 7
        %1766 = vrot.lane.b32.xlu0 %v1758, 1
        %v1767 = vpop.permute.xlu0 %1766
        %1768 = vrot.lane.b32.xlu0 %v1759, 1
        %v1769 = vpop.permute.xlu0 %1768
        %1770 = vrot.lane.b32.xlu0 %v1760, 1
        %v1771 = vpop.permute.xlu0 %1770
        %1772 = vrot.lane.b32.xlu0 %v1761, 1
        %v1773 = vpop.permute.xlu0 %1772
        %1774 = vrot.lane.b32.xlu0 %v1762, 1
        %v1775 = vpop.permute.xlu0 %1774
        %1776 = vrot.lane.b32.xlu0 %v1763, 1
        %v1777 = vpop.permute.xlu0 %1776
        %1778 = vrot.lane.b32.xlu0 %v1764, 1
        %v1779 = vpop.permute.xlu0 %1778
        %1780 = vrot.lane.b32.xlu0 %v1765, 1
        %v1781 = vpop.permute.xlu0 %1780
        %vm1782 = vcmask 7168
        %v1783 = vsel %vm1782, %v1767, %v1769
        %v1784 = vsel %vm1782, %v1769, %v1771
        %v1785 = vsel %vm1782, %v1771, %v1773
        %v1786 = vsel %vm1782, %v1773, %v1775
        %v1787 = vsel %vm1782, %v1775, %v1777
        %v1788 = vsel %vm1782, %v1777, %v1779
        %v1789 = vsel %vm1782, %v1779, %v1781
        %v1799 = vmul.f32 %v1744, %v1767
        %v1800 = vmul.f32 %v1745, %v1783
        %v1801 = vmul.f32 %v1746, %v1784
        %v1802 = vmul.f32 %v1747, %v1785
        %v1803 = vmul.f32 %v1748, %v1786
        %v1804 = vmul.f32 %v1749, %v1787
        %v1805 = vmul.f32 %v1750, %v1788
        %v1806 = vmul.f32 %v1751, %v1789
        %v1807 = vmul.f32 %v1752, %v1781
        %v1808 = vpack.c.bf16 %v1800, %v1799
        %v1809 = vpack.c.bf16 %v1802, %v1801
        %v1810 = vpack.c.bf16 %v1804, %v1803
        %v1811 = vpack.c.bf16 %v1806, %v1805
        %v1812 = vpack.c.bf16 %v1807, %v1807
        %1818 = vrot.lane.b32.xlu0 %v1808, 127
        %v1819 = vpop.permute.xlu0 %1818
        %1820 = vrot.lane.b32.xlu0 %v1809, 127
        %v1821 = vpop.permute.xlu0 %1820
        %1822 = vrot.lane.b32.xlu0 %v1810, 127
        %v1823 = vpop.permute.xlu0 %1822
        %1824 = vrot.lane.b32.xlu0 %v1811, 127
        %v1825 = vpop.permute.xlu0 %1824
        %1826 = vrot.lane.b32.xlu0 %v1812, 127
        %v1827 = vpop.permute.xlu0 %1826
        %v1828 = vrot.slane %v1819, 4
        %v1829 = vrot.slane %v1821, 4
        %v1830 = vrot.slane %v1823, 4
        %v1831 = vrot.slane %v1825, 4
        %v1832 = vrot.slane %v1827, 4
        %v1833 = vsel %vm396, %v1828, %v1829
        %vm1834 = vcmask 1039360
        %v1835 = vsel %vm1834, %v1819, %v1833
        %v1836 = vsel %vm396, %v1829, %v1830
        %v1837 = vsel %vm1834, %v1821, %v1836
        %v1838 = vsel %vm396, %v1830, %v1831
        %v1839 = vsel %vm1834, %v1823, %v1838
        %v1840 = vsel %vm396, %v1831, %v1832
        %v1841 = vsel %vm1834, %v1825, %v1840
        %1846 = vst [vmem:[#allocation3 + $0xe0] sm:$0x33] %v1835
        %1847 = vst [vmem:[#allocation3 + $0xe8] sm:$0x33] %v1837
        %1848 = vst [vmem:[#allocation3 + $0xf0] sm:$0x33] %v1839
        %1849 = vst [vmem:[#allocation3 + $0xf8] sm:$0x33] %v1841
        %v1850 = vld [vmem:[#allocation2 + $0x8] sm:$0xf]
        %v1851 = vld [vmem:[#allocation2 + $0x10] sm:$0xf]
        %v1852 = vld [vmem:[#allocation2 + $0x18] sm:$0xf]
        %v1853 = vld [vmem:[#allocation2 + $0x20] sm:$0xf]
        %v1854 = vld [vmem:[#allocation2 + $0x28] sm:$0xf]
        %v1855 = vld [vmem:[#allocation2 + $0x30] sm:$0xf]
        %v1856 = vld [vmem:[#allocation2 + $0x38] sm:$0xf]
        %v1857 = vld [vmem:[#allocation2 + $0x40] sm:$0xf]
        %v1858 = vld [vmem:[#allocation2 + $0x48] sm:$0xf]
        %s1859 = scalar_lea.vmem [#allocation7], 71
        %v1860 = vld [vmem:[%s1859] ss:$8 sm:$0xf]
        %v1861 = vld [vmem:[%s1859] ss:$8 sm:$0xf0]
        %v1862 = vor.u32 %v1860, %v1861
        %v1864 = vperm.slane %v1862, 0
        %v1865 = vperm.slane %v1862, 1
        %v1866 = vperm.slane %v1862, 2
        %v1867 = vperm.slane %v1862, 3
        %v1868 = vperm.slane %v1862, 4
        %v1869 = vperm.slane %v1862, 5
        %v1870 = vperm.slane %v1862, 6
        %v1871 = vperm.slane %v1862, 7
        %1872 = vrot.lane.b32.xlu0 %v1864, 7
        %v1873 = vpop.permute.xlu0 %1872
        %1874 = vrot.lane.b32.xlu0 %v1865, 7
        %v1875 = vpop.permute.xlu0 %1874
        %1876 = vrot.lane.b32.xlu0 %v1866, 7
        %v1877 = vpop.permute.xlu0 %1876
        %1878 = vrot.lane.b32.xlu0 %v1867, 7
        %v1879 = vpop.permute.xlu0 %1878
        %1880 = vrot.lane.b32.xlu0 %v1868, 7
        %v1881 = vpop.permute.xlu0 %1880
        %1882 = vrot.lane.b32.xlu0 %v1869, 7
        %v1883 = vpop.permute.xlu0 %1882
        %1884 = vrot.lane.b32.xlu0 %v1870, 7
        %v1885 = vpop.permute.xlu0 %1884
        %1886 = vrot.lane.b32.xlu0 %v1871, 7
        %v1887 = vpop.permute.xlu0 %1886
        %vm1888 = vcmask 56320
        %v1889 = vsel %vm1888, %v1873, %v1875
        %v1890 = vsel %vm1888, %v1875, %v1877
        %v1891 = vsel %vm1888, %v1877, %v1879
        %v1892 = vsel %vm1888, %v1879, %v1881
        %v1893 = vsel %vm1888, %v1881, %v1883
        %v1894 = vsel %vm1888, %v1883, %v1885
        %v1895 = vsel %vm1888, %v1885, %v1887
        %v1905 = vmul.f32 %v1850, %v1873
        %v1906 = vmul.f32 %v1851, %v1889
        %v1907 = vmul.f32 %v1852, %v1890
        %v1908 = vmul.f32 %v1853, %v1891
        %v1909 = vmul.f32 %v1854, %v1892
        %v1910 = vmul.f32 %v1855, %v1893
        %v1911 = vmul.f32 %v1856, %v1894
        %v1912 = vmul.f32 %v1857, %v1895
        %v1913 = vmul.f32 %v1858, %v1887
        %v1914 = vpack.c.bf16 %v1906, %v1905
        %v1915 = vpack.c.bf16 %v1908, %v1907
        %v1916 = vpack.c.bf16 %v1910, %v1909
        %v1917 = vpack.c.bf16 %v1912, %v1911
        %v1918 = vpack.c.bf16 %v1913, %v1913
        %v1924 = vrot.slane %v1914, 6
        %v1925 = vrot.slane %v1915, 6
        %v1926 = vrot.slane %v1916, 6
        %v1927 = vrot.slane %v1917, 6
        %v1928 = vrot.slane %v1918, 6
        %1929 = vrot.lane.b32.xlu0 %v1924, 121
        %v1930 = vpop.permute.xlu0 %1929
        %1931 = vrot.lane.b32.xlu0 %v1925, 121
        %v1932 = vpop.permute.xlu0 %1931
        %1933 = vrot.lane.b32.xlu0 %v1926, 121
        %v1934 = vpop.permute.xlu0 %1933
        %1935 = vrot.lane.b32.xlu0 %v1927, 121
        %v1936 = vpop.permute.xlu0 %1935
        %1937 = vrot.lane.b32.xlu0 %v1928, 121
        %v1938 = vpop.permute.xlu0 %1937
        %v1939 = vrot.slane %v1930, 4
        %v1940 = vrot.slane %v1932, 4
        %v1941 = vrot.slane %v1934, 4
        %v1942 = vrot.slane %v1936, 4
        %v1943 = vrot.slane %v1938, 4
        %v1944 = vsel %vm396, %v1939, %v1940
        %vm1945 = vcmask 990208
        %v1946 = vsel %vm1945, %v1930, %v1944
        %v1947 = vsel %vm396, %v1940, %v1941
        %v1948 = vsel %vm1945, %v1932, %v1947
        %v1949 = vsel %vm396, %v1941, %v1942
        %v1950 = vsel %vm1945, %v1934, %v1949
        %v1951 = vsel %vm396, %v1942, %v1943
        %v1952 = vsel %vm1945, %v1936, %v1951
        %1957 = vst [vmem:[#allocation3 + $0xe0] sm:$0xcc] %v1946
        %1958 = vst [vmem:[#allocation3 + $0xe8] sm:$0xcc] %v1948
        %1959 = vst [vmem:[#allocation3 + $0xf0] sm:$0xcc] %v1950
        %1960 = vst [vmem:[#allocation3 + $0xf8] sm:$0xcc] %v1952
        %v1961 = vld [vmem:[#allocation2 + $0x8] sm:$0xf]
        %v1962 = vld [vmem:[#allocation2 + $0x10] sm:$0xf]
        %v1963 = vld [vmem:[#allocation2 + $0x18] sm:$0xf]
        %v1964 = vld [vmem:[#allocation2 + $0x20] sm:$0xf]
        %v1965 = vld [vmem:[#allocation2 + $0x28] sm:$0xf]
        %v1966 = vld [vmem:[#allocation2 + $0x30] sm:$0xf]
        %v1967 = vld [vmem:[#allocation2 + $0x38] sm:$0xf]
        %v1968 = vld [vmem:[#allocation2 + $0x40] sm:$0xf]
        %v1969 = vld [vmem:[#allocation2 + $0x48] sm:$0xf]
        %s1970 = scalar_lea.vmem [#allocation7], 128
        %v1971 = vld [vmem:[%s1970] ss:$8 sm:$0xf]
        %v1972 = vld [vmem:[%s1970] ss:$8 sm:$0xf0]
        %v1973 = vor.u32 %v1971, %v1972
        %v1975 = vperm.slane %v1973, 0
        %v1976 = vperm.slane %v1973, 1
        %v1977 = vperm.slane %v1973, 2
        %v1978 = vperm.slane %v1973, 3
        %v1979 = vperm.slane %v1973, 4
        %v1980 = vperm.slane %v1973, 5
        %v1981 = vperm.slane %v1973, 6
        %v1982 = vperm.slane %v1973, 7
        %1983 = vrot.lane.b32.xlu0 %v1975, 8
        %v1984 = vpop.permute.xlu0 %1983
        %1985 = vrot.lane.b32.xlu0 %v1976, 8
        %v1986 = vpop.permute.xlu0 %1985
        %1987 = vrot.lane.b32.xlu0 %v1977, 8
        %v1988 = vpop.permute.xlu0 %1987
        %1989 = vrot.lane.b32.xlu0 %v1978, 8
        %v1990 = vpop.permute.xlu0 %1989
        %1991 = vrot.lane.b32.xlu0 %v1979, 8
        %v1992 = vpop.permute.xlu0 %1991
        %1993 = vrot.lane.b32.xlu0 %v1980, 8
        %v1994 = vpop.permute.xlu0 %1993
        %1995 = vrot.lane.b32.xlu0 %v1981, 8
        %v1996 = vpop.permute.xlu0 %1995
        %1997 = vrot.lane.b32.xlu0 %v1982, 8
        %v1998 = vpop.permute.xlu0 %1997
        %vm1999 = vcmask 64512
        %v2000 = vsel %vm1999, %v1984, %v1986
        %v2001 = vsel %vm1999, %v1986, %v1988
        %v2002 = vsel %vm1999, %v1988, %v1990
        %v2003 = vsel %vm1999, %v1990, %v1992
        %v2004 = vsel %vm1999, %v1992, %v1994
        %v2005 = vsel %vm1999, %v1994, %v1996
        %v2006 = vsel %vm1999, %v1996, %v1998
        %v2016 = vmul.f32 %v1961, %v1984
        %v2017 = vmul.f32 %v1962, %v2000
        %v2018 = vmul.f32 %v1963, %v2001
        %v2019 = vmul.f32 %v1964, %v2002
        %v2020 = vmul.f32 %v1965, %v2003
        %v2021 = vmul.f32 %v1966, %v2004
        %v2022 = vmul.f32 %v1967, %v2005
        %v2023 = vmul.f32 %v1968, %v2006
        %v2024 = vmul.f32 %v1969, %v1998
        %v2025 = vpack.c.bf16 %v2017, %v2016
        %v2026 = vpack.c.bf16 %v2019, %v2018
        %v2027 = vpack.c.bf16 %v2021, %v2020
        %v2028 = vpack.c.bf16 %v2023, %v2022
        %v2029 = vpack.c.bf16 %v2024, %v2024
        %2035 = vrot.lane.b32.xlu0 %v2025, 120
        %v2036 = vpop.permute.xlu0 %2035
        %2037 = vrot.lane.b32.xlu0 %v2026, 120
        %v2038 = vpop.permute.xlu0 %2037
        %2039 = vrot.lane.b32.xlu0 %v2027, 120
        %v2040 = vpop.permute.xlu0 %2039
        %2041 = vrot.lane.b32.xlu0 %v2028, 120
        %v2042 = vpop.permute.xlu0 %2041
        %2043 = vrot.lane.b32.xlu0 %v2029, 120
        %v2044 = vpop.permute.xlu0 %2043
        %v2045 = vrot.slane %v2036, 4
        %v2046 = vrot.slane %v2038, 4
        %v2047 = vrot.slane %v2040, 4
        %v2048 = vrot.slane %v2042, 4
        %v2049 = vrot.slane %v2044, 4
        %v2050 = vsel %vm396, %v2045, %v2046
        %vm2051 = vcmask 982016
        %v2052 = vsel %vm2051, %v2036, %v2050
        %v2053 = vsel %vm396, %v2046, %v2047
        %v2054 = vsel %vm2051, %v2038, %v2053
        %v2055 = vsel %vm396, %v2047, %v2048
        %v2056 = vsel %vm2051, %v2040, %v2055
        %v2057 = vsel %vm396, %v2048, %v2049
        %v2058 = vsel %vm2051, %v2042, %v2057
        %2063 = vst [vmem:[#allocation3 + $0x100] sm:$0x33] %v2052
        %2064 = vst [vmem:[#allocation3 + $0x108] sm:$0x33] %v2054
        %2065 = vst [vmem:[#allocation3 + $0x110] sm:$0x33] %v2056
        %2066 = vst [vmem:[#allocation3 + $0x118] sm:$0x33] %v2058
        %v2067 = vld [vmem:[#allocation2 + $0x8] sm:$0xf]
        %v2068 = vld [vmem:[#allocation2 + $0x10] sm:$0xf]
        %v2069 = vld [vmem:[#allocation2 + $0x18] sm:$0xf]
        %v2070 = vld [vmem:[#allocation2 + $0x20] sm:$0xf]
        %v2071 = vld [vmem:[#allocation2 + $0x28] sm:$0xf]
        %v2072 = vld [vmem:[#allocation2 + $0x30] sm:$0xf]
        %v2073 = vld [vmem:[#allocation2 + $0x38] sm:$0xf]
        %v2074 = vld [vmem:[#allocation2 + $0x40] sm:$0xf]
        %v2075 = vld [vmem:[#allocation2 + $0x48] sm:$0xf]
        %s2076 = scalar_lea.vmem [#allocation7], 129
        %v2077 = vld [vmem:[%s2076] ss:$8 sm:$0xf]
        %v2078 = vld [vmem:[%s2076] ss:$8 sm:$0xf0]
        %v2079 = vor.u32 %v2077, %v2078
        %v2081 = vperm.slane %v2079, 0
        %v2082 = vperm.slane %v2079, 1
        %v2083 = vperm.slane %v2079, 2
        %v2084 = vperm.slane %v2079, 3
        %v2085 = vperm.slane %v2079, 4
        %v2086 = vperm.slane %v2079, 5
        %v2087 = vperm.slane %v2079, 6
        %v2088 = vperm.slane %v2079, 7
        %2089 = vrot.lane.b32.xlu0 %v2081, 9
        %v2090 = vpop.permute.xlu0 %2089
        %2091 = vrot.lane.b32.xlu0 %v2082, 9
        %v2092 = vpop.permute.xlu0 %2091
        %2093 = vrot.lane.b32.xlu0 %v2083, 9
        %v2094 = vpop.permute.xlu0 %2093
        %2095 = vrot.lane.b32.xlu0 %v2084, 9
        %v2096 = vpop.permute.xlu0 %2095
        %2097 = vrot.lane.b32.xlu0 %v2085, 9
        %v2098 = vpop.permute.xlu0 %2097
        %2099 = vrot.lane.b32.xlu0 %v2086, 9
        %v2100 = vpop.permute.xlu0 %2099
        %2101 = vrot.lane.b32.xlu0 %v2087, 9
        %v2102 = vpop.permute.xlu0 %2101
        %2103 = vrot.lane.b32.xlu0 %v2088, 9
        %v2104 = vpop.permute.xlu0 %2103
        %vm2105 = vcmask 72704
        %v2106 = vsel %vm2105, %v2090, %v2092
        %v2107 = vsel %vm2105, %v2092, %v2094
        %v2108 = vsel %vm2105, %v2094, %v2096
        %v2109 = vsel %vm2105, %v2096, %v2098
        %v2110 = vsel %vm2105, %v2098, %v2100
        %v2111 = vsel %vm2105, %v2100, %v2102
        %v2112 = vsel %vm2105, %v2102, %v2104
        %v2122 = vmul.f32 %v2067, %v2090
        %v2123 = vmul.f32 %v2068, %v2106
        %v2124 = vmul.f32 %v2069, %v2107
        %v2125 = vmul.f32 %v2070, %v2108
        %v2126 = vmul.f32 %v2071, %v2109
        %v2127 = vmul.f32 %v2072, %v2110
        %v2128 = vmul.f32 %v2073, %v2111
        %v2129 = vmul.f32 %v2074, %v2112
        %v2130 = vmul.f32 %v2075, %v2104
        %v2131 = vpack.c.bf16 %v2123, %v2122
        %v2132 = vpack.c.bf16 %v2125, %v2124
        %v2133 = vpack.c.bf16 %v2127, %v2126
        %v2134 = vpack.c.bf16 %v2129, %v2128
        %v2135 = vpack.c.bf16 %v2130, %v2130
        %v2141 = vrot.slane %v2131, 6
        %v2142 = vrot.slane %v2132, 6
        %v2143 = vrot.slane %v2133, 6
        %v2144 = vrot.slane %v2134, 6
        %v2145 = vrot.slane %v2135, 6
        %2146 = vrot.lane.b32.xlu0 %v2141, 119
        %v2147 = vpop.permute.xlu0 %2146
        %2148 = vrot.lane.b32.xlu0 %v2142, 119
        %v2149 = vpop.permute.xlu0 %2148
        %2150 = vrot.lane.b32.xlu0 %v2143, 119
        %v2151 = vpop.permute.xlu0 %2150
        %2152 = vrot.lane.b32.xlu0 %v2144, 119
        %v2153 = vpop.permute.xlu0 %2152
        %2154 = vrot.lane.b32.xlu0 %v2145, 119
        %v2155 = vpop.permute.xlu0 %2154
        %v2156 = vrot.slane %v2147, 4
        %v2157 = vrot.slane %v2149, 4
        %v2158 = vrot.slane %v2151, 4
        %v2159 = vrot.slane %v2153, 4
        %v2160 = vrot.slane %v2155, 4
        %v2161 = vsel %vm396, %v2156, %v2157
        %vm2162 = vcmask 973824
        %v2163 = vsel %vm2162, %v2147, %v2161
        %v2164 = vsel %vm396, %v2157, %v2158
        %v2165 = vsel %vm2162, %v2149, %v2164
        %v2166 = vsel %vm396, %v2158, %v2159
        %v2167 = vsel %vm2162, %v2151, %v2166
        %v2168 = vsel %vm396, %v2159, %v2160
        %v2169 = vsel %vm2162, %v2153, %v2168
        %2174 = vst [vmem:[#allocation3 + $0x100] sm:$0xcc] %v2163
        %2175 = vst [vmem:[#allocation3 + $0x108] sm:$0xcc] %v2165
        %2176 = vst [vmem:[#allocation3 + $0x110] sm:$0xcc] %v2167
        %2177 = vst [vmem:[#allocation3 + $0x118] sm:$0xcc] %v2169
        %v2178 = vld [vmem:[#allocation2 + $0x8] sm:$0xf]
        %v2179 = vld [vmem:[#allocation2 + $0x10] sm:$0xf]
        %v2180 = vld [vmem:[#allocation2 + $0x18] sm:$0xf]
        %v2181 = vld [vmem:[#allocation2 + $0x20] sm:$0xf]
        %v2182 = vld [vmem:[#allocation2 + $0x28] sm:$0xf]
        %v2183 = vld [vmem:[#allocation2 + $0x30] sm:$0xf]
        %v2184 = vld [vmem:[#allocation2 + $0x38] sm:$0xf]
        %v2185 = vld [vmem:[#allocation2 + $0x40] sm:$0xf]
        %v2186 = vld [vmem:[#allocation2 + $0x48] sm:$0xf]
        %s2187 = scalar_lea.vmem [#allocation7], 130
        %v2188 = vld [vmem:[%s2187] ss:$8 sm:$0xf]
        %v2189 = vld [vmem:[%s2187] ss:$8 sm:$0xf0]
        %v2190 = vor.u32 %v2188, %v2189
        %v2192 = vperm.slane %v2190, 0
        %v2193 = vperm.slane %v2190, 1
        %v2194 = vperm.slane %v2190, 2
        %v2195 = vperm.slane %v2190, 3
        %v2196 = vperm.slane %v2190, 4
        %v2197 = vperm.slane %v2190, 5
        %v2198 = vperm.slane %v2190, 6
        %v2199 = vperm.slane %v2190, 7
        %2200 = vrot.lane.b32.xlu0 %v2192, 55
        %v2201 = vpop.permute.xlu0 %2200
        %2202 = vrot.lane.b32.xlu0 %v2193, 55
        %v2203 = vpop.permute.xlu0 %2202
        %2204 = vrot.lane.b32.xlu0 %v2194, 55
        %v2205 = vpop.permute.xlu0 %2204
        %2206 = vrot.lane.b32.xlu0 %v2195, 55
        %v2207 = vpop.permute.xlu0 %2206
        %2208 = vrot.lane.b32.xlu0 %v2196, 55
        %v2209 = vpop.permute.xlu0 %2208
        %2210 = vrot.lane.b32.xlu0 %v2197, 55
        %v2211 = vpop.permute.xlu0 %2210
        %2212 = vrot.lane.b32.xlu0 %v2198, 55
        %v2213 = vpop.permute.xlu0 %2212
        %2214 = vrot.lane.b32.xlu0 %v2199, 55
        %v2215 = vpop.permute.xlu0 %2214
        %v2216 = vsel %vm345, %v2201, %v2203
        %v2217 = vsel %vm345, %v2203, %v2205
        %v2218 = vsel %vm345, %v2205, %v2207
        %v2219 = vsel %vm345, %v2207, %v2209
        %v2220 = vsel %vm345, %v2209, %v2211
        %v2221 = vsel %vm345, %v2211, %v2213
        %v2222 = vsel %vm345, %v2213, %v2215
        %v2232 = vmul.f32 %v2178, %v2201
        %v2233 = vmul.f32 %v2179, %v2216
        %v2234 = vmul.f32 %v2180, %v2217
        %v2235 = vmul.f32 %v2181, %v2218
        %v2236 = vmul.f32 %v2182, %v2219
        %v2237 = vmul.f32 %v2183, %v2220
        %v2238 = vmul.f32 %v2184, %v2221
        %v2239 = vmul.f32 %v2185, %v2222
        %v2240 = vmul.f32 %v2186, %v2215
        %v2241 = vpack.c.bf16 %v2233, %v2232
        %v2242 = vpack.c.bf16 %v2235, %v2234
        %v2243 = vpack.c.bf16 %v2237, %v2236
        %v2244 = vpack.c.bf16 %v2239, %v2238
        %v2245 = vpack.c.bf16 %v2240, %v2240
        %2251 = vrot.lane.b32.xlu0 %v2241, 73
        %v2252 = vpop.permute.xlu0 %2251
        %2253 = vrot.lane.b32.xlu0 %v2242, 73
        %v2254 = vpop.permute.xlu0 %2253
        %2255 = vrot.lane.b32.xlu0 %v2243, 73
        %v2256 = vpop.permute.xlu0 %2255
        %2257 = vrot.lane.b32.xlu0 %v2244, 73
        %v2258 = vpop.permute.xlu0 %2257
        %2259 = vrot.lane.b32.xlu0 %v2245, 73
        %v2260 = vpop.permute.xlu0 %2259
        %v2261 = vrot.slane %v2252, 4
        %v2262 = vrot.slane %v2254, 4
        %v2263 = vrot.slane %v2256, 4
        %v2264 = vrot.slane %v2258, 4
        %v2265 = vrot.slane %v2260, 4
        %v2266 = vsel %vm396, %v2261, %v2262
        %v2267 = vsel %vm398, %v2252, %v2266
        %v2268 = vsel %vm396, %v2262, %v2263
        %v2269 = vsel %vm398, %v2254, %v2268
        %v2270 = vsel %vm396, %v2263, %v2264
        %v2271 = vsel %vm398, %v2256, %v2270
        %v2272 = vsel %vm396, %v2264, %v2265
        %v2273 = vsel %vm398, %v2258, %v2272
        %2278 = vst [vmem:[#allocation3 + $0x120] sm:$0x33] %v2267
        %2279 = vst [vmem:[#allocation3 + $0x128] sm:$0x33] %v2269
        %2280 = vst [vmem:[#allocation3 + $0x130] sm:$0x33] %v2271
        %2281 = vst [vmem:[#allocation3 + $0x138] sm:$0x33] %v2273
        %v2282 = vld [vmem:[#allocation2 + $0x8] sm:$0xf]
        %v2283 = vld [vmem:[#allocation2 + $0x10] sm:$0xf]
        %v2284 = vld [vmem:[#allocation2 + $0x18] sm:$0xf]
        %v2285 = vld [vmem:[#allocation2 + $0x20] sm:$0xf]
        %v2286 = vld [vmem:[#allocation2 + $0x28] sm:$0xf]
        %v2287 = vld [vmem:[#allocation2 + $0x30] sm:$0xf]
        %v2288 = vld [vmem:[#allocation2 + $0x38] sm:$0xf]
        %v2289 = vld [vmem:[#allocation2 + $0x40] sm:$0xf]
        %v2290 = vld [vmem:[#allocation2 + $0x48] sm:$0xf]
        %s2291 = scalar_lea.vmem [#allocation7], 131
        %v2292 = vld [vmem:[%s2291] ss:$8 sm:$0xf]
        %v2293 = vld [vmem:[%s2291] ss:$8 sm:$0xf0]
        %v2294 = vor.u32 %v2292, %v2293
        %v2296 = vperm.slane %v2294, 0
        %v2297 = vperm.slane %v2294, 1
        %v2298 = vperm.slane %v2294, 2
        %v2299 = vperm.slane %v2294, 3
        %v2300 = vperm.slane %v2294, 4
        %v2301 = vperm.slane %v2294, 5
        %v2302 = vperm.slane %v2294, 6
        %v2303 = vperm.slane %v2294, 7
        %2304 = vrot.lane.b32.xlu0 %v2296, 56
        %v2305 = vpop.permute.xlu0 %2304
        %2306 = vrot.lane.b32.xlu0 %v2297, 56
        %v2307 = vpop.permute.xlu0 %2306
        %2308 = vrot.lane.b32.xlu0 %v2298, 56
        %v2309 = vpop.permute.xlu0 %2308
        %2310 = vrot.lane.b32.xlu0 %v2299, 56
        %v2311 = vpop.permute.xlu0 %2310
        %2312 = vrot.lane.b32.xlu0 %v2300, 56
        %v2313 = vpop.permute.xlu0 %2312
        %2314 = vrot.lane.b32.xlu0 %v2301, 56
        %v2315 = vpop.permute.xlu0 %2314
        %2316 = vrot.lane.b32.xlu0 %v2302, 56
        %v2317 = vpop.permute.xlu0 %2316
        %2318 = vrot.lane.b32.xlu0 %v2303, 56
        %v2319 = vpop.permute.xlu0 %2318
        %v2320 = vsel %vm452, %v2305, %v2307
        %v2321 = vsel %vm452, %v2307, %v2309
        %v2322 = vsel %vm452, %v2309, %v2311
        %v2323 = vsel %vm452, %v2311, %v2313
        %v2324 = vsel %vm452, %v2313, %v2315
        %v2325 = vsel %vm452, %v2315, %v2317
        %v2326 = vsel %vm452, %v2317, %v2319
        %v2336 = vmul.f32 %v2282, %v2305
        %v2337 = vmul.f32 %v2283, %v2320
        %v2338 = vmul.f32 %v2284, %v2321
        %v2339 = vmul.f32 %v2285, %v2322
        %v2340 = vmul.f32 %v2286, %v2323
        %v2341 = vmul.f32 %v2287, %v2324
        %v2342 = vmul.f32 %v2288, %v2325
        %v2343 = vmul.f32 %v2289, %v2326
        %v2344 = vmul.f32 %v2290, %v2319
        %v2345 = vpack.c.bf16 %v2337, %v2336
        %v2346 = vpack.c.bf16 %v2339, %v2338
        %v2347 = vpack.c.bf16 %v2341, %v2340
        %v2348 = vpack.c.bf16 %v2343, %v2342
        %v2349 = vpack.c.bf16 %v2344, %v2344
        %v2355 = vrot.slane %v2345, 6
        %v2356 = vrot.slane %v2346, 6
        %v2357 = vrot.slane %v2347, 6
        %v2358 = vrot.slane %v2348, 6
        %v2359 = vrot.slane %v2349, 6
        %2360 = vrot.lane.b32.xlu0 %v2355, 72
        %v2361 = vpop.permute.xlu0 %2360
        %2362 = vrot.lane.b32.xlu0 %v2356, 72
        %v2363 = vpop.permute.xlu0 %2362
        %2364 = vrot.lane.b32.xlu0 %v2357, 72
        %v2365 = vpop.permute.xlu0 %2364
        %2366 = vrot.lane.b32.xlu0 %v2358, 72
        %v2367 = vpop.permute.xlu0 %2366
        %2368 = vrot.lane.b32.xlu0 %v2359, 72
        %v2369 = vpop.permute.xlu0 %2368
        %v2370 = vrot.slane %v2361, 4
        %v2371 = vrot.slane %v2363, 4
        %v2372 = vrot.slane %v2365, 4
        %v2373 = vrot.slane %v2367, 4
        %v2374 = vrot.slane %v2369, 4
        %v2375 = vsel %vm396, %v2370, %v2371
        %v2376 = vsel %vm509, %v2361, %v2375
        %v2377 = vsel %vm396, %v2371, %v2372
        %v2378 = vsel %vm509, %v2363, %v2377
        %v2379 = vsel %vm396, %v2372, %v2373
        %v2380 = vsel %vm509, %v2365, %v2379
        %v2381 = vsel %vm396, %v2373, %v2374
        %v2382 = vsel %vm509, %v2367, %v2381
        %2387 = vst [vmem:[#allocation3 + $0x120] sm:$0xcc] %v2376
        %2388 = vst [vmem:[#allocation3 + $0x128] sm:$0xcc] %v2378
        %2389 = vst [vmem:[#allocation3 + $0x130] sm:$0xcc] %v2380
        %2390 = vst [vmem:[#allocation3 + $0x138] sm:$0xcc] %v2382
        %v2391 = vld [vmem:[#allocation2 + $0x8] sm:$0xf]
        %v2392 = vld [vmem:[#allocation2 + $0x10] sm:$0xf]
        %v2393 = vld [vmem:[#allocation2 + $0x18] sm:$0xf]
        %v2394 = vld [vmem:[#allocation2 + $0x20] sm:$0xf]
        %v2395 = vld [vmem:[#allocation2 + $0x28] sm:$0xf]
        %v2396 = vld [vmem:[#allocation2 + $0x30] sm:$0xf]
        %v2397 = vld [vmem:[#allocation2 + $0x38] sm:$0xf]
        %v2398 = vld [vmem:[#allocation2 + $0x40] sm:$0xf]
        %v2399 = vld [vmem:[#allocation2 + $0x48] sm:$0xf]
        %s2400 = scalar_lea.vmem [#allocation7], 132
        %v2401 = vld [vmem:[%s2400] ss:$8 sm:$0xf]
        %v2402 = vld [vmem:[%s2400] ss:$8 sm:$0xf0]
        %v2403 = vor.u32 %v2401, %v2402
        %v2405 = vperm.slane %v2403, 0
        %v2406 = vperm.slane %v2403, 1
        %v2407 = vperm.slane %v2403, 2
        %v2408 = vperm.slane %v2403, 3
        %v2409 = vperm.slane %v2403, 4
        %v2410 = vperm.slane %v2403, 5
        %v2411 = vperm.slane %v2403, 6
        %v2412 = vperm.slane %v2403, 7
        %2413 = vrot.lane.b32.xlu0 %v2405, 57
        %v2414 = vpop.permute.xlu0 %2413
        %2415 = vrot.lane.b32.xlu0 %v2406, 57
        %v2416 = vpop.permute.xlu0 %2415
        %2417 = vrot.lane.b32.xlu0 %v2407, 57
        %v2418 = vpop.permute.xlu0 %2417
        %2419 = vrot.lane.b32.xlu0 %v2408, 57
        %v2420 = vpop.permute.xlu0 %2419
        %2421 = vrot.lane.b32.xlu0 %v2409, 57
        %v2422 = vpop.permute.xlu0 %2421
        %2423 = vrot.lane.b32.xlu0 %v2410, 57
        %v2424 = vpop.permute.xlu0 %2423
        %2425 = vrot.lane.b32.xlu0 %v2411, 57
        %v2426 = vpop.permute.xlu0 %2425
        %2427 = vrot.lane.b32.xlu0 %v2412, 57
        %v2428 = vpop.permute.xlu0 %2427
        %v2429 = vsel %vm563, %v2414, %v2416
        %v2430 = vsel %vm563, %v2416, %v2418
        %v2431 = vsel %vm563, %v2418, %v2420
        %v2432 = vsel %vm563, %v2420, %v2422
        %v2433 = vsel %vm563, %v2422, %v2424
        %v2434 = vsel %vm563, %v2424, %v2426
        %v2435 = vsel %vm563, %v2426, %v2428
        %v2445 = vmul.f32 %v2391, %v2414
        %v2446 = vmul.f32 %v2392, %v2429
        %v2447 = vmul.f32 %v2393, %v2430
        %v2448 = vmul.f32 %v2394, %v2431
        %v2449 = vmul.f32 %v2395, %v2432
        %v2450 = vmul.f32 %v2396, %v2433
        %v2451 = vmul.f32 %v2397, %v2434
        %v2452 = vmul.f32 %v2398, %v2435
        %v2453 = vmul.f32 %v2399, %v2428
        %v2454 = vpack.c.bf16 %v2446, %v2445
        %v2455 = vpack.c.bf16 %v2448, %v2447
        %v2456 = vpack.c.bf16 %v2450, %v2449
        %v2457 = vpack.c.bf16 %v2452, %v2451
        %v2458 = vpack.c.bf16 %v2453, %v2453
        %2464 = vrot.lane.b32.xlu0 %v2454, 71
        %v2465 = vpop.permute.xlu0 %2464
        %2466 = vrot.lane.b32.xlu0 %v2455, 71
        %v2467 = vpop.permute.xlu0 %2466
        %2468 = vrot.lane.b32.xlu0 %v2456, 71
        %v2469 = vpop.permute.xlu0 %2468
        %2470 = vrot.lane.b32.xlu0 %v2457, 71
        %v2471 = vpop.permute.xlu0 %2470
        %2472 = vrot.lane.b32.xlu0 %v2458, 71
        %v2473 = vpop.permute.xlu0 %2472
        %v2474 = vrot.slane %v2465, 4
        %v2475 = vrot.slane %v2467, 4
        %v2476 = vrot.slane %v2469, 4
        %v2477 = vrot.slane %v2471, 4
        %v2478 = vrot.slane %v2473, 4
        %v2479 = vsel %vm396, %v2474, %v2475
        %v2480 = vsel %vm615, %v2465, %v2479
        %v2481 = vsel %vm396, %v2475, %v2476
        %v2482 = vsel %vm615, %v2467, %v2481
        %v2483 = vsel %vm396, %v2476, %v2477
        %v2484 = vsel %vm615, %v2469, %v2483
        %v2485 = vsel %vm396, %v2477, %v2478
        %v2486 = vsel %vm615, %v2471, %v2485
        %2491 = vst [vmem:[#allocation3 + $0x140] sm:$0x33] %v2480
        %2492 = vst [vmem:[#allocation3 + $0x148] sm:$0x33] %v2482
        %2493 = vst [vmem:[#allocation3 + $0x150] sm:$0x33] %v2484
        %2494 = vst [vmem:[#allocation3 + $0x158] sm:$0x33] %v2486
        %v2495 = vld [vmem:[#allocation2 + $0x8] sm:$0xf]
        %v2496 = vld [vmem:[#allocation2 + $0x10] sm:$0xf]
        %v2497 = vld [vmem:[#allocation2 + $0x18] sm:$0xf]
        %v2498 = vld [vmem:[#allocation2 + $0x20] sm:$0xf]
        %v2499 = vld [vmem:[#allocation2 + $0x28] sm:$0xf]
        %v2500 = vld [vmem:[#allocation2 + $0x30] sm:$0xf]
        %v2501 = vld [vmem:[#allocation2 + $0x38] sm:$0xf]
        %v2502 = vld [vmem:[#allocation2 + $0x40] sm:$0xf]
        %v2503 = vld [vmem:[#allocation2 + $0x48] sm:$0xf]
        %s2504 = scalar_lea.vmem [#allocation7], 133
        %v2505 = vld [vmem:[%s2504] ss:$8 sm:$0xf]
        %v2506 = vld [vmem:[%s2504] ss:$8 sm:$0xf0]
        %v2507 = vor.u32 %v2505, %v2506
        %v2509 = vperm.slane %v2507, 0
        %v2510 = vperm.slane %v2507, 1
        %v2511 = vperm.slane %v2507, 2
        %v2512 = vperm.slane %v2507, 3
        %v2513 = vperm.slane %v2507, 4
        %v2514 = vperm.slane %v2507, 5
        %v2515 = vperm.slane %v2507, 6
        %v2516 = vperm.slane %v2507, 7
        %2517 = vrot.lane.b32.xlu0 %v2509, 63
        %v2518 = vpop.permute.xlu0 %2517
        %2519 = vrot.lane.b32.xlu0 %v2510, 63
        %v2520 = vpop.permute.xlu0 %2519
        %2521 = vrot.lane.b32.xlu0 %v2511, 63
        %v2522 = vpop.permute.xlu0 %2521
        %2523 = vrot.lane.b32.xlu0 %v2512, 63
        %v2524 = vpop.permute.xlu0 %2523
        %2525 = vrot.lane.b32.xlu0 %v2513, 63
        %v2526 = vpop.permute.xlu0 %2525
        %2527 = vrot.lane.b32.xlu0 %v2514, 63
        %v2528 = vpop.permute.xlu0 %2527
        %2529 = vrot.lane.b32.xlu0 %v2515, 63
        %v2530 = vpop.permute.xlu0 %2529
        %2531 = vrot.lane.b32.xlu0 %v2516, 63
        %v2532 = vpop.permute.xlu0 %2531
        %v2533 = vsel %vm669, %v2518, %v2520
        %v2534 = vsel %vm669, %v2520, %v2522
        %v2535 = vsel %vm669, %v2522, %v2524
        %v2536 = vsel %vm669, %v2524, %v2526
        %v2537 = vsel %vm669, %v2526, %v2528
        %v2538 = vsel %vm669, %v2528, %v2530
        %v2539 = vsel %vm669, %v2530, %v2532
        %v2549 = vmul.f32 %v2495, %v2518
        %v2550 = vmul.f32 %v2496, %v2533
        %v2551 = vmul.f32 %v2497, %v2534
        %v2552 = vmul.f32 %v2498, %v2535
        %v2553 = vmul.f32 %v2499, %v2536
        %v2554 = vmul.f32 %v2500, %v2537
        %v2555 = vmul.f32 %v2501, %v2538
        %v2556 = vmul.f32 %v2502, %v2539
        %v2557 = vmul.f32 %v2503, %v2532
        %v2558 = vpack.c.bf16 %v2550, %v2549
        %v2559 = vpack.c.bf16 %v2552, %v2551
        %v2560 = vpack.c.bf16 %v2554, %v2553
        %v2561 = vpack.c.bf16 %v2556, %v2555
        %v2562 = vpack.c.bf16 %v2557, %v2557
        %v2568 = vrot.slane %v2558, 6
        %v2569 = vrot.slane %v2559, 6
        %v2570 = vrot.slane %v2560, 6
        %v2571 = vrot.slane %v2561, 6
        %v2572 = vrot.slane %v2562, 6
        %2573 = vrot.lane.b32.xlu0 %v2568, 65
        %v2574 = vpop.permute.xlu0 %2573
        %2575 = vrot.lane.b32.xlu0 %v2569, 65
        %v2576 = vpop.permute.xlu0 %2575
        %2577 = vrot.lane.b32.xlu0 %v2570, 65
        %v2578 = vpop.permute.xlu0 %2577
        %2579 = vrot.lane.b32.xlu0 %v2571, 65
        %v2580 = vpop.permute.xlu0 %2579
        %2581 = vrot.lane.b32.xlu0 %v2572, 65
        %v2582 = vpop.permute.xlu0 %2581
        %v2583 = vrot.slane %v2574, 4
        %v2584 = vrot.slane %v2576, 4
        %v2585 = vrot.slane %v2578, 4
        %v2586 = vrot.slane %v2580, 4
        %v2587 = vrot.slane %v2582, 4
        %v2588 = vsel %vm396, %v2583, %v2584
        %v2589 = vsel %vm726, %v2574, %v2588
        %v2590 = vsel %vm396, %v2584, %v2585
        %v2591 = vsel %vm726, %v2576, %v2590
        %v2592 = vsel %vm396, %v2585, %v2586
        %v2593 = vsel %vm726, %v2578, %v2592
        %v2594 = vsel %vm396, %v2586, %v2587
        %v2595 = vsel %vm726, %v2580, %v2594
        %2600 = vst [vmem:[#allocation3 + $0x140] sm:$0xcc] %v2589
        %2601 = vst [vmem:[#allocation3 + $0x148] sm:$0xcc] %v2591
        %2602 = vst [vmem:[#allocation3 + $0x150] sm:$0xcc] %v2593
        %2603 = vst [vmem:[#allocation3 + $0x158] sm:$0xcc] %v2595
        %v2604 = vld [vmem:[#allocation2 + $0x8] sm:$0xf]
        %v2605 = vld [vmem:[#allocation2 + $0x10] sm:$0xf]
        %v2606 = vld [vmem:[#allocation2 + $0x18] sm:$0xf]
        %v2607 = vld [vmem:[#allocation2 + $0x20] sm:$0xf]
        %v2608 = vld [vmem:[#allocation2 + $0x28] sm:$0xf]
        %v2609 = vld [vmem:[#allocation2 + $0x30] sm:$0xf]
        %v2610 = vld [vmem:[#allocation2 + $0x38] sm:$0xf]
        %v2611 = vld [vmem:[#allocation2 + $0x40] sm:$0xf]
        %v2612 = vld [vmem:[#allocation2 + $0x48] sm:$0xf]
        %s2613 = scalar_lea.vmem [#allocation7], 134
        %v2614 = vld [vmem:[%s2613] ss:$8 sm:$0xf]
        %v2615 = vld [vmem:[%s2613] ss:$8 sm:$0xf0]
        %v2616 = vor.u32 %v2614, %v2615
        %v2618 = vperm.slane %v2616, 0
        %v2619 = vperm.slane %v2616, 1
        %v2620 = vperm.slane %v2616, 2
        %v2621 = vperm.slane %v2616, 3
        %v2622 = vperm.slane %v2616, 4
        %v2623 = vperm.slane %v2616, 5
        %v2624 = vperm.slane %v2616, 6
        %v2625 = vperm.slane %v2616, 7
        %2626 = vrot.lane.b32.xlu0 %v2618, 64
        %v2627 = vpop.permute.xlu0 %2626
        %2628 = vrot.lane.b32.xlu0 %v2619, 64
        %v2629 = vpop.permute.xlu0 %2628
        %2630 = vrot.lane.b32.xlu0 %v2620, 64
        %v2631 = vpop.permute.xlu0 %2630
        %2632 = vrot.lane.b32.xlu0 %v2621, 64
        %v2633 = vpop.permute.xlu0 %2632
        %2634 = vrot.lane.b32.xlu0 %v2622, 64
        %v2635 = vpop.permute.xlu0 %2634
        %2636 = vrot.lane.b32.xlu0 %v2623, 64
        %v2637 = vpop.permute.xlu0 %2636
        %2638 = vrot.lane.b32.xlu0 %v2624, 64
        %v2639 = vpop.permute.xlu0 %2638
        %2640 = vrot.lane.b32.xlu0 %v2625, 64
        %v2641 = vpop.permute.xlu0 %2640
        %v2642 = vsel %vm780, %v2627, %v2629
        %v2643 = vsel %vm780, %v2629, %v2631
        %v2644 = vsel %vm780, %v2631, %v2633
        %v2645 = vsel %vm780, %v2633, %v2635
        %v2646 = vsel %vm780, %v2635, %v2637
        %v2647 = vsel %vm780, %v2637, %v2639
        %v2648 = vsel %vm780, %v2639, %v2641
        %v2658 = vmul.f32 %v2604, %v2627
        %v2659 = vmul.f32 %v2605, %v2642
        %v2660 = vmul.f32 %v2606, %v2643
        %v2661 = vmul.f32 %v2607, %v2644
        %v2662 = vmul.f32 %v2608, %v2645
        %v2663 = vmul.f32 %v2609, %v2646
        %v2664 = vmul.f32 %v2610, %v2647
        %v2665 = vmul.f32 %v2611, %v2648
        %v2666 = vmul.f32 %v2612, %v2641
        %v2667 = vpack.c.bf16 %v2659, %v2658
        %v2668 = vpack.c.bf16 %v2661, %v2660
        %v2669 = vpack.c.bf16 %v2663, %v2662
        %v2670 = vpack.c.bf16 %v2665, %v2664
        %v2671 = vpack.c.bf16 %v2666, %v2666
        %2677 = vrot.lane.b32.xlu0 %v2667, 64
        %v2678 = vpop.permute.xlu0 %2677
        %2679 = vrot.lane.b32.xlu0 %v2668, 64
        %v2680 = vpop.permute.xlu0 %2679
        %2681 = vrot.lane.b32.xlu0 %v2669, 64
        %v2682 = vpop.permute.xlu0 %2681
        %2683 = vrot.lane.b32.xlu0 %v2670, 64
        %v2684 = vpop.permute.xlu0 %2683
        %2685 = vrot.lane.b32.xlu0 %v2671, 64
        %v2686 = vpop.permute.xlu0 %2685
        %v2687 = vrot.slane %v2678, 4
        %v2688 = vrot.slane %v2680, 4
        %v2689 = vrot.slane %v2682, 4
        %v2690 = vrot.slane %v2684, 4
        %v2691 = vrot.slane %v2686, 4
        %v2692 = vsel %vm396, %v2687, %v2688
        %v2693 = vsel %vm832, %v2678, %v2692
        %v2694 = vsel %vm396, %v2688, %v2689
        %v2695 = vsel %vm832, %v2680, %v2694
        %v2696 = vsel %vm396, %v2689, %v2690
        %v2697 = vsel %vm832, %v2682, %v2696
        %v2698 = vsel %vm396, %v2690, %v2691
        %v2699 = vsel %vm832, %v2684, %v2698
        %2704 = vst [vmem:[#allocation3 + $0x160] sm:$0x33] %v2693
        %2705 = vst [vmem:[#allocation3 + $0x168] sm:$0x33] %v2695
        %2706 = vst [vmem:[#allocation3 + $0x170] sm:$0x33] %v2697
        %2707 = vst [vmem:[#allocation3 + $0x178] sm:$0x33] %v2699
        %v2708 = vld [vmem:[#allocation2 + $0x8] sm:$0xf]
        %v2709 = vld [vmem:[#allocation2 + $0x10] sm:$0xf]
        %v2710 = vld [vmem:[#allocation2 + $0x18] sm:$0xf]
        %v2711 = vld [vmem:[#allocation2 + $0x20] sm:$0xf]
        %v2712 = vld [vmem:[#allocation2 + $0x28] sm:$0xf]
        %v2713 = vld [vmem:[#allocation2 + $0x30] sm:$0xf]
        %v2714 = vld [vmem:[#allocation2 + $0x38] sm:$0xf]
        %v2715 = vld [vmem:[#allocation2 + $0x40] sm:$0xf]
        %v2716 = vld [vmem:[#allocation2 + $0x48] sm:$0xf]
        %s2717 = scalar_lea.vmem [#allocation7], 135
        %v2718 = vld [vmem:[%s2717] ss:$8 sm:$0xf]
        %v2719 = vld [vmem:[%s2717] ss:$8 sm:$0xf0]
        %v2720 = vor.u32 %v2718, %v2719
        %v2722 = vperm.slane %v2720, 0
        %v2723 = vperm.slane %v2720, 1
        %v2724 = vperm.slane %v2720, 2
        %v2725 = vperm.slane %v2720, 3
        %v2726 = vperm.slane %v2720, 4
        %v2727 = vperm.slane %v2720, 5
        %v2728 = vperm.slane %v2720, 6
        %v2729 = vperm.slane %v2720, 7
        %2730 = vrot.lane.b32.xlu0 %v2722, 65
        %v2731 = vpop.permute.xlu0 %2730
        %2732 = vrot.lane.b32.xlu0 %v2723, 65
        %v2733 = vpop.permute.xlu0 %2732
        %2734 = vrot.lane.b32.xlu0 %v2724, 65
        %v2735 = vpop.permute.xlu0 %2734
        %2736 = vrot.lane.b32.xlu0 %v2725, 65
        %v2737 = vpop.permute.xlu0 %2736
        %2738 = vrot.lane.b32.xlu0 %v2726, 65
        %v2739 = vpop.permute.xlu0 %2738
        %2740 = vrot.lane.b32.xlu0 %v2727, 65
        %v2741 = vpop.permute.xlu0 %2740
        %2742 = vrot.lane.b32.xlu0 %v2728, 65
        %v2743 = vpop.permute.xlu0 %2742
        %2744 = vrot.lane.b32.xlu0 %v2729, 65
        %v2745 = vpop.permute.xlu0 %2744
        %v2746 = vsel %vm886, %v2731, %v2733
        %v2747 = vsel %vm886, %v2733, %v2735
        %v2748 = vsel %vm886, %v2735, %v2737
        %v2749 = vsel %vm886, %v2737, %v2739
        %v2750 = vsel %vm886, %v2739, %v2741
        %v2751 = vsel %vm886, %v2741, %v2743
        %v2752 = vsel %vm886, %v2743, %v2745
        %v2762 = vmul.f32 %v2708, %v2731
        %v2763 = vmul.f32 %v2709, %v2746
        %v2764 = vmul.f32 %v2710, %v2747
        %v2765 = vmul.f32 %v2711, %v2748
        %v2766 = vmul.f32 %v2712, %v2749
        %v2767 = vmul.f32 %v2713, %v2750
        %v2768 = vmul.f32 %v2714, %v2751
        %v2769 = vmul.f32 %v2715, %v2752
        %v2770 = vmul.f32 %v2716, %v2745
        %v2771 = vpack.c.bf16 %v2763, %v2762
        %v2772 = vpack.c.bf16 %v2765, %v2764
        %v2773 = vpack.c.bf16 %v2767, %v2766
        %v2774 = vpack.c.bf16 %v2769, %v2768
        %v2775 = vpack.c.bf16 %v2770, %v2770
        %v2781 = vrot.slane %v2771, 6
        %v2782 = vrot.slane %v2772, 6
        %v2783 = vrot.slane %v2773, 6
        %v2784 = vrot.slane %v2774, 6
        %v2785 = vrot.slane %v2775, 6
        %2786 = vrot.lane.b32.xlu0 %v2781, 63
        %v2787 = vpop.permute.xlu0 %2786
        %2788 = vrot.lane.b32.xlu0 %v2782, 63
        %v2789 = vpop.permute.xlu0 %2788
        %2790 = vrot.lane.b32.xlu0 %v2783, 63
        %v2791 = vpop.permute.xlu0 %2790
        %2792 = vrot.lane.b32.xlu0 %v2784, 63
        %v2793 = vpop.permute.xlu0 %2792
        %2794 = vrot.lane.b32.xlu0 %v2785, 63
        %v2795 = vpop.permute.xlu0 %2794
        %v2796 = vrot.slane %v2787, 4
        %v2797 = vrot.slane %v2789, 4
        %v2798 = vrot.slane %v2791, 4
        %v2799 = vrot.slane %v2793, 4
        %v2800 = vrot.slane %v2795, 4
        %v2801 = vsel %vm396, %v2796, %v2797
        %v2802 = vsel %vm943, %v2787, %v2801
        %v2803 = vsel %vm396, %v2797, %v2798
        %v2804 = vsel %vm943, %v2789, %v2803
        %v2805 = vsel %vm396, %v2798, %v2799
        %v2806 = vsel %vm943, %v2791, %v2805
        %v2807 = vsel %vm396, %v2799, %v2800
        %v2808 = vsel %vm943, %v2793, %v2807
        %2813 = vst [vmem:[#allocation3 + $0x160] sm:$0xcc] %v2802
        %2814 = vst [vmem:[#allocation3 + $0x168] sm:$0xcc] %v2804
        %2815 = vst [vmem:[#allocation3 + $0x170] sm:$0xcc] %v2806
        %2816 = vst [vmem:[#allocation3 + $0x178] sm:$0xcc] %v2808
        %v2817 = vld [vmem:[#allocation2 + $0x8] sm:$0xf]
        %v2818 = vld [vmem:[#allocation2 + $0x10] sm:$0xf]
        %v2819 = vld [vmem:[#allocation2 + $0x18] sm:$0xf]
        %v2820 = vld [vmem:[#allocation2 + $0x20] sm:$0xf]
        %v2821 = vld [vmem:[#allocation2 + $0x28] sm:$0xf]
        %v2822 = vld [vmem:[#allocation2 + $0x30] sm:$0xf]
        %v2823 = vld [vmem:[#allocation2 + $0x38] sm:$0xf]
        %v2824 = vld [vmem:[#allocation2 + $0x40] sm:$0xf]
        %v2825 = vld [vmem:[#allocation2 + $0x48] sm:$0xf]
        %s2826 = scalar_lea.vmem [#allocation7], 192
        %v2827 = vld [vmem:[%s2826] ss:$8 sm:$0xf]
        %v2828 = vld [vmem:[%s2826] ss:$8 sm:$0xf0]
        %v2829 = vor.u32 %v2827, %v2828
        %v2831 = vperm.slane %v2829, 0
        %v2832 = vperm.slane %v2829, 1
        %v2833 = vperm.slane %v2829, 2
        %v2834 = vperm.slane %v2829, 3
        %v2835 = vperm.slane %v2829, 4
        %v2836 = vperm.slane %v2829, 5
        %v2837 = vperm.slane %v2829, 6
        %v2838 = vperm.slane %v2829, 7
        %2839 = vrot.lane.b32.xlu0 %v2831, 71
        %v2840 = vpop.permute.xlu0 %2839
        %2841 = vrot.lane.b32.xlu0 %v2832, 71
        %v2842 = vpop.permute.xlu0 %2841
        %2843 = vrot.lane.b32.xlu0 %v2833, 71
        %v2844 = vpop.permute.xlu0 %2843
        %2845 = vrot.lane.b32.xlu0 %v2834, 71
        %v2846 = vpop.permute.xlu0 %2845
        %2847 = vrot.lane.b32.xlu0 %v2835, 71
        %v2848 = vpop.permute.xlu0 %2847
        %2849 = vrot.lane.b32.xlu0 %v2836, 71
        %v2850 = vpop.permute.xlu0 %2849
        %2851 = vrot.lane.b32.xlu0 %v2837, 71
        %v2852 = vpop.permute.xlu0 %2851
        %2853 = vrot.lane.b32.xlu0 %v2838, 71
        %v2854 = vpop.permute.xlu0 %2853
        %v2855 = vsel %vm997, %v2840, %v2842
        %v2856 = vsel %vm997, %v2842, %v2844
        %v2857 = vsel %vm997, %v2844, %v2846
        %v2858 = vsel %vm997, %v2846, %v2848
        %v2859 = vsel %vm997, %v2848, %v2850
        %v2860 = vsel %vm997, %v2850, %v2852
        %v2861 = vsel %vm997, %v2852, %v2854
        %v2871 = vmul.f32 %v2817, %v2840
        %v2872 = vmul.f32 %v2818, %v2855
        %v2873 = vmul.f32 %v2819, %v2856
        %v2874 = vmul.f32 %v2820, %v2857
        %v2875 = vmul.f32 %v2821, %v2858
        %v2876 = vmul.f32 %v2822, %v2859
        %v2877 = vmul.f32 %v2823, %v2860
        %v2878 = vmul.f32 %v2824, %v2861
        %v2879 = vmul.f32 %v2825, %v2854
        %v2880 = vpack.c.bf16 %v2872, %v2871
        %v2881 = vpack.c.bf16 %v2874, %v2873
        %v2882 = vpack.c.bf16 %v2876, %v2875
        %v2883 = vpack.c.bf16 %v2878, %v2877
        %v2884 = vpack.c.bf16 %v2879, %v2879
        %2890 = vrot.lane.b32.xlu0 %v2880, 57
        %v2891 = vpop.permute.xlu0 %2890
        %2892 = vrot.lane.b32.xlu0 %v2881, 57
        %v2893 = vpop.permute.xlu0 %2892
        %2894 = vrot.lane.b32.xlu0 %v2882, 57
        %v2895 = vpop.permute.xlu0 %2894
        %2896 = vrot.lane.b32.xlu0 %v2883, 57
        %v2897 = vpop.permute.xlu0 %2896
        %2898 = vrot.lane.b32.xlu0 %v2884, 57
        %v2899 = vpop.permute.xlu0 %2898
        %v2900 = vrot.slane %v2891, 4
        %v2901 = vrot.slane %v2893, 4
        %v2902 = vrot.slane %v2895, 4
        %v2903 = vrot.slane %v2897, 4
        %v2904 = vrot.slane %v2899, 4
        %v2905 = vsel %vm396, %v2900, %v2901
        %v2906 = vsel %vm1049, %v2891, %v2905
        %v2907 = vsel %vm396, %v2901, %v2902
        %v2908 = vsel %vm1049, %v2893, %v2907
        %v2909 = vsel %vm396, %v2902, %v2903
        %v2910 = vsel %vm1049, %v2895, %v2909
        %v2911 = vsel %vm396, %v2903, %v2904
        %v2912 = vsel %vm1049, %v2897, %v2911
        %2917 = vst [vmem:[#allocation3 + $0x180] sm:$0x33] %v2906
        %2918 = vst [vmem:[#allocation3 + $0x188] sm:$0x33] %v2908
        %2919 = vst [vmem:[#allocation3 + $0x190] sm:$0x33] %v2910
        %2920 = vst [vmem:[#allocation3 + $0x198] sm:$0x33] %v2912
        %v2921 = vld [vmem:[#allocation2 + $0x8] sm:$0xf]
        %v2922 = vld [vmem:[#allocation2 + $0x10] sm:$0xf]
        %v2923 = vld [vmem:[#allocation2 + $0x18] sm:$0xf]
        %v2924 = vld [vmem:[#allocation2 + $0x20] sm:$0xf]
        %v2925 = vld [vmem:[#allocation2 + $0x28] sm:$0xf]
        %v2926 = vld [vmem:[#allocation2 + $0x30] sm:$0xf]
        %v2927 = vld [vmem:[#allocation2 + $0x38] sm:$0xf]
        %v2928 = vld [vmem:[#allocation2 + $0x40] sm:$0xf]
        %v2929 = vld [vmem:[#allocation2 + $0x48] sm:$0xf]
        %s2930 = scalar_lea.vmem [#allocation7], 193
        %v2931 = vld [vmem:[%s2930] ss:$8 sm:$0xf]
        %v2932 = vld [vmem:[%s2930] ss:$8 sm:$0xf0]
        %v2933 = vor.u32 %v2931, %v2932
        %v2935 = vperm.slane %v2933, 0
        %v2936 = vperm.slane %v2933, 1
        %v2937 = vperm.slane %v2933, 2
        %v2938 = vperm.slane %v2933, 3
        %v2939 = vperm.slane %v2933, 4
        %v2940 = vperm.slane %v2933, 5
        %v2941 = vperm.slane %v2933, 6
        %v2942 = vperm.slane %v2933, 7
        %2943 = vrot.lane.b32.xlu0 %v2935, 72
        %v2944 = vpop.permute.xlu0 %2943
        %2945 = vrot.lane.b32.xlu0 %v2936, 72
        %v2946 = vpop.permute.xlu0 %2945
        %2947 = vrot.lane.b32.xlu0 %v2937, 72
        %v2948 = vpop.permute.xlu0 %2947
        %2949 = vrot.lane.b32.xlu0 %v2938, 72
        %v2950 = vpop.permute.xlu0 %2949
        %2951 = vrot.lane.b32.xlu0 %v2939, 72
        %v2952 = vpop.permute.xlu0 %2951
        %2953 = vrot.lane.b32.xlu0 %v2940, 72
        %v2954 = vpop.permute.xlu0 %2953
        %2955 = vrot.lane.b32.xlu0 %v2941, 72
        %v2956 = vpop.permute.xlu0 %2955
        %2957 = vrot.lane.b32.xlu0 %v2942, 72
        %v2958 = vpop.permute.xlu0 %2957
        %v2959 = vsel %vm1103, %v2944, %v2946
        %v2960 = vsel %vm1103, %v2946, %v2948
        %v2961 = vsel %vm1103, %v2948, %v2950
        %v2962 = vsel %vm1103, %v2950, %v2952
        %v2963 = vsel %vm1103, %v2952, %v2954
        %v2964 = vsel %vm1103, %v2954, %v2956
        %v2965 = vsel %vm1103, %v2956, %v2958
        %v2975 = vmul.f32 %v2921, %v2944
        %v2976 = vmul.f32 %v2922, %v2959
        %v2977 = vmul.f32 %v2923, %v2960
        %v2978 = vmul.f32 %v2924, %v2961
        %v2979 = vmul.f32 %v2925, %v2962
        %v2980 = vmul.f32 %v2926, %v2963
        %v2981 = vmul.f32 %v2927, %v2964
        %v2982 = vmul.f32 %v2928, %v2965
        %v2983 = vmul.f32 %v2929, %v2958
        %v2984 = vpack.c.bf16 %v2976, %v2975
        %v2985 = vpack.c.bf16 %v2978, %v2977
        %v2986 = vpack.c.bf16 %v2980, %v2979
        %v2987 = vpack.c.bf16 %v2982, %v2981
        %v2988 = vpack.c.bf16 %v2983, %v2983
        %v2994 = vrot.slane %v2984, 6
        %v2995 = vrot.slane %v2985, 6
        %v2996 = vrot.slane %v2986, 6
        %v2997 = vrot.slane %v2987, 6
        %v2998 = vrot.slane %v2988, 6
        %2999 = vrot.lane.b32.xlu0 %v2994, 56
        %v3000 = vpop.permute.xlu0 %2999
        %3001 = vrot.lane.b32.xlu0 %v2995, 56
        %v3002 = vpop.permute.xlu0 %3001
        %3003 = vrot.lane.b32.xlu0 %v2996, 56
        %v3004 = vpop.permute.xlu0 %3003
        %3005 = vrot.lane.b32.xlu0 %v2997, 56
        %v3006 = vpop.permute.xlu0 %3005
        %3007 = vrot.lane.b32.xlu0 %v2998, 56
        %v3008 = vpop.permute.xlu0 %3007
        %v3009 = vrot.slane %v3000, 4
        %v3010 = vrot.slane %v3002, 4
        %v3011 = vrot.slane %v3004, 4
        %v3012 = vrot.slane %v3006, 4
        %v3013 = vrot.slane %v3008, 4
        %v3014 = vsel %vm396, %v3009, %v3010
        %v3015 = vsel %vm1160, %v3000, %v3014
        %v3016 = vsel %vm396, %v3010, %v3011
        %v3017 = vsel %vm1160, %v3002, %v3016
        %v3018 = vsel %vm396, %v3011, %v3012
        %v3019 = vsel %vm1160, %v3004, %v3018
        %v3020 = vsel %vm396, %v3012, %v3013
        %v3021 = vsel %vm1160, %v3006, %v3020
        %3026 = vst [vmem:[#allocation3 + $0x180] sm:$0xcc] %v3015
        %3027 = vst [vmem:[#allocation3 + $0x188] sm:$0xcc] %v3017
        %3028 = vst [vmem:[#allocation3 + $0x190] sm:$0xcc] %v3019
        %3029 = vst [vmem:[#allocation3 + $0x198] sm:$0xcc] %v3021
        %v3030 = vld [vmem:[#allocation2 + $0x8] sm:$0xf]
        %v3031 = vld [vmem:[#allocation2 + $0x10] sm:$0xf]
        %v3032 = vld [vmem:[#allocation2 + $0x18] sm:$0xf]
        %v3033 = vld [vmem:[#allocation2 + $0x20] sm:$0xf]
        %v3034 = vld [vmem:[#allocation2 + $0x28] sm:$0xf]
        %v3035 = vld [vmem:[#allocation2 + $0x30] sm:$0xf]
        %v3036 = vld [vmem:[#allocation2 + $0x38] sm:$0xf]
        %v3037 = vld [vmem:[#allocation2 + $0x40] sm:$0xf]
        %v3038 = vld [vmem:[#allocation2 + $0x48] sm:$0xf]
        %s3039 = scalar_lea.vmem [#allocation7], 194
        %v3040 = vld [vmem:[%s3039] ss:$8 sm:$0xf]
        %v3041 = vld [vmem:[%s3039] ss:$8 sm:$0xf0]
        %v3042 = vor.u32 %v3040, %v3041
        %v3044 = vperm.slane %v3042, 0
        %v3045 = vperm.slane %v3042, 1
        %v3046 = vperm.slane %v3042, 2
        %v3047 = vperm.slane %v3042, 3
        %v3048 = vperm.slane %v3042, 4
        %v3049 = vperm.slane %v3042, 5
        %v3050 = vperm.slane %v3042, 6
        %v3051 = vperm.slane %v3042, 7
        %3052 = vrot.lane.b32.xlu0 %v3044, 73
        %v3053 = vpop.permute.xlu0 %3052
        %3054 = vrot.lane.b32.xlu0 %v3045, 73
        %v3055 = vpop.permute.xlu0 %3054
        %3056 = vrot.lane.b32.xlu0 %v3046, 73
        %v3057 = vpop.permute.xlu0 %3056
        %3058 = vrot.lane.b32.xlu0 %v3047, 73
        %v3059 = vpop.permute.xlu0 %3058
        %3060 = vrot.lane.b32.xlu0 %v3048, 73
        %v3061 = vpop.permute.xlu0 %3060
        %3062 = vrot.lane.b32.xlu0 %v3049, 73
        %v3063 = vpop.permute.xlu0 %3062
        %3064 = vrot.lane.b32.xlu0 %v3050, 73
        %v3065 = vpop.permute.xlu0 %3064
        %3066 = vrot.lane.b32.xlu0 %v3051, 73
        %v3067 = vpop.permute.xlu0 %3066
        %v3068 = vsel %vm1214, %v3053, %v3055
        %v3069 = vsel %vm1214, %v3055, %v3057
        %v3070 = vsel %vm1214, %v3057, %v3059
        %v3071 = vsel %vm1214, %v3059, %v3061
        %v3072 = vsel %vm1214, %v3061, %v3063
        %v3073 = vsel %vm1214, %v3063, %v3065
        %v3074 = vsel %vm1214, %v3065, %v3067
        %v3084 = vmul.f32 %v3030, %v3053
        %v3085 = vmul.f32 %v3031, %v3068
        %v3086 = vmul.f32 %v3032, %v3069
        %v3087 = vmul.f32 %v3033, %v3070
        %v3088 = vmul.f32 %v3034, %v3071
        %v3089 = vmul.f32 %v3035, %v3072
        %v3090 = vmul.f32 %v3036, %v3073
        %v3091 = vmul.f32 %v3037, %v3074
        %v3092 = vmul.f32 %v3038, %v3067
        %v3093 = vpack.c.bf16 %v3085, %v3084
        %v3094 = vpack.c.bf16 %v3087, %v3086
        %v3095 = vpack.c.bf16 %v3089, %v3088
        %v3096 = vpack.c.bf16 %v3091, %v3090
        %v3097 = vpack.c.bf16 %v3092, %v3092
        %3103 = vrot.lane.b32.xlu0 %v3093, 55
        %v3104 = vpop.permute.xlu0 %3103
        %3105 = vrot.lane.b32.xlu0 %v3094, 55
        %v3106 = vpop.permute.xlu0 %3105
        %3107 = vrot.lane.b32.xlu0 %v3095, 55
        %v3108 = vpop.permute.xlu0 %3107
        %3109 = vrot.lane.b32.xlu0 %v3096, 55
        %v3110 = vpop.permute.xlu0 %3109
        %3111 = vrot.lane.b32.xlu0 %v3097, 55
        %v3112 = vpop.permute.xlu0 %3111
        %v3113 = vrot.slane %v3104, 4
        %v3114 = vrot.slane %v3106, 4
        %v3115 = vrot.slane %v3108, 4
        %v3116 = vrot.slane %v3110, 4
        %v3117 = vrot.slane %v3112, 4
        %v3118 = vsel %vm396, %v3113, %v3114
        %v3119 = vsel %vm1266, %v3104, %v3118
        %v3120 = vsel %vm396, %v3114, %v3115
        %v3121 = vsel %vm1266, %v3106, %v3120
        %v3122 = vsel %vm396, %v3115, %v3116
        %v3123 = vsel %vm1266, %v3108, %v3122
        %v3124 = vsel %vm396, %v3116, %v3117
        %v3125 = vsel %vm1266, %v3110, %v3124
        %3130 = vst [vmem:[#allocation3 + $0x1a0] sm:$0x33] %v3119
        %3131 = vst [vmem:[#allocation3 + $0x1a8] sm:$0x33] %v3121
        %3132 = vst [vmem:[#allocation3 + $0x1b0] sm:$0x33] %v3123
        %3133 = vst [vmem:[#allocation3 + $0x1b8] sm:$0x33] %v3125
        %3134 = vst [vmem:[#allocation3 + $0x1a0] sm:$0xcc] 1065369472
        %3135 = vst [vmem:[#allocation3 + $0x1a8] sm:$0xcc] 1065369472
        %3136 = vst [vmem:[#allocation3 + $0x1b0] sm:$0xcc] 1065369472
        %3137 = vst [vmem:[#allocation3 + $0x1b8] sm:$0xcc] 1065369472
        %v3138 = vld [vmem:[%s1] sm:$0xf]
        %v3139 = vld [vmem:[#allocation3] sm:$0xff]
        %v3140 = vld [vmem:[#allocation3 + $0x8] sm:$0xff]
        %v3141 = vld [vmem:[#allocation3 + $0x10] sm:$0xff]
        %v3142 = vld [vmem:[#allocation3 + $0x18] sm:$0xff]
        %v3143 = vld [vmem:[#allocation3 + $0x20] sm:$0xff]
        %v3144 = vld [vmem:[#allocation3 + $0x28] sm:$0xff]
        %v3145 = vld [vmem:[#allocation3 + $0x30] sm:$0xff]
        %v3146 = vld [vmem:[#allocation3 + $0x38] sm:$0xff]
        %v3147 = vld [vmem:[#allocation3 + $0x40] sm:$0xff]
        %v3148 = vld [vmem:[#allocation3 + $0x48] sm:$0xff]
        %v3149 = vld [vmem:[#allocation3 + $0x50] sm:$0xff]
        %v3150 = vld [vmem:[#allocation3 + $0x58] sm:$0xff]
        %v3151 = vld [vmem:[#allocation3 + $0x60] sm:$0xff]
        %v3152 = vld [vmem:[#allocation3 + $0x68] sm:$0xff]
        %v3153 = vld [vmem:[#allocation3 + $0x70] sm:$0xff]
        %v3154 = vld [vmem:[#allocation3 + $0x78] sm:$0xff]
        %v3155 = vld [vmem:[#allocation3 + $0x80] sm:$0xff]
        %v3156 = vld [vmem:[#allocation3 + $0x88] sm:$0xff]
        %v3157 = vld [vmem:[#allocation3 + $0x90] sm:$0xff]
        %v3158 = vld [vmem:[#allocation3 + $0x98] sm:$0xff]
        %v3159 = vld [vmem:[#allocation3 + $0xa0] sm:$0xff]
        %v3160 = vld [vmem:[#allocation3 + $0xa8] sm:$0xff]
        %v3161 = vld [vmem:[#allocation3 + $0xb0] sm:$0xff]
        %v3162 = vld [vmem:[#allocation3 + $0xb8] sm:$0xff]
        %v3163 = vld [vmem:[#allocation3 + $0xc0] sm:$0xff]
        %v3164 = vld [vmem:[#allocation3 + $0xc8] sm:$0xff]
        %v3165 = vld [vmem:[#allocation3 + $0xd0] sm:$0xff]
        %v3166 = vld [vmem:[#allocation3 + $0xd8] sm:$0xff]
        %v3167 = vld [vmem:[#allocation3 + $0xe0] sm:$0xff]
        %v3168 = vld [vmem:[#allocation3 + $0xe8] sm:$0xff]
        %v3169 = vld [vmem:[#allocation3 + $0xf0] sm:$0xff]
        %v3170 = vld [vmem:[#allocation3 + $0xf8] sm:$0xff]
        %v3171 = vld [vmem:[#allocation3 + $0x100] sm:$0xff]
        %v3172 = vld [vmem:[#allocation3 + $0x108] sm:$0xff]
        %v3173 = vld [vmem:[#allocation3 + $0x110] sm:$0xff]
        %v3174 = vld [vmem:[#allocation3 + $0x118] sm:$0xff]
        %v3175 = vld [vmem:[#allocation3 + $0x120] sm:$0xff]
        %v3176 = vld [vmem:[#allocation3 + $0x128] sm:$0xff]
        %v3177 = vld [vmem:[#allocation3 + $0x130] sm:$0xff]
        %v3178 = vld [vmem:[#allocation3 + $0x138] sm:$0xff]
        %v3179 = vld [vmem:[#allocation3 + $0x140] sm:$0xff]
        %v3180 = vld [vmem:[#allocation3 + $0x148] sm:$0xff]
        %v3181 = vld [vmem:[#allocation3 + $0x150] sm:$0xff]
        %v3182 = vld [vmem:[#allocation3 + $0x158] sm:$0xff]
        %v3183 = vld [vmem:[#allocation3 + $0x160] sm:$0xff]
        %v3184 = vld [vmem:[#allocation3 + $0x168] sm:$0xff]
        %v3185 = vld [vmem:[#allocation3 + $0x170] sm:$0xff]
        %v3186 = vld [vmem:[#allocation3 + $0x178] sm:$0xff]
        %v3187 = vld [vmem:[#allocation3 + $0x180] sm:$0xff]
        %v3188 = vld [vmem:[#allocation3 + $0x188] sm:$0xff]
        %v3189 = vld [vmem:[#allocation3 + $0x190] sm:$0xff]
        %v3190 = vld [vmem:[#allocation3 + $0x198] sm:$0xff]
        %v3191 = vld [vmem:[#allocation3 + $0x1a0] sm:$0xff]
        %v3192 = vld [vmem:[#allocation3 + $0x1a8] sm:$0xff]
        %v3193 = vld [vmem:[#allocation3 + $0x1b0] sm:$0xff]
        %v3194 = vld [vmem:[#allocation3 + $0x1b8] sm:$0xff]
        %v3251 = vunpack.c.l.b16 %v3139
        %v3252 = vunpack.c.h.b16 %v3139
        %v3253 = vunpack.c.l.b16 %v3140
        %v3254 = vunpack.c.h.b16 %v3140
        %v3255 = vunpack.c.l.b16 %v3141
        %v3256 = vunpack.c.h.b16 %v3141
        %v3257 = vunpack.c.l.b16 %v3142
        %v3258 = vunpack.c.h.b16 %v3142
        %v3259 = vunpack.c.l.b16 %v3143
        %v3260 = vunpack.c.h.b16 %v3143
        %v3261 = vunpack.c.l.b16 %v3144
        %v3262 = vunpack.c.h.b16 %v3144
        %v3263 = vunpack.c.l.b16 %v3145
        %v3264 = vunpack.c.h.b16 %v3145
        %v3265 = vunpack.c.l.b16 %v3146
        %v3266 = vunpack.c.h.b16 %v3146
        %v3267 = vunpack.c.l.b16 %v3147
        %v3268 = vunpack.c.h.b16 %v3147
        %v3269 = vunpack.c.l.b16 %v3148
        %v3270 = vunpack.c.h.b16 %v3148
        %v3271 = vunpack.c.l.b16 %v3149
        %v3272 = vunpack.c.h.b16 %v3149
        %v3273 = vunpack.c.l.b16 %v3150
        %v3274 = vunpack.c.h.b16 %v3150
        %v3275 = vunpack.c.l.b16 %v3151
        %v3276 = vunpack.c.h.b16 %v3151
        %v3277 = vunpack.c.l.b16 %v3152
        %v3278 = vunpack.c.h.b16 %v3152
        %v3279 = vunpack.c.l.b16 %v3153
        %v3280 = vunpack.c.h.b16 %v3153
        %v3281 = vunpack.c.l.b16 %v3154
        %v3282 = vunpack.c.h.b16 %v3154
        %v3283 = vunpack.c.l.b16 %v3155
        %v3284 = vunpack.c.h.b16 %v3155
        %v3285 = vunpack.c.l.b16 %v3156
        %v3286 = vunpack.c.h.b16 %v3156
        %v3287 = vunpack.c.l.b16 %v3157
        %v3288 = vunpack.c.h.b16 %v3157
        %v3289 = vunpack.c.l.b16 %v3158
        %v3290 = vunpack.c.h.b16 %v3158
        %v3291 = vunpack.c.l.b16 %v3159
        %v3292 = vunpack.c.h.b16 %v3159
        %v3293 = vunpack.c.l.b16 %v3160
        %v3294 = vunpack.c.h.b16 %v3160
        %v3295 = vunpack.c.l.b16 %v3161
        %v3296 = vunpack.c.h.b16 %v3161
        %v3297 = vunpack.c.l.b16 %v3162
        %v3298 = vunpack.c.h.b16 %v3162
        %v3299 = vunpack.c.l.b16 %v3163
        %v3300 = vunpack.c.h.b16 %v3163
        %v3301 = vunpack.c.l.b16 %v3164
        %v3302 = vunpack.c.h.b16 %v3164
        %v3303 = vunpack.c.l.b16 %v3165
        %v3304 = vunpack.c.h.b16 %v3165
        %v3305 = vunpack.c.l.b16 %v3166
        %v3306 = vunpack.c.h.b16 %v3166
        %v3307 = vunpack.c.l.b16 %v3167
        %v3308 = vunpack.c.h.b16 %v3167
        %v3309 = vunpack.c.l.b16 %v3168
        %v3310 = vunpack.c.h.b16 %v3168
        %v3311 = vunpack.c.l.b16 %v3169
        %v3312 = vunpack.c.h.b16 %v3169
        %v3313 = vunpack.c.l.b16 %v3170
        %v3314 = vunpack.c.h.b16 %v3170
        %v3315 = vunpack.c.l.b16 %v3171
        %v3316 = vunpack.c.h.b16 %v3171
        %v3317 = vunpack.c.l.b16 %v3172
        %v3318 = vunpack.c.h.b16 %v3172
        %v3319 = vunpack.c.l.b16 %v3173
        %v3320 = vunpack.c.h.b16 %v3173
        %v3321 = vunpack.c.l.b16 %v3174
        %v3322 = vunpack.c.h.b16 %v3174
        %v3323 = vunpack.c.l.b16 %v3175
        %v3324 = vunpack.c.h.b16 %v3175
        %v3325 = vunpack.c.l.b16 %v3176
        %v3326 = vunpack.c.h.b16 %v3176
        %v3327 = vunpack.c.l.b16 %v3177
        %v3328 = vunpack.c.h.b16 %v3177
        %v3329 = vunpack.c.l.b16 %v3178
        %v3330 = vunpack.c.h.b16 %v3178
        %v3331 = vunpack.c.l.b16 %v3179
        %v3332 = vunpack.c.h.b16 %v3179
        %v3333 = vunpack.c.l.b16 %v3180
        %v3334 = vunpack.c.h.b16 %v3180
        %v3335 = vunpack.c.l.b16 %v3181
        %v3336 = vunpack.c.h.b16 %v3181
        %v3337 = vunpack.c.l.b16 %v3182
        %v3338 = vunpack.c.h.b16 %v3182
        %v3339 = vunpack.c.l.b16 %v3183
        %v3340 = vunpack.c.h.b16 %v3183
        %v3341 = vunpack.c.l.b16 %v3184
        %v3342 = vunpack.c.h.b16 %v3184
        %v3343 = vunpack.c.l.b16 %v3185
        %v3344 = vunpack.c.h.b16 %v3185
        %v3345 = vunpack.c.l.b16 %v3186
        %v3346 = vunpack.c.h.b16 %v3186
        %v3347 = vunpack.c.l.b16 %v3187
        %v3348 = vunpack.c.h.b16 %v3187
        %v3349 = vunpack.c.l.b16 %v3188
        %v3350 = vunpack.c.h.b16 %v3188
        %v3351 = vunpack.c.l.b16 %v3189
        %v3352 = vunpack.c.h.b16 %v3189
        %v3353 = vunpack.c.l.b16 %v3190
        %v3354 = vunpack.c.h.b16 %v3190
        %v3355 = vunpack.c.l.b16 %v3191
        %v3356 = vunpack.c.h.b16 %v3191
        %v3357 = vunpack.c.l.b16 %v3192
        %v3358 = vunpack.c.h.b16 %v3192
        %v3359 = vunpack.c.l.b16 %v3193
        %v3360 = vunpack.c.h.b16 %v3193
        %v3361 = vunpack.c.l.b16 %v3194
        %v3362 = vunpack.c.h.b16 %v3194
        %v3363 = vpack.c.b16 %v3259, %v3251
        %v3364 = vpack.c.b16 %v3260, %v3252
        %v3365 = vpack.c.b16 %v3261, %v3253
        %v3366 = vpack.c.b16 %v3262, %v3254
        %v3367 = vpack.c.b16 %v3263, %v3255
        %v3368 = vpack.c.b16 %v3264, %v3256
        %v3369 = vpack.c.b16 %v3265, %v3257
        %v3370 = vpack.c.b16 %v3266, %v3258
        %v3371 = vpack.c.b16 %v3275, %v3267
        %v3372 = vpack.c.b16 %v3276, %v3268
        %v3373 = vpack.c.b16 %v3277, %v3269
        %v3374 = vpack.c.b16 %v3278, %v3270
        %v3375 = vpack.c.b16 %v3279, %v3271
        %v3376 = vpack.c.b16 %v3280, %v3272
        %v3377 = vpack.c.b16 %v3281, %v3273
        %v3378 = vpack.c.b16 %v3282, %v3274
        %v3379 = vpack.c.b16 %v3291, %v3283
        %v3380 = vpack.c.b16 %v3292, %v3284
        %v3381 = vpack.c.b16 %v3293, %v3285
        %v3382 = vpack.c.b16 %v3294, %v3286
        %v3383 = vpack.c.b16 %v3295, %v3287
        %v3384 = vpack.c.b16 %v3296, %v3288
        %v3385 = vpack.c.b16 %v3297, %v3289
        %v3386 = vpack.c.b16 %v3298, %v3290
        %v3387 = vpack.c.b16 %v3307, %v3299
        %v3388 = vpack.c.b16 %v3308, %v3300
        %v3389 = vpack.c.b16 %v3309, %v3301
        %v3390 = vpack.c.b16 %v3310, %v3302
        %v3391 = vpack.c.b16 %v3311, %v3303
        %v3392 = vpack.c.b16 %v3312, %v3304
        %v3393 = vpack.c.b16 %v3313, %v3305
        %v3394 = vpack.c.b16 %v3314, %v3306
        %v3395 = vpack.c.b16 %v3323, %v3315
        %v3396 = vpack.c.b16 %v3324, %v3316
        %v3397 = vpack.c.b16 %v3325, %v3317
        %v3398 = vpack.c.b16 %v3326, %v3318
        %v3399 = vpack.c.b16 %v3327, %v3319
        %v3400 = vpack.c.b16 %v3328, %v3320
        %v3401 = vpack.c.b16 %v3329, %v3321
        %v3402 = vpack.c.b16 %v3330, %v3322
        %v3403 = vpack.c.b16 %v3339, %v3331
        %v3404 = vpack.c.b16 %v3340, %v3332
        %v3405 = vpack.c.b16 %v3341, %v3333
        %v3406 = vpack.c.b16 %v3342, %v3334
        %v3407 = vpack.c.b16 %v3343, %v3335
        %v3408 = vpack.c.b16 %v3344, %v3336
        %v3409 = vpack.c.b16 %v3345, %v3337
        %v3410 = vpack.c.b16 %v3346, %v3338
        %v3411 = vpack.c.b16 %v3355, %v3347
        %v3412 = vpack.c.b16 %v3356, %v3348
        %v3413 = vpack.c.b16 %v3357, %v3349
        %v3414 = vpack.c.b16 %v3358, %v3350
        %v3415 = vpack.c.b16 %v3359, %v3351
        %v3416 = vpack.c.b16 %v3360, %v3352
        %v3417 = vpack.c.b16 %v3361, %v3353
        %v3418 = vpack.c.b16 %v3362, %v3354
        %vm3475 = vcmask 916480
        %v3477 = vsel %vm3475, %v3138, 0
        %3479 = vmatpush.bf16.msra.mxu0 0
        %3480 = vmatpush.bf16.msra.mxu0 %v3411
        %3481 = vmatpush.bf16.msra.mxu0 %v3403
        %3482 = vmatpush.bf16.msra.mxu0 %v3395
        %3483 = vmatpush.bf16.msra.mxu0 %v3387
        %3484 = vmatpush.bf16.msra.mxu0 %v3379
        %3485 = vmatpush.bf16.msra.mxu0 %v3371
        %3486 = vmatpush.bf16.msra.mxu0 %v3363
        %3487 = vmatmul.bf16.gmra.mxu0 %v3477
        %v3488 = vpop.f32.mrf.mxu0
        %v3489 = vadd.f32 0.0, %v3488
        %v3490 = vpop.f32.mrf.mxu0
        %3491 = vdwg.mxu0
        %3492 = vmatpush.bf16.msra.mxu0 0
        %3493 = vmatpush.bf16.msra.mxu0 %v3412
        %3494 = vmatpush.bf16.msra.mxu0 %v3404
        %3495 = vmatpush.bf16.msra.mxu0 %v3396
        %3496 = vmatpush.bf16.msra.mxu0 %v3388
        %3497 = vmatpush.bf16.msra.mxu0 %v3380
        %3498 = vmatpush.bf16.msra.mxu0 %v3372
        %3499 = vmatpush.bf16.msra.mxu0 %v3364
        %3500 = vmatmul.bf16.gmra.mxu0 %v3477
        %v3501 = vpop.f32.mrf.mxu0
        %v3502 = vadd.f32 0.0, %v3501
        %v3503 = vpop.f32.mrf.mxu0
        %3504 = vdwg.mxu0
        %3505 = vmatpush.bf16.msra.mxu0 0
        %3506 = vmatpush.bf16.msra.mxu0 %v3413
        %3507 = vmatpush.bf16.msra.mxu0 %v3405
        %3508 = vmatpush.bf16.msra.mxu0 %v3397
        %3509 = vmatpush.bf16.msra.mxu0 %v3389
        %3510 = vmatpush.bf16.msra.mxu0 %v3381
        %3511 = vmatpush.bf16.msra.mxu0 %v3373
        %3512 = vmatpush.bf16.msra.mxu0 %v3365
        %3513 = vmatmul.bf16.gmra.mxu0 %v3477
        %v3514 = vpop.f32.mrf.mxu0
        %v3515 = vadd.f32 0.0, %v3514
        %v3516 = vpop.f32.mrf.mxu0
        %3517 = vdwg.mxu0
        %3518 = vmatpush.bf16.msra.mxu0 0
        %3519 = vmatpush.bf16.msra.mxu0 %v3414
        %3520 = vmatpush.bf16.msra.mxu0 %v3406
        %3521 = vmatpush.bf16.msra.mxu0 %v3398
        %3522 = vmatpush.bf16.msra.mxu0 %v3390
        %3523 = vmatpush.bf16.msra.mxu0 %v3382
        %3524 = vmatpush.bf16.msra.mxu0 %v3374
        %3525 = vmatpush.bf16.msra.mxu0 %v3366
        %3526 = vmatmul.bf16.gmra.mxu0 %v3477
        %v3527 = vpop.f32.mrf.mxu0
        %v3528 = vadd.f32 0.0, %v3527
        %v3529 = vpop.f32.mrf.mxu0
        %3530 = vdwg.mxu0
        %3531 = vmatpush.bf16.msra.mxu0 0
        %3532 = vmatpush.bf16.msra.mxu0 %v3415
        %3533 = vmatpush.bf16.msra.mxu0 %v3407
        %3534 = vmatpush.bf16.msra.mxu0 %v3399
        %3535 = vmatpush.bf16.msra.mxu0 %v3391
        %3536 = vmatpush.bf16.msra.mxu0 %v3383
        %3537 = vmatpush.bf16.msra.mxu0 %v3375
        %3538 = vmatpush.bf16.msra.mxu0 %v3367
        %3539 = vmatmul.bf16.gmra.mxu0 %v3477
        %v3540 = vpop.f32.mrf.mxu0
        %v3541 = vadd.f32 0.0, %v3540
        %v3542 = vpop.f32.mrf.mxu0
        %3543 = vdwg.mxu0
        %3544 = vmatpush.bf16.msra.mxu0 0
        %3545 = vmatpush.bf16.msra.mxu0 %v3416
        %3546 = vmatpush.bf16.msra.mxu0 %v3408
        %3547 = vmatpush.bf16.msra.mxu0 %v3400
        %3548 = vmatpush.bf16.msra.mxu0 %v3392
        %3549 = vmatpush.bf16.msra.mxu0 %v3384
        %3550 = vmatpush.bf16.msra.mxu0 %v3376
        %3551 = vmatpush.bf16.msra.mxu0 %v3368
        %3552 = vmatmul.bf16.gmra.mxu0 %v3477
        %v3553 = vpop.f32.mrf.mxu0
        %v3554 = vadd.f32 0.0, %v3553
        %v3555 = vpop.f32.mrf.mxu0
        %3556 = vdwg.mxu0
        %3557 = vmatpush.bf16.msra.mxu0 0
        %3558 = vmatpush.bf16.msra.mxu0 %v3417
        %3559 = vmatpush.bf16.msra.mxu0 %v3409
        %3560 = vmatpush.bf16.msra.mxu0 %v3401
        %3561 = vmatpush.bf16.msra.mxu0 %v3393
        %3562 = vmatpush.bf16.msra.mxu0 %v3385
        %3563 = vmatpush.bf16.msra.mxu0 %v3377
        %3564 = vmatpush.bf16.msra.mxu0 %v3369
        %3565 = vmatmul.bf16.gmra.mxu0 %v3477
        %v3566 = vpop.f32.mrf.mxu0
        %v3567 = vadd.f32 0.0, %v3566
        %v3568 = vpop.f32.mrf.mxu0
        %3569 = vdwg.mxu0
        %3570 = vmatpush.bf16.msra.mxu0 0
        %3571 = vmatpush.bf16.msra.mxu0 %v3418
        %3572 = vmatpush.bf16.msra.mxu0 %v3410
        %3573 = vmatpush.bf16.msra.mxu0 %v3402
        %3574 = vmatpush.bf16.msra.mxu0 %v3394
        %3575 = vmatpush.bf16.msra.mxu0 %v3386
        %3576 = vmatpush.bf16.msra.mxu0 %v3378
        %3577 = vmatpush.bf16.msra.mxu0 %v3370
        %3578 = vmatmul.bf16.gmra.mxu0 %v3477
        %v3579 = vpop.f32.mrf.mxu0
        %v3580 = vadd.f32 0.0, %v3579
        %v3581 = vpop.f32.mrf.mxu0
        %3582 = vdwg.mxu0
        %v3583 = vld [vmem:[%s3] sm:$0xff]
        %v3584 = vadd.f32 %v3489, %v3502
        %v3585 = vadd.f32 %v3584, %v3515
        %v3586 = vadd.f32 %v3585, %v3528
        %3587 = vadd.xlane.f32.xlu0 %v3586
        %v3588 = vpop.xlane.xlu0 %3587
        %v3589 = vmul.f32 %v3489, %v3489
        %v3590 = vmul.f32 %v3502, %v3502
        %v3591 = vmul.f32 %v3515, %v3515
        %v3592 = vmul.f32 %v3528, %v3528
        %v3593 = vadd.f32 %v3589, %v3590
        %v3594 = vadd.f32 %v3593, %v3591
        %v3595 = vadd.f32 %v3594, %v3592
        %3596 = vadd.xlane.f32.xlu0 %v3595
        %v3597 = vpop.xlane.xlu0 %3596
        %v3598 = vlaneseq
        %v3599 = vshrl.u32 %v3598, 7
        %vm3600 = vcmask 3072
        %v3601 = vsel %vm3600, %v3588, 0.0
        %3602 = vadd.xlane.f32.xlu0 %v3601
        %v3603 = vpop.xlane.xlu0 %3602
        %v3604 = vrot.slane %v3603, 4
        %v3605 = vadd.f32 %v3603, %v3604
        %v3606 = vrot.slane %v3605, 2
        %v3607 = vadd.f32 %v3605, %v3606
        %v3608 = vrot.slane %v3607, 1
        %v3609 = vadd.f32 %v3607, %v3608
        %s3610 = vtos %v3609
        %v3611 = vstv %s3610
        %v3612 = vmul.f32 %v3611, 0.00048828125
        %v3613 = vsel %vm3600, %v3597, 0.0
        %3614 = vadd.xlane.f32.xlu0 %v3613
        %v3615 = vpop.xlane.xlu0 %3614
        %v3616 = vrot.slane %v3615, 4
        %v3617 = vadd.f32 %v3615, %v3616
        %v3618 = vrot.slane %v3617, 2
        %v3619 = vadd.f32 %v3617, %v3618
        %v3620 = vrot.slane %v3619, 1
        %v3621 = vadd.f32 %v3619, %v3620
        %s3622 = vtos %v3621
        %v3623 = vstv %s3622
        %v3624 = vmul.f32 %v3623, 0.00048828125
        %v3625 = vmul.f32 %v3612, %v3612
        %v3626 = vsub.f32 %v3624, %v3625
        %vm3627 = vcmp.ge.s32.totalorder %v3599, 0
        %vm3628 = vcmp.lt.s32.totalorder %v3599, 4
        %vm3629 = vmand %vm3627, %vm3628
        %v3630 = vsel %vm3629, %v3612, 0.0
        %v3631 = vsel %vm3629, %v3626, 0.0
        %v3633 = vrot.slane %v3588, 4
        %v3635 = vsel %vm3600, %v3633, 0.0
        %3636 = vadd.xlane.f32.xlu0 %v3635
        %v3637 = vpop.xlane.xlu0 %3636
        %v3638 = vrot.slane %v3637, 4
        %v3639 = vadd.f32 %v3637, %v3638
        %v3640 = vrot.slane %v3639, 2
        %v3641 = vadd.f32 %v3639, %v3640
        %v3642 = vrot.slane %v3641, 1
        %v3643 = vadd.f32 %v3641, %v3642
        %s3644 = vtos %v3643
        %v3645 = vstv %s3644
        %v3646 = vmul.f32 %v3645, 0.00048828125
        %v3648 = vrot.slane %v3597, 4
        %v3650 = vsel %vm3600, %v3648, 0.0
        %3651 = vadd.xlane.f32.xlu0 %v3650
        %v3652 = vpop.xlane.xlu0 %3651
        %v3653 = vrot.slane %v3652, 4
        %v3654 = vadd.f32 %v3652, %v3653
        %v3655 = vrot.slane %v3654, 2
        %v3656 = vadd.f32 %v3654, %v3655
        %v3657 = vrot.slane %v3656, 1
        %v3658 = vadd.f32 %v3656, %v3657
        %s3659 = vtos %v3658
        %v3660 = vstv %s3659
        %v3661 = vmul.f32 %v3660, 0.00048828125
        %v3662 = vmul.f32 %v3646, %v3646
        %v3663 = vsub.f32 %v3661, %v3662
        %vm3664 = vcmp.ge.s32.totalorder %v3599, 4
        %vm3665 = vcmp.lt.s32.totalorder %v3599, 8
        %vm3666 = vmand %vm3664, %vm3665
        %v3667 = vsel %vm3666, %v3646, %v3630
        %v3668 = vsel %vm3666, %v3663, %v3631
        %v3669 = vsub.f32 %v3489, %v3667
        %v3670 = vsub.f32 %v3502, %v3667
        %v3671 = vsub.f32 %v3515, %v3667
        %v3672 = vsub.f32 %v3528, %v3667
        %v3673 = vadd.f32 %v3668, 1e-05
        %v3674 = vrsqrt.pop %v3673
        %v3675 = vmul.f32 %v3674, %v3673
        %v3676 = vmul.f32 %v3675, %v3674
        %v3677 = vmul.f32 0.5, %v3676
        %v3678 = vsub.f32 1.5, %v3677
        %v3679 = vmul.f32 %v3674, %v3678
        %vm3680 = vweird.f32 %v3673
        %vm3681 = vweird.f32 %v3674
        %vm3682 = vmor %vm3680, %vm3681
        %v3683 = vsel %vm3682, %v3674, %v3679
        %v3684 = vmul.f32 %v3669, %v3683
        %v3685 = vmul.f32 %v3670, %v3683
        %v3686 = vmul.f32 %v3671, %v3683
        %v3687 = vmul.f32 %v3672, %v3683
        %3689 = vset.pattern.permute.xlu0 0
        %3690 = vperm.xlu0 %3689, %v3583
        %v3691 = vpop.permute.xlu0 %3690
        %v3693 = vmul.f32 %v3684, %v3691
        %v3694 = vmul.f32 %v3685, %v3691
        %v3695 = vmul.f32 %v3686, %v3691
        %v3696 = vmul.f32 %v3687, %v3691
        %3697 = vset.pattern.permute.xlu0 1
        %3698 = vperm.xlu0 %3697, %v3583
        %v3699 = vpop.permute.xlu0 %3698
        %v3701 = vadd.f32 %v3693, %v3699
        %v3702 = vadd.f32 %v3694, %v3699
        %v3703 = vadd.f32 %v3695, %v3699
        %v3704 = vadd.f32 %v3696, %v3699
        %v3705 = vmax.f32 %v3701, 0.0
        %v3706 = vmax.f32 %v3702, 0.0
        %v3707 = vmax.f32 %v3703, 0.0
        %v3708 = vmax.f32 %v3704, 0.0
        %3709 = vst [vmem:[#allocation2 + $0x8] sm:$0xff] %v3705
        %3710 = vst [vmem:[#allocation2 + $0x10] sm:$0xff] %v3706
        %3711 = vst [vmem:[#allocation2 + $0x18] sm:$0xff] %v3707
        %3712 = vst [vmem:[#allocation2 + $0x20] sm:$0xff] %v3708
        %v3713 = vld [vmem:[%s3] sm:$0xff]
        %v3714 = vadd.f32 %v3541, %v3554
        %v3715 = vadd.f32 %v3714, %v3567
        %v3716 = vadd.f32 %v3715, %v3580
        %3717 = vadd.xlane.f32.xlu0 %v3716
        %v3718 = vpop.xlane.xlu0 %3717
        %v3719 = vmul.f32 %v3541, %v3541
        %v3720 = vmul.f32 %v3554, %v3554
        %v3721 = vmul.f32 %v3567, %v3567
        %v3722 = vmul.f32 %v3580, %v3580
        %v3723 = vadd.f32 %v3719, %v3720
        %v3724 = vadd.f32 %v3723, %v3721
        %v3725 = vadd.f32 %v3724, %v3722
        %3726 = vadd.xlane.f32.xlu0 %v3725
        %v3727 = vpop.xlane.xlu0 %3726
        %v3728 = vsel %vm3600, %v3718, 0.0
        %3729 = vadd.xlane.f32.xlu0 %v3728
        %v3730 = vpop.xlane.xlu0 %3729
        %v3731 = vrot.slane %v3730, 4
        %v3732 = vadd.f32 %v3730, %v3731
        %v3733 = vrot.slane %v3732, 2
        %v3734 = vadd.f32 %v3732, %v3733
        %v3735 = vrot.slane %v3734, 1
        %v3736 = vadd.f32 %v3734, %v3735
        %s3737 = vtos %v3736
        %v3738 = vstv %s3737
        %v3739 = vmul.f32 %v3738, 0.00048828125
        %v3740 = vsel %vm3600, %v3727, 0.0
        %3741 = vadd.xlane.f32.xlu0 %v3740
        %v3742 = vpop.xlane.xlu0 %3741
        %v3743 = vrot.slane %v3742, 4
        %v3744 = vadd.f32 %v3742, %v3743
        %v3745 = vrot.slane %v3744, 2
        %v3746 = vadd.f32 %v3744, %v3745
        %v3747 = vrot.slane %v3746, 1
        %v3748 = vadd.f32 %v3746, %v3747
        %s3749 = vtos %v3748
        %v3750 = vstv %s3749
        %v3751 = vmul.f32 %v3750, 0.00048828125
        %v3752 = vmul.f32 %v3739, %v3739
        %v3753 = vsub.f32 %v3751, %v3752
        %v3754 = vsel %vm3629, %v3739, 0.0
        %v3755 = vsel %vm3629, %v3753, 0.0
        %v3757 = vrot.slane %v3718, 4
        %v3759 = vsel %vm3600, %v3757, 0.0
        %3760 = vadd.xlane.f32.xlu0 %v3759
        %v3761 = vpop.xlane.xlu0 %3760
        %v3762 = vrot.slane %v3761, 4
        %v3763 = vadd.f32 %v3761, %v3762
        %v3764 = vrot.slane %v3763, 2
        %v3765 = vadd.f32 %v3763, %v3764
        %v3766 = vrot.slane %v3765, 1
        %v3767 = vadd.f32 %v3765, %v3766
        %s3768 = vtos %v3767
        %v3769 = vstv %s3768
        %v3770 = vmul.f32 %v3769, 0.00048828125
        %v3772 = vrot.slane %v3727, 4
        %v3774 = vsel %vm3600, %v3772, 0.0
        %3775 = vadd.xlane.f32.xlu0 %v3774
        %v3776 = vpop.xlane.xlu0 %3775
        %v3777 = vrot.slane %v3776, 4
        %v3778 = vadd.f32 %v3776, %v3777
        %v3779 = vrot.slane %v3778, 2
        %v3780 = vadd.f32 %v3778, %v3779
        %v3781 = vrot.slane %v3780, 1
        %v3782 = vadd.f32 %v3780, %v3781
        %s3783 = vtos %v3782
        %v3784 = vstv %s3783
        %v3785 = vmul.f32 %v3784, 0.00048828125
        %v3786 = vmul.f32 %v3770, %v3770
        %v3787 = vsub.f32 %v3785, %v3786
        %v3788 = vsel %vm3666, %v3770, %v3754
        %v3789 = vsel %vm3666, %v3787, %v3755
        %v3790 = vsub.f32 %v3541, %v3788
        %v3791 = vsub.f32 %v3554, %v3788
        %v3792 = vsub.f32 %v3567, %v3788
        %v3793 = vsub.f32 %v3580, %v3788
        %v3794 = vadd.f32 %v3789, 1e-05
        %v3795 = vrsqrt.pop %v3794
        %v3796 = vmul.f32 %v3795, %v3794
        %v3797 = vmul.f32 %v3796, %v3795
        %v3798 = vmul.f32 0.5, %v3797
        %v3799 = vsub.f32 1.5, %v3798
        %v3800 = vmul.f32 %v3795, %v3799
        %vm3801 = vweird.f32 %v3794
        %vm3802 = vweird.f32 %v3795
        %vm3803 = vmor %vm3801, %vm3802
        %v3804 = vsel %vm3803, %v3795, %v3800
        %v3805 = vmul.f32 %v3790, %v3804
        %v3806 = vmul.f32 %v3791, %v3804
        %v3807 = vmul.f32 %v3792, %v3804
        %v3808 = vmul.f32 %v3793, %v3804
        %3810 = vset.pattern.permute.xlu0 0
        %3811 = vperm.xlu0 %3810, %v3713
        %v3812 = vpop.permute.xlu0 %3811
        %v3814 = vmul.f32 %v3805, %v3812
        %v3815 = vmul.f32 %v3806, %v3812
        %v3816 = vmul.f32 %v3807, %v3812
        %v3817 = vmul.f32 %v3808, %v3812
        %3818 = vset.pattern.permute.xlu0 1
        %3819 = vperm.xlu0 %3818, %v3713
        %v3820 = vpop.permute.xlu0 %3819
        %v3822 = vadd.f32 %v3814, %v3820
        %v3823 = vadd.f32 %v3815, %v3820
        %v3824 = vadd.f32 %v3816, %v3820
        %v3825 = vadd.f32 %v3817, %v3820
        %v3826 = vmax.f32 %v3822, 0.0
        %v3827 = vmax.f32 %v3823, 0.0
        %v3828 = vmax.f32 %v3824, 0.0
        %v3829 = vmax.f32 %v3825, 0.0
        %3830 = vst [vmem:[#allocation2 + $0x28] sm:$0xff] %v3826
        %3831 = vst [vmem:[#allocation2 + $0x30] sm:$0xff] %v3827
        %3832 = vst [vmem:[#allocation2 + $0x38] sm:$0xff] %v3828
        %3833 = vst [vmem:[#allocation2 + $0x40] sm:$0xff] %v3829
        %v3834 = vld [vmem:[#allocation2] sm:$0xff]
        %v3835 = vld [vmem:[#allocation2 + $0x8] sm:$0xff]
        %v3836 = vld [vmem:[#allocation2 + $0x10] sm:$0xff]
        %v3837 = vld [vmem:[#allocation2 + $0x18] sm:$0xff]
        %v3838 = vld [vmem:[#allocation2 + $0x20] sm:$0xff]
        %v3839 = vld [vmem:[#allocation2 + $0x28] sm:$0xff]
        %v3840 = vld [vmem:[#allocation2 + $0x30] sm:$0xff]
        %v3841 = vld [vmem:[#allocation2 + $0x38] sm:$0xff]
        %v3842 = vld [vmem:[#allocation2 + $0x40] sm:$0xff]
        %v3843 = vld [vmem:[#allocation7] ss:$8 sm:$0xf]
        %v3844 = vld [vmem:[#allocation7] ss:$8 sm:$0xf0]
        %v3845 = vor.u32 %v3843, %v3844
        %v3847 = vperm.slane %v3845, 0
        %v3848 = vperm.slane %v3845, 1
        %v3849 = vperm.slane %v3845, 2
        %v3850 = vperm.slane %v3845, 3
        %v3851 = vperm.slane %v3845, 4
        %v3852 = vperm.slane %v3845, 5
        %v3853 = vperm.slane %v3845, 6
        %v3854 = vperm.slane %v3845, 7
        %3855 = vrot.lane.b32.xlu0 %v3847, 55
        %v3856 = vpop.permute.xlu0 %3855
        %3857 = vrot.lane.b32.xlu0 %v3848, 55
        %v3858 = vpop.permute.xlu0 %3857
        %3859 = vrot.lane.b32.xlu0 %v3849, 55
        %v3860 = vpop.permute.xlu0 %3859
        %3861 = vrot.lane.b32.xlu0 %v3850, 55
        %v3862 = vpop.permute.xlu0 %3861
        %3863 = vrot.lane.b32.xlu0 %v3851, 55
        %v3864 = vpop.permute.xlu0 %3863
        %3865 = vrot.lane.b32.xlu0 %v3852, 55
        %v3866 = vpop.permute.xlu0 %3865
        %3867 = vrot.lane.b32.xlu0 %v3853, 55
        %v3868 = vpop.permute.xlu0 %3867
        %3869 = vrot.lane.b32.xlu0 %v3854, 55
        %v3870 = vpop.permute.xlu0 %3869
        %v3871 = vsel %vm345, %v3856, %v3858
        %v3872 = vsel %vm345, %v3858, %v3860
        %v3873 = vsel %vm345, %v3860, %v3862
        %v3874 = vsel %vm345, %v3862, %v3864
        %v3875 = vsel %vm345, %v3864, %v3866
        %v3876 = vsel %vm345, %v3866, %v3868
        %v3877 = vsel %vm345, %v3868, %v3870
        %v3887 = vmul.f32 %v3834, %v3856
        %v3888 = vmul.f32 %v3835, %v3871
        %v3889 = vmul.f32 %v3836, %v3872
        %v3890 = vmul.f32 %v3837, %v3873
        %v3891 = vmul.f32 %v3838, %v3874
        %v3892 = vmul.f32 %v3839, %v3875
        %v3893 = vmul.f32 %v3840, %v3876
        %v3894 = vmul.f32 %v3841, %v3877
        %v3895 = vmul.f32 %v3842, %v3870
        %v3896 = vld [vmem:[%s423] ss:$8 sm:$0xf]
        %v3897 = vld [vmem:[%s423] ss:$8 sm:$0xf0]
        %v3898 = vor.u32 %v3896, %v3897
        %v3900 = vperm.slane %v3898, 0
        %v3901 = vperm.slane %v3898, 1
        %v3902 = vperm.slane %v3898, 2
        %v3903 = vperm.slane %v3898, 3
        %v3904 = vperm.slane %v3898, 4
        %v3905 = vperm.slane %v3898, 5
        %v3906 = vperm.slane %v3898, 6
        %v3907 = vperm.slane %v3898, 7
        %3908 = vrot.lane.b32.xlu0 %v3900, 56
        %v3909 = vpop.permute.xlu0 %3908
        %3910 = vrot.lane.b32.xlu0 %v3901, 56
        %v3911 = vpop.permute.xlu0 %3910
        %3912 = vrot.lane.b32.xlu0 %v3902, 56
        %v3913 = vpop.permute.xlu0 %3912
        %3914 = vrot.lane.b32.xlu0 %v3903, 56
        %v3915 = vpop.permute.xlu0 %3914
        %3916 = vrot.lane.b32.xlu0 %v3904, 56
        %v3917 = vpop.permute.xlu0 %3916
        %3918 = vrot.lane.b32.xlu0 %v3905, 56
        %v3919 = vpop.permute.xlu0 %3918
        %3920 = vrot.lane.b32.xlu0 %v3906, 56
        %v3921 = vpop.permute.xlu0 %3920
        %3922 = vrot.lane.b32.xlu0 %v3907, 56
        %v3923 = vpop.permute.xlu0 %3922
        %v3924 = vsel %vm452, %v3909, %v3911
        %v3925 = vsel %vm452, %v3911, %v3913
        %v3926 = vsel %vm452, %v3913, %v3915
        %v3927 = vsel %vm452, %v3915, %v3917
        %v3928 = vsel %vm452, %v3917, %v3919
        %v3929 = vsel %vm452, %v3919, %v3921
        %v3930 = vsel %vm452, %v3921, %v3923
        %v3940 = vmul.f32 %v3834, %v3909
        %v3941 = vmul.f32 %v3835, %v3924
        %v3942 = vmul.f32 %v3836, %v3925
        %v3943 = vmul.f32 %v3837, %v3926
        %v3944 = vmul.f32 %v3838, %v3927
        %v3945 = vmul.f32 %v3839, %v3928
        %v3946 = vmul.f32 %v3840, %v3929
        %v3947 = vmul.f32 %v3841, %v3930
        %v3948 = vmul.f32 %v3842, %v3923
        %3958 = vrot.lane.b32.xlu0 %v3940, 127
        %v3959 = vpop.permute.xlu0 %3958
        %3960 = vrot.lane.b32.xlu0 %v3941, 127
        %v3961 = vpop.permute.xlu0 %3960
        %3962 = vrot.lane.b32.xlu0 %v3942, 127
        %v3963 = vpop.permute.xlu0 %3962
        %3964 = vrot.lane.b32.xlu0 %v3943, 127
        %v3965 = vpop.permute.xlu0 %3964
        %3966 = vrot.lane.b32.xlu0 %v3944, 127
        %v3967 = vpop.permute.xlu0 %3966
        %3968 = vrot.lane.b32.xlu0 %v3945, 127
        %v3969 = vpop.permute.xlu0 %3968
        %3970 = vrot.lane.b32.xlu0 %v3946, 127
        %v3971 = vpop.permute.xlu0 %3970
        %3972 = vrot.lane.b32.xlu0 %v3947, 127
        %v3973 = vpop.permute.xlu0 %3972
        %3974 = vrot.lane.b32.xlu0 %v3948, 127
        %v3975 = vpop.permute.xlu0 %3974
        %v3976 = vsel %vm1648, %v3959, %v3961
        %v3977 = vsel %vm1648, %v3961, %v3963
        %v3978 = vsel %vm1648, %v3963, %v3965
        %v3979 = vsel %vm1648, %v3965, %v3967
        %v3980 = vsel %vm1648, %v3967, %v3969
        %v3981 = vsel %vm1648, %v3969, %v3971
        %v3982 = vsel %vm1648, %v3971, %v3973
        %v3983 = vsel %vm1648, %v3973, %v3975
        %v3993 = vpack.c.bf16 %v3888, %v3887
        %v3994 = vpack.c.bf16 %v3890, %v3889
        %v3995 = vpack.c.bf16 %v3892, %v3891
        %v3996 = vpack.c.bf16 %v3894, %v3893
        %v3997 = vpack.c.bf16 %v3895, %v3895
        %v3998 = vpack.c.bf16 %v3977, %v3976
        %v3999 = vpack.c.bf16 %v3979, %v3978
        %v4000 = vpack.c.bf16 %v3981, %v3980
        %v4001 = vpack.c.bf16 %v3983, %v3982
        %v4002 = vpack.c.bf16 %v3975, %v3975
        %4013 = vrot.lane.b32.xlu0 %v3993, 73
        %v4014 = vpop.permute.xlu0 %4013
        %4015 = vrot.lane.b32.xlu0 %v3994, 73
        %v4016 = vpop.permute.xlu0 %4015
        %4017 = vrot.lane.b32.xlu0 %v3995, 73
        %v4018 = vpop.permute.xlu0 %4017
        %4019 = vrot.lane.b32.xlu0 %v3996, 73
        %v4020 = vpop.permute.xlu0 %4019
        %4021 = vrot.lane.b32.xlu0 %v3997, 73
        %v4022 = vpop.permute.xlu0 %4021
        %4023 = vrot.lane.b32.xlu0 %v3998, 73
        %v4024 = vpop.permute.xlu0 %4023
        %4025 = vrot.lane.b32.xlu0 %v3999, 73
        %v4026 = vpop.permute.xlu0 %4025
        %4027 = vrot.lane.b32.xlu0 %v4000, 73
        %v4028 = vpop.permute.xlu0 %4027
        %4029 = vrot.lane.b32.xlu0 %v4001, 73
        %v4030 = vpop.permute.xlu0 %4029
        %4031 = vrot.lane.b32.xlu0 %v4002, 73
        %v4032 = vpop.permute.xlu0 %4031
        %v4033 = vrot.slane %v4014, 4
        %v4034 = vrot.slane %v4016, 4
        %v4035 = vrot.slane %v4018, 4
        %v4036 = vrot.slane %v4020, 4
        %v4037 = vrot.slane %v4022, 4
        %v4038 = vrot.slane %v4024, 4
        %v4039 = vrot.slane %v4026, 4
        %v4040 = vrot.slane %v4028, 4
        %v4041 = vrot.slane %v4030, 4
        %v4042 = vrot.slane %v4032, 4
        %v4043 = vsel %vm396, %v4033, %v4034
        %v4044 = vsel %vm398, %v4014, %v4043
        %v4045 = vsel %vm396, %v4034, %v4035
        %v4046 = vsel %vm398, %v4016, %v4045
        %v4047 = vsel %vm396, %v4035, %v4036
        %v4048 = vsel %vm398, %v4018, %v4047
        %v4049 = vsel %vm396, %v4036, %v4037
        %v4050 = vsel %vm398, %v4020, %v4049
        %v4051 = vsel %vm396, %v4038, %v4039
        %v4052 = vsel %vm398, %v4024, %v4051
        %v4053 = vsel %vm396, %v4039, %v4040
        %v4054 = vsel %vm398, %v4026, %v4053
        %v4055 = vsel %vm396, %v4040, %v4041
        %v4056 = vsel %vm398, %v4028, %v4055
        %v4057 = vsel %vm396, %v4041, %v4042
        %v4058 = vsel %vm398, %v4030, %v4057
        %4067 = vst [vmem:[#allocation3] sm:$0xff] %v4044
        %4068 = vst [vmem:[#allocation3 + $0x8] sm:$0xff] %v4046
        %4069 = vst [vmem:[#allocation3 + $0x10] sm:$0xff] %v4048
        %4070 = vst [vmem:[#allocation3 + $0x18] sm:$0xff] %v4050
        %4071 = vst [vmem:[#allocation3 + $0x20] sm:$0xff] %v4052
        %4072 = vst [vmem:[#allocation3 + $0x28] sm:$0xff] %v4054
        %4073 = vst [vmem:[#allocation3 + $0x30] sm:$0xff] %v4056
        %4074 = vst [vmem:[#allocation3 + $0x38] sm:$0xff] %v4058
        %v4075 = vld [vmem:[#allocation2] sm:$0xff]
        %v4076 = vld [vmem:[#allocation2 + $0x8] sm:$0xff]
        %v4077 = vld [vmem:[#allocation2 + $0x10] sm:$0xff]
        %v4078 = vld [vmem:[#allocation2 + $0x18] sm:$0xff]
        %v4079 = vld [vmem:[#allocation2 + $0x20] sm:$0xff]
        %v4080 = vld [vmem:[#allocation2 + $0x28] sm:$0xff]
        %v4081 = vld [vmem:[#allocation2 + $0x30] sm:$0xff]
        %v4082 = vld [vmem:[#allocation2 + $0x38] sm:$0xff]
        %v4083 = vld [vmem:[#allocation2 + $0x40] sm:$0xff]
        %v4084 = vld [vmem:[%s534] ss:$8 sm:$0xf]
        %v4085 = vld [vmem:[%s534] ss:$8 sm:$0xf0]
        %v4086 = vor.u32 %v4084, %v4085
        %v4088 = vperm.slane %v4086, 0
        %v4089 = vperm.slane %v4086, 1
        %v4090 = vperm.slane %v4086, 2
        %v4091 = vperm.slane %v4086, 3
        %v4092 = vperm.slane %v4086, 4
        %v4093 = vperm.slane %v4086, 5
        %v4094 = vperm.slane %v4086, 6
        %v4095 = vperm.slane %v4086, 7
        %4096 = vrot.lane.b32.xlu0 %v4088, 57
        %v4097 = vpop.permute.xlu0 %4096
        %4098 = vrot.lane.b32.xlu0 %v4089, 57
        %v4099 = vpop.permute.xlu0 %4098
        %4100 = vrot.lane.b32.xlu0 %v4090, 57
        %v4101 = vpop.permute.xlu0 %4100
        %4102 = vrot.lane.b32.xlu0 %v4091, 57
        %v4103 = vpop.permute.xlu0 %4102
        %4104 = vrot.lane.b32.xlu0 %v4092, 57
        %v4105 = vpop.permute.xlu0 %4104
        %4106 = vrot.lane.b32.xlu0 %v4093, 57
        %v4107 = vpop.permute.xlu0 %4106
        %4108 = vrot.lane.b32.xlu0 %v4094, 57
        %v4109 = vpop.permute.xlu0 %4108
        %4110 = vrot.lane.b32.xlu0 %v4095, 57
        %v4111 = vpop.permute.xlu0 %4110
        %v4112 = vsel %vm563, %v4097, %v4099
        %v4113 = vsel %vm563, %v4099, %v4101
        %v4114 = vsel %vm563, %v4101, %v4103
        %v4115 = vsel %vm563, %v4103, %v4105
        %v4116 = vsel %vm563, %v4105, %v4107
        %v4117 = vsel %vm563, %v4107, %v4109
        %v4118 = vsel %vm563, %v4109, %v4111
        %v4128 = vmul.f32 %v4075, %v4097
        %v4129 = vmul.f32 %v4076, %v4112
        %v4130 = vmul.f32 %v4077, %v4113
        %v4131 = vmul.f32 %v4078, %v4114
        %v4132 = vmul.f32 %v4079, %v4115
        %v4133 = vmul.f32 %v4080, %v4116
        %v4134 = vmul.f32 %v4081, %v4117
        %v4135 = vmul.f32 %v4082, %v4118
        %v4136 = vmul.f32 %v4083, %v4111
        %v4137 = vld [vmem:[%s640] ss:$8 sm:$0xf]
        %v4138 = vld [vmem:[%s640] ss:$8 sm:$0xf0]
        %v4139 = vor.u32 %v4137, %v4138
        %v4141 = vperm.slane %v4139, 0
        %v4142 = vperm.slane %v4139, 1
        %v4143 = vperm.slane %v4139, 2
        %v4144 = vperm.slane %v4139, 3
        %v4145 = vperm.slane %v4139, 4
        %v4146 = vperm.slane %v4139, 5
        %v4147 = vperm.slane %v4139, 6
        %v4148 = vperm.slane %v4139, 7
        %4149 = vrot.lane.b32.xlu0 %v4141, 63
        %v4150 = vpop.permute.xlu0 %4149
        %4151 = vrot.lane.b32.xlu0 %v4142, 63
        %v4152 = vpop.permute.xlu0 %4151
        %4153 = vrot.lane.b32.xlu0 %v4143, 63
        %v4154 = vpop.permute.xlu0 %4153
        %4155 = vrot.lane.b32.xlu0 %v4144, 63
        %v4156 = vpop.permute.xlu0 %4155
        %4157 = vrot.lane.b32.xlu0 %v4145, 63
        %v4158 = vpop.permute.xlu0 %4157
        %4159 = vrot.lane.b32.xlu0 %v4146, 63
        %v4160 = vpop.permute.xlu0 %4159
        %4161 = vrot.lane.b32.xlu0 %v4147, 63
        %v4162 = vpop.permute.xlu0 %4161
        %4163 = vrot.lane.b32.xlu0 %v4148, 63
        %v4164 = vpop.permute.xlu0 %4163
        %v4165 = vsel %vm669, %v4150, %v4152
        %v4166 = vsel %vm669, %v4152, %v4154
        %v4167 = vsel %vm669, %v4154, %v4156
        %v4168 = vsel %vm669, %v4156, %v4158
        %v4169 = vsel %vm669, %v4158, %v4160
        %v4170 = vsel %vm669, %v4160, %v4162
        %v4171 = vsel %vm669, %v4162, %v4164
        %v4181 = vmul.f32 %v4075, %v4150
        %v4182 = vmul.f32 %v4076, %v4165
        %v4183 = vmul.f32 %v4077, %v4166
        %v4184 = vmul.f32 %v4078, %v4167
        %v4185 = vmul.f32 %v4079, %v4168
        %v4186 = vmul.f32 %v4080, %v4169
        %v4187 = vmul.f32 %v4081, %v4170
        %v4188 = vmul.f32 %v4082, %v4171
        %v4189 = vmul.f32 %v4083, %v4164
        %4199 = vrot.lane.b32.xlu0 %v4181, 122
        %v4200 = vpop.permute.xlu0 %4199
        %4201 = vrot.lane.b32.xlu0 %v4182, 122
        %v4202 = vpop.permute.xlu0 %4201
        %4203 = vrot.lane.b32.xlu0 %v4183, 122
        %v4204 = vpop.permute.xlu0 %4203
        %4205 = vrot.lane.b32.xlu0 %v4184, 122
        %v4206 = vpop.permute.xlu0 %4205
        %4207 = vrot.lane.b32.xlu0 %v4185, 122
        %v4208 = vpop.permute.xlu0 %4207
        %4209 = vrot.lane.b32.xlu0 %v4186, 122
        %v4210 = vpop.permute.xlu0 %4209
        %4211 = vrot.lane.b32.xlu0 %v4187, 122
        %v4212 = vpop.permute.xlu0 %4211
        %4213 = vrot.lane.b32.xlu0 %v4188, 122
        %v4214 = vpop.permute.xlu0 %4213
        %4215 = vrot.lane.b32.xlu0 %v4189, 122
        %v4216 = vpop.permute.xlu0 %4215
        %vm4217 = vcmask 998400
        %v4218 = vsel %vm4217, %v4200, %v4202
        %v4219 = vsel %vm4217, %v4202, %v4204
        %v4220 = vsel %vm4217, %v4204, %v4206
        %v4221 = vsel %vm4217, %v4206, %v4208
        %v4222 = vsel %vm4217, %v4208, %v4210
        %v4223 = vsel %vm4217, %v4210, %v4212
        %v4224 = vsel %vm4217, %v4212, %v4214
        %v4225 = vsel %vm4217, %v4214, %v4216
        %v4235 = vpack.c.bf16 %v4129, %v4128
        %v4236 = vpack.c.bf16 %v4131, %v4130
        %v4237 = vpack.c.bf16 %v4133, %v4132
        %v4238 = vpack.c.bf16 %v4135, %v4134
        %v4239 = vpack.c.bf16 %v4136, %v4136
        %v4240 = vpack.c.bf16 %v4219, %v4218
        %v4241 = vpack.c.bf16 %v4221, %v4220
        %v4242 = vpack.c.bf16 %v4223, %v4222
        %v4243 = vpack.c.bf16 %v4225, %v4224
        %v4244 = vpack.c.bf16 %v4216, %v4216
        %4255 = vrot.lane.b32.xlu0 %v4235, 71
        %v4256 = vpop.permute.xlu0 %4255
        %4257 = vrot.lane.b32.xlu0 %v4236, 71
        %v4258 = vpop.permute.xlu0 %4257
        %4259 = vrot.lane.b32.xlu0 %v4237, 71
        %v4260 = vpop.permute.xlu0 %4259
        %4261 = vrot.lane.b32.xlu0 %v4238, 71
        %v4262 = vpop.permute.xlu0 %4261
        %4263 = vrot.lane.b32.xlu0 %v4239, 71
        %v4264 = vpop.permute.xlu0 %4263
        %4265 = vrot.lane.b32.xlu0 %v4240, 71
        %v4266 = vpop.permute.xlu0 %4265
        %4267 = vrot.lane.b32.xlu0 %v4241, 71
        %v4268 = vpop.permute.xlu0 %4267
        %4269 = vrot.lane.b32.xlu0 %v4242, 71
        %v4270 = vpop.permute.xlu0 %4269
        %4271 = vrot.lane.b32.xlu0 %v4243, 71
        %v4272 = vpop.permute.xlu0 %4271
        %4273 = vrot.lane.b32.xlu0 %v4244, 71
        %v4274 = vpop.permute.xlu0 %4273
        %v4275 = vrot.slane %v4256, 4
        %v4276 = vrot.slane %v4258, 4
        %v4277 = vrot.slane %v4260, 4
        %v4278 = vrot.slane %v4262, 4
        %v4279 = vrot.slane %v4264, 4
        %v4280 = vrot.slane %v4266, 4
        %v4281 = vrot.slane %v4268, 4
        %v4282 = vrot.slane %v4270, 4
        %v4283 = vrot.slane %v4272, 4
        %v4284 = vrot.slane %v4274, 4
        %v4285 = vsel %vm396, %v4275, %v4276
        %v4286 = vsel %vm615, %v4256, %v4285
        %v4287 = vsel %vm396, %v4276, %v4277
        %v4288 = vsel %vm615, %v4258, %v4287
        %v4289 = vsel %vm396, %v4277, %v4278
        %v4290 = vsel %vm615, %v4260, %v4289
        %v4291 = vsel %vm396, %v4278, %v4279
        %v4292 = vsel %vm615, %v4262, %v4291
        %v4293 = vsel %vm396, %v4280, %v4281
        %v4294 = vsel %vm615, %v4266, %v4293
        %v4295 = vsel %vm396, %v4281, %v4282
        %v4296 = vsel %vm615, %v4268, %v4295
        %v4297 = vsel %vm396, %v4282, %v4283
        %v4298 = vsel %vm615, %v4270, %v4297
        %v4299 = vsel %vm396, %v4283, %v4284
        %v4300 = vsel %vm615, %v4272, %v4299
        %4309 = vst [vmem:[#allocation3 + $0x40] sm:$0xff] %v4286
        %4310 = vst [vmem:[#allocation3 + $0x48] sm:$0xff] %v4288
        %4311 = vst [vmem:[#allocation3 + $0x50] sm:$0xff] %v4290
        %4312 = vst [vmem:[#allocation3 + $0x58] sm:$0xff] %v4292
        %4313 = vst [vmem:[#allocation3 + $0x60] sm:$0xff] %v4294
        %4314 = vst [vmem:[#allocation3 + $0x68] sm:$0xff] %v4296
        %4315 = vst [vmem:[#allocation3 + $0x70] sm:$0xff] %v4298
        %4316 = vst [vmem:[#allocation3 + $0x78] sm:$0xff] %v4300
        %v4317 = vld [vmem:[#allocation2] sm:$0xff]
        %v4318 = vld [vmem:[#allocation2 + $0x8] sm:$0xff]
        %v4319 = vld [vmem:[#allocation2 + $0x10] sm:$0xff]
        %v4320 = vld [vmem:[#allocation2 + $0x18] sm:$0xff]
        %v4321 = vld [vmem:[#allocation2 + $0x20] sm:$0xff]
        %v4322 = vld [vmem:[#allocation2 + $0x28] sm:$0xff]
        %v4323 = vld [vmem:[#allocation2 + $0x30] sm:$0xff]
        %v4324 = vld [vmem:[#allocation2 + $0x38] sm:$0xff]
        %v4325 = vld [vmem:[#allocation2 + $0x40] sm:$0xff]
        %v4326 = vld [vmem:[%s751] ss:$8 sm:$0xf]
        %v4327 = vld [vmem:[%s751] ss:$8 sm:$0xf0]
        %v4328 = vor.u32 %v4326, %v4327
        %v4330 = vperm.slane %v4328, 0
        %v4331 = vperm.slane %v4328, 1
        %v4332 = vperm.slane %v4328, 2
        %v4333 = vperm.slane %v4328, 3
        %v4334 = vperm.slane %v4328, 4
        %v4335 = vperm.slane %v4328, 5
        %v4336 = vperm.slane %v4328, 6
        %v4337 = vperm.slane %v4328, 7
        %4338 = vrot.lane.b32.xlu0 %v4330, 64
        %v4339 = vpop.permute.xlu0 %4338
        %4340 = vrot.lane.b32.xlu0 %v4331, 64
        %v4341 = vpop.permute.xlu0 %4340
        %4342 = vrot.lane.b32.xlu0 %v4332, 64
        %v4343 = vpop.permute.xlu0 %4342
        %4344 = vrot.lane.b32.xlu0 %v4333, 64
        %v4345 = vpop.permute.xlu0 %4344
        %4346 = vrot.lane.b32.xlu0 %v4334, 64
        %v4347 = vpop.permute.xlu0 %4346
        %4348 = vrot.lane.b32.xlu0 %v4335, 64
        %v4349 = vpop.permute.xlu0 %4348
        %4350 = vrot.lane.b32.xlu0 %v4336, 64
        %v4351 = vpop.permute.xlu0 %4350
        %4352 = vrot.lane.b32.xlu0 %v4337, 64
        %v4353 = vpop.permute.xlu0 %4352
        %v4354 = vsel %vm780, %v4339, %v4341
        %v4355 = vsel %vm780, %v4341, %v4343
        %v4356 = vsel %vm780, %v4343, %v4345
        %v4357 = vsel %vm780, %v4345, %v4347
        %v4358 = vsel %vm780, %v4347, %v4349
        %v4359 = vsel %vm780, %v4349, %v4351
        %v4360 = vsel %vm780, %v4351, %v4353
        %v4370 = vmul.f32 %v4317, %v4339
        %v4371 = vmul.f32 %v4318, %v4354
        %v4372 = vmul.f32 %v4319, %v4355
        %v4373 = vmul.f32 %v4320, %v4356
        %v4374 = vmul.f32 %v4321, %v4357
        %v4375 = vmul.f32 %v4322, %v4358
        %v4376 = vmul.f32 %v4323, %v4359
        %v4377 = vmul.f32 %v4324, %v4360
        %v4378 = vmul.f32 %v4325, %v4353
        %v4379 = vld [vmem:[%s857] ss:$8 sm:$0xf]
        %v4380 = vld [vmem:[%s857] ss:$8 sm:$0xf0]
        %v4381 = vor.u32 %v4379, %v4380
        %v4383 = vperm.slane %v4381, 0
        %v4384 = vperm.slane %v4381, 1
        %v4385 = vperm.slane %v4381, 2
        %v4386 = vperm.slane %v4381, 3
        %v4387 = vperm.slane %v4381, 4
        %v4388 = vperm.slane %v4381, 5
        %v4389 = vperm.slane %v4381, 6
        %v4390 = vperm.slane %v4381, 7
        %4391 = vrot.lane.b32.xlu0 %v4383, 65
        %v4392 = vpop.permute.xlu0 %4391
        %4393 = vrot.lane.b32.xlu0 %v4384, 65
        %v4394 = vpop.permute.xlu0 %4393
        %4395 = vrot.lane.b32.xlu0 %v4385, 65
        %v4396 = vpop.permute.xlu0 %4395
        %4397 = vrot.lane.b32.xlu0 %v4386, 65
        %v4398 = vpop.permute.xlu0 %4397
        %4399 = vrot.lane.b32.xlu0 %v4387, 65
        %v4400 = vpop.permute.xlu0 %4399
        %4401 = vrot.lane.b32.xlu0 %v4388, 65
        %v4402 = vpop.permute.xlu0 %4401
        %4403 = vrot.lane.b32.xlu0 %v4389, 65
        %v4404 = vpop.permute.xlu0 %4403
        %4405 = vrot.lane.b32.xlu0 %v4390, 65
        %v4406 = vpop.permute.xlu0 %4405
        %v4407 = vsel %vm886, %v4392, %v4394
        %v4408 = vsel %vm886, %v4394, %v4396
        %v4409 = vsel %vm886, %v4396, %v4398
        %v4410 = vsel %vm886, %v4398, %v4400
        %v4411 = vsel %vm886, %v4400, %v4402
        %v4412 = vsel %vm886, %v4402, %v4404
        %v4413 = vsel %vm886, %v4404, %v4406
        %v4423 = vmul.f32 %v4317, %v4392
        %v4424 = vmul.f32 %v4318, %v4407
        %v4425 = vmul.f32 %v4319, %v4408
        %v4426 = vmul.f32 %v4320, %v4409
        %v4427 = vmul.f32 %v4321, %v4410
        %v4428 = vmul.f32 %v4322, %v4411
        %v4429 = vmul.f32 %v4323, %v4412
        %v4430 = vmul.f32 %v4324, %v4413
        %v4431 = vmul.f32 %v4325, %v4406
        %4441 = vrot.lane.b32.xlu0 %v4423, 127
        %v4442 = vpop.permute.xlu0 %4441
        %4443 = vrot.lane.b32.xlu0 %v4424, 127
        %v4444 = vpop.permute.xlu0 %4443
        %4445 = vrot.lane.b32.xlu0 %v4425, 127
        %v4446 = vpop.permute.xlu0 %4445
        %4447 = vrot.lane.b32.xlu0 %v4426, 127
        %v4448 = vpop.permute.xlu0 %4447
        %4449 = vrot.lane.b32.xlu0 %v4427, 127
        %v4450 = vpop.permute.xlu0 %4449
        %4451 = vrot.lane.b32.xlu0 %v4428, 127
        %v4452 = vpop.permute.xlu0 %4451
        %4453 = vrot.lane.b32.xlu0 %v4429, 127
        %v4454 = vpop.permute.xlu0 %4453
        %4455 = vrot.lane.b32.xlu0 %v4430, 127
        %v4456 = vpop.permute.xlu0 %4455
        %4457 = vrot.lane.b32.xlu0 %v4431, 127
        %v4458 = vpop.permute.xlu0 %4457
        %v4459 = vsel %vm1648, %v4442, %v4444
        %v4460 = vsel %vm1648, %v4444, %v4446
        %v4461 = vsel %vm1648, %v4446, %v4448
        %v4462 = vsel %vm1648, %v4448, %v4450
        %v4463 = vsel %vm1648, %v4450, %v4452
        %v4464 = vsel %vm1648, %v4452, %v4454
        %v4465 = vsel %vm1648, %v4454, %v4456
        %v4466 = vsel %vm1648, %v4456, %v4458
        %v4476 = vpack.c.bf16 %v4371, %v4370
        %v4477 = vpack.c.bf16 %v4373, %v4372
        %v4478 = vpack.c.bf16 %v4375, %v4374
        %v4479 = vpack.c.bf16 %v4377, %v4376
        %v4480 = vpack.c.bf16 %v4378, %v4378
        %v4481 = vpack.c.bf16 %v4460, %v4459
        %v4482 = vpack.c.bf16 %v4462, %v4461
        %v4483 = vpack.c.bf16 %v4464, %v4463
        %v4484 = vpack.c.bf16 %v4466, %v4465
        %v4485 = vpack.c.bf16 %v4458, %v4458
        %4496 = vrot.lane.b32.xlu0 %v4476, 64
        %v4497 = vpop.permute.xlu0 %4496
        %4498 = vrot.lane.b32.xlu0 %v4477, 64
        %v4499 = vpop.permute.xlu0 %4498
        %4500 = vrot.lane.b32.xlu0 %v4478, 64
        %v4501 = vpop.permute.xlu0 %4500
        %4502 = vrot.lane.b32.xlu0 %v4479, 64
        %v4503 = vpop.permute.xlu0 %4502
        %4504 = vrot.lane.b32.xlu0 %v4480, 64
        %v4505 = vpop.permute.xlu0 %4504
        %4506 = vrot.lane.b32.xlu0 %v4481, 64
        %v4507 = vpop.permute.xlu0 %4506
        %4508 = vrot.lane.b32.xlu0 %v4482, 64
        %v4509 = vpop.permute.xlu0 %4508
        %4510 = vrot.lane.b32.xlu0 %v4483, 64
        %v4511 = vpop.permute.xlu0 %4510
        %4512 = vrot.lane.b32.xlu0 %v4484, 64
        %v4513 = vpop.permute.xlu0 %4512
        %4514 = vrot.lane.b32.xlu0 %v4485, 64
        %v4515 = vpop.permute.xlu0 %4514
        %v4516 = vrot.slane %v4497, 4
        %v4517 = vrot.slane %v4499, 4
        %v4518 = vrot.slane %v4501, 4
        %v4519 = vrot.slane %v4503, 4
        %v4520 = vrot.slane %v4505, 4
        %v4521 = vrot.slane %v4507, 4
        %v4522 = vrot.slane %v4509, 4
        %v4523 = vrot.slane %v4511, 4
        %v4524 = vrot.slane %v4513, 4
        %v4525 = vrot.slane %v4515, 4
        %v4526 = vsel %vm396, %v4516, %v4517
        %v4527 = vsel %vm832, %v4497, %v4526
        %v4528 = vsel %vm396, %v4517, %v4518
        %v4529 = vsel %vm832, %v4499, %v4528
        %v4530 = vsel %vm396, %v4518, %v4519
        %v4531 = vsel %vm832, %v4501, %v4530
        %v4532 = vsel %vm396, %v4519, %v4520
        %v4533 = vsel %vm832, %v4503, %v4532
        %v4534 = vsel %vm396, %v4521, %v4522
        %v4535 = vsel %vm832, %v4507, %v4534
        %v4536 = vsel %vm396, %v4522, %v4523
        %v4537 = vsel %vm832, %v4509, %v4536
        %v4538 = vsel %vm396, %v4523, %v4524
        %v4539 = vsel %vm832, %v4511, %v4538
        %v4540 = vsel %vm396, %v4524, %v4525
        %v4541 = vsel %vm832, %v4513, %v4540
        %4550 = vst [vmem:[#allocation3 + $0x80] sm:$0xff] %v4527
        %4551 = vst [vmem:[#allocation3 + $0x88] sm:$0xff] %v4529
        %4552 = vst [vmem:[#allocation3 + $0x90] sm:$0xff] %v4531
        %4553 = vst [vmem:[#allocation3 + $0x98] sm:$0xff] %v4533
        %4554 = vst [vmem:[#allocation3 + $0xa0] sm:$0xff] %v4535
        %4555 = vst [vmem:[#allocation3 + $0xa8] sm:$0xff] %v4537
        %4556 = vst [vmem:[#allocation3 + $0xb0] sm:$0xff] %v4539
        %4557 = vst [vmem:[#allocation3 + $0xb8] sm:$0xff] %v4541
        %v4558 = vld [vmem:[#allocation2] sm:$0xff]
        %v4559 = vld [vmem:[#allocation2 + $0x8] sm:$0xff]
        %v4560 = vld [vmem:[#allocation2 + $0x10] sm:$0xff]
        %v4561 = vld [vmem:[#allocation2 + $0x18] sm:$0xff]
        %v4562 = vld [vmem:[#allocation2 + $0x20] sm:$0xff]
        %v4563 = vld [vmem:[#allocation2 + $0x28] sm:$0xff]
        %v4564 = vld [vmem:[#allocation2 + $0x30] sm:$0xff]
        %v4565 = vld [vmem:[#allocation2 + $0x38] sm:$0xff]
        %v4566 = vld [vmem:[#allocation2 + $0x40] sm:$0xff]
        %v4567 = vld [vmem:[%s968] ss:$8 sm:$0xf]
        %v4568 = vld [vmem:[%s968] ss:$8 sm:$0xf0]
        %v4569 = vor.u32 %v4567, %v4568
        %v4571 = vperm.slane %v4569, 0
        %v4572 = vperm.slane %v4569, 1
        %v4573 = vperm.slane %v4569, 2
        %v4574 = vperm.slane %v4569, 3
        %v4575 = vperm.slane %v4569, 4
        %v4576 = vperm.slane %v4569, 5
        %v4577 = vperm.slane %v4569, 6
        %v4578 = vperm.slane %v4569, 7
        %4579 = vrot.lane.b32.xlu0 %v4571, 71
        %v4580 = vpop.permute.xlu0 %4579
        %4581 = vrot.lane.b32.xlu0 %v4572, 71
        %v4582 = vpop.permute.xlu0 %4581
        %4583 = vrot.lane.b32.xlu0 %v4573, 71
        %v4584 = vpop.permute.xlu0 %4583
        %4585 = vrot.lane.b32.xlu0 %v4574, 71
        %v4586 = vpop.permute.xlu0 %4585
        %4587 = vrot.lane.b32.xlu0 %v4575, 71
        %v4588 = vpop.permute.xlu0 %4587
        %4589 = vrot.lane.b32.xlu0 %v4576, 71
        %v4590 = vpop.permute.xlu0 %4589
        %4591 = vrot.lane.b32.xlu0 %v4577, 71
        %v4592 = vpop.permute.xlu0 %4591
        %4593 = vrot.lane.b32.xlu0 %v4578, 71
        %v4594 = vpop.permute.xlu0 %4593
        %v4595 = vsel %vm997, %v4580, %v4582
        %v4596 = vsel %vm997, %v4582, %v4584
        %v4597 = vsel %vm997, %v4584, %v4586
        %v4598 = vsel %vm997, %v4586, %v4588
        %v4599 = vsel %vm997, %v4588, %v4590
        %v4600 = vsel %vm997, %v4590, %v4592
        %v4601 = vsel %vm997, %v4592, %v4594
        %v4611 = vmul.f32 %v4558, %v4580
        %v4612 = vmul.f32 %v4559, %v4595
        %v4613 = vmul.f32 %v4560, %v4596
        %v4614 = vmul.f32 %v4561, %v4597
        %v4615 = vmul.f32 %v4562, %v4598
        %v4616 = vmul.f32 %v4563, %v4599
        %v4617 = vmul.f32 %v4564, %v4600
        %v4618 = vmul.f32 %v4565, %v4601
        %v4619 = vmul.f32 %v4566, %v4594
        %v4620 = vld [vmem:[%s1074] ss:$8 sm:$0xf]
        %v4621 = vld [vmem:[%s1074] ss:$8 sm:$0xf0]
        %v4622 = vor.u32 %v4620, %v4621
        %v4624 = vperm.slane %v4622, 0
        %v4625 = vperm.slane %v4622, 1
        %v4626 = vperm.slane %v4622, 2
        %v4627 = vperm.slane %v4622, 3
        %v4628 = vperm.slane %v4622, 4
        %v4629 = vperm.slane %v4622, 5
        %v4630 = vperm.slane %v4622, 6
        %v4631 = vperm.slane %v4622, 7
        %4632 = vrot.lane.b32.xlu0 %v4624, 72
        %v4633 = vpop.permute.xlu0 %4632
        %4634 = vrot.lane.b32.xlu0 %v4625, 72
        %v4635 = vpop.permute.xlu0 %4634
        %4636 = vrot.lane.b32.xlu0 %v4626, 72
        %v4637 = vpop.permute.xlu0 %4636
        %4638 = vrot.lane.b32.xlu0 %v4627, 72
        %v4639 = vpop.permute.xlu0 %4638
        %4640 = vrot.lane.b32.xlu0 %v4628, 72
        %v4641 = vpop.permute.xlu0 %4640
        %4642 = vrot.lane.b32.xlu0 %v4629, 72
        %v4643 = vpop.permute.xlu0 %4642
        %4644 = vrot.lane.b32.xlu0 %v4630, 72
        %v4645 = vpop.permute.xlu0 %4644
        %4646 = vrot.lane.b32.xlu0 %v4631, 72
        %v4647 = vpop.permute.xlu0 %4646
        %v4648 = vsel %vm1103, %v4633, %v4635
        %v4649 = vsel %vm1103, %v4635, %v4637
        %v4650 = vsel %vm1103, %v4637, %v4639
        %v4651 = vsel %vm1103, %v4639, %v4641
        %v4652 = vsel %vm1103, %v4641, %v4643
        %v4653 = vsel %vm1103, %v4643, %v4645
        %v4654 = vsel %vm1103, %v4645, %v4647
        %v4664 = vmul.f32 %v4558, %v4633
        %v4665 = vmul.f32 %v4559, %v4648
        %v4666 = vmul.f32 %v4560, %v4649
        %v4667 = vmul.f32 %v4561, %v4650
        %v4668 = vmul.f32 %v4562, %v4651
        %v4669 = vmul.f32 %v4563, %v4652
        %v4670 = vmul.f32 %v4564, %v4653
        %v4671 = vmul.f32 %v4565, %v4654
        %v4672 = vmul.f32 %v4566, %v4647
        %4682 = vrot.lane.b32.xlu0 %v4664, 127
        %v4683 = vpop.permute.xlu0 %4682
        %4684 = vrot.lane.b32.xlu0 %v4665, 127
        %v4685 = vpop.permute.xlu0 %4684
        %4686 = vrot.lane.b32.xlu0 %v4666, 127
        %v4687 = vpop.permute.xlu0 %4686
        %4688 = vrot.lane.b32.xlu0 %v4667, 127
        %v4689 = vpop.permute.xlu0 %4688
        %4690 = vrot.lane.b32.xlu0 %v4668, 127
        %v4691 = vpop.permute.xlu0 %4690
        %4692 = vrot.lane.b32.xlu0 %v4669, 127
        %v4693 = vpop.permute.xlu0 %4692
        %4694 = vrot.lane.b32.xlu0 %v4670, 127
        %v4695 = vpop.permute.xlu0 %4694
        %4696 = vrot.lane.b32.xlu0 %v4671, 127
        %v4697 = vpop.permute.xlu0 %4696
        %4698 = vrot.lane.b32.xlu0 %v4672, 127
        %v4699 = vpop.permute.xlu0 %4698
        %v4700 = vsel %vm1648, %v4683, %v4685
        %v4701 = vsel %vm1648, %v4685, %v4687
        %v4702 = vsel %vm1648, %v4687, %v4689
        %v4703 = vsel %vm1648, %v4689, %v4691
        %v4704 = vsel %vm1648, %v4691, %v4693
        %v4705 = vsel %vm1648, %v4693, %v4695
        %v4706 = vsel %vm1648, %v4695, %v4697
        %v4707 = vsel %vm1648, %v4697, %v4699
        %v4717 = vpack.c.bf16 %v4612, %v4611
        %v4718 = vpack.c.bf16 %v4614, %v4613
        %v4719 = vpack.c.bf16 %v4616, %v4615
        %v4720 = vpack.c.bf16 %v4618, %v4617
        %v4721 = vpack.c.bf16 %v4619, %v4619
        %v4722 = vpack.c.bf16 %v4701, %v4700
        %v4723 = vpack.c.bf16 %v4703, %v4702
        %v4724 = vpack.c.bf16 %v4705, %v4704
        %v4725 = vpack.c.bf16 %v4707, %v4706
        %v4726 = vpack.c.bf16 %v4699, %v4699
        %4737 = vrot.lane.b32.xlu0 %v4717, 57
        %v4738 = vpop.permute.xlu0 %4737
        %4739 = vrot.lane.b32.xlu0 %v4718, 57
        %v4740 = vpop.permute.xlu0 %4739
        %4741 = vrot.lane.b32.xlu0 %v4719, 57
        %v4742 = vpop.permute.xlu0 %4741
        %4743 = vrot.lane.b32.xlu0 %v4720, 57
        %v4744 = vpop.permute.xlu0 %4743
        %4745 = vrot.lane.b32.xlu0 %v4721, 57
        %v4746 = vpop.permute.xlu0 %4745
        %4747 = vrot.lane.b32.xlu0 %v4722, 57
        %v4748 = vpop.permute.xlu0 %4747
        %4749 = vrot.lane.b32.xlu0 %v4723, 57
        %v4750 = vpop.permute.xlu0 %4749
        %4751 = vrot.lane.b32.xlu0 %v4724, 57
        %v4752 = vpop.permute.xlu0 %4751
        %4753 = vrot.lane.b32.xlu0 %v4725, 57
        %v4754 = vpop.permute.xlu0 %4753
        %4755 = vrot.lane.b32.xlu0 %v4726, 57
        %v4756 = vpop.permute.xlu0 %4755
        %v4757 = vrot.slane %v4738, 4
        %v4758 = vrot.slane %v4740, 4
        %v4759 = vrot.slane %v4742, 4
        %v4760 = vrot.slane %v4744, 4
        %v4761 = vrot.slane %v4746, 4
        %v4762 = vrot.slane %v4748, 4
        %v4763 = vrot.slane %v4750, 4
        %v4764 = vrot.slane %v4752, 4
        %v4765 = vrot.slane %v4754, 4
        %v4766 = vrot.slane %v4756, 4
        %v4767 = vsel %vm396, %v4757, %v4758
        %v4768 = vsel %vm1049, %v4738, %v4767
        %v4769 = vsel %vm396, %v4758, %v4759
        %v4770 = vsel %vm1049, %v4740, %v4769
        %v4771 = vsel %vm396, %v4759, %v4760
        %v4772 = vsel %vm1049, %v4742, %v4771
        %v4773 = vsel %vm396, %v4760, %v4761
        %v4774 = vsel %vm1049, %v4744, %v4773
        %v4775 = vsel %vm396, %v4762, %v4763
        %v4776 = vsel %vm1049, %v4748, %v4775
        %v4777 = vsel %vm396, %v4763, %v4764
        %v4778 = vsel %vm1049, %v4750, %v4777
        %v4779 = vsel %vm396, %v4764, %v4765
        %v4780 = vsel %vm1049, %v4752, %v4779
        %v4781 = vsel %vm396, %v4765, %v4766
        %v4782 = vsel %vm1049, %v4754, %v4781
        %4791 = vst [vmem:[#allocation3 + $0xc0] sm:$0xff] %v4768
        %4792 = vst [vmem:[#allocation3 + $0xc8] sm:$0xff] %v4770
        %4793 = vst [vmem:[#allocation3 + $0xd0] sm:$0xff] %v4772
        %4794 = vst [vmem:[#allocation3 + $0xd8] sm:$0xff] %v4774
        %4795 = vst [vmem:[#allocation3 + $0xe0] sm:$0xff] %v4776
        %4796 = vst [vmem:[#allocation3 + $0xe8] sm:$0xff] %v4778
        %4797 = vst [vmem:[#allocation3 + $0xf0] sm:$0xff] %v4780
        %4798 = vst [vmem:[#allocation3 + $0xf8] sm:$0xff] %v4782
        %v4799 = vld [vmem:[#allocation2] sm:$0xff]
        %v4800 = vld [vmem:[#allocation2 + $0x8] sm:$0xff]
        %v4801 = vld [vmem:[#allocation2 + $0x10] sm:$0xff]
        %v4802 = vld [vmem:[#allocation2 + $0x18] sm:$0xff]
        %v4803 = vld [vmem:[#allocation2 + $0x20] sm:$0xff]
        %v4804 = vld [vmem:[#allocation2 + $0x28] sm:$0xff]
        %v4805 = vld [vmem:[#allocation2 + $0x30] sm:$0xff]
        %v4806 = vld [vmem:[#allocation2 + $0x38] sm:$0xff]
        %v4807 = vld [vmem:[#allocation2 + $0x40] sm:$0xff]
        %v4808 = vld [vmem:[%s1185] ss:$8 sm:$0xf]
        %v4809 = vld [vmem:[%s1185] ss:$8 sm:$0xf0]
        %v4810 = vor.u32 %v4808, %v4809
        %v4812 = vperm.slane %v4810, 0
        %v4813 = vperm.slane %v4810, 1
        %v4814 = vperm.slane %v4810, 2
        %v4815 = vperm.slane %v4810, 3
        %v4816 = vperm.slane %v4810, 4
        %v4817 = vperm.slane %v4810, 5
        %v4818 = vperm.slane %v4810, 6
        %v4819 = vperm.slane %v4810, 7
        %4820 = vrot.lane.b32.xlu0 %v4812, 73
        %v4821 = vpop.permute.xlu0 %4820
        %4822 = vrot.lane.b32.xlu0 %v4813, 73
        %v4823 = vpop.permute.xlu0 %4822
        %4824 = vrot.lane.b32.xlu0 %v4814, 73
        %v4825 = vpop.permute.xlu0 %4824
        %4826 = vrot.lane.b32.xlu0 %v4815, 73
        %v4827 = vpop.permute.xlu0 %4826
        %4828 = vrot.lane.b32.xlu0 %v4816, 73
        %v4829 = vpop.permute.xlu0 %4828
        %4830 = vrot.lane.b32.xlu0 %v4817, 73
        %v4831 = vpop.permute.xlu0 %4830
        %4832 = vrot.lane.b32.xlu0 %v4818, 73
        %v4833 = vpop.permute.xlu0 %4832
        %4834 = vrot.lane.b32.xlu0 %v4819, 73
        %v4835 = vpop.permute.xlu0 %4834
        %v4836 = vsel %vm1214, %v4821, %v4823
        %v4837 = vsel %vm1214, %v4823, %v4825
        %v4838 = vsel %vm1214, %v4825, %v4827
        %v4839 = vsel %vm1214, %v4827, %v4829
        %v4840 = vsel %vm1214, %v4829, %v4831
        %v4841 = vsel %vm1214, %v4831, %v4833
        %v4842 = vsel %vm1214, %v4833, %v4835
        %v4852 = vmul.f32 %v4799, %v4821
        %v4853 = vmul.f32 %v4800, %v4836
        %v4854 = vmul.f32 %v4801, %v4837
        %v4855 = vmul.f32 %v4802, %v4838
        %v4856 = vmul.f32 %v4803, %v4839
        %v4857 = vmul.f32 %v4804, %v4840
        %v4858 = vmul.f32 %v4805, %v4841
        %v4859 = vmul.f32 %v4806, %v4842
        %v4860 = vmul.f32 %v4807, %v4835
        %v4861 = vld [vmem:[%s1291] ss:$8 sm:$0xf]
        %v4862 = vld [vmem:[%s1291] ss:$8 sm:$0xf0]
        %v4863 = vor.u32 %v4861, %v4862
        %v4865 = vperm.slane %v4863, 0
        %v4866 = vperm.slane %v4863, 1
        %v4867 = vperm.slane %v4863, 2
        %v4868 = vperm.slane %v4863, 3
        %v4869 = vperm.slane %v4863, 4
        %v4870 = vperm.slane %v4863, 5
        %v4871 = vperm.slane %v4863, 6
        %v4872 = vperm.slane %v4863, 7
        %4873 = vrot.lane.b32.xlu0 %v4865, 119
        %v4874 = vpop.permute.xlu0 %4873
        %4875 = vrot.lane.b32.xlu0 %v4866, 119
        %v4876 = vpop.permute.xlu0 %4875
        %4877 = vrot.lane.b32.xlu0 %v4867, 119
        %v4878 = vpop.permute.xlu0 %4877
        %4879 = vrot.lane.b32.xlu0 %v4868, 119
        %v4880 = vpop.permute.xlu0 %4879
        %4881 = vrot.lane.b32.xlu0 %v4869, 119
        %v4882 = vpop.permute.xlu0 %4881
        %4883 = vrot.lane.b32.xlu0 %v4870, 119
        %v4884 = vpop.permute.xlu0 %4883
        %4885 = vrot.lane.b32.xlu0 %v4871, 119
        %v4886 = vpop.permute.xlu0 %4885
        %4887 = vrot.lane.b32.xlu0 %v4872, 119
        %v4888 = vpop.permute.xlu0 %4887
        %v4889 = vsel %vm1320, %v4874, %v4876
        %v4890 = vsel %vm1320, %v4876, %v4878
        %v4891 = vsel %vm1320, %v4878, %v4880
        %v4892 = vsel %vm1320, %v4880, %v4882
        %v4893 = vsel %vm1320, %v4882, %v4884
        %v4894 = vsel %vm1320, %v4884, %v4886
        %v4895 = vsel %vm1320, %v4886, %v4888
        %v4905 = vmul.f32 %v4799, %v4874
        %v4906 = vmul.f32 %v4800, %v4889
        %v4907 = vmul.f32 %v4801, %v4890
        %v4908 = vmul.f32 %v4802, %v4891
        %v4909 = vmul.f32 %v4803, %v4892
        %v4910 = vmul.f32 %v4804, %v4893
        %v4911 = vmul.f32 %v4805, %v4894
        %v4912 = vmul.f32 %v4806, %v4895
        %v4913 = vmul.f32 %v4807, %v4888
        %4923 = vrot.lane.b32.xlu0 %v4905, 82
        %v4924 = vpop.permute.xlu0 %4923
        %4925 = vrot.lane.b32.xlu0 %v4906, 82
        %v4926 = vpop.permute.xlu0 %4925
        %4927 = vrot.lane.b32.xlu0 %v4907, 82
        %v4928 = vpop.permute.xlu0 %4927
        %4929 = vrot.lane.b32.xlu0 %v4908, 82
        %v4930 = vpop.permute.xlu0 %4929
        %4931 = vrot.lane.b32.xlu0 %v4909, 82
        %v4932 = vpop.permute.xlu0 %4931
        %4933 = vrot.lane.b32.xlu0 %v4910, 82
        %v4934 = vpop.permute.xlu0 %4933
        %4935 = vrot.lane.b32.xlu0 %v4911, 82
        %v4936 = vpop.permute.xlu0 %4935
        %4937 = vrot.lane.b32.xlu0 %v4912, 82
        %v4938 = vpop.permute.xlu0 %4937
        %4939 = vrot.lane.b32.xlu0 %v4913, 82
        %v4940 = vpop.permute.xlu0 %4939
        %vm4941 = vcmask 670720
        %v4942 = vsel %vm4941, %v4924, %v4926
        %v4943 = vsel %vm4941, %v4926, %v4928
        %v4944 = vsel %vm4941, %v4928, %v4930
        %v4945 = vsel %vm4941, %v4930, %v4932
        %v4946 = vsel %vm4941, %v4932, %v4934
        %v4947 = vsel %vm4941, %v4934, %v4936
        %v4948 = vsel %vm4941, %v4936, %v4938
        %v4949 = vsel %vm4941, %v4938, %v4940
        %v4959 = vpack.c.bf16 %v4853, %v4852
        %v4960 = vpack.c.bf16 %v4855, %v4854
        %v4961 = vpack.c.bf16 %v4857, %v4856
        %v4962 = vpack.c.bf16 %v4859, %v4858
        %v4963 = vpack.c.bf16 %v4860, %v4860
        %v4964 = vpack.c.bf16 %v4943, %v4942
        %v4965 = vpack.c.bf16 %v4945, %v4944
        %v4966 = vpack.c.bf16 %v4947, %v4946
        %v4967 = vpack.c.bf16 %v4949, %v4948
        %v4968 = vpack.c.bf16 %v4940, %v4940
        %4979 = vrot.lane.b32.xlu0 %v4959, 55
        %v4980 = vpop.permute.xlu0 %4979
        %4981 = vrot.lane.b32.xlu0 %v4960, 55
        %v4982 = vpop.permute.xlu0 %4981
        %4983 = vrot.lane.b32.xlu0 %v4961, 55
        %v4984 = vpop.permute.xlu0 %4983
        %4985 = vrot.lane.b32.xlu0 %v4962, 55
        %v4986 = vpop.permute.xlu0 %4985
        %4987 = vrot.lane.b32.xlu0 %v4963, 55
        %v4988 = vpop.permute.xlu0 %4987
        %4989 = vrot.lane.b32.xlu0 %v4964, 55
        %v4990 = vpop.permute.xlu0 %4989
        %4991 = vrot.lane.b32.xlu0 %v4965, 55
        %v4992 = vpop.permute.xlu0 %4991
        %4993 = vrot.lane.b32.xlu0 %v4966, 55
        %v4994 = vpop.permute.xlu0 %4993
        %4995 = vrot.lane.b32.xlu0 %v4967, 55
        %v4996 = vpop.permute.xlu0 %4995
        %4997 = vrot.lane.b32.xlu0 %v4968, 55
        %v4998 = vpop.permute.xlu0 %4997
        %v4999 = vrot.slane %v4980, 4
        %v5000 = vrot.slane %v4982, 4
        %v5001 = vrot.slane %v4984, 4
        %v5002 = vrot.slane %v4986, 4
        %v5003 = vrot.slane %v4988, 4
        %v5004 = vrot.slane %v4990, 4
        %v5005 = vrot.slane %v4992, 4
        %v5006 = vrot.slane %v4994, 4
        %v5007 = vrot.slane %v4996, 4
        %v5008 = vrot.slane %v4998, 4
        %v5009 = vsel %vm396, %v4999, %v5000
        %v5010 = vsel %vm1266, %v4980, %v5009
        %v5011 = vsel %vm396, %v5000, %v5001
        %v5012 = vsel %vm1266, %v4982, %v5011
        %v5013 = vsel %vm396, %v5001, %v5002
        %v5014 = vsel %vm1266, %v4984, %v5013
        %v5015 = vsel %vm396, %v5002, %v5003
        %v5016 = vsel %vm1266, %v4986, %v5015
        %v5017 = vsel %vm396, %v5004, %v5005
        %v5018 = vsel %vm1266, %v4990, %v5017
        %v5019 = vsel %vm396, %v5005, %v5006
        %v5020 = vsel %vm1266, %v4992, %v5019
        %v5021 = vsel %vm396, %v5006, %v5007
        %v5022 = vsel %vm1266, %v4994, %v5021
        %v5023 = vsel %vm396, %v5007, %v5008
        %v5024 = vsel %vm1266, %v4996, %v5023
        %5033 = vst [vmem:[#allocation3 + $0x100] sm:$0xff] %v5010
        %5034 = vst [vmem:[#allocation3 + $0x108] sm:$0xff] %v5012
        %5035 = vst [vmem:[#allocation3 + $0x110] sm:$0xff] %v5014
        %5036 = vst [vmem:[#allocation3 + $0x118] sm:$0xff] %v5016
        %5037 = vst [vmem:[#allocation3 + $0x120] sm:$0xff] %v5018
        %5038 = vst [vmem:[#allocation3 + $0x128] sm:$0xff] %v5020
        %5039 = vst [vmem:[#allocation3 + $0x130] sm:$0xff] %v5022
        %5040 = vst [vmem:[#allocation3 + $0x138] sm:$0xff] %v5024
        %v5041 = vld [vmem:[#allocation2] sm:$0xff]
        %v5042 = vld [vmem:[#allocation2 + $0x8] sm:$0xff]
        %v5043 = vld [vmem:[#allocation2 + $0x10] sm:$0xff]
        %v5044 = vld [vmem:[#allocation2 + $0x18] sm:$0xff]
        %v5045 = vld [vmem:[#allocation2 + $0x20] sm:$0xff]
        %v5046 = vld [vmem:[#allocation2 + $0x28] sm:$0xff]
        %v5047 = vld [vmem:[#allocation2 + $0x30] sm:$0xff]
        %v5048 = vld [vmem:[#allocation2 + $0x38] sm:$0xff]
        %v5049 = vld [vmem:[#allocation2 + $0x40] sm:$0xff]
        %v5050 = vld [vmem:[%s1402] ss:$8 sm:$0xf]
        %v5051 = vld [vmem:[%s1402] ss:$8 sm:$0xf0]
        %v5052 = vor.u32 %v5050, %v5051
        %v5054 = vperm.slane %v5052, 0
        %v5055 = vperm.slane %v5052, 1
        %v5056 = vperm.slane %v5052, 2
        %v5057 = vperm.slane %v5052, 3
        %v5058 = vperm.slane %v5052, 4
        %v5059 = vperm.slane %v5052, 5
        %v5060 = vperm.slane %v5052, 6
        %v5061 = vperm.slane %v5052, 7
        %5062 = vrot.lane.b32.xlu0 %v5054, 120
        %v5063 = vpop.permute.xlu0 %5062
        %5064 = vrot.lane.b32.xlu0 %v5055, 120
        %v5065 = vpop.permute.xlu0 %5064
        %5066 = vrot.lane.b32.xlu0 %v5056, 120
        %v5067 = vpop.permute.xlu0 %5066
        %5068 = vrot.lane.b32.xlu0 %v5057, 120
        %v5069 = vpop.permute.xlu0 %5068
        %5070 = vrot.lane.b32.xlu0 %v5058, 120
        %v5071 = vpop.permute.xlu0 %5070
        %5072 = vrot.lane.b32.xlu0 %v5059, 120
        %v5073 = vpop.permute.xlu0 %5072
        %5074 = vrot.lane.b32.xlu0 %v5060, 120
        %v5075 = vpop.permute.xlu0 %5074
        %5076 = vrot.lane.b32.xlu0 %v5061, 120
        %v5077 = vpop.permute.xlu0 %5076
        %v5078 = vsel %vm1431, %v5063, %v5065
        %v5079 = vsel %vm1431, %v5065, %v5067
        %v5080 = vsel %vm1431, %v5067, %v5069
        %v5081 = vsel %vm1431, %v5069, %v5071
        %v5082 = vsel %vm1431, %v5071, %v5073
        %v5083 = vsel %vm1431, %v5073, %v5075
        %v5084 = vsel %vm1431, %v5075, %v5077
        %v5094 = vmul.f32 %v5041, %v5063
        %v5095 = vmul.f32 %v5042, %v5078
        %v5096 = vmul.f32 %v5043, %v5079
        %v5097 = vmul.f32 %v5044, %v5080
        %v5098 = vmul.f32 %v5045, %v5081
        %v5099 = vmul.f32 %v5046, %v5082
        %v5100 = vmul.f32 %v5047, %v5083
        %v5101 = vmul.f32 %v5048, %v5084
        %v5102 = vmul.f32 %v5049, %v5077
        %v5103 = vld [vmem:[%s1508] ss:$8 sm:$0xf]
        %v5104 = vld [vmem:[%s1508] ss:$8 sm:$0xf0]
        %v5105 = vor.u32 %v5103, %v5104
        %v5107 = vperm.slane %v5105, 0
        %v5108 = vperm.slane %v5105, 1
        %v5109 = vperm.slane %v5105, 2
        %v5110 = vperm.slane %v5105, 3
        %v5111 = vperm.slane %v5105, 4
        %v5112 = vperm.slane %v5105, 5
        %v5113 = vperm.slane %v5105, 6
        %v5114 = vperm.slane %v5105, 7
        %5115 = vrot.lane.b32.xlu0 %v5107, 121
        %v5116 = vpop.permute.xlu0 %5115
        %5117 = vrot.lane.b32.xlu0 %v5108, 121
        %v5118 = vpop.permute.xlu0 %5117
        %5119 = vrot.lane.b32.xlu0 %v5109, 121
        %v5120 = vpop.permute.xlu0 %5119
        %5121 = vrot.lane.b32.xlu0 %v5110, 121
        %v5122 = vpop.permute.xlu0 %5121
        %5123 = vrot.lane.b32.xlu0 %v5111, 121
        %v5124 = vpop.permute.xlu0 %5123
        %5125 = vrot.lane.b32.xlu0 %v5112, 121
        %v5126 = vpop.permute.xlu0 %5125
        %5127 = vrot.lane.b32.xlu0 %v5113, 121
        %v5128 = vpop.permute.xlu0 %5127
        %5129 = vrot.lane.b32.xlu0 %v5114, 121
        %v5130 = vpop.permute.xlu0 %5129
        %v5131 = vsel %vm1537, %v5116, %v5118
        %v5132 = vsel %vm1537, %v5118, %v5120
        %v5133 = vsel %vm1537, %v5120, %v5122
        %v5134 = vsel %vm1537, %v5122, %v5124
        %v5135 = vsel %vm1537, %v5124, %v5126
        %v5136 = vsel %vm1537, %v5126, %v5128
        %v5137 = vsel %vm1537, %v5128, %v5130
        %v5147 = vmul.f32 %v5041, %v5116
        %v5148 = vmul.f32 %v5042, %v5131
        %v5149 = vmul.f32 %v5043, %v5132
        %v5150 = vmul.f32 %v5044, %v5133
        %v5151 = vmul.f32 %v5045, %v5134
        %v5152 = vmul.f32 %v5046, %v5135
        %v5153 = vmul.f32 %v5047, %v5136
        %v5154 = vmul.f32 %v5048, %v5137
        %v5155 = vmul.f32 %v5049, %v5130
        %5165 = vrot.lane.b32.xlu0 %v5147, 127
        %v5166 = vpop.permute.xlu0 %5165
        %5167 = vrot.lane.b32.xlu0 %v5148, 127
        %v5168 = vpop.permute.xlu0 %5167
        %5169 = vrot.lane.b32.xlu0 %v5149, 127
        %v5170 = vpop.permute.xlu0 %5169
        %5171 = vrot.lane.b32.xlu0 %v5150, 127
        %v5172 = vpop.permute.xlu0 %5171
        %5173 = vrot.lane.b32.xlu0 %v5151, 127
        %v5174 = vpop.permute.xlu0 %5173
        %5175 = vrot.lane.b32.xlu0 %v5152, 127
        %v5176 = vpop.permute.xlu0 %5175
        %5177 = vrot.lane.b32.xlu0 %v5153, 127
        %v5178 = vpop.permute.xlu0 %5177
        %5179 = vrot.lane.b32.xlu0 %v5154, 127
        %v5180 = vpop.permute.xlu0 %5179
        %5181 = vrot.lane.b32.xlu0 %v5155, 127
        %v5182 = vpop.permute.xlu0 %5181
        %v5183 = vsel %vm1648, %v5166, %v5168
        %v5184 = vsel %vm1648, %v5168, %v5170
        %v5185 = vsel %vm1648, %v5170, %v5172
        %v5186 = vsel %vm1648, %v5172, %v5174
        %v5187 = vsel %vm1648, %v5174, %v5176
        %v5188 = vsel %vm1648, %v5176, %v5178
        %v5189 = vsel %vm1648, %v5178, %v5180
        %v5190 = vsel %vm1648, %v5180, %v5182
        %v5200 = vpack.c.bf16 %v5095, %v5094
        %v5201 = vpack.c.bf16 %v5097, %v5096
        %v5202 = vpack.c.bf16 %v5099, %v5098
        %v5203 = vpack.c.bf16 %v5101, %v5100
        %v5204 = vpack.c.bf16 %v5102, %v5102
        %v5205 = vpack.c.bf16 %v5184, %v5183
        %v5206 = vpack.c.bf16 %v5186, %v5185
        %v5207 = vpack.c.bf16 %v5188, %v5187
        %v5208 = vpack.c.bf16 %v5190, %v5189
        %v5209 = vpack.c.bf16 %v5182, %v5182
        %5220 = vrot.lane.b32.xlu0 %v5200, 8
        %v5221 = vpop.permute.xlu0 %5220
        %5222 = vrot.lane.b32.xlu0 %v5201, 8
        %v5223 = vpop.permute.xlu0 %5222
        %5224 = vrot.lane.b32.xlu0 %v5202, 8
        %v5225 = vpop.permute.xlu0 %5224
        %5226 = vrot.lane.b32.xlu0 %v5203, 8
        %v5227 = vpop.permute.xlu0 %5226
        %5228 = vrot.lane.b32.xlu0 %v5204, 8
        %v5229 = vpop.permute.xlu0 %5228
        %5230 = vrot.lane.b32.xlu0 %v5205, 8
        %v5231 = vpop.permute.xlu0 %5230
        %5232 = vrot.lane.b32.xlu0 %v5206, 8
        %v5233 = vpop.permute.xlu0 %5232
        %5234 = vrot.lane.b32.xlu0 %v5207, 8
        %v5235 = vpop.permute.xlu0 %5234
        %5236 = vrot.lane.b32.xlu0 %v5208, 8
        %v5237 = vpop.permute.xlu0 %5236
        %5238 = vrot.lane.b32.xlu0 %v5209, 8
        %v5239 = vpop.permute.xlu0 %5238
        %v5240 = vrot.slane %v5221, 4
        %v5241 = vrot.slane %v5223, 4
        %v5242 = vrot.slane %v5225, 4
        %v5243 = vrot.slane %v5227, 4
        %v5244 = vrot.slane %v5229, 4
        %v5245 = vrot.slane %v5231, 4
        %v5246 = vrot.slane %v5233, 4
        %v5247 = vrot.slane %v5235, 4
        %v5248 = vrot.slane %v5237, 4
        %v5249 = vrot.slane %v5239, 4
        %v5250 = vsel %vm396, %v5240, %v5241
        %v5251 = vsel %vm1483, %v5221, %v5250
        %v5252 = vsel %vm396, %v5241, %v5242
        %v5253 = vsel %vm1483, %v5223, %v5252
        %v5254 = vsel %vm396, %v5242, %v5243
        %v5255 = vsel %vm1483, %v5225, %v5254
        %v5256 = vsel %vm396, %v5243, %v5244
        %v5257 = vsel %vm1483, %v5227, %v5256
        %v5258 = vsel %vm396, %v5245, %v5246
        %v5259 = vsel %vm1483, %v5231, %v5258
        %v5260 = vsel %vm396, %v5246, %v5247
        %v5261 = vsel %vm1483, %v5233, %v5260
        %v5262 = vsel %vm396, %v5247, %v5248
        %v5263 = vsel %vm1483, %v5235, %v5262
        %v5264 = vsel %vm396, %v5248, %v5249
        %v5265 = vsel %vm1483, %v5237, %v5264
        %5274 = vst [vmem:[#allocation3 + $0x140] sm:$0xff] %v5251
        %5275 = vst [vmem:[#allocation3 + $0x148] sm:$0xff] %v5253
        %5276 = vst [vmem:[#allocation3 + $0x150] sm:$0xff] %v5255
        %5277 = vst [vmem:[#allocation3 + $0x158] sm:$0xff] %v5257
        %5278 = vst [vmem:[#allocation3 + $0x160] sm:$0xff] %v5259
        %5279 = vst [vmem:[#allocation3 + $0x168] sm:$0xff] %v5261
        %5280 = vst [vmem:[#allocation3 + $0x170] sm:$0xff] %v5263
        %5281 = vst [vmem:[#allocation3 + $0x178] sm:$0xff] %v5265
        %v5282 = vld [vmem:[#allocation2] sm:$0xff]
        %v5283 = vld [vmem:[#allocation2 + $0x8] sm:$0xff]
        %v5284 = vld [vmem:[#allocation2 + $0x10] sm:$0xff]
        %v5285 = vld [vmem:[#allocation2 + $0x18] sm:$0xff]
        %v5286 = vld [vmem:[#allocation2 + $0x20] sm:$0xff]
        %v5287 = vld [vmem:[#allocation2 + $0x28] sm:$0xff]
        %v5288 = vld [vmem:[#allocation2 + $0x30] sm:$0xff]
        %v5289 = vld [vmem:[#allocation2 + $0x38] sm:$0xff]
        %v5290 = vld [vmem:[#allocation2 + $0x40] sm:$0xff]
        %v5291 = vld [vmem:[%s1619] ss:$8 sm:$0xf]
        %v5292 = vld [vmem:[%s1619] ss:$8 sm:$0xf0]
        %v5293 = vor.u32 %v5291, %v5292
        %v5295 = vperm.slane %v5293, 0
        %v5296 = vperm.slane %v5293, 1
        %v5297 = vperm.slane %v5293, 2
        %v5298 = vperm.slane %v5293, 3
        %v5299 = vperm.slane %v5293, 4
        %v5300 = vperm.slane %v5293, 5
        %v5301 = vperm.slane %v5293, 6
        %v5302 = vperm.slane %v5293, 7
        %5303 = vrot.lane.b32.xlu0 %v5295, 127
        %v5304 = vpop.permute.xlu0 %5303
        %5305 = vrot.lane.b32.xlu0 %v5296, 127
        %v5306 = vpop.permute.xlu0 %5305
        %5307 = vrot.lane.b32.xlu0 %v5297, 127
        %v5308 = vpop.permute.xlu0 %5307
        %5309 = vrot.lane.b32.xlu0 %v5298, 127
        %v5310 = vpop.permute.xlu0 %5309
        %5311 = vrot.lane.b32.xlu0 %v5299, 127
        %v5312 = vpop.permute.xlu0 %5311
        %5313 = vrot.lane.b32.xlu0 %v5300, 127
        %v5314 = vpop.permute.xlu0 %5313
        %5315 = vrot.lane.b32.xlu0 %v5301, 127
        %v5316 = vpop.permute.xlu0 %5315
        %5317 = vrot.lane.b32.xlu0 %v5302, 127
        %v5318 = vpop.permute.xlu0 %5317
        %v5319 = vsel %vm1648, %v5304, %v5306
        %v5320 = vsel %vm1648, %v5306, %v5308
        %v5321 = vsel %vm1648, %v5308, %v5310
        %v5322 = vsel %vm1648, %v5310, %v5312
        %v5323 = vsel %vm1648, %v5312, %v5314
        %v5324 = vsel %vm1648, %v5314, %v5316
        %v5325 = vsel %vm1648, %v5316, %v5318
        %v5335 = vmul.f32 %v5282, %v5304
        %v5336 = vmul.f32 %v5283, %v5319
        %v5337 = vmul.f32 %v5284, %v5320
        %v5338 = vmul.f32 %v5285, %v5321
        %v5339 = vmul.f32 %v5286, %v5322
        %v5340 = vmul.f32 %v5287, %v5323
        %v5341 = vmul.f32 %v5288, %v5324
        %v5342 = vmul.f32 %v5289, %v5325
        %v5343 = vmul.f32 %v5290, %v5318
        %5352 = vrot.lane.b32.xlu0 %v5283, 127
        %v5353 = vpop.permute.xlu0 %5352
        %5354 = vrot.lane.b32.xlu0 %v5284, 127
        %v5355 = vpop.permute.xlu0 %5354
        %5356 = vrot.lane.b32.xlu0 %v5285, 127
        %v5357 = vpop.permute.xlu0 %5356
        %5358 = vrot.lane.b32.xlu0 %v5286, 127
        %v5359 = vpop.permute.xlu0 %5358
        %5360 = vrot.lane.b32.xlu0 %v5287, 127
        %v5361 = vpop.permute.xlu0 %5360
        %5362 = vrot.lane.b32.xlu0 %v5288, 127
        %v5363 = vpop.permute.xlu0 %5362
        %5364 = vrot.lane.b32.xlu0 %v5289, 127
        %v5365 = vpop.permute.xlu0 %5364
        %5366 = vrot.lane.b32.xlu0 %v5290, 127
        %v5367 = vpop.permute.xlu0 %5366
        %v5368 = vsel %vm1648, %v5353, %v5355
        %v5369 = vsel %vm1648, %v5355, %v5357
        %v5370 = vsel %vm1648, %v5357, %v5359
        %v5371 = vsel %vm1648, %v5359, %v5361
        %v5372 = vsel %vm1648, %v5361, %v5363
        %v5373 = vsel %vm1648, %v5363, %v5365
        %v5374 = vsel %vm1648, %v5365, %v5367
        %v5384 = vpack.c.bf16 %v5336, %v5335
        %v5385 = vpack.c.bf16 %v5338, %v5337
        %v5386 = vpack.c.bf16 %v5340, %v5339
        %v5387 = vpack.c.bf16 %v5342, %v5341
        %v5388 = vpack.c.bf16 %v5343, %v5343
        %v5389 = vpack.c.bf16 %v5368, %v5353
        %v5390 = vpack.c.bf16 %v5370, %v5369
        %v5391 = vpack.c.bf16 %v5372, %v5371
        %v5392 = vpack.c.bf16 %v5374, %v5373
        %v5393 = vpack.c.bf16 %v5367, %v5367
        %5404 = vrot.lane.b32.xlu0 %v5384, 1
        %v5405 = vpop.permute.xlu0 %5404
        %5406 = vrot.lane.b32.xlu0 %v5385, 1
        %v5407 = vpop.permute.xlu0 %5406
        %5408 = vrot.lane.b32.xlu0 %v5386, 1
        %v5409 = vpop.permute.xlu0 %5408
        %5410 = vrot.lane.b32.xlu0 %v5387, 1
        %v5411 = vpop.permute.xlu0 %5410
        %5412 = vrot.lane.b32.xlu0 %v5388, 1
        %v5413 = vpop.permute.xlu0 %5412
        %5414 = vrot.lane.b32.xlu0 %v5389, 1
        %v5415 = vpop.permute.xlu0 %5414
        %5416 = vrot.lane.b32.xlu0 %v5390, 1
        %v5417 = vpop.permute.xlu0 %5416
        %5418 = vrot.lane.b32.xlu0 %v5391, 1
        %v5419 = vpop.permute.xlu0 %5418
        %5420 = vrot.lane.b32.xlu0 %v5392, 1
        %v5421 = vpop.permute.xlu0 %5420
        %5422 = vrot.lane.b32.xlu0 %v5393, 1
        %v5423 = vpop.permute.xlu0 %5422
        %v5424 = vrot.slane %v5405, 4
        %v5425 = vrot.slane %v5407, 4
        %v5426 = vrot.slane %v5409, 4
        %v5427 = vrot.slane %v5411, 4
        %v5428 = vrot.slane %v5413, 4
        %v5429 = vrot.slane %v5415, 4
        %v5430 = vrot.slane %v5417, 4
        %v5431 = vrot.slane %v5419, 4
        %v5432 = vrot.slane %v5421, 4
        %v5433 = vrot.slane %v5423, 4
        %v5434 = vsel %vm396, %v5424, %v5425
        %v5435 = vsel %vm1700, %v5405, %v5434
        %v5436 = vsel %vm396, %v5425, %v5426
        %v5437 = vsel %vm1700, %v5407, %v5436
        %v5438 = vsel %vm396, %v5426, %v5427
        %v5439 = vsel %vm1700, %v5409, %v5438
        %v5440 = vsel %vm396, %v5427, %v5428
        %v5441 = vsel %vm1700, %v5411, %v5440
        %v5442 = vsel %vm396, %v5429, %v5430
        %v5443 = vsel %vm1700, %v5415, %v5442
        %v5444 = vsel %vm396, %v5430, %v5431
        %v5445 = vsel %vm1700, %v5417, %v5444
        %v5446 = vsel %vm396, %v5431, %v5432
        %v5447 = vsel %vm1700, %v5419, %v5446
        %v5448 = vsel %vm396, %v5432, %v5433
        %v5449 = vsel %vm1700, %v5421, %v5448
        %5458 = vst [vmem:[#allocation3 + $0x180] sm:$0xff] %v5435
        %5459 = vst [vmem:[#allocation3 + $0x188] sm:$0xff] %v5437
        %5460 = vst [vmem:[#allocation3 + $0x190] sm:$0xff] %v5439
        %5461 = vst [vmem:[#allocation3 + $0x198] sm:$0xff] %v5441
        %5462 = vst [vmem:[#allocation3 + $0x1a0] sm:$0xff] %v5443
        %5463 = vst [vmem:[#allocation3 + $0x1a8] sm:$0xff] %v5445
        %5464 = vst [vmem:[#allocation3 + $0x1b0] sm:$0xff] %v5447
        %5465 = vst [vmem:[#allocation3 + $0x1b8] sm:$0xff] %v5449
        %v5466 = vld [vmem:[#allocation2 + $0x8] sm:$0xff]
        %v5467 = vld [vmem:[#allocation2 + $0x10] sm:$0xff]
        %v5468 = vld [vmem:[#allocation2 + $0x18] sm:$0xff]
        %v5469 = vld [vmem:[#allocation2 + $0x20] sm:$0xff]
        %v5470 = vld [vmem:[#allocation2 + $0x28] sm:$0xff]
        %v5471 = vld [vmem:[#allocation2 + $0x30] sm:$0xff]
        %v5472 = vld [vmem:[#allocation2 + $0x38] sm:$0xff]
        %v5473 = vld [vmem:[#allocation2 + $0x40] sm:$0xff]
        %v5474 = vld [vmem:[#allocation2 + $0x48] sm:$0xff]
        %v5475 = vld [vmem:[%s1753] ss:$8 sm:$0xf]
        %v5476 = vld [vmem:[%s1753] ss:$8 sm:$0xf0]
        %v5477 = vor.u32 %v5475, %v5476
        %v5479 = vperm.slane %v5477, 0
        %v5480 = vperm.slane %v5477, 1
        %v5481 = vperm.slane %v5477, 2
        %v5482 = vperm.slane %v5477, 3
        %v5483 = vperm.slane %v5477, 4
        %v5484 = vperm.slane %v5477, 5
        %v5485 = vperm.slane %v5477, 6
        %v5486 = vperm.slane %v5477, 7
        %5487 = vrot.lane.b32.xlu0 %v5479, 1
        %v5488 = vpop.permute.xlu0 %5487
        %5489 = vrot.lane.b32.xlu0 %v5480, 1
        %v5490 = vpop.permute.xlu0 %5489
        %5491 = vrot.lane.b32.xlu0 %v5481, 1
        %v5492 = vpop.permute.xlu0 %5491
        %5493 = vrot.lane.b32.xlu0 %v5482, 1
        %v5494 = vpop.permute.xlu0 %5493
        %5495 = vrot.lane.b32.xlu0 %v5483, 1
        %v5496 = vpop.permute.xlu0 %5495
        %5497 = vrot.lane.b32.xlu0 %v5484, 1
        %v5498 = vpop.permute.xlu0 %5497
        %5499 = vrot.lane.b32.xlu0 %v5485, 1
        %v5500 = vpop.permute.xlu0 %5499
        %5501 = vrot.lane.b32.xlu0 %v5486, 1
        %v5502 = vpop.permute.xlu0 %5501
        %v5503 = vsel %vm1782, %v5488, %v5490
        %v5504 = vsel %vm1782, %v5490, %v5492
        %v5505 = vsel %vm1782, %v5492, %v5494
        %v5506 = vsel %vm1782, %v5494, %v5496
        %v5507 = vsel %vm1782, %v5496, %v5498
        %v5508 = vsel %vm1782, %v5498, %v5500
        %v5509 = vsel %vm1782, %v5500, %v5502
        %v5519 = vmul.f32 %v5466, %v5488
        %v5520 = vmul.f32 %v5467, %v5503
        %v5521 = vmul.f32 %v5468, %v5504
        %v5522 = vmul.f32 %v5469, %v5505
        %v5523 = vmul.f32 %v5470, %v5506
        %v5524 = vmul.f32 %v5471, %v5507
        %v5525 = vmul.f32 %v5472, %v5508
        %v5526 = vmul.f32 %v5473, %v5509
        %v5527 = vmul.f32 %v5474, %v5502
        %v5528 = vld [vmem:[%s1859] ss:$8 sm:$0xf]
        %v5529 = vld [vmem:[%s1859] ss:$8 sm:$0xf0]
        %v5530 = vor.u32 %v5528, %v5529
        %v5532 = vperm.slane %v5530, 0
        %v5533 = vperm.slane %v5530, 1
        %v5534 = vperm.slane %v5530, 2
        %v5535 = vperm.slane %v5530, 3
        %v5536 = vperm.slane %v5530, 4
        %v5537 = vperm.slane %v5530, 5
        %v5538 = vperm.slane %v5530, 6
        %v5539 = vperm.slane %v5530, 7
        %5540 = vrot.lane.b32.xlu0 %v5532, 7
        %v5541 = vpop.permute.xlu0 %5540
        %5542 = vrot.lane.b32.xlu0 %v5533, 7
        %v5543 = vpop.permute.xlu0 %5542
        %5544 = vrot.lane.b32.xlu0 %v5534, 7
        %v5545 = vpop.permute.xlu0 %5544
        %5546 = vrot.lane.b32.xlu0 %v5535, 7
        %v5547 = vpop.permute.xlu0 %5546
        %5548 = vrot.lane.b32.xlu0 %v5536, 7
        %v5549 = vpop.permute.xlu0 %5548
        %5550 = vrot.lane.b32.xlu0 %v5537, 7
        %v5551 = vpop.permute.xlu0 %5550
        %5552 = vrot.lane.b32.xlu0 %v5538, 7
        %v5553 = vpop.permute.xlu0 %5552
        %5554 = vrot.lane.b32.xlu0 %v5539, 7
        %v5555 = vpop.permute.xlu0 %5554
        %v5556 = vsel %vm1888, %v5541, %v5543
        %v5557 = vsel %vm1888, %v5543, %v5545
        %v5558 = vsel %vm1888, %v5545, %v5547
        %v5559 = vsel %vm1888, %v5547, %v5549
        %v5560 = vsel %vm1888, %v5549, %v5551
        %v5561 = vsel %vm1888, %v5551, %v5553
        %v5562 = vsel %vm1888, %v5553, %v5555
        %v5572 = vmul.f32 %v5466, %v5541
        %v5573 = vmul.f32 %v5467, %v5556
        %v5574 = vmul.f32 %v5468, %v5557
        %v5575 = vmul.f32 %v5469, %v5558
        %v5576 = vmul.f32 %v5470, %v5559
        %v5577 = vmul.f32 %v5471, %v5560
        %v5578 = vmul.f32 %v5472, %v5561
        %v5579 = vmul.f32 %v5473, %v5562
        %v5580 = vmul.f32 %v5474, %v5555
        %5590 = vrot.lane.b32.xlu0 %v5572, 122
        %v5591 = vpop.permute.xlu0 %5590
        %5592 = vrot.lane.b32.xlu0 %v5573, 122
        %v5593 = vpop.permute.xlu0 %5592
        %5594 = vrot.lane.b32.xlu0 %v5574, 122
        %v5595 = vpop.permute.xlu0 %5594
        %5596 = vrot.lane.b32.xlu0 %v5575, 122
        %v5597 = vpop.permute.xlu0 %5596
        %5598 = vrot.lane.b32.xlu0 %v5576, 122
        %v5599 = vpop.permute.xlu0 %5598
        %5600 = vrot.lane.b32.xlu0 %v5577, 122
        %v5601 = vpop.permute.xlu0 %5600
        %5602 = vrot.lane.b32.xlu0 %v5578, 122
        %v5603 = vpop.permute.xlu0 %5602
        %5604 = vrot.lane.b32.xlu0 %v5579, 122
        %v5605 = vpop.permute.xlu0 %5604
        %5606 = vrot.lane.b32.xlu0 %v5580, 122
        %v5607 = vpop.permute.xlu0 %5606
        %v5608 = vsel %vm4217, %v5591, %v5593
        %v5609 = vsel %vm4217, %v5593, %v5595
        %v5610 = vsel %vm4217, %v5595, %v5597
        %v5611 = vsel %vm4217, %v5597, %v5599
        %v5612 = vsel %vm4217, %v5599, %v5601
        %v5613 = vsel %vm4217, %v5601, %v5603
        %v5614 = vsel %vm4217, %v5603, %v5605
        %v5615 = vsel %vm4217, %v5605, %v5607
        %v5625 = vpack.c.bf16 %v5520, %v5519
        %v5626 = vpack.c.bf16 %v5522, %v5521
        %v5627 = vpack.c.bf16 %v5524, %v5523
        %v5628 = vpack.c.bf16 %v5526, %v5525
        %v5629 = vpack.c.bf16 %v5527, %v5527
        %v5630 = vpack.c.bf16 %v5609, %v5608
        %v5631 = vpack.c.bf16 %v5611, %v5610
        %v5632 = vpack.c.bf16 %v5613, %v5612
        %v5633 = vpack.c.bf16 %v5615, %v5614
        %v5634 = vpack.c.bf16 %v5607, %v5607
        %5645 = vrot.lane.b32.xlu0 %v5625, 127
        %v5646 = vpop.permute.xlu0 %5645
        %5647 = vrot.lane.b32.xlu0 %v5626, 127
        %v5648 = vpop.permute.xlu0 %5647
        %5649 = vrot.lane.b32.xlu0 %v5627, 127
        %v5650 = vpop.permute.xlu0 %5649
        %5651 = vrot.lane.b32.xlu0 %v5628, 127
        %v5652 = vpop.permute.xlu0 %5651
        %5653 = vrot.lane.b32.xlu0 %v5629, 127
        %v5654 = vpop.permute.xlu0 %5653
        %5655 = vrot.lane.b32.xlu0 %v5630, 127
        %v5656 = vpop.permute.xlu0 %5655
        %5657 = vrot.lane.b32.xlu0 %v5631, 127
        %v5658 = vpop.permute.xlu0 %5657
        %5659 = vrot.lane.b32.xlu0 %v5632, 127
        %v5660 = vpop.permute.xlu0 %5659
        %5661 = vrot.lane.b32.xlu0 %v5633, 127
        %v5662 = vpop.permute.xlu0 %5661
        %5663 = vrot.lane.b32.xlu0 %v5634, 127
        %v5664 = vpop.permute.xlu0 %5663
        %v5665 = vrot.slane %v5646, 4
        %v5666 = vrot.slane %v5648, 4
        %v5667 = vrot.slane %v5650, 4
        %v5668 = vrot.slane %v5652, 4
        %v5669 = vrot.slane %v5654, 4
        %v5670 = vrot.slane %v5656, 4
        %v5671 = vrot.slane %v5658, 4
        %v5672 = vrot.slane %v5660, 4
        %v5673 = vrot.slane %v5662, 4
        %v5674 = vrot.slane %v5664, 4
        %v5675 = vsel %vm396, %v5665, %v5666
        %v5676 = vsel %vm1834, %v5646, %v5675
        %v5677 = vsel %vm396, %v5666, %v5667
        %v5678 = vsel %vm1834, %v5648, %v5677
        %v5679 = vsel %vm396, %v5667, %v5668
        %v5680 = vsel %vm1834, %v5650, %v5679
        %v5681 = vsel %vm396, %v5668, %v5669
        %v5682 = vsel %vm1834, %v5652, %v5681
        %v5683 = vsel %vm396, %v5670, %v5671
        %v5684 = vsel %vm1834, %v5656, %v5683
        %v5685 = vsel %vm396, %v5671, %v5672
        %v5686 = vsel %vm1834, %v5658, %v5685
        %v5687 = vsel %vm396, %v5672, %v5673
        %v5688 = vsel %vm1834, %v5660, %v5687
        %v5689 = vsel %vm396, %v5673, %v5674
        %v5690 = vsel %vm1834, %v5662, %v5689
        %5699 = vst [vmem:[#allocation3 + $0x1c0] sm:$0xff] %v5676
        %5700 = vst [vmem:[#allocation3 + $0x1c8] sm:$0xff] %v5678
        %5701 = vst [vmem:[#allocation3 + $0x1d0] sm:$0xff] %v5680
        %5702 = vst [vmem:[#allocation3 + $0x1d8] sm:$0xff] %v5682
        %5703 = vst [vmem:[#allocation3 + $0x1e0] sm:$0xff] %v5684
        %5704 = vst [vmem:[#allocation3 + $0x1e8] sm:$0xff] %v5686
        %5705 = vst [vmem:[#allocation3 + $0x1f0] sm:$0xff] %v5688
        %5706 = vst [vmem:[#allocation3 + $0x1f8] sm:$0xff] %v5690
        %v5707 = vld [vmem:[#allocation2 + $0x8] sm:$0xff]
        %v5708 = vld [vmem:[#allocation2 + $0x10] sm:$0xff]
        %v5709 = vld [vmem:[#allocation2 + $0x18] sm:$0xff]
        %v5710 = vld [vmem:[#allocation2 + $0x20] sm:$0xff]
        %v5711 = vld [vmem:[#allocation2 + $0x28] sm:$0xff]
        %v5712 = vld [vmem:[#allocation2 + $0x30] sm:$0xff]
        %v5713 = vld [vmem:[#allocation2 + $0x38] sm:$0xff]
        %v5714 = vld [vmem:[#allocation2 + $0x40] sm:$0xff]
        %v5715 = vld [vmem:[#allocation2 + $0x48] sm:$0xff]
        %v5716 = vld [vmem:[%s1970] ss:$8 sm:$0xf]
        %v5717 = vld [vmem:[%s1970] ss:$8 sm:$0xf0]
        %v5718 = vor.u32 %v5716, %v5717
        %v5720 = vperm.slane %v5718, 0
        %v5721 = vperm.slane %v5718, 1
        %v5722 = vperm.slane %v5718, 2
        %v5723 = vperm.slane %v5718, 3
        %v5724 = vperm.slane %v5718, 4
        %v5725 = vperm.slane %v5718, 5
        %v5726 = vperm.slane %v5718, 6
        %v5727 = vperm.slane %v5718, 7
        %5728 = vrot.lane.b32.xlu0 %v5720, 8
        %v5729 = vpop.permute.xlu0 %5728
        %5730 = vrot.lane.b32.xlu0 %v5721, 8
        %v5731 = vpop.permute.xlu0 %5730
        %5732 = vrot.lane.b32.xlu0 %v5722, 8
        %v5733 = vpop.permute.xlu0 %5732
        %5734 = vrot.lane.b32.xlu0 %v5723, 8
        %v5735 = vpop.permute.xlu0 %5734
        %5736 = vrot.lane.b32.xlu0 %v5724, 8
        %v5737 = vpop.permute.xlu0 %5736
        %5738 = vrot.lane.b32.xlu0 %v5725, 8
        %v5739 = vpop.permute.xlu0 %5738
        %5740 = vrot.lane.b32.xlu0 %v5726, 8
        %v5741 = vpop.permute.xlu0 %5740
        %5742 = vrot.lane.b32.xlu0 %v5727, 8
        %v5743 = vpop.permute.xlu0 %5742
        %v5744 = vsel %vm1999, %v5729, %v5731
        %v5745 = vsel %vm1999, %v5731, %v5733
        %v5746 = vsel %vm1999, %v5733, %v5735
        %v5747 = vsel %vm1999, %v5735, %v5737
        %v5748 = vsel %vm1999, %v5737, %v5739
        %v5749 = vsel %vm1999, %v5739, %v5741
        %v5750 = vsel %vm1999, %v5741, %v5743
        %v5760 = vmul.f32 %v5707, %v5729
        %v5761 = vmul.f32 %v5708, %v5744
        %v5762 = vmul.f32 %v5709, %v5745
        %v5763 = vmul.f32 %v5710, %v5746
        %v5764 = vmul.f32 %v5711, %v5747
        %v5765 = vmul.f32 %v5712, %v5748
        %v5766 = vmul.f32 %v5713, %v5749
        %v5767 = vmul.f32 %v5714, %v5750
        %v5768 = vmul.f32 %v5715, %v5743
        %v5769 = vld [vmem:[%s2076] ss:$8 sm:$0xf]
        %v5770 = vld [vmem:[%s2076] ss:$8 sm:$0xf0]
        %v5771 = vor.u32 %v5769, %v5770
        %v5773 = vperm.slane %v5771, 0
        %v5774 = vperm.slane %v5771, 1
        %v5775 = vperm.slane %v5771, 2
        %v5776 = vperm.slane %v5771, 3
        %v5777 = vperm.slane %v5771, 4
        %v5778 = vperm.slane %v5771, 5
        %v5779 = vperm.slane %v5771, 6
        %v5780 = vperm.slane %v5771, 7
        %5781 = vrot.lane.b32.xlu0 %v5773, 9
        %v5782 = vpop.permute.xlu0 %5781
        %5783 = vrot.lane.b32.xlu0 %v5774, 9
        %v5784 = vpop.permute.xlu0 %5783
        %5785 = vrot.lane.b32.xlu0 %v5775, 9
        %v5786 = vpop.permute.xlu0 %5785
        %5787 = vrot.lane.b32.xlu0 %v5776, 9
        %v5788 = vpop.permute.xlu0 %5787
        %5789 = vrot.lane.b32.xlu0 %v5777, 9
        %v5790 = vpop.permute.xlu0 %5789
        %5791 = vrot.lane.b32.xlu0 %v5778, 9
        %v5792 = vpop.permute.xlu0 %5791
        %5793 = vrot.lane.b32.xlu0 %v5779, 9
        %v5794 = vpop.permute.xlu0 %5793
        %5795 = vrot.lane.b32.xlu0 %v5780, 9
        %v5796 = vpop.permute.xlu0 %5795
        %v5797 = vsel %vm2105, %v5782, %v5784
        %v5798 = vsel %vm2105, %v5784, %v5786
        %v5799 = vsel %vm2105, %v5786, %v5788
        %v5800 = vsel %vm2105, %v5788, %v5790
        %v5801 = vsel %vm2105, %v5790, %v5792
        %v5802 = vsel %vm2105, %v5792, %v5794
        %v5803 = vsel %vm2105, %v5794, %v5796
        %v5813 = vmul.f32 %v5707, %v5782
        %v5814 = vmul.f32 %v5708, %v5797
        %v5815 = vmul.f32 %v5709, %v5798
        %v5816 = vmul.f32 %v5710, %v5799
        %v5817 = vmul.f32 %v5711, %v5800
        %v5818 = vmul.f32 %v5712, %v5801
        %v5819 = vmul.f32 %v5713, %v5802
        %v5820 = vmul.f32 %v5714, %v5803
        %v5821 = vmul.f32 %v5715, %v5796
        %5831 = vrot.lane.b32.xlu0 %v5813, 127
        %v5832 = vpop.permute.xlu0 %5831
        %5833 = vrot.lane.b32.xlu0 %v5814, 127
        %v5834 = vpop.permute.xlu0 %5833
        %5835 = vrot.lane.b32.xlu0 %v5815, 127
        %v5836 = vpop.permute.xlu0 %5835
        %5837 = vrot.lane.b32.xlu0 %v5816, 127
        %v5838 = vpop.permute.xlu0 %5837
        %5839 = vrot.lane.b32.xlu0 %v5817, 127
        %v5840 = vpop.permute.xlu0 %5839
        %5841 = vrot.lane.b32.xlu0 %v5818, 127
        %v5842 = vpop.permute.xlu0 %5841
        %5843 = vrot.lane.b32.xlu0 %v5819, 127
        %v5844 = vpop.permute.xlu0 %5843
        %5845 = vrot.lane.b32.xlu0 %v5820, 127
        %v5846 = vpop.permute.xlu0 %5845
        %5847 = vrot.lane.b32.xlu0 %v5821, 127
        %v5848 = vpop.permute.xlu0 %5847
        %v5849 = vsel %vm1648, %v5832, %v5834
        %v5850 = vsel %vm1648, %v5834, %v5836
        %v5851 = vsel %vm1648, %v5836, %v5838
        %v5852 = vsel %vm1648, %v5838, %v5840
        %v5853 = vsel %vm1648, %v5840, %v5842
        %v5854 = vsel %vm1648, %v5842, %v5844
        %v5855 = vsel %vm1648, %v5844, %v5846
        %v5856 = vsel %vm1648, %v5846, %v5848
        %v5866 = vpack.c.bf16 %v5761, %v5760
        %v5867 = vpack.c.bf16 %v5763, %v5762
        %v5868 = vpack.c.bf16 %v5765, %v5764
        %v5869 = vpack.c.bf16 %v5767, %v5766
        %v5870 = vpack.c.bf16 %v5768, %v5768
        %v5871 = vpack.c.bf16 %v5850, %v5849
        %v5872 = vpack.c.bf16 %v5852, %v5851
        %v5873 = vpack.c.bf16 %v5854, %v5853
        %v5874 = vpack.c.bf16 %v5856, %v5855
        %v5875 = vpack.c.bf16 %v5848, %v5848
        %5886 = vrot.lane.b32.xlu0 %v5866, 120
        %v5887 = vpop.permute.xlu0 %5886
        %5888 = vrot.lane.b32.xlu0 %v5867, 120
        %v5889 = vpop.permute.xlu0 %5888
        %5890 = vrot.lane.b32.xlu0 %v5868, 120
        %v5891 = vpop.permute.xlu0 %5890
        %5892 = vrot.lane.b32.xlu0 %v5869, 120
        %v5893 = vpop.permute.xlu0 %5892
        %5894 = vrot.lane.b32.xlu0 %v5870, 120
        %v5895 = vpop.permute.xlu0 %5894
        %5896 = vrot.lane.b32.xlu0 %v5871, 120
        %v5897 = vpop.permute.xlu0 %5896
        %5898 = vrot.lane.b32.xlu0 %v5872, 120
        %v5899 = vpop.permute.xlu0 %5898
        %5900 = vrot.lane.b32.xlu0 %v5873, 120
        %v5901 = vpop.permute.xlu0 %5900
        %5902 = vrot.lane.b32.xlu0 %v5874, 120
        %v5903 = vpop.permute.xlu0 %5902
        %5904 = vrot.lane.b32.xlu0 %v5875, 120
        %v5905 = vpop.permute.xlu0 %5904
        %v5906 = vrot.slane %v5887, 4
        %v5907 = vrot.slane %v5889, 4
        %v5908 = vrot.slane %v5891, 4
        %v5909 = vrot.slane %v5893, 4
        %v5910 = vrot.slane %v5895, 4
        %v5911 = vrot.slane %v5897, 4
        %v5912 = vrot.slane %v5899, 4
        %v5913 = vrot.slane %v5901, 4
        %v5914 = vrot.slane %v5903, 4
        %v5915 = vrot.slane %v5905, 4
        %v5916 = vsel %vm396, %v5906, %v5907
        %v5917 = vsel %vm2051, %v5887, %v5916
        %v5918 = vsel %vm396, %v5907, %v5908
        %v5919 = vsel %vm2051, %v5889, %v5918
        %v5920 = vsel %vm396, %v5908, %v5909
        %v5921 = vsel %vm2051, %v5891, %v5920
        %v5922 = vsel %vm396, %v5909, %v5910
        %v5923 = vsel %vm2051, %v5893, %v5922
        %v5924 = vsel %vm396, %v5911, %v5912
        %v5925 = vsel %vm2051, %v5897, %v5924
        %v5926 = vsel %vm396, %v5912, %v5913
        %v5927 = vsel %vm2051, %v5899, %v5926
        %v5928 = vsel %vm396, %v5913, %v5914
        %v5929 = vsel %vm2051, %v5901, %v5928
        %v5930 = vsel %vm396, %v5914, %v5915
        %v5931 = vsel %vm2051, %v5903, %v5930
        %5940 = vst [vmem:[#allocation3 + $0x200] sm:$0xff] %v5917
        %5941 = vst [vmem:[#allocation3 + $0x208] sm:$0xff] %v5919
        %5942 = vst [vmem:[#allocation3 + $0x210] sm:$0xff] %v5921
        %5943 = vst [vmem:[#allocation3 + $0x218] sm:$0xff] %v5923
        %5944 = vst [vmem:[#allocation3 + $0x220] sm:$0xff] %v5925
        %5945 = vst [vmem:[#allocation3 + $0x228] sm:$0xff] %v5927
        %5946 = vst [vmem:[#allocation3 + $0x230] sm:$0xff] %v5929
        %5947 = vst [vmem:[#allocation3 + $0x238] sm:$0xff] %v5931
        %v5948 = vld [vmem:[#allocation2 + $0x8] sm:$0xff]
        %v5949 = vld [vmem:[#allocation2 + $0x10] sm:$0xff]
        %v5950 = vld [vmem:[#allocation2 + $0x18] sm:$0xff]
        %v5951 = vld [vmem:[#allocation2 + $0x20] sm:$0xff]
        %v5952 = vld [vmem:[#allocation2 + $0x28] sm:$0xff]
        %v5953 = vld [vmem:[#allocation2 + $0x30] sm:$0xff]
        %v5954 = vld [vmem:[#allocation2 + $0x38] sm:$0xff]
        %v5955 = vld [vmem:[#allocation2 + $0x40] sm:$0xff]
        %v5956 = vld [vmem:[#allocation2 + $0x48] sm:$0xff]
        %v5957 = vld [vmem:[%s2187] ss:$8 sm:$0xf]
        %v5958 = vld [vmem:[%s2187] ss:$8 sm:$0xf0]
        %v5959 = vor.u32 %v5957, %v5958
        %v5961 = vperm.slane %v5959, 0
        %v5962 = vperm.slane %v5959, 1
        %v5963 = vperm.slane %v5959, 2
        %v5964 = vperm.slane %v5959, 3
        %v5965 = vperm.slane %v5959, 4
        %v5966 = vperm.slane %v5959, 5
        %v5967 = vperm.slane %v5959, 6
        %v5968 = vperm.slane %v5959, 7
        %5969 = vrot.lane.b32.xlu0 %v5961, 55
        %v5970 = vpop.permute.xlu0 %5969
        %5971 = vrot.lane.b32.xlu0 %v5962, 55
        %v5972 = vpop.permute.xlu0 %5971
        %5973 = vrot.lane.b32.xlu0 %v5963, 55
        %v5974 = vpop.permute.xlu0 %5973
        %5975 = vrot.lane.b32.xlu0 %v5964, 55
        %v5976 = vpop.permute.xlu0 %5975
        %5977 = vrot.lane.b32.xlu0 %v5965, 55
        %v5978 = vpop.permute.xlu0 %5977
        %5979 = vrot.lane.b32.xlu0 %v5966, 55
        %v5980 = vpop.permute.xlu0 %5979
        %5981 = vrot.lane.b32.xlu0 %v5967, 55
        %v5982 = vpop.permute.xlu0 %5981
        %5983 = vrot.lane.b32.xlu0 %v5968, 55
        %v5984 = vpop.permute.xlu0 %5983
        %v5985 = vsel %vm345, %v5970, %v5972
        %v5986 = vsel %vm345, %v5972, %v5974
        %v5987 = vsel %vm345, %v5974, %v5976
        %v5988 = vsel %vm345, %v5976, %v5978
        %v5989 = vsel %vm345, %v5978, %v5980
        %v5990 = vsel %vm345, %v5980, %v5982
        %v5991 = vsel %vm345, %v5982, %v5984
        %v6001 = vmul.f32 %v5948, %v5970
        %v6002 = vmul.f32 %v5949, %v5985
        %v6003 = vmul.f32 %v5950, %v5986
        %v6004 = vmul.f32 %v5951, %v5987
        %v6005 = vmul.f32 %v5952, %v5988
        %v6006 = vmul.f32 %v5953, %v5989
        %v6007 = vmul.f32 %v5954, %v5990
        %v6008 = vmul.f32 %v5955, %v5991
        %v6009 = vmul.f32 %v5956, %v5984
        %v6010 = vld [vmem:[%s2291] ss:$8 sm:$0xf]
        %v6011 = vld [vmem:[%s2291] ss:$8 sm:$0xf0]
        %v6012 = vor.u32 %v6010, %v6011
        %v6014 = vperm.slane %v6012, 0
        %v6015 = vperm.slane %v6012, 1
        %v6016 = vperm.slane %v6012, 2
        %v6017 = vperm.slane %v6012, 3
        %v6018 = vperm.slane %v6012, 4
        %v6019 = vperm.slane %v6012, 5
        %v6020 = vperm.slane %v6012, 6
        %v6021 = vperm.slane %v6012, 7
        %6022 = vrot.lane.b32.xlu0 %v6014, 56
        %v6023 = vpop.permute.xlu0 %6022
        %6024 = vrot.lane.b32.xlu0 %v6015, 56
        %v6025 = vpop.permute.xlu0 %6024
        %6026 = vrot.lane.b32.xlu0 %v6016, 56
        %v6027 = vpop.permute.xlu0 %6026
        %6028 = vrot.lane.b32.xlu0 %v6017, 56
        %v6029 = vpop.permute.xlu0 %6028
        %6030 = vrot.lane.b32.xlu0 %v6018, 56
        %v6031 = vpop.permute.xlu0 %6030
        %6032 = vrot.lane.b32.xlu0 %v6019, 56
        %v6033 = vpop.permute.xlu0 %6032
        %6034 = vrot.lane.b32.xlu0 %v6020, 56
        %v6035 = vpop.permute.xlu0 %6034
        %6036 = vrot.lane.b32.xlu0 %v6021, 56
        %v6037 = vpop.permute.xlu0 %6036
        %v6038 = vsel %vm452, %v6023, %v6025
        %v6039 = vsel %vm452, %v6025, %v6027
        %v6040 = vsel %vm452, %v6027, %v6029
        %v6041 = vsel %vm452, %v6029, %v6031
        %v6042 = vsel %vm452, %v6031, %v6033
        %v6043 = vsel %vm452, %v6033, %v6035
        %v6044 = vsel %vm452, %v6035, %v6037
        %v6054 = vmul.f32 %v5948, %v6023
        %v6055 = vmul.f32 %v5949, %v6038
        %v6056 = vmul.f32 %v5950, %v6039
        %v6057 = vmul.f32 %v5951, %v6040
        %v6058 = vmul.f32 %v5952, %v6041
        %v6059 = vmul.f32 %v5953, %v6042
        %v6060 = vmul.f32 %v5954, %v6043
        %v6061 = vmul.f32 %v5955, %v6044
        %v6062 = vmul.f32 %v5956, %v6037
        %6072 = vrot.lane.b32.xlu0 %v6054, 127
        %v6073 = vpop.permute.xlu0 %6072
        %6074 = vrot.lane.b32.xlu0 %v6055, 127
        %v6075 = vpop.permute.xlu0 %6074
        %6076 = vrot.lane.b32.xlu0 %v6056, 127
        %v6077 = vpop.permute.xlu0 %6076
        %6078 = vrot.lane.b32.xlu0 %v6057, 127
        %v6079 = vpop.permute.xlu0 %6078
        %6080 = vrot.lane.b32.xlu0 %v6058, 127
        %v6081 = vpop.permute.xlu0 %6080
        %6082 = vrot.lane.b32.xlu0 %v6059, 127
        %v6083 = vpop.permute.xlu0 %6082
        %6084 = vrot.lane.b32.xlu0 %v6060, 127
        %v6085 = vpop.permute.xlu0 %6084
        %6086 = vrot.lane.b32.xlu0 %v6061, 127
        %v6087 = vpop.permute.xlu0 %6086
        %6088 = vrot.lane.b32.xlu0 %v6062, 127
        %v6089 = vpop.permute.xlu0 %6088
        %v6090 = vsel %vm1648, %v6073, %v6075
        %v6091 = vsel %vm1648, %v6075, %v6077
        %v6092 = vsel %vm1648, %v6077, %v6079
        %v6093 = vsel %vm1648, %v6079, %v6081
        %v6094 = vsel %vm1648, %v6081, %v6083
        %v6095 = vsel %vm1648, %v6083, %v6085
        %v6096 = vsel %vm1648, %v6085, %v6087
        %v6097 = vsel %vm1648, %v6087, %v6089
        %v6107 = vpack.c.bf16 %v6002, %v6001
        %v6108 = vpack.c.bf16 %v6004, %v6003
        %v6109 = vpack.c.bf16 %v6006, %v6005
        %v6110 = vpack.c.bf16 %v6008, %v6007
        %v6111 = vpack.c.bf16 %v6009, %v6009
        %v6112 = vpack.c.bf16 %v6091, %v6090
        %v6113 = vpack.c.bf16 %v6093, %v6092
        %v6114 = vpack.c.bf16 %v6095, %v6094
        %v6115 = vpack.c.bf16 %v6097, %v6096
        %v6116 = vpack.c.bf16 %v6089, %v6089
        %6127 = vrot.lane.b32.xlu0 %v6107, 73
        %v6128 = vpop.permute.xlu0 %6127
        %6129 = vrot.lane.b32.xlu0 %v6108, 73
        %v6130 = vpop.permute.xlu0 %6129
        %6131 = vrot.lane.b32.xlu0 %v6109, 73
        %v6132 = vpop.permute.xlu0 %6131
        %6133 = vrot.lane.b32.xlu0 %v6110, 73
        %v6134 = vpop.permute.xlu0 %6133
        %6135 = vrot.lane.b32.xlu0 %v6111, 73
        %v6136 = vpop.permute.xlu0 %6135
        %6137 = vrot.lane.b32.xlu0 %v6112, 73
        %v6138 = vpop.permute.xlu0 %6137
        %6139 = vrot.lane.b32.xlu0 %v6113, 73
        %v6140 = vpop.permute.xlu0 %6139
        %6141 = vrot.lane.b32.xlu0 %v6114, 73
        %v6142 = vpop.permute.xlu0 %6141
        %6143 = vrot.lane.b32.xlu0 %v6115, 73
        %v6144 = vpop.permute.xlu0 %6143
        %6145 = vrot.lane.b32.xlu0 %v6116, 73
        %v6146 = vpop.permute.xlu0 %6145
        %v6147 = vrot.slane %v6128, 4
        %v6148 = vrot.slane %v6130, 4
        %v6149 = vrot.slane %v6132, 4
        %v6150 = vrot.slane %v6134, 4
        %v6151 = vrot.slane %v6136, 4
        %v6152 = vrot.slane %v6138, 4
        %v6153 = vrot.slane %v6140, 4
        %v6154 = vrot.slane %v6142, 4
        %v6155 = vrot.slane %v6144, 4
        %v6156 = vrot.slane %v6146, 4
        %v6157 = vsel %vm396, %v6147, %v6148
        %v6158 = vsel %vm398, %v6128, %v6157
        %v6159 = vsel %vm396, %v6148, %v6149
        %v6160 = vsel %vm398, %v6130, %v6159
        %v6161 = vsel %vm396, %v6149, %v6150
        %v6162 = vsel %vm398, %v6132, %v6161
        %v6163 = vsel %vm396, %v6150, %v6151
        %v6164 = vsel %vm398, %v6134, %v6163
        %v6165 = vsel %vm396, %v6152, %v6153
        %v6166 = vsel %vm398, %v6138, %v6165
        %v6167 = vsel %vm396, %v6153, %v6154
        %v6168 = vsel %vm398, %v6140, %v6167
        %v6169 = vsel %vm396, %v6154, %v6155
        %v6170 = vsel %vm398, %v6142, %v6169
        %v6171 = vsel %vm396, %v6155, %v6156
        %v6172 = vsel %vm398, %v6144, %v6171
        %6181 = vst [vmem:[#allocation3 + $0x240] sm:$0xff] %v6158
        %6182 = vst [vmem:[#allocation3 + $0x248] sm:$0xff] %v6160
        %6183 = vst [vmem:[#allocation3 + $0x250] sm:$0xff] %v6162
        %6184 = vst [vmem:[#allocation3 + $0x258] sm:$0xff] %v6164
        %6185 = vst [vmem:[#allocation3 + $0x260] sm:$0xff] %v6166
        %6186 = vst [vmem:[#allocation3 + $0x268] sm:$0xff] %v6168
        %6187 = vst [vmem:[#allocation3 + $0x270] sm:$0xff] %v6170
        %6188 = vst [vmem:[#allocation3 + $0x278] sm:$0xff] %v6172
        %v6189 = vld [vmem:[#allocation2 + $0x8] sm:$0xff]
        %v6190 = vld [vmem:[#allocation2 + $0x10] sm:$0xff]
        %v6191 = vld [vmem:[#allocation2 + $0x18] sm:$0xff]
        %v6192 = vld [vmem:[#allocation2 + $0x20] sm:$0xff]
        %v6193 = vld [vmem:[#allocation2 + $0x28] sm:$0xff]
        %v6194 = vld [vmem:[#allocation2 + $0x30] sm:$0xff]
        %v6195 = vld [vmem:[#allocation2 + $0x38] sm:$0xff]
        %v6196 = vld [vmem:[#allocation2 + $0x40] sm:$0xff]
        %v6197 = vld [vmem:[#allocation2 + $0x48] sm:$0xff]
        %v6198 = vld [vmem:[%s2400] ss:$8 sm:$0xf]
        %v6199 = vld [vmem:[%s2400] ss:$8 sm:$0xf0]
        %v6200 = vor.u32 %v6198, %v6199
        %v6202 = vperm.slane %v6200, 0
        %v6203 = vperm.slane %v6200, 1
        %v6204 = vperm.slane %v6200, 2
        %v6205 = vperm.slane %v6200, 3
        %v6206 = vperm.slane %v6200, 4
        %v6207 = vperm.slane %v6200, 5
        %v6208 = vperm.slane %v6200, 6
        %v6209 = vperm.slane %v6200, 7
        %6210 = vrot.lane.b32.xlu0 %v6202, 57
        %v6211 = vpop.permute.xlu0 %6210
        %6212 = vrot.lane.b32.xlu0 %v6203, 57
        %v6213 = vpop.permute.xlu0 %6212
        %6214 = vrot.lane.b32.xlu0 %v6204, 57
        %v6215 = vpop.permute.xlu0 %6214
        %6216 = vrot.lane.b32.xlu0 %v6205, 57
        %v6217 = vpop.permute.xlu0 %6216
        %6218 = vrot.lane.b32.xlu0 %v6206, 57
        %v6219 = vpop.permute.xlu0 %6218
        %6220 = vrot.lane.b32.xlu0 %v6207, 57
        %v6221 = vpop.permute.xlu0 %6220
        %6222 = vrot.lane.b32.xlu0 %v6208, 57
        %v6223 = vpop.permute.xlu0 %6222
        %6224 = vrot.lane.b32.xlu0 %v6209, 57
        %v6225 = vpop.permute.xlu0 %6224
        %v6226 = vsel %vm563, %v6211, %v6213
        %v6227 = vsel %vm563, %v6213, %v6215
        %v6228 = vsel %vm563, %v6215, %v6217
        %v6229 = vsel %vm563, %v6217, %v6219
        %v6230 = vsel %vm563, %v6219, %v6221
        %v6231 = vsel %vm563, %v6221, %v6223
        %v6232 = vsel %vm563, %v6223, %v6225
        %v6242 = vmul.f32 %v6189, %v6211
        %v6243 = vmul.f32 %v6190, %v6226
        %v6244 = vmul.f32 %v6191, %v6227
        %v6245 = vmul.f32 %v6192, %v6228
        %v6246 = vmul.f32 %v6193, %v6229
        %v6247 = vmul.f32 %v6194, %v6230
        %v6248 = vmul.f32 %v6195, %v6231
        %v6249 = vmul.f32 %v6196, %v6232
        %v6250 = vmul.f32 %v6197, %v6225
        %v6251 = vld [vmem:[%s2504] ss:$8 sm:$0xf]
        %v6252 = vld [vmem:[%s2504] ss:$8 sm:$0xf0]
        %v6253 = vor.u32 %v6251, %v6252
        %v6255 = vperm.slane %v6253, 0
        %v6256 = vperm.slane %v6253, 1
        %v6257 = vperm.slane %v6253, 2
        %v6258 = vperm.slane %v6253, 3
        %v6259 = vperm.slane %v6253, 4
        %v6260 = vperm.slane %v6253, 5
        %v6261 = vperm.slane %v6253, 6
        %v6262 = vperm.slane %v6253, 7
        %6263 = vrot.lane.b32.xlu0 %v6255, 63
        %v6264 = vpop.permute.xlu0 %6263
        %6265 = vrot.lane.b32.xlu0 %v6256, 63
        %v6266 = vpop.permute.xlu0 %6265
        %6267 = vrot.lane.b32.xlu0 %v6257, 63
        %v6268 = vpop.permute.xlu0 %6267
        %6269 = vrot.lane.b32.xlu0 %v6258, 63
        %v6270 = vpop.permute.xlu0 %6269
        %6271 = vrot.lane.b32.xlu0 %v6259, 63
        %v6272 = vpop.permute.xlu0 %6271
        %6273 = vrot.lane.b32.xlu0 %v6260, 63
        %v6274 = vpop.permute.xlu0 %6273
        %6275 = vrot.lane.b32.xlu0 %v6261, 63
        %v6276 = vpop.permute.xlu0 %6275
        %6277 = vrot.lane.b32.xlu0 %v6262, 63
        %v6278 = vpop.permute.xlu0 %6277
        %v6279 = vsel %vm669, %v6264, %v6266
        %v6280 = vsel %vm669, %v6266, %v6268
        %v6281 = vsel %vm669, %v6268, %v6270
        %v6282 = vsel %vm669, %v6270, %v6272
        %v6283 = vsel %vm669, %v6272, %v6274
        %v6284 = vsel %vm669, %v6274, %v6276
        %v6285 = vsel %vm669, %v6276, %v6278
        %v6295 = vmul.f32 %v6189, %v6264
        %v6296 = vmul.f32 %v6190, %v6279
        %v6297 = vmul.f32 %v6191, %v6280
        %v6298 = vmul.f32 %v6192, %v6281
        %v6299 = vmul.f32 %v6193, %v6282
        %v6300 = vmul.f32 %v6194, %v6283
        %v6301 = vmul.f32 %v6195, %v6284
        %v6302 = vmul.f32 %v6196, %v6285
        %v6303 = vmul.f32 %v6197, %v6278
        %6313 = vrot.lane.b32.xlu0 %v6295, 122
        %v6314 = vpop.permute.xlu0 %6313
        %6315 = vrot.lane.b32.xlu0 %v6296, 122
        %v6316 = vpop.permute.xlu0 %6315
        %6317 = vrot.lane.b32.xlu0 %v6297, 122
        %v6318 = vpop.permute.xlu0 %6317
        %6319 = vrot.lane.b32.xlu0 %v6298, 122
        %v6320 = vpop.permute.xlu0 %6319
        %6321 = vrot.lane.b32.xlu0 %v6299, 122
        %v6322 = vpop.permute.xlu0 %6321
        %6323 = vrot.lane.b32.xlu0 %v6300, 122
        %v6324 = vpop.permute.xlu0 %6323
        %6325 = vrot.lane.b32.xlu0 %v6301, 122
        %v6326 = vpop.permute.xlu0 %6325
        %6327 = vrot.lane.b32.xlu0 %v6302, 122
        %v6328 = vpop.permute.xlu0 %6327
        %6329 = vrot.lane.b32.xlu0 %v6303, 122
        %v6330 = vpop.permute.xlu0 %6329
        %v6331 = vsel %vm4217, %v6314, %v6316
        %v6332 = vsel %vm4217, %v6316, %v6318
        %v6333 = vsel %vm4217, %v6318, %v6320
        %v6334 = vsel %vm4217, %v6320, %v6322
        %v6335 = vsel %vm4217, %v6322, %v6324
        %v6336 = vsel %vm4217, %v6324, %v6326
        %v6337 = vsel %vm4217, %v6326, %v6328
        %v6338 = vsel %vm4217, %v6328, %v6330
        %v6348 = vpack.c.bf16 %v6243, %v6242
        %v6349 = vpack.c.bf16 %v6245, %v6244
        %v6350 = vpack.c.bf16 %v6247, %v6246
        %v6351 = vpack.c.bf16 %v6249, %v6248
        %v6352 = vpack.c.bf16 %v6250, %v6250
        %v6353 = vpack.c.bf16 %v6332, %v6331
        %v6354 = vpack.c.bf16 %v6334, %v6333
        %v6355 = vpack.c.bf16 %v6336, %v6335
        %v6356 = vpack.c.bf16 %v6338, %v6337
        %v6357 = vpack.c.bf16 %v6330, %v6330
        %6368 = vrot.lane.b32.xlu0 %v6348, 71
        %v6369 = vpop.permute.xlu0 %6368
        %6370 = vrot.lane.b32.xlu0 %v6349, 71
        %v6371 = vpop.permute.xlu0 %6370
        %6372 = vrot.lane.b32.xlu0 %v6350, 71
        %v6373 = vpop.permute.xlu0 %6372
        %6374 = vrot.lane.b32.xlu0 %v6351, 71
        %v6375 = vpop.permute.xlu0 %6374
        %6376 = vrot.lane.b32.xlu0 %v6352, 71
        %v6377 = vpop.permute.xlu0 %6376
        %6378 = vrot.lane.b32.xlu0 %v6353, 71
        %v6379 = vpop.permute.xlu0 %6378
        %6380 = vrot.lane.b32.xlu0 %v6354, 71
        %v6381 = vpop.permute.xlu0 %6380
        %6382 = vrot.lane.b32.xlu0 %v6355, 71
        %v6383 = vpop.permute.xlu0 %6382
        %6384 = vrot.lane.b32.xlu0 %v6356, 71
        %v6385 = vpop.permute.xlu0 %6384
        %6386 = vrot.lane.b32.xlu0 %v6357, 71
        %v6387 = vpop.permute.xlu0 %6386
        %v6388 = vrot.slane %v6369, 4
        %v6389 = vrot.slane %v6371, 4
        %v6390 = vrot.slane %v6373, 4
        %v6391 = vrot.slane %v6375, 4
        %v6392 = vrot.slane %v6377, 4
        %v6393 = vrot.slane %v6379, 4
        %v6394 = vrot.slane %v6381, 4
        %v6395 = vrot.slane %v6383, 4
        %v6396 = vrot.slane %v6385, 4
        %v6397 = vrot.slane %v6387, 4
        %v6398 = vsel %vm396, %v6388, %v6389
        %v6399 = vsel %vm615, %v6369, %v6398
        %v6400 = vsel %vm396, %v6389, %v6390
        %v6401 = vsel %vm615, %v6371, %v6400
        %v6402 = vsel %vm396, %v6390, %v6391
        %v6403 = vsel %vm615, %v6373, %v6402
        %v6404 = vsel %vm396, %v6391, %v6392
        %v6405 = vsel %vm615, %v6375, %v6404
        %v6406 = vsel %vm396, %v6393, %v6394
        %v6407 = vsel %vm615, %v6379, %v6406
        %v6408 = vsel %vm396, %v6394, %v6395
        %v6409 = vsel %vm615, %v6381, %v6408
        %v6410 = vsel %vm396, %v6395, %v6396
        %v6411 = vsel %vm615, %v6383, %v6410
        %v6412 = vsel %vm396, %v6396, %v6397
        %v6413 = vsel %vm615, %v6385, %v6412
        %6422 = vst [vmem:[#allocation3 + $0x280] sm:$0xff] %v6399
        %6423 = vst [vmem:[#allocation3 + $0x288] sm:$0xff] %v6401
        %6424 = vst [vmem:[#allocation3 + $0x290] sm:$0xff] %v6403
        %6425 = vst [vmem:[#allocation3 + $0x298] sm:$0xff] %v6405
        %6426 = vst [vmem:[#allocation3 + $0x2a0] sm:$0xff] %v6407
        %6427 = vst [vmem:[#allocation3 + $0x2a8] sm:$0xff] %v6409
        %6428 = vst [vmem:[#allocation3 + $0x2b0] sm:$0xff] %v6411
        %6429 = vst [vmem:[#allocation3 + $0x2b8] sm:$0xff] %v6413
        %v6430 = vld [vmem:[#allocation2 + $0x8] sm:$0xff]
        %v6431 = vld [vmem:[#allocation2 + $0x10] sm:$0xff]
        %v6432 = vld [vmem:[#allocation2 + $0x18] sm:$0xff]
        %v6433 = vld [vmem:[#allocation2 + $0x20] sm:$0xff]
        %v6434 = vld [vmem:[#allocation2 + $0x28] sm:$0xff]
        %v6435 = vld [vmem:[#allocation2 + $0x30] sm:$0xff]
        %v6436 = vld [vmem:[#allocation2 + $0x38] sm:$0xff]
        %v6437 = vld [vmem:[#allocation2 + $0x40] sm:$0xff]
        %v6438 = vld [vmem:[#allocation2 + $0x48] sm:$0xff]
        %v6439 = vld [vmem:[%s2613] ss:$8 sm:$0xf]
        %v6440 = vld [vmem:[%s2613] ss:$8 sm:$0xf0]
        %v6441 = vor.u32 %v6439, %v6440
        %v6443 = vperm.slane %v6441, 0
        %v6444 = vperm.slane %v6441, 1
        %v6445 = vperm.slane %v6441, 2
        %v6446 = vperm.slane %v6441, 3
        %v6447 = vperm.slane %v6441, 4
        %v6448 = vperm.slane %v6441, 5
        %v6449 = vperm.slane %v6441, 6
        %v6450 = vperm.slane %v6441, 7
        %6451 = vrot.lane.b32.xlu0 %v6443, 64
        %v6452 = vpop.permute.xlu0 %6451
        %6453 = vrot.lane.b32.xlu0 %v6444, 64
        %v6454 = vpop.permute.xlu0 %6453
        %6455 = vrot.lane.b32.xlu0 %v6445, 64
        %v6456 = vpop.permute.xlu0 %6455
        %6457 = vrot.lane.b32.xlu0 %v6446, 64
        %v6458 = vpop.permute.xlu0 %6457
        %6459 = vrot.lane.b32.xlu0 %v6447, 64
        %v6460 = vpop.permute.xlu0 %6459
        %6461 = vrot.lane.b32.xlu0 %v6448, 64
        %v6462 = vpop.permute.xlu0 %6461
        %6463 = vrot.lane.b32.xlu0 %v6449, 64
        %v6464 = vpop.permute.xlu0 %6463
        %6465 = vrot.lane.b32.xlu0 %v6450, 64
        %v6466 = vpop.permute.xlu0 %6465
        %v6467 = vsel %vm780, %v6452, %v6454
        %v6468 = vsel %vm780, %v6454, %v6456
        %v6469 = vsel %vm780, %v6456, %v6458
        %v6470 = vsel %vm780, %v6458, %v6460
        %v6471 = vsel %vm780, %v6460, %v6462
        %v6472 = vsel %vm780, %v6462, %v6464
        %v6473 = vsel %vm780, %v6464, %v6466
        %v6483 = vmul.f32 %v6430, %v6452
        %v6484 = vmul.f32 %v6431, %v6467
        %v6485 = vmul.f32 %v6432, %v6468
        %v6486 = vmul.f32 %v6433, %v6469
        %v6487 = vmul.f32 %v6434, %v6470
        %v6488 = vmul.f32 %v6435, %v6471
        %v6489 = vmul.f32 %v6436, %v6472
        %v6490 = vmul.f32 %v6437, %v6473
        %v6491 = vmul.f32 %v6438, %v6466
        %v6492 = vld [vmem:[%s2717] ss:$8 sm:$0xf]
        %v6493 = vld [vmem:[%s2717] ss:$8 sm:$0xf0]
        %v6494 = vor.u32 %v6492, %v6493
        %v6496 = vperm.slane %v6494, 0
        %v6497 = vperm.slane %v6494, 1
        %v6498 = vperm.slane %v6494, 2
        %v6499 = vperm.slane %v6494, 3
        %v6500 = vperm.slane %v6494, 4
        %v6501 = vperm.slane %v6494, 5
        %v6502 = vperm.slane %v6494, 6
        %v6503 = vperm.slane %v6494, 7
        %6504 = vrot.lane.b32.xlu0 %v6496, 65
        %v6505 = vpop.permute.xlu0 %6504
        %6506 = vrot.lane.b32.xlu0 %v6497, 65
        %v6507 = vpop.permute.xlu0 %6506
        %6508 = vrot.lane.b32.xlu0 %v6498, 65
        %v6509 = vpop.permute.xlu0 %6508
        %6510 = vrot.lane.b32.xlu0 %v6499, 65
        %v6511 = vpop.permute.xlu0 %6510
        %6512 = vrot.lane.b32.xlu0 %v6500, 65
        %v6513 = vpop.permute.xlu0 %6512
        %6514 = vrot.lane.b32.xlu0 %v6501, 65
        %v6515 = vpop.permute.xlu0 %6514
        %6516 = vrot.lane.b32.xlu0 %v6502, 65
        %v6517 = vpop.permute.xlu0 %6516
        %6518 = vrot.lane.b32.xlu0 %v6503, 65
        %v6519 = vpop.permute.xlu0 %6518
        %v6520 = vsel %vm886, %v6505, %v6507
        %v6521 = vsel %vm886, %v6507, %v6509
        %v6522 = vsel %vm886, %v6509, %v6511
        %v6523 = vsel %vm886, %v6511, %v6513
        %v6524 = vsel %vm886, %v6513, %v6515
        %v6525 = vsel %vm886, %v6515, %v6517
        %v6526 = vsel %vm886, %v6517, %v6519
        %v6536 = vmul.f32 %v6430, %v6505
        %v6537 = vmul.f32 %v6431, %v6520
        %v6538 = vmul.f32 %v6432, %v6521
        %v6539 = vmul.f32 %v6433, %v6522
        %v6540 = vmul.f32 %v6434, %v6523
        %v6541 = vmul.f32 %v6435, %v6524
        %v6542 = vmul.f32 %v6436, %v6525
        %v6543 = vmul.f32 %v6437, %v6526
        %v6544 = vmul.f32 %v6438, %v6519
        %6554 = vrot.lane.b32.xlu0 %v6536, 127
        %v6555 = vpop.permute.xlu0 %6554
        %6556 = vrot.lane.b32.xlu0 %v6537, 127
        %v6557 = vpop.permute.xlu0 %6556
        %6558 = vrot.lane.b32.xlu0 %v6538, 127
        %v6559 = vpop.permute.xlu0 %6558
        %6560 = vrot.lane.b32.xlu0 %v6539, 127
        %v6561 = vpop.permute.xlu0 %6560
        %6562 = vrot.lane.b32.xlu0 %v6540, 127
        %v6563 = vpop.permute.xlu0 %6562
        %6564 = vrot.lane.b32.xlu0 %v6541, 127
        %v6565 = vpop.permute.xlu0 %6564
        %6566 = vrot.lane.b32.xlu0 %v6542, 127
        %v6567 = vpop.permute.xlu0 %6566
        %6568 = vrot.lane.b32.xlu0 %v6543, 127
        %v6569 = vpop.permute.xlu0 %6568
        %6570 = vrot.lane.b32.xlu0 %v6544, 127
        %v6571 = vpop.permute.xlu0 %6570
        %v6572 = vsel %vm1648, %v6555, %v6557
        %v6573 = vsel %vm1648, %v6557, %v6559
        %v6574 = vsel %vm1648, %v6559, %v6561
        %v6575 = vsel %vm1648, %v6561, %v6563
        %v6576 = vsel %vm1648, %v6563, %v6565
        %v6577 = vsel %vm1648, %v6565, %v6567
        %v6578 = vsel %vm1648, %v6567, %v6569
        %v6579 = vsel %vm1648, %v6569, %v6571
        %v6589 = vpack.c.bf16 %v6484, %v6483
        %v6590 = vpack.c.bf16 %v6486, %v6485
        %v6591 = vpack.c.bf16 %v6488, %v6487
        %v6592 = vpack.c.bf16 %v6490, %v6489
        %v6593 = vpack.c.bf16 %v6491, %v6491
        %v6594 = vpack.c.bf16 %v6573, %v6572
        %v6595 = vpack.c.bf16 %v6575, %v6574
        %v6596 = vpack.c.bf16 %v6577, %v6576
        %v6597 = vpack.c.bf16 %v6579, %v6578
        %v6598 = vpack.c.bf16 %v6571, %v6571
        %6609 = vrot.lane.b32.xlu0 %v6589, 64
        %v6610 = vpop.permute.xlu0 %6609
        %6611 = vrot.lane.b32.xlu0 %v6590, 64
        %v6612 = vpop.permute.xlu0 %6611
        %6613 = vrot.lane.b32.xlu0 %v6591, 64
        %v6614 = vpop.permute.xlu0 %6613
        %6615 = vrot.lane.b32.xlu0 %v6592, 64
        %v6616 = vpop.permute.xlu0 %6615
        %6617 = vrot.lane.b32.xlu0 %v6593, 64
        %v6618 = vpop.permute.xlu0 %6617
        %6619 = vrot.lane.b32.xlu0 %v6594, 64
        %v6620 = vpop.permute.xlu0 %6619
        %6621 = vrot.lane.b32.xlu0 %v6595, 64
        %v6622 = vpop.permute.xlu0 %6621
        %6623 = vrot.lane.b32.xlu0 %v6596, 64
        %v6624 = vpop.permute.xlu0 %6623
        %6625 = vrot.lane.b32.xlu0 %v6597, 64
        %v6626 = vpop.permute.xlu0 %6625
        %6627 = vrot.lane.b32.xlu0 %v6598, 64
        %v6628 = vpop.permute.xlu0 %6627
        %v6629 = vrot.slane %v6610, 4
        %v6630 = vrot.slane %v6612, 4
        %v6631 = vrot.slane %v6614, 4
        %v6632 = vrot.slane %v6616, 4
        %v6633 = vrot.slane %v6618, 4
        %v6634 = vrot.slane %v6620, 4
        %v6635 = vrot.slane %v6622, 4
        %v6636 = vrot.slane %v6624, 4
        %v6637 = vrot.slane %v6626, 4
        %v6638 = vrot.slane %v6628, 4
        %v6639 = vsel %vm396, %v6629, %v6630
        %v6640 = vsel %vm832, %v6610, %v6639
        %v6641 = vsel %vm396, %v6630, %v6631
        %v6642 = vsel %vm832, %v6612, %v6641
        %v6643 = vsel %vm396, %v6631, %v6632
        %v6644 = vsel %vm832, %v6614, %v6643
        %v6645 = vsel %vm396, %v6632, %v6633
        %v6646 = vsel %vm832, %v6616, %v6645
        %v6647 = vsel %vm396, %v6634, %v6635
        %v6648 = vsel %vm832, %v6620, %v6647
        %v6649 = vsel %vm396, %v6635, %v6636
        %v6650 = vsel %vm832, %v6622, %v6649
        %v6651 = vsel %vm396, %v6636, %v6637
        %v6652 = vsel %vm832, %v6624, %v6651
        %v6653 = vsel %vm396, %v6637, %v6638
        %v6654 = vsel %vm832, %v6626, %v6653
        %6663 = vst [vmem:[#allocation3 + $0x2c0] sm:$0xff] %v6640
        %6664 = vst [vmem:[#allocation3 + $0x2c8] sm:$0xff] %v6642
        %6665 = vst [vmem:[#allocation3 + $0x2d0] sm:$0xff] %v6644
        %6666 = vst [vmem:[#allocation3 + $0x2d8] sm:$0xff] %v6646
        %6667 = vst [vmem:[#allocation3 + $0x2e0] sm:$0xff] %v6648
        %6668 = vst [vmem:[#allocation3 + $0x2e8] sm:$0xff] %v6650
        %6669 = vst [vmem:[#allocation3 + $0x2f0] sm:$0xff] %v6652
        %6670 = vst [vmem:[#allocation3 + $0x2f8] sm:$0xff] %v6654
        %v6671 = vld [vmem:[#allocation2 + $0x8] sm:$0xff]
        %v6672 = vld [vmem:[#allocation2 + $0x10] sm:$0xff]
        %v6673 = vld [vmem:[#allocation2 + $0x18] sm:$0xff]
        %v6674 = vld [vmem:[#allocation2 + $0x20] sm:$0xff]
        %v6675 = vld [vmem:[#allocation2 + $0x28] sm:$0xff]
        %v6676 = vld [vmem:[#allocation2 + $0x30] sm:$0xff]
        %v6677 = vld [vmem:[#allocation2 + $0x38] sm:$0xff]
        %v6678 = vld [vmem:[#allocation2 + $0x40] sm:$0xff]
        %v6679 = vld [vmem:[#allocation2 + $0x48] sm:$0xff]
        %v6680 = vld [vmem:[%s2826] ss:$8 sm:$0xf]
        %v6681 = vld [vmem:[%s2826] ss:$8 sm:$0xf0]
        %v6682 = vor.u32 %v6680, %v6681
        %v6684 = vperm.slane %v6682, 0
        %v6685 = vperm.slane %v6682, 1
        %v6686 = vperm.slane %v6682, 2
        %v6687 = vperm.slane %v6682, 3
        %v6688 = vperm.slane %v6682, 4
        %v6689 = vperm.slane %v6682, 5
        %v6690 = vperm.slane %v6682, 6
        %v6691 = vperm.slane %v6682, 7
        %6692 = vrot.lane.b32.xlu0 %v6684, 71
        %v6693 = vpop.permute.xlu0 %6692
        %6694 = vrot.lane.b32.xlu0 %v6685, 71
        %v6695 = vpop.permute.xlu0 %6694
        %6696 = vrot.lane.b32.xlu0 %v6686, 71
        %v6697 = vpop.permute.xlu0 %6696
        %6698 = vrot.lane.b32.xlu0 %v6687, 71
        %v6699 = vpop.permute.xlu0 %6698
        %6700 = vrot.lane.b32.xlu0 %v6688, 71
        %v6701 = vpop.permute.xlu0 %6700
        %6702 = vrot.lane.b32.xlu0 %v6689, 71
        %v6703 = vpop.permute.xlu0 %6702
        %6704 = vrot.lane.b32.xlu0 %v6690, 71
        %v6705 = vpop.permute.xlu0 %6704
        %6706 = vrot.lane.b32.xlu0 %v6691, 71
        %v6707 = vpop.permute.xlu0 %6706
        %v6708 = vsel %vm997, %v6693, %v6695
        %v6709 = vsel %vm997, %v6695, %v6697
        %v6710 = vsel %vm997, %v6697, %v6699
        %v6711 = vsel %vm997, %v6699, %v6701
        %v6712 = vsel %vm997, %v6701, %v6703
        %v6713 = vsel %vm997, %v6703, %v6705
        %v6714 = vsel %vm997, %v6705, %v6707
        %v6724 = vmul.f32 %v6671, %v6693
        %v6725 = vmul.f32 %v6672, %v6708
        %v6726 = vmul.f32 %v6673, %v6709
        %v6727 = vmul.f32 %v6674, %v6710
        %v6728 = vmul.f32 %v6675, %v6711
        %v6729 = vmul.f32 %v6676, %v6712
        %v6730 = vmul.f32 %v6677, %v6713
        %v6731 = vmul.f32 %v6678, %v6714
        %v6732 = vmul.f32 %v6679, %v6707
        %v6733 = vld [vmem:[%s2930] ss:$8 sm:$0xf]
        %v6734 = vld [vmem:[%s2930] ss:$8 sm:$0xf0]
        %v6735 = vor.u32 %v6733, %v6734
        %v6737 = vperm.slane %v6735, 0
        %v6738 = vperm.slane %v6735, 1
        %v6739 = vperm.slane %v6735, 2
        %v6740 = vperm.slane %v6735, 3
        %v6741 = vperm.slane %v6735, 4
        %v6742 = vperm.slane %v6735, 5
        %v6743 = vperm.slane %v6735, 6
        %v6744 = vperm.slane %v6735, 7
        %6745 = vrot.lane.b32.xlu0 %v6737, 72
        %v6746 = vpop.permute.xlu0 %6745
        %6747 = vrot.lane.b32.xlu0 %v6738, 72
        %v6748 = vpop.permute.xlu0 %6747
        %6749 = vrot.lane.b32.xlu0 %v6739, 72
        %v6750 = vpop.permute.xlu0 %6749
        %6751 = vrot.lane.b32.xlu0 %v6740, 72
        %v6752 = vpop.permute.xlu0 %6751
        %6753 = vrot.lane.b32.xlu0 %v6741, 72
        %v6754 = vpop.permute.xlu0 %6753
        %6755 = vrot.lane.b32.xlu0 %v6742, 72
        %v6756 = vpop.permute.xlu0 %6755
        %6757 = vrot.lane.b32.xlu0 %v6743, 72
        %v6758 = vpop.permute.xlu0 %6757
        %6759 = vrot.lane.b32.xlu0 %v6744, 72
        %v6760 = vpop.permute.xlu0 %6759
        %v6761 = vsel %vm1103, %v6746, %v6748
        %v6762 = vsel %vm1103, %v6748, %v6750
        %v6763 = vsel %vm1103, %v6750, %v6752
        %v6764 = vsel %vm1103, %v6752, %v6754
        %v6765 = vsel %vm1103, %v6754, %v6756
        %v6766 = vsel %vm1103, %v6756, %v6758
        %v6767 = vsel %vm1103, %v6758, %v6760
        %v6777 = vmul.f32 %v6671, %v6746
        %v6778 = vmul.f32 %v6672, %v6761
        %v6779 = vmul.f32 %v6673, %v6762
        %v6780 = vmul.f32 %v6674, %v6763
        %v6781 = vmul.f32 %v6675, %v6764
        %v6782 = vmul.f32 %v6676, %v6765
        %v6783 = vmul.f32 %v6677, %v6766
        %v6784 = vmul.f32 %v6678, %v6767
        %v6785 = vmul.f32 %v6679, %v6760
        %6795 = vrot.lane.b32.xlu0 %v6777, 127
        %v6796 = vpop.permute.xlu0 %6795
        %6797 = vrot.lane.b32.xlu0 %v6778, 127
        %v6798 = vpop.permute.xlu0 %6797
        %6799 = vrot.lane.b32.xlu0 %v6779, 127
        %v6800 = vpop.permute.xlu0 %6799
        %6801 = vrot.lane.b32.xlu0 %v6780, 127
        %v6802 = vpop.permute.xlu0 %6801
        %6803 = vrot.lane.b32.xlu0 %v6781, 127
        %v6804 = vpop.permute.xlu0 %6803
        %6805 = vrot.lane.b32.xlu0 %v6782, 127
        %v6806 = vpop.permute.xlu0 %6805
        %6807 = vrot.lane.b32.xlu0 %v6783, 127
        %v6808 = vpop.permute.xlu0 %6807
        %6809 = vrot.lane.b32.xlu0 %v6784, 127
        %v6810 = vpop.permute.xlu0 %6809
        %6811 = vrot.lane.b32.xlu0 %v6785, 127
        %v6812 = vpop.permute.xlu0 %6811
        %v6813 = vsel %vm1648, %v6796, %v6798
        %v6814 = vsel %vm1648, %v6798, %v6800
        %v6815 = vsel %vm1648, %v6800, %v6802
        %v6816 = vsel %vm1648, %v6802, %v6804
        %v6817 = vsel %vm1648, %v6804, %v6806
        %v6818 = vsel %vm1648, %v6806, %v6808
        %v6819 = vsel %vm1648, %v6808, %v6810
        %v6820 = vsel %vm1648, %v6810, %v6812
        %v6830 = vpack.c.bf16 %v6725, %v6724
        %v6831 = vpack.c.bf16 %v6727, %v6726
        %v6832 = vpack.c.bf16 %v6729, %v6728
        %v6833 = vpack.c.bf16 %v6731, %v6730
        %v6834 = vpack.c.bf16 %v6732, %v6732
        %v6835 = vpack.c.bf16 %v6814, %v6813
        %v6836 = vpack.c.bf16 %v6816, %v6815
        %v6837 = vpack.c.bf16 %v6818, %v6817
        %v6838 = vpack.c.bf16 %v6820, %v6819
        %v6839 = vpack.c.bf16 %v6812, %v6812
        %6850 = vrot.lane.b32.xlu0 %v6830, 57
        %v6851 = vpop.permute.xlu0 %6850
        %6852 = vrot.lane.b32.xlu0 %v6831, 57
        %v6853 = vpop.permute.xlu0 %6852
        %6854 = vrot.lane.b32.xlu0 %v6832, 57
        %v6855 = vpop.permute.xlu0 %6854
        %6856 = vrot.lane.b32.xlu0 %v6833, 57
        %v6857 = vpop.permute.xlu0 %6856
        %6858 = vrot.lane.b32.xlu0 %v6834, 57
        %v6859 = vpop.permute.xlu0 %6858
        %6860 = vrot.lane.b32.xlu0 %v6835, 57
        %v6861 = vpop.permute.xlu0 %6860
        %6862 = vrot.lane.b32.xlu0 %v6836, 57
        %v6863 = vpop.permute.xlu0 %6862
        %6864 = vrot.lane.b32.xlu0 %v6837, 57
        %v6865 = vpop.permute.xlu0 %6864
        %6866 = vrot.lane.b32.xlu0 %v6838, 57
        %v6867 = vpop.permute.xlu0 %6866
        %6868 = vrot.lane.b32.xlu0 %v6839, 57
        %v6869 = vpop.permute.xlu0 %6868
        %v6870 = vrot.slane %v6851, 4
        %v6871 = vrot.slane %v6853, 4
        %v6872 = vrot.slane %v6855, 4
        %v6873 = vrot.slane %v6857, 4
        %v6874 = vrot.slane %v6859, 4
        %v6875 = vrot.slane %v6861, 4
        %v6876 = vrot.slane %v6863, 4
        %v6877 = vrot.slane %v6865, 4
        %v6878 = vrot.slane %v6867, 4
        %v6879 = vrot.slane %v6869, 4
        %v6880 = vsel %vm396, %v6870, %v6871
        %v6881 = vsel %vm1049, %v6851, %v6880
        %v6882 = vsel %vm396, %v6871, %v6872
        %v6883 = vsel %vm1049, %v6853, %v6882
        %v6884 = vsel %vm396, %v6872, %v6873
        %v6885 = vsel %vm1049, %v6855, %v6884
        %v6886 = vsel %vm396, %v6873, %v6874
        %v6887 = vsel %vm1049, %v6857, %v6886
        %v6888 = vsel %vm396, %v6875, %v6876
        %v6889 = vsel %vm1049, %v6861, %v6888
        %v6890 = vsel %vm396, %v6876, %v6877
        %v6891 = vsel %vm1049, %v6863, %v6890
        %v6892 = vsel %vm396, %v6877, %v6878
        %v6893 = vsel %vm1049, %v6865, %v6892
        %v6894 = vsel %vm396, %v6878, %v6879
        %v6895 = vsel %vm1049, %v6867, %v6894
        %6904 = vst [vmem:[#allocation3 + $0x300] sm:$0xff] %v6881
        %6905 = vst [vmem:[#allocation3 + $0x308] sm:$0xff] %v6883
        %6906 = vst [vmem:[#allocation3 + $0x310] sm:$0xff] %v6885
        %6907 = vst [vmem:[#allocation3 + $0x318] sm:$0xff] %v6887
        %6908 = vst [vmem:[#allocation3 + $0x320] sm:$0xff] %v6889
        %6909 = vst [vmem:[#allocation3 + $0x328] sm:$0xff] %v6891
        %6910 = vst [vmem:[#allocation3 + $0x330] sm:$0xff] %v6893
        %6911 = vst [vmem:[#allocation3 + $0x338] sm:$0xff] %v6895
        %v6912 = vld [vmem:[#allocation2 + $0x8] sm:$0xff]
        %v6913 = vld [vmem:[#allocation2 + $0x10] sm:$0xff]
        %v6914 = vld [vmem:[#allocation2 + $0x18] sm:$0xff]
        %v6915 = vld [vmem:[#allocation2 + $0x20] sm:$0xff]
        %v6916 = vld [vmem:[#allocation2 + $0x28] sm:$0xff]
        %v6917 = vld [vmem:[#allocation2 + $0x30] sm:$0xff]
        %v6918 = vld [vmem:[#allocation2 + $0x38] sm:$0xff]
        %v6919 = vld [vmem:[#allocation2 + $0x40] sm:$0xff]
        %v6920 = vld [vmem:[#allocation2 + $0x48] sm:$0xff]
        %v6921 = vld [vmem:[%s3039] ss:$8 sm:$0xf]
        %v6922 = vld [vmem:[%s3039] ss:$8 sm:$0xf0]
        %v6923 = vor.u32 %v6921, %v6922
        %v6925 = vperm.slane %v6923, 0
        %v6926 = vperm.slane %v6923, 1
        %v6927 = vperm.slane %v6923, 2
        %v6928 = vperm.slane %v6923, 3
        %v6929 = vperm.slane %v6923, 4
        %v6930 = vperm.slane %v6923, 5
        %v6931 = vperm.slane %v6923, 6
        %v6932 = vperm.slane %v6923, 7
        %6933 = vrot.lane.b32.xlu0 %v6925, 73
        %v6934 = vpop.permute.xlu0 %6933
        %6935 = vrot.lane.b32.xlu0 %v6926, 73
        %v6936 = vpop.permute.xlu0 %6935
        %6937 = vrot.lane.b32.xlu0 %v6927, 73
        %v6938 = vpop.permute.xlu0 %6937
        %6939 = vrot.lane.b32.xlu0 %v6928, 73
        %v6940 = vpop.permute.xlu0 %6939
        %6941 = vrot.lane.b32.xlu0 %v6929, 73
        %v6942 = vpop.permute.xlu0 %6941
        %6943 = vrot.lane.b32.xlu0 %v6930, 73
        %v6944 = vpop.permute.xlu0 %6943
        %6945 = vrot.lane.b32.xlu0 %v6931, 73
        %v6946 = vpop.permute.xlu0 %6945
        %6947 = vrot.lane.b32.xlu0 %v6932, 73
        %v6948 = vpop.permute.xlu0 %6947
        %v6949 = vsel %vm1214, %v6934, %v6936
        %v6950 = vsel %vm1214, %v6936, %v6938
        %v6951 = vsel %vm1214, %v6938, %v6940
        %v6952 = vsel %vm1214, %v6940, %v6942
        %v6953 = vsel %vm1214, %v6942, %v6944
        %v6954 = vsel %vm1214, %v6944, %v6946
        %v6955 = vsel %vm1214, %v6946, %v6948
        %v6965 = vmul.f32 %v6912, %v6934
        %v6966 = vmul.f32 %v6913, %v6949
        %v6967 = vmul.f32 %v6914, %v6950
        %v6968 = vmul.f32 %v6915, %v6951
        %v6969 = vmul.f32 %v6916, %v6952
        %v6970 = vmul.f32 %v6917, %v6953
        %v6971 = vmul.f32 %v6918, %v6954
        %v6972 = vmul.f32 %v6919, %v6955
        %v6973 = vmul.f32 %v6920, %v6948
        %v6974 = vpack.c.bf16 %v6966, %v6965
        %v6975 = vpack.c.bf16 %v6968, %v6967
        %v6976 = vpack.c.bf16 %v6970, %v6969
        %v6977 = vpack.c.bf16 %v6972, %v6971
        %v6978 = vpack.c.bf16 %v6973, %v6973
        %6984 = vrot.lane.b32.xlu0 %v6974, 55
        %v6985 = vpop.permute.xlu0 %6984
        %6986 = vrot.lane.b32.xlu0 %v6975, 55
        %v6987 = vpop.permute.xlu0 %6986
        %6988 = vrot.lane.b32.xlu0 %v6976, 55
        %v6989 = vpop.permute.xlu0 %6988
        %6990 = vrot.lane.b32.xlu0 %v6977, 55
        %v6991 = vpop.permute.xlu0 %6990
        %6992 = vrot.lane.b32.xlu0 %v6978, 55
        %v6993 = vpop.permute.xlu0 %6992
        %v6994 = vrot.slane %v6985, 4
        %v6995 = vrot.slane %v6987, 4
        %v6996 = vrot.slane %v6989, 4
        %v6997 = vrot.slane %v6991, 4
        %v6998 = vrot.slane %v6993, 4
        %v6999 = vsel %vm396, %v6994, %v6995
        %v7000 = vsel %vm1266, %v6985, %v6999
        %v7001 = vsel %vm396, %v6995, %v6996
        %v7002 = vsel %vm1266, %v6987, %v7001
        %v7003 = vsel %vm396, %v6996, %v6997
        %v7004 = vsel %vm1266, %v6989, %v7003
        %v7005 = vsel %vm396, %v6997, %v6998
        %v7006 = vsel %vm1266, %v6991, %v7005
        %7011 = vst [vmem:[#allocation3 + $0x340] sm:$0xff] %v7000
        %7012 = vst [vmem:[#allocation3 + $0x348] sm:$0xff] %v7002
        %7013 = vst [vmem:[#allocation3 + $0x350] sm:$0xff] %v7004
        %7014 = vst [vmem:[#allocation3 + $0x358] sm:$0xff] %v7006
        %7015 = vst [vmem:[#allocation3 + $0x360] sm:$0xff] 1065369472
        %7016 = vst [vmem:[#allocation3 + $0x368] sm:$0xff] 1065369472
        %7017 = vst [vmem:[#allocation3 + $0x370] sm:$0xff] 1065369472
        %7018 = vst [vmem:[#allocation3 + $0x378] sm:$0xff] 1065369472
        %v7019 = vld [vmem:[%s2] sm:$0xff]
        %v7020 = vld [vmem:[#allocation3] sm:$0xff]
        %v7021 = vld [vmem:[#allocation3 + $0x8] sm:$0xff]
        %v7022 = vld [vmem:[#allocation3 + $0x10] sm:$0xff]
        %v7023 = vld [vmem:[#allocation3 + $0x18] sm:$0xff]
        %v7024 = vld [vmem:[#allocation3 + $0x20] sm:$0xff]
        %v7025 = vld [vmem:[#allocation3 + $0x28] sm:$0xff]
        %v7026 = vld [vmem:[#allocation3 + $0x30] sm:$0xff]
        %v7027 = vld [vmem:[#allocation3 + $0x38] sm:$0xff]
        %v7028 = vld [vmem:[#allocation3 + $0x40] sm:$0xff]
        %v7029 = vld [vmem:[#allocation3 + $0x48] sm:$0xff]
        %v7030 = vld [vmem:[#allocation3 + $0x50] sm:$0xff]
        %v7031 = vld [vmem:[#allocation3 + $0x58] sm:$0xff]
        %v7032 = vld [vmem:[#allocation3 + $0x60] sm:$0xff]
        %v7033 = vld [vmem:[#allocation3 + $0x68] sm:$0xff]
        %v7034 = vld [vmem:[#allocation3 + $0x70] sm:$0xff]
        %v7035 = vld [vmem:[#allocation3 + $0x78] sm:$0xff]
        %v7036 = vld [vmem:[#allocation3 + $0x80] sm:$0xff]
        %v7037 = vld [vmem:[#allocation3 + $0x88] sm:$0xff]
        %v7038 = vld [vmem:[#allocation3 + $0x90] sm:$0xff]
        %v7039 = vld [vmem:[#allocation3 + $0x98] sm:$0xff]
        %v7040 = vld [vmem:[#allocation3 + $0xa0] sm:$0xff]
        %v7041 = vld [vmem:[#allocation3 + $0xa8] sm:$0xff]
        %v7042 = vld [vmem:[#allocation3 + $0xb0] sm:$0xff]
        %v7043 = vld [vmem:[#allocation3 + $0xb8] sm:$0xff]
        %v7044 = vld [vmem:[#allocation3 + $0xc0] sm:$0xff]
        %v7045 = vld [vmem:[#allocation3 + $0xc8] sm:$0xff]
        %v7046 = vld [vmem:[#allocation3 + $0xd0] sm:$0xff]
        %v7047 = vld [vmem:[#allocation3 + $0xd8] sm:$0xff]
        %v7048 = vld [vmem:[#allocation3 + $0xe0] sm:$0xff]
        %v7049 = vld [vmem:[#allocation3 + $0xe8] sm:$0xff]
        %v7050 = vld [vmem:[#allocation3 + $0xf0] sm:$0xff]
        %v7051 = vld [vmem:[#allocation3 + $0xf8] sm:$0xff]
        %v7052 = vld [vmem:[#allocation3 + $0x100] sm:$0xff]
        %v7053 = vld [vmem:[#allocation3 + $0x108] sm:$0xff]
        %v7054 = vld [vmem:[#allocation3 + $0x110] sm:$0xff]
        %v7055 = vld [vmem:[#allocation3 + $0x118] sm:$0xff]
        %v7056 = vld [vmem:[#allocation3 + $0x120] sm:$0xff]
        %v7057 = vld [vmem:[#allocation3 + $0x128] sm:$0xff]
        %v7058 = vld [vmem:[#allocation3 + $0x130] sm:$0xff]
        %v7059 = vld [vmem:[#allocation3 + $0x138] sm:$0xff]
        %v7060 = vld [vmem:[#allocation3 + $0x140] sm:$0xff]
        %v7061 = vld [vmem:[#allocation3 + $0x148] sm:$0xff]
        %v7062 = vld [vmem:[#allocation3 + $0x150] sm:$0xff]
        %v7063 = vld [vmem:[#allocation3 + $0x158] sm:$0xff]
        %v7064 = vld [vmem:[#allocation3 + $0x160] sm:$0xff]
        %v7065 = vld [vmem:[#allocation3 + $0x168] sm:$0xff]
        %v7066 = vld [vmem:[#allocation3 + $0x170] sm:$0xff]
        %v7067 = vld [vmem:[#allocation3 + $0x178] sm:$0xff]
        %v7068 = vld [vmem:[#allocation3 + $0x180] sm:$0xff]
        %v7069 = vld [vmem:[#allocation3 + $0x188] sm:$0xff]
        %v7070 = vld [vmem:[#allocation3 + $0x190] sm:$0xff]
        %v7071 = vld [vmem:[#allocation3 + $0x198] sm:$0xff]
        %v7072 = vld [vmem:[#allocation3 + $0x1a0] sm:$0xff]
        %v7073 = vld [vmem:[#allocation3 + $0x1a8] sm:$0xff]
        %v7074 = vld [vmem:[#allocation3 + $0x1b0] sm:$0xff]
        %v7075 = vld [vmem:[#allocation3 + $0x1b8] sm:$0xff]
        %v7076 = vld [vmem:[#allocation3 + $0x1c0] sm:$0xff]
        %v7077 = vld [vmem:[#allocation3 + $0x1c8] sm:$0xff]
        %v7078 = vld [vmem:[#allocation3 + $0x1d0] sm:$0xff]
        %v7079 = vld [vmem:[#allocation3 + $0x1d8] sm:$0xff]
        %v7080 = vld [vmem:[#allocation3 + $0x1e0] sm:$0xff]
        %v7081 = vld [vmem:[#allocation3 + $0x1e8] sm:$0xff]
        %v7082 = vld [vmem:[#allocation3 + $0x1f0] sm:$0xff]
        %v7083 = vld [vmem:[#allocation3 + $0x1f8] sm:$0xff]
        %v7084 = vld [vmem:[#allocation3 + $0x200] sm:$0xff]
        %v7085 = vld [vmem:[#allocation3 + $0x208] sm:$0xff]
        %v7086 = vld [vmem:[#allocation3 + $0x210] sm:$0xff]
        %v7087 = vld [vmem:[#allocation3 + $0x218] sm:$0xff]
        %v7088 = vld [vmem:[#allocation3 + $0x220] sm:$0xff]
        %v7089 = vld [vmem:[#allocation3 + $0x228] sm:$0xff]
        %v7090 = vld [vmem:[#allocation3 + $0x230] sm:$0xff]
        %v7091 = vld [vmem:[#allocation3 + $0x238] sm:$0xff]
        %v7092 = vld [vmem:[#allocation3 + $0x240] sm:$0xff]
        %v7093 = vld [vmem:[#allocation3 + $0x248] sm:$0xff]
        %v7094 = vld [vmem:[#allocation3 + $0x250] sm:$0xff]
        %v7095 = vld [vmem:[#allocation3 + $0x258] sm:$0xff]
        %v7096 = vld [vmem:[#allocation3 + $0x260] sm:$0xff]
        %v7097 = vld [vmem:[#allocation3 + $0x268] sm:$0xff]
        %v7098 = vld [vmem:[#allocation3 + $0x270] sm:$0xff]
        %v7099 = vld [vmem:[#allocation3 + $0x278] sm:$0xff]
        %v7100 = vld [vmem:[#allocation3 + $0x280] sm:$0xff]
        %v7101 = vld [vmem:[#allocation3 + $0x288] sm:$0xff]
        %v7102 = vld [vmem:[#allocation3 + $0x290] sm:$0xff]
        %v7103 = vld [vmem:[#allocation3 + $0x298] sm:$0xff]
        %v7104 = vld [vmem:[#allocation3 + $0x2a0] sm:$0xff]
        %v7105 = vld [vmem:[#allocation3 + $0x2a8] sm:$0xff]
        %v7106 = vld [vmem:[#allocation3 + $0x2b0] sm:$0xff]
        %v7107 = vld [vmem:[#allocation3 + $0x2b8] sm:$0xff]
        %v7108 = vld [vmem:[#allocation3 + $0x2c0] sm:$0xff]
        %v7109 = vld [vmem:[#allocation3 + $0x2c8] sm:$0xff]
        %v7110 = vld [vmem:[#allocation3 + $0x2d0] sm:$0xff]
        %v7111 = vld [vmem:[#allocation3 + $0x2d8] sm:$0xff]
        %v7112 = vld [vmem:[#allocation3 + $0x2e0] sm:$0xff]
        %v7113 = vld [vmem:[#allocation3 + $0x2e8] sm:$0xff]
        %v7114 = vld [vmem:[#allocation3 + $0x2f0] sm:$0xff]
        %v7115 = vld [vmem:[#allocation3 + $0x2f8] sm:$0xff]
        %v7116 = vld [vmem:[#allocation3 + $0x300] sm:$0xff]
        %v7117 = vld [vmem:[#allocation3 + $0x308] sm:$0xff]
        %v7118 = vld [vmem:[#allocation3 + $0x310] sm:$0xff]
        %v7119 = vld [vmem:[#allocation3 + $0x318] sm:$0xff]
        %v7120 = vld [vmem:[#allocation3 + $0x320] sm:$0xff]
        %v7121 = vld [vmem:[#allocation3 + $0x328] sm:$0xff]
        %v7122 = vld [vmem:[#allocation3 + $0x330] sm:$0xff]
        %v7123 = vld [vmem:[#allocation3 + $0x338] sm:$0xff]
        %v7124 = vld [vmem:[#allocation3 + $0x340] sm:$0xff]
        %v7125 = vld [vmem:[#allocation3 + $0x348] sm:$0xff]
        %v7126 = vld [vmem:[#allocation3 + $0x350] sm:$0xff]
        %v7127 = vld [vmem:[#allocation3 + $0x358] sm:$0xff]
        %v7128 = vld [vmem:[#allocation3 + $0x360] sm:$0xff]
        %v7129 = vld [vmem:[#allocation3 + $0x368] sm:$0xff]
        %v7130 = vld [vmem:[#allocation3 + $0x370] sm:$0xff]
        %v7131 = vld [vmem:[#allocation3 + $0x378] sm:$0xff]
        %v7133 = vunpack.c.l.b16 %v7019
        %v7134 = vunpack.c.h.b16 %v7019
        %v7135 = vpack.c.b16 %v7133, %v7133
        %v7136 = vpack.c.b16 %v7134, %v7134
        %v7250 = vunpack.c.l.b16 %v7020
        %v7251 = vunpack.c.h.b16 %v7020
        %v7252 = vunpack.c.l.b16 %v7021
        %v7253 = vunpack.c.h.b16 %v7021
        %v7254 = vunpack.c.l.b16 %v7022
        %v7255 = vunpack.c.h.b16 %v7022
        %v7256 = vunpack.c.l.b16 %v7023
        %v7257 = vunpack.c.h.b16 %v7023
        %v7258 = vunpack.c.l.b16 %v7024
        %v7259 = vunpack.c.h.b16 %v7024
        %v7260 = vunpack.c.l.b16 %v7025
        %v7261 = vunpack.c.h.b16 %v7025
        %v7262 = vunpack.c.l.b16 %v7026
        %v7263 = vunpack.c.h.b16 %v7026
        %v7264 = vunpack.c.l.b16 %v7027
        %v7265 = vunpack.c.h.b16 %v7027
        %v7266 = vunpack.c.l.b16 %v7028
        %v7267 = vunpack.c.h.b16 %v7028
        %v7268 = vunpack.c.l.b16 %v7029
        %v7269 = vunpack.c.h.b16 %v7029
        %v7270 = vunpack.c.l.b16 %v7030
        %v7271 = vunpack.c.h.b16 %v7030
        %v7272 = vunpack.c.l.b16 %v7031
        %v7273 = vunpack.c.h.b16 %v7031
        %v7274 = vunpack.c.l.b16 %v7032
        %v7275 = vunpack.c.h.b16 %v7032
        %v7276 = vunpack.c.l.b16 %v7033
        %v7277 = vunpack.c.h.b16 %v7033
        %v7278 = vunpack.c.l.b16 %v7034
        %v7279 = vunpack.c.h.b16 %v7034
        %v7280 = vunpack.c.l.b16 %v7035
        %v7281 = vunpack.c.h.b16 %v7035
        %v7282 = vunpack.c.l.b16 %v7036
        %v7283 = vunpack.c.h.b16 %v7036
        %v7284 = vunpack.c.l.b16 %v7037
        %v7285 = vunpack.c.h.b16 %v7037
        %v7286 = vunpack.c.l.b16 %v7038
        %v7287 = vunpack.c.h.b16 %v7038
        %v7288 = vunpack.c.l.b16 %v7039
        %v7289 = vunpack.c.h.b16 %v7039
        %v7290 = vunpack.c.l.b16 %v7040
        %v7291 = vunpack.c.h.b16 %v7040
        %v7292 = vunpack.c.l.b16 %v7041
        %v7293 = vunpack.c.h.b16 %v7041
        %v7294 = vunpack.c.l.b16 %v7042
        %v7295 = vunpack.c.h.b16 %v7042
        %v7296 = vunpack.c.l.b16 %v7043
        %v7297 = vunpack.c.h.b16 %v7043
        %v7298 = vunpack.c.l.b16 %v7044
        %v7299 = vunpack.c.h.b16 %v7044
        %v7300 = vunpack.c.l.b16 %v7045
        %v7301 = vunpack.c.h.b16 %v7045
        %v7302 = vunpack.c.l.b16 %v7046
        %v7303 = vunpack.c.h.b16 %v7046
        %v7304 = vunpack.c.l.b16 %v7047
        %v7305 = vunpack.c.h.b16 %v7047
        %v7306 = vunpack.c.l.b16 %v7048
        %v7307 = vunpack.c.h.b16 %v7048
        %v7308 = vunpack.c.l.b16 %v7049
        %v7309 = vunpack.c.h.b16 %v7049
        %v7310 = vunpack.c.l.b16 %v7050
        %v7311 = vunpack.c.h.b16 %v7050
        %v7312 = vunpack.c.l.b16 %v7051
        %v7313 = vunpack.c.h.b16 %v7051
        %v7314 = vunpack.c.l.b16 %v7052
        %v7315 = vunpack.c.h.b16 %v7052
        %v7316 = vunpack.c.l.b16 %v7053
        %v7317 = vunpack.c.h.b16 %v7053
        %v7318 = vunpack.c.l.b16 %v7054
        %v7319 = vunpack.c.h.b16 %v7054
        %v7320 = vunpack.c.l.b16 %v7055
        %v7321 = vunpack.c.h.b16 %v7055
        %v7322 = vunpack.c.l.b16 %v7056
        %v7323 = vunpack.c.h.b16 %v7056
        %v7324 = vunpack.c.l.b16 %v7057
        %v7325 = vunpack.c.h.b16 %v7057
        %v7326 = vunpack.c.l.b16 %v7058
        %v7327 = vunpack.c.h.b16 %v7058
        %v7328 = vunpack.c.l.b16 %v7059
        %v7329 = vunpack.c.h.b16 %v7059
        %v7330 = vunpack.c.l.b16 %v7060
        %v7331 = vunpack.c.h.b16 %v7060
        %v7332 = vunpack.c.l.b16 %v7061
        %v7333 = vunpack.c.h.b16 %v7061
        %v7334 = vunpack.c.l.b16 %v7062
        %v7335 = vunpack.c.h.b16 %v7062
        %v7336 = vunpack.c.l.b16 %v7063
        %v7337 = vunpack.c.h.b16 %v7063
        %v7338 = vunpack.c.l.b16 %v7064
        %v7339 = vunpack.c.h.b16 %v7064
        %v7340 = vunpack.c.l.b16 %v7065
        %v7341 = vunpack.c.h.b16 %v7065
        %v7342 = vunpack.c.l.b16 %v7066
        %v7343 = vunpack.c.h.b16 %v7066
        %v7344 = vunpack.c.l.b16 %v7067
        %v7345 = vunpack.c.h.b16 %v7067
        %v7346 = vunpack.c.l.b16 %v7068
        %v7347 = vunpack.c.h.b16 %v7068
        %v7348 = vunpack.c.l.b16 %v7069
        %v7349 = vunpack.c.h.b16 %v7069
        %v7350 = vunpack.c.l.b16 %v7070
        %v7351 = vunpack.c.h.b16 %v7070
        %v7352 = vunpack.c.l.b16 %v7071
        %v7353 = vunpack.c.h.b16 %v7071
        %v7354 = vunpack.c.l.b16 %v7072
        %v7355 = vunpack.c.h.b16 %v7072
        %v7356 = vunpack.c.l.b16 %v7073
        %v7357 = vunpack.c.h.b16 %v7073
        %v7358 = vunpack.c.l.b16 %v7074
        %v7359 = vunpack.c.h.b16 %v7074
        %v7360 = vunpack.c.l.b16 %v7075
        %v7361 = vunpack.c.h.b16 %v7075
        %v7362 = vunpack.c.l.b16 %v7076
        %v7363 = vunpack.c.h.b16 %v7076
        %v7364 = vunpack.c.l.b16 %v7077
        %v7365 = vunpack.c.h.b16 %v7077
        %v7366 = vunpack.c.l.b16 %v7078
        %v7367 = vunpack.c.h.b16 %v7078
        %v7368 = vunpack.c.l.b16 %v7079
        %v7369 = vunpack.c.h.b16 %v7079
        %v7370 = vunpack.c.l.b16 %v7080
        %v7371 = vunpack.c.h.b16 %v7080
        %v7372 = vunpack.c.l.b16 %v7081
        %v7373 = vunpack.c.h.b16 %v7081
        %v7374 = vunpack.c.l.b16 %v7082
        %v7375 = vunpack.c.h.b16 %v7082
        %v7376 = vunpack.c.l.b16 %v7083
        %v7377 = vunpack.c.h.b16 %v7083
        %v7378 = vunpack.c.l.b16 %v7084
        %v7379 = vunpack.c.h.b16 %v7084
        %v7380 = vunpack.c.l.b16 %v7085
        %v7381 = vunpack.c.h.b16 %v7085
        %v7382 = vunpack.c.l.b16 %v7086
        %v7383 = vunpack.c.h.b16 %v7086
        %v7384 = vunpack.c.l.b16 %v7087
        %v7385 = vunpack.c.h.b16 %v7087
        %v7386 = vunpack.c.l.b16 %v7088
        %v7387 = vunpack.c.h.b16 %v7088
        %v7388 = vunpack.c.l.b16 %v7089
        %v7389 = vunpack.c.h.b16 %v7089
        %v7390 = vunpack.c.l.b16 %v7090
        %v7391 = vunpack.c.h.b16 %v7090
        %v7392 = vunpack.c.l.b16 %v7091
        %v7393 = vunpack.c.h.b16 %v7091
        %v7394 = vunpack.c.l.b16 %v7092
        %v7395 = vunpack.c.h.b16 %v7092
        %v7396 = vunpack.c.l.b16 %v7093
        %v7397 = vunpack.c.h.b16 %v7093
        %v7398 = vunpack.c.l.b16 %v7094
        %v7399 = vunpack.c.h.b16 %v7094
        %v7400 = vunpack.c.l.b16 %v7095
        %v7401 = vunpack.c.h.b16 %v7095
        %v7402 = vunpack.c.l.b16 %v7096
        %v7403 = vunpack.c.h.b16 %v7096
        %v7404 = vunpack.c.l.b16 %v7097
        %v7405 = vunpack.c.h.b16 %v7097
        %v7406 = vunpack.c.l.b16 %v7098
        %v7407 = vunpack.c.h.b16 %v7098
        %v7408 = vunpack.c.l.b16 %v7099
        %v7409 = vunpack.c.h.b16 %v7099
        %v7410 = vunpack.c.l.b16 %v7100
        %v7411 = vunpack.c.h.b16 %v7100
        %v7412 = vunpack.c.l.b16 %v7101
        %v7413 = vunpack.c.h.b16 %v7101
        %v7414 = vunpack.c.l.b16 %v7102
        %v7415 = vunpack.c.h.b16 %v7102
        %v7416 = vunpack.c.l.b16 %v7103
        %v7417 = vunpack.c.h.b16 %v7103
        %v7418 = vunpack.c.l.b16 %v7104
        %v7419 = vunpack.c.h.b16 %v7104
        %v7420 = vunpack.c.l.b16 %v7105
        %v7421 = vunpack.c.h.b16 %v7105
        %v7422 = vunpack.c.l.b16 %v7106
        %v7423 = vunpack.c.h.b16 %v7106
        %v7424 = vunpack.c.l.b16 %v7107
        %v7425 = vunpack.c.h.b16 %v7107
        %v7426 = vunpack.c.l.b16 %v7108
        %v7427 = vunpack.c.h.b16 %v7108
        %v7428 = vunpack.c.l.b16 %v7109
        %v7429 = vunpack.c.h.b16 %v7109
        %v7430 = vunpack.c.l.b16 %v7110
        %v7431 = vunpack.c.h.b16 %v7110
        %v7432 = vunpack.c.l.b16 %v7111
        %v7433 = vunpack.c.h.b16 %v7111
        %v7434 = vunpack.c.l.b16 %v7112
        %v7435 = vunpack.c.h.b16 %v7112
        %v7436 = vunpack.c.l.b16 %v7113
        %v7437 = vunpack.c.h.b16 %v7113
        %v7438 = vunpack.c.l.b16 %v7114
        %v7439 = vunpack.c.h.b16 %v7114
        %v7440 = vunpack.c.l.b16 %v7115
        %v7441 = vunpack.c.h.b16 %v7115
        %v7442 = vunpack.c.l.b16 %v7116
        %v7443 = vunpack.c.h.b16 %v7116
        %v7444 = vunpack.c.l.b16 %v7117
        %v7445 = vunpack.c.h.b16 %v7117
        %v7446 = vunpack.c.l.b16 %v7118
        %v7447 = vunpack.c.h.b16 %v7118
        %v7448 = vunpack.c.l.b16 %v7119
        %v7449 = vunpack.c.h.b16 %v7119
        %v7450 = vunpack.c.l.b16 %v7120
        %v7451 = vunpack.c.h.b16 %v7120
        %v7452 = vunpack.c.l.b16 %v7121
        %v7453 = vunpack.c.h.b16 %v7121
        %v7454 = vunpack.c.l.b16 %v7122
        %v7455 = vunpack.c.h.b16 %v7122
        %v7456 = vunpack.c.l.b16 %v7123
        %v7457 = vunpack.c.h.b16 %v7123
        %v7458 = vunpack.c.l.b16 %v7124
        %v7459 = vunpack.c.h.b16 %v7124
        %v7460 = vunpack.c.l.b16 %v7125
        %v7461 = vunpack.c.h.b16 %v7125
        %v7462 = vunpack.c.l.b16 %v7126
        %v7463 = vunpack.c.h.b16 %v7126
        %v7464 = vunpack.c.l.b16 %v7127
        %v7465 = vunpack.c.h.b16 %v7127
        %v7466 = vunpack.c.l.b16 %v7128
        %v7467 = vunpack.c.h.b16 %v7128
        %v7468 = vunpack.c.l.b16 %v7129
        %v7469 = vunpack.c.h.b16 %v7129
        %v7470 = vunpack.c.l.b16 %v7130
        %v7471 = vunpack.c.h.b16 %v7130
        %v7472 = vunpack.c.l.b16 %v7131
        %v7473 = vunpack.c.h.b16 %v7131
        %v7474 = vpack.c.b16 %v7258, %v7250
        %v7475 = vpack.c.b16 %v7259, %v7251
        %v7476 = vpack.c.b16 %v7260, %v7252
        %v7477 = vpack.c.b16 %v7261, %v7253
        %v7478 = vpack.c.b16 %v7262, %v7254
        %v7479 = vpack.c.b16 %v7263, %v7255
        %v7480 = vpack.c.b16 %v7264, %v7256
        %v7481 = vpack.c.b16 %v7265, %v7257
        %v7482 = vpack.c.b16 %v7274, %v7266
        %v7483 = vpack.c.b16 %v7275, %v7267
        %v7484 = vpack.c.b16 %v7276, %v7268
        %v7485 = vpack.c.b16 %v7277, %v7269
        %v7486 = vpack.c.b16 %v7278, %v7270
        %v7487 = vpack.c.b16 %v7279, %v7271
        %v7488 = vpack.c.b16 %v7280, %v7272
        %v7489 = vpack.c.b16 %v7281, %v7273
        %v7490 = vpack.c.b16 %v7290, %v7282
        %v7491 = vpack.c.b16 %v7291, %v7283
        %v7492 = vpack.c.b16 %v7292, %v7284
        %v7493 = vpack.c.b16 %v7293, %v7285
        %v7494 = vpack.c.b16 %v7294, %v7286
        %v7495 = vpack.c.b16 %v7295, %v7287
        %v7496 = vpack.c.b16 %v7296, %v7288
        %v7497 = vpack.c.b16 %v7297, %v7289
        %v7498 = vpack.c.b16 %v7306, %v7298
        %v7499 = vpack.c.b16 %v7307, %v7299
        %v7500 = vpack.c.b16 %v7308, %v7300
        %v7501 = vpack.c.b16 %v7309, %v7301
        %v7502 = vpack.c.b16 %v7310, %v7302
        %v7503 = vpack.c.b16 %v7311, %v7303
        %v7504 = vpack.c.b16 %v7312, %v7304
        %v7505 = vpack.c.b16 %v7313, %v7305
        %v7506 = vpack.c.b16 %v7322, %v7314
        %v7507 = vpack.c.b16 %v7323, %v7315
        %v7508 = vpack.c.b16 %v7324, %v7316
        %v7509 = vpack.c.b16 %v7325, %v7317
        %v7510 = vpack.c.b16 %v7326, %v7318
        %v7511 = vpack.c.b16 %v7327, %v7319
        %v7512 = vpack.c.b16 %v7328, %v7320
        %v7513 = vpack.c.b16 %v7329, %v7321
        %v7514 = vpack.c.b16 %v7338, %v7330
        %v7515 = vpack.c.b16 %v7339, %v7331
        %v7516 = vpack.c.b16 %v7340, %v7332
        %v7517 = vpack.c.b16 %v7341, %v7333
        %v7518 = vpack.c.b16 %v7342, %v7334
        %v7519 = vpack.c.b16 %v7343, %v7335
        %v7520 = vpack.c.b16 %v7344, %v7336
        %v7521 = vpack.c.b16 %v7345, %v7337
        %v7522 = vpack.c.b16 %v7354, %v7346
        %v7523 = vpack.c.b16 %v7355, %v7347
        %v7524 = vpack.c.b16 %v7356, %v7348
        %v7525 = vpack.c.b16 %v7357, %v7349
        %v7526 = vpack.c.b16 %v7358, %v7350
        %v7527 = vpack.c.b16 %v7359, %v7351
        %v7528 = vpack.c.b16 %v7360, %v7352
        %v7529 = vpack.c.b16 %v7361, %v7353
        %v7530 = vpack.c.b16 %v7370, %v7362
        %v7531 = vpack.c.b16 %v7371, %v7363
        %v7532 = vpack.c.b16 %v7372, %v7364
        %v7533 = vpack.c.b16 %v7373, %v7365
        %v7534 = vpack.c.b16 %v7374, %v7366
        %v7535 = vpack.c.b16 %v7375, %v7367
        %v7536 = vpack.c.b16 %v7376, %v7368
        %v7537 = vpack.c.b16 %v7377, %v7369
        %v7538 = vpack.c.b16 %v7386, %v7378
        %v7539 = vpack.c.b16 %v7387, %v7379
        %v7540 = vpack.c.b16 %v7388, %v7380
        %v7541 = vpack.c.b16 %v7389, %v7381
        %v7542 = vpack.c.b16 %v7390, %v7382
        %v7543 = vpack.c.b16 %v7391, %v7383
        %v7544 = vpack.c.b16 %v7392, %v7384
        %v7545 = vpack.c.b16 %v7393, %v7385
        %v7546 = vpack.c.b16 %v7402, %v7394
        %v7547 = vpack.c.b16 %v7403, %v7395
        %v7548 = vpack.c.b16 %v7404, %v7396
        %v7549 = vpack.c.b16 %v7405, %v7397
        %v7550 = vpack.c.b16 %v7406, %v7398
        %v7551 = vpack.c.b16 %v7407, %v7399
        %v7552 = vpack.c.b16 %v7408, %v7400
        %v7553 = vpack.c.b16 %v7409, %v7401
        %v7554 = vpack.c.b16 %v7418, %v7410
        %v7555 = vpack.c.b16 %v7419, %v7411
        %v7556 = vpack.c.b16 %v7420, %v7412
        %v7557 = vpack.c.b16 %v7421, %v7413
        %v7558 = vpack.c.b16 %v7422, %v7414
        %v7559 = vpack.c.b16 %v7423, %v7415
        %v7560 = vpack.c.b16 %v7424, %v7416
        %v7561 = vpack.c.b16 %v7425, %v7417
        %v7562 = vpack.c.b16 %v7434, %v7426
        %v7563 = vpack.c.b16 %v7435, %v7427
        %v7564 = vpack.c.b16 %v7436, %v7428
        %v7565 = vpack.c.b16 %v7437, %v7429
        %v7566 = vpack.c.b16 %v7438, %v7430
        %v7567 = vpack.c.b16 %v7439, %v7431
        %v7568 = vpack.c.b16 %v7440, %v7432
        %v7569 = vpack.c.b16 %v7441, %v7433
        %v7570 = vpack.c.b16 %v7450, %v7442
        %v7571 = vpack.c.b16 %v7451, %v7443
        %v7572 = vpack.c.b16 %v7452, %v7444
        %v7573 = vpack.c.b16 %v7453, %v7445
        %v7574 = vpack.c.b16 %v7454, %v7446
        %v7575 = vpack.c.b16 %v7455, %v7447
        %v7576 = vpack.c.b16 %v7456, %v7448
        %v7577 = vpack.c.b16 %v7457, %v7449
        %v7578 = vpack.c.b16 %v7466, %v7458
        %v7579 = vpack.c.b16 %v7467, %v7459
        %v7580 = vpack.c.b16 %v7468, %v7460
        %v7581 = vpack.c.b16 %v7469, %v7461
        %v7582 = vpack.c.b16 %v7470, %v7462
        %v7583 = vpack.c.b16 %v7471, %v7463
        %v7584 = vpack.c.b16 %v7472, %v7464
        %v7585 = vpack.c.b16 %v7473, %v7465
        %vm7698 = vcmask 785408
        %v7700 = vsel %vm7698, %v7136, 0
        %7702 = vmatpush.bf16.msra.mxu0 %v7530
        %7703 = vmatpush.bf16.msra.mxu0 %v7522
        %7704 = vmatpush.bf16.msra.mxu0 %v7514
        %7705 = vmatpush.bf16.msra.mxu0 %v7506
        %7706 = vmatpush.bf16.msra.mxu0 %v7498
        %7707 = vmatpush.bf16.msra.mxu0 %v7490
        %7708 = vmatpush.bf16.msra.mxu0 %v7482
        %7709 = vmatpush.bf16.msra.mxu0 %v7474
        %7710 = vmatmul.bf16.gmra.mxu0 %v7135
        %v7711 = vpop.f32.mrf.mxu0
        %v7712 = vadd.f32 0.0, %v7711
        %v7713 = vpop.f32.mrf.mxu0
        %7714 = vdwg.mxu0
        %7715 = vmatpush.bf16.msra.mxu0 0
        %7716 = vmatpush.bf16.msra.mxu0 0
        %7717 = vmatpush.bf16.msra.mxu0 %v7578
        %7718 = vmatpush.bf16.msra.mxu0 %v7570
        %7719 = vmatpush.bf16.msra.mxu0 %v7562
        %7720 = vmatpush.bf16.msra.mxu0 %v7554
        %7721 = vmatpush.bf16.msra.mxu0 %v7546
        %7722 = vmatpush.bf16.msra.mxu0 %v7538
        %7723 = vmatmul.bf16.gmra.mxu0 %v7700
        %v7724 = vpop.f32.mrf.mxu0
        %v7725 = vadd.f32 %v7712, %v7724
        %v7726 = vpop.f32.mrf.mxu0
        %7727 = vdwg.mxu0
        %7728 = vmatpush.bf16.msra.mxu0 %v7531
        %7729 = vmatpush.bf16.msra.mxu0 %v7523
        %7730 = vmatpush.bf16.msra.mxu0 %v7515
        %7731 = vmatpush.bf16.msra.mxu0 %v7507
        %7732 = vmatpush.bf16.msra.mxu0 %v7499
        %7733 = vmatpush.bf16.msra.mxu0 %v7491
        %7734 = vmatpush.bf16.msra.mxu0 %v7483
        %7735 = vmatpush.bf16.msra.mxu0 %v7475
        %7736 = vmatmul.bf16.gmra.mxu0 %v7135
        %v7737 = vpop.f32.mrf.mxu0
        %v7738 = vadd.f32 0.0, %v7737
        %v7739 = vpop.f32.mrf.mxu0
        %7740 = vdwg.mxu0
        %7741 = vmatpush.bf16.msra.mxu0 0
        %7742 = vmatpush.bf16.msra.mxu0 0
        %7743 = vmatpush.bf16.msra.mxu0 %v7579
        %7744 = vmatpush.bf16.msra.mxu0 %v7571
        %7745 = vmatpush.bf16.msra.mxu0 %v7563
        %7746 = vmatpush.bf16.msra.mxu0 %v7555
        %7747 = vmatpush.bf16.msra.mxu0 %v7547
        %7748 = vmatpush.bf16.msra.mxu0 %v7539
        %7749 = vmatmul.bf16.gmra.mxu0 %v7700
        %v7750 = vpop.f32.mrf.mxu0
        %v7751 = vadd.f32 %v7738, %v7750
        %v7752 = vpop.f32.mrf.mxu0
        %7753 = vdwg.mxu0
        %7754 = vmatpush.bf16.msra.mxu0 %v7532
        %7755 = vmatpush.bf16.msra.mxu0 %v7524
        %7756 = vmatpush.bf16.msra.mxu0 %v7516
        %7757 = vmatpush.bf16.msra.mxu0 %v7508
        %7758 = vmatpush.bf16.msra.mxu0 %v7500
        %7759 = vmatpush.bf16.msra.mxu0 %v7492
        %7760 = vmatpush.bf16.msra.mxu0 %v7484
        %7761 = vmatpush.bf16.msra.mxu0 %v7476
        %7762 = vmatmul.bf16.gmra.mxu0 %v7135
        %v7763 = vpop.f32.mrf.mxu0
        %v7764 = vadd.f32 0.0, %v7763
        %v7765 = vpop.f32.mrf.mxu0
        %7766 = vdwg.mxu0
        %7767 = vmatpush.bf16.msra.mxu0 0
        %7768 = vmatpush.bf16.msra.mxu0 0
        %7769 = vmatpush.bf16.msra.mxu0 %v7580
        %7770 = vmatpush.bf16.msra.mxu0 %v7572
        %7771 = vmatpush.bf16.msra.mxu0 %v7564
        %7772 = vmatpush.bf16.msra.mxu0 %v7556
        %7773 = vmatpush.bf16.msra.mxu0 %v7548
        %7774 = vmatpush.bf16.msra.mxu0 %v7540
        %7775 = vmatmul.bf16.gmra.mxu0 %v7700
        %v7776 = vpop.f32.mrf.mxu0
        %v7777 = vadd.f32 %v7764, %v7776
        %v7778 = vpop.f32.mrf.mxu0
        %7779 = vdwg.mxu0
        %7780 = vmatpush.bf16.msra.mxu0 %v7533
        %7781 = vmatpush.bf16.msra.mxu0 %v7525
        %7782 = vmatpush.bf16.msra.mxu0 %v7517
        %7783 = vmatpush.bf16.msra.mxu0 %v7509
        %7784 = vmatpush.bf16.msra.mxu0 %v7501
        %7785 = vmatpush.bf16.msra.mxu0 %v7493
        %7786 = vmatpush.bf16.msra.mxu0 %v7485
        %7787 = vmatpush.bf16.msra.mxu0 %v7477
        %7788 = vmatmul.bf16.gmra.mxu0 %v7135
        %v7789 = vpop.f32.mrf.mxu0
        %v7790 = vadd.f32 0.0, %v7789
        %v7791 = vpop.f32.mrf.mxu0
        %7792 = vdwg.mxu0
        %7793 = vmatpush.bf16.msra.mxu0 0
        %7794 = vmatpush.bf16.msra.mxu0 0
        %7795 = vmatpush.bf16.msra.mxu0 %v7581
        %7796 = vmatpush.bf16.msra.mxu0 %v7573
        %7797 = vmatpush.bf16.msra.mxu0 %v7565
        %7798 = vmatpush.bf16.msra.mxu0 %v7557
        %7799 = vmatpush.bf16.msra.mxu0 %v7549
        %7800 = vmatpush.bf16.msra.mxu0 %v7541
        %7801 = vmatmul.bf16.gmra.mxu0 %v7700
        %v7802 = vpop.f32.mrf.mxu0
        %v7803 = vadd.f32 %v7790, %v7802
        %v7804 = vpop.f32.mrf.mxu0
        %7805 = vdwg.mxu0
        %7806 = vmatpush.bf16.msra.mxu0 %v7534
        %7807 = vmatpush.bf16.msra.mxu0 %v7526
        %7808 = vmatpush.bf16.msra.mxu0 %v7518
        %7809 = vmatpush.bf16.msra.mxu0 %v7510
        %7810 = vmatpush.bf16.msra.mxu0 %v7502
        %7811 = vmatpush.bf16.msra.mxu0 %v7494
        %7812 = vmatpush.bf16.msra.mxu0 %v7486
        %7813 = vmatpush.bf16.msra.mxu0 %v7478
        %7814 = vmatmul.bf16.gmra.mxu0 %v7135
        %v7815 = vpop.f32.mrf.mxu0
        %v7816 = vadd.f32 0.0, %v7815
        %v7817 = vpop.f32.mrf.mxu0
        %7818 = vdwg.mxu0
        %7819 = vmatpush.bf16.msra.mxu0 0
        %7820 = vmatpush.bf16.msra.mxu0 0
        %7821 = vmatpush.bf16.msra.mxu0 %v7582
        %7822 = vmatpush.bf16.msra.mxu0 %v7574
        %7823 = vmatpush.bf16.msra.mxu0 %v7566
        %7824 = vmatpush.bf16.msra.mxu0 %v7558
        %7825 = vmatpush.bf16.msra.mxu0 %v7550
        %7826 = vmatpush.bf16.msra.mxu0 %v7542
        %7827 = vmatmul.bf16.gmra.mxu0 %v7700
        %v7828 = vpop.f32.mrf.mxu0
        %v7829 = vadd.f32 %v7816, %v7828
        %v7830 = vpop.f32.mrf.mxu0
        %7831 = vdwg.mxu0
        %7832 = vmatpush.bf16.msra.mxu0 %v7535
        %7833 = vmatpush.bf16.msra.mxu0 %v7527
        %7834 = vmatpush.bf16.msra.mxu0 %v7519
        %7835 = vmatpush.bf16.msra.mxu0 %v7511
        %7836 = vmatpush.bf16.msra.mxu0 %v7503
        %7837 = vmatpush.bf16.msra.mxu0 %v7495
        %7838 = vmatpush.bf16.msra.mxu0 %v7487
        %7839 = vmatpush.bf16.msra.mxu0 %v7479
        %7840 = vmatmul.bf16.gmra.mxu0 %v7135
        %v7841 = vpop.f32.mrf.mxu0
        %v7842 = vadd.f32 0.0, %v7841
        %v7843 = vpop.f32.mrf.mxu0
        %7844 = vdwg.mxu0
        %7845 = vmatpush.bf16.msra.mxu0 0
        %7846 = vmatpush.bf16.msra.mxu0 0
        %7847 = vmatpush.bf16.msra.mxu0 %v7583
        %7848 = vmatpush.bf16.msra.mxu0 %v7575
        %7849 = vmatpush.bf16.msra.mxu0 %v7567
        %7850 = vmatpush.bf16.msra.mxu0 %v7559
        %7851 = vmatpush.bf16.msra.mxu0 %v7551
        %7852 = vmatpush.bf16.msra.mxu0 %v7543
        %7853 = vmatmul.bf16.gmra.mxu0 %v7700
        %v7854 = vpop.f32.mrf.mxu0
        %v7855 = vadd.f32 %v7842, %v7854
        %v7856 = vpop.f32.mrf.mxu0
        %7857 = vdwg.mxu0
        %7858 = vmatpush.bf16.msra.mxu0 %v7536
        %7859 = vmatpush.bf16.msra.mxu0 %v7528
        %7860 = vmatpush.bf16.msra.mxu0 %v7520
        %7861 = vmatpush.bf16.msra.mxu0 %v7512
        %7862 = vmatpush.bf16.msra.mxu0 %v7504
        %7863 = vmatpush.bf16.msra.mxu0 %v7496
        %7864 = vmatpush.bf16.msra.mxu0 %v7488
        %7865 = vmatpush.bf16.msra.mxu0 %v7480
        %7866 = vmatmul.bf16.gmra.mxu0 %v7135
        %v7867 = vpop.f32.mrf.mxu0
        %v7868 = vadd.f32 0.0, %v7867
        %v7869 = vpop.f32.mrf.mxu0
        %7870 = vdwg.mxu0
        %7871 = vmatpush.bf16.msra.mxu0 0
        %7872 = vmatpush.bf16.msra.mxu0 0
        %7873 = vmatpush.bf16.msra.mxu0 %v7584
        %7874 = vmatpush.bf16.msra.mxu0 %v7576
        %7875 = vmatpush.bf16.msra.mxu0 %v7568
        %7876 = vmatpush.bf16.msra.mxu0 %v7560
        %7877 = vmatpush.bf16.msra.mxu0 %v7552
        %7878 = vmatpush.bf16.msra.mxu0 %v7544
        %7879 = vmatmul.bf16.gmra.mxu0 %v7700
        %v7880 = vpop.f32.mrf.mxu0
        %v7881 = vadd.f32 %v7868, %v7880
        %v7882 = vpop.f32.mrf.mxu0
        %7883 = vdwg.mxu0
        %7884 = vmatpush.bf16.msra.mxu0 %v7537
        %7885 = vmatpush.bf16.msra.mxu0 %v7529
        %7886 = vmatpush.bf16.msra.mxu0 %v7521
        %7887 = vmatpush.bf16.msra.mxu0 %v7513
        %7888 = vmatpush.bf16.msra.mxu0 %v7505
        %7889 = vmatpush.bf16.msra.mxu0 %v7497
        %7890 = vmatpush.bf16.msra.mxu0 %v7489
        %7891 = vmatpush.bf16.msra.mxu0 %v7481
        %7892 = vmatmul.bf16.gmra.mxu0 %v7135
        %v7893 = vpop.f32.mrf.mxu0
        %v7894 = vadd.f32 0.0, %v7893
        %v7895 = vpop.f32.mrf.mxu0
        %7896 = vdwg.mxu0
        %7897 = vmatpush.bf16.msra.mxu0 0
        %7898 = vmatpush.bf16.msra.mxu0 0
        %7899 = vmatpush.bf16.msra.mxu0 %v7585
        %7900 = vmatpush.bf16.msra.mxu0 %v7577
        %7901 = vmatpush.bf16.msra.mxu0 %v7569
        %7902 = vmatpush.bf16.msra.mxu0 %v7561
        %7903 = vmatpush.bf16.msra.mxu0 %v7553
        %7904 = vmatpush.bf16.msra.mxu0 %v7545
        %7905 = vmatmul.bf16.gmra.mxu0 %v7700
        %v7906 = vpop.f32.mrf.mxu0
        %v7907 = vadd.f32 %v7894, %v7906
        %v7908 = vpop.f32.mrf.mxu0
        %7909 = vdwg.mxu0
        %v7910 = vld [vmem:[%s3] sm:$0xff]
        %v7911 = vadd.f32 %v7725, %v7751
        %v7912 = vadd.f32 %v7911, %v7777
        %v7913 = vadd.f32 %v7912, %v7803
        %7914 = vadd.xlane.f32.xlu0 %v7913
        %v7915 = vpop.xlane.xlu0 %7914
        %v7916 = vmul.f32 %v7725, %v7725
        %v7917 = vmul.f32 %v7751, %v7751
        %v7918 = vmul.f32 %v7777, %v7777
        %v7919 = vmul.f32 %v7803, %v7803
        %v7920 = vadd.f32 %v7916, %v7917
        %v7921 = vadd.f32 %v7920, %v7918
        %v7922 = vadd.f32 %v7921, %v7919
        %7923 = vadd.xlane.f32.xlu0 %v7922
        %v7924 = vpop.xlane.xlu0 %7923
        %v7925 = vsel %vm3600, %v7915, 0.0
        %7926 = vadd.xlane.f32.xlu0 %v7925
        %v7927 = vpop.xlane.xlu0 %7926
        %v7928 = vrot.slane %v7927, 4
        %v7929 = vadd.f32 %v7927, %v7928
        %v7930 = vrot.slane %v7929, 2
        %v7931 = vadd.f32 %v7929, %v7930
        %v7932 = vrot.slane %v7931, 1
        %v7933 = vadd.f32 %v7931, %v7932
        %s7934 = vtos %v7933
        %v7935 = vstv %s7934
        %v7936 = vmul.f32 %v7935, 0.00048828125
        %v7937 = vsel %vm3600, %v7924, 0.0
        %7938 = vadd.xlane.f32.xlu0 %v7937
        %v7939 = vpop.xlane.xlu0 %7938
        %v7940 = vrot.slane %v7939, 4
        %v7941 = vadd.f32 %v7939, %v7940
        %v7942 = vrot.slane %v7941, 2
        %v7943 = vadd.f32 %v7941, %v7942
        %v7944 = vrot.slane %v7943, 1
        %v7945 = vadd.f32 %v7943, %v7944
        %s7946 = vtos %v7945
        %v7947 = vstv %s7946
        %v7948 = vmul.f32 %v7947, 0.00048828125
        %v7949 = vmul.f32 %v7936, %v7936
        %v7950 = vsub.f32 %v7948, %v7949
        %v7951 = vsel %vm3629, %v7936, 0.0
        %v7952 = vsel %vm3629, %v7950, 0.0
        %v7954 = vrot.slane %v7915, 4
        %v7956 = vsel %vm3600, %v7954, 0.0
        %7957 = vadd.xlane.f32.xlu0 %v7956
        %v7958 = vpop.xlane.xlu0 %7957
        %v7959 = vrot.slane %v7958, 4
        %v7960 = vadd.f32 %v7958, %v7959
        %v7961 = vrot.slane %v7960, 2
        %v7962 = vadd.f32 %v7960, %v7961
        %v7963 = vrot.slane %v7962, 1
        %v7964 = vadd.f32 %v7962, %v7963
        %s7965 = vtos %v7964
        %v7966 = vstv %s7965
        %v7967 = vmul.f32 %v7966, 0.00048828125
        %v7969 = vrot.slane %v7924, 4
        %v7971 = vsel %vm3600, %v7969, 0.0
        %7972 = vadd.xlane.f32.xlu0 %v7971
        %v7973 = vpop.xlane.xlu0 %7972
        %v7974 = vrot.slane %v7973, 4
        %v7975 = vadd.f32 %v7973, %v7974
        %v7976 = vrot.slane %v7975, 2
        %v7977 = vadd.f32 %v7975, %v7976
        %v7978 = vrot.slane %v7977, 1
        %v7979 = vadd.f32 %v7977, %v7978
        %s7980 = vtos %v7979
        %v7981 = vstv %s7980
        %v7982 = vmul.f32 %v7981, 0.00048828125
        %v7983 = vmul.f32 %v7967, %v7967
        %v7984 = vsub.f32 %v7982, %v7983
        %v7985 = vsel %vm3666, %v7967, %v7951
        %v7986 = vsel %vm3666, %v7984, %v7952
        %v7987 = vsub.f32 %v7725, %v7985
        %v7988 = vsub.f32 %v7751, %v7985
        %v7989 = vsub.f32 %v7777, %v7985
        %v7990 = vsub.f32 %v7803, %v7985
        %v7991 = vadd.f32 %v7986, 1e-05
        %v7992 = vrsqrt.pop %v7991
        %v7993 = vmul.f32 %v7992, %v7991
        %v7994 = vmul.f32 %v7993, %v7992
        %v7995 = vmul.f32 0.5, %v7994
        %v7996 = vsub.f32 1.5, %v7995
        %v7997 = vmul.f32 %v7992, %v7996
        %vm7998 = vweird.f32 %v7991
        %vm7999 = vweird.f32 %v7992
        %vm8000 = vmor %vm7998, %vm7999
        %v8001 = vsel %vm8000, %v7992, %v7997
        %v8002 = vmul.f32 %v7987, %v8001
        %v8003 = vmul.f32 %v7988, %v8001
        %v8004 = vmul.f32 %v7989, %v8001
        %v8005 = vmul.f32 %v7990, %v8001
        %8007 = vset.pattern.permute.xlu0 2
        %8008 = vperm.xlu0 %8007, %v7910
        %v8009 = vpop.permute.xlu0 %8008
        %v8011 = vmul.f32 %v8002, %v8009
        %v8012 = vmul.f32 %v8003, %v8009
        %v8013 = vmul.f32 %v8004, %v8009
        %v8014 = vmul.f32 %v8005, %v8009
        %8015 = vset.pattern.permute.xlu0 3
        %8016 = vperm.xlu0 %8015, %v7910
        %v8017 = vpop.permute.xlu0 %8016
        %v8019 = vadd.f32 %v8011, %v8017
        %v8020 = vadd.f32 %v8012, %v8017
        %v8021 = vadd.f32 %v8013, %v8017
        %v8022 = vadd.f32 %v8014, %v8017
        %v8023 = vmax.f32 %v8019, 0.0
        %v8024 = vmax.f32 %v8020, 0.0
        %v8025 = vmax.f32 %v8021, 0.0
        %v8026 = vmax.f32 %v8022, 0.0
        %8027 = vst [vmem:[%s262] sm:$0xff] %v8023
        %8028 = vst [vmem:[%s262 + $0x8] sm:$0xff] %v8024
        %8029 = vst [vmem:[%s262 + $0x10] sm:$0xff] %v8025
        %8030 = vst [vmem:[%s262 + $0x18] sm:$0xff] %v8026
        %v8031 = vld [vmem:[%s3] sm:$0xff]
        %v8032 = vadd.f32 %v7829, %v7855
        %v8033 = vadd.f32 %v8032, %v7881
        %v8034 = vadd.f32 %v8033, %v7907
        %8035 = vadd.xlane.f32.xlu0 %v8034
        %v8036 = vpop.xlane.xlu0 %8035
        %v8037 = vmul.f32 %v7829, %v7829
        %v8038 = vmul.f32 %v7855, %v7855
        %v8039 = vmul.f32 %v7881, %v7881
        %v8040 = vmul.f32 %v7907, %v7907
        %v8041 = vadd.f32 %v8037, %v8038
        %v8042 = vadd.f32 %v8041, %v8039
        %v8043 = vadd.f32 %v8042, %v8040
        %8044 = vadd.xlane.f32.xlu0 %v8043
        %v8045 = vpop.xlane.xlu0 %8044
        %v8046 = vsel %vm3600, %v8036, 0.0
        %8047 = vadd.xlane.f32.xlu0 %v8046
        %v8048 = vpop.xlane.xlu0 %8047
        %v8049 = vrot.slane %v8048, 4
        %v8050 = vadd.f32 %v8048, %v8049
        %v8051 = vrot.slane %v8050, 2
        %v8052 = vadd.f32 %v8050, %v8051
        %v8053 = vrot.slane %v8052, 1
        %v8054 = vadd.f32 %v8052, %v8053
        %s8055 = vtos %v8054
        %v8056 = vstv %s8055
        %v8057 = vmul.f32 %v8056, 0.00048828125
        %v8058 = vsel %vm3600, %v8045, 0.0
        %8059 = vadd.xlane.f32.xlu0 %v8058
        %v8060 = vpop.xlane.xlu0 %8059
        %v8061 = vrot.slane %v8060, 4
        %v8062 = vadd.f32 %v8060, %v8061
        %v8063 = vrot.slane %v8062, 2
        %v8064 = vadd.f32 %v8062, %v8063
        %v8065 = vrot.slane %v8064, 1
        %v8066 = vadd.f32 %v8064, %v8065
        %s8067 = vtos %v8066
        %v8068 = vstv %s8067
        %v8069 = vmul.f32 %v8068, 0.00048828125
        %v8070 = vmul.f32 %v8057, %v8057
        %v8071 = vsub.f32 %v8069, %v8070
        %v8072 = vsel %vm3629, %v8057, 0.0
        %v8073 = vsel %vm3629, %v8071, 0.0
        %v8075 = vrot.slane %v8036, 4
        %v8077 = vsel %vm3600, %v8075, 0.0
        %8078 = vadd.xlane.f32.xlu0 %v8077
        %v8079 = vpop.xlane.xlu0 %8078
        %v8080 = vrot.slane %v8079, 4
        %v8081 = vadd.f32 %v8079, %v8080
        %v8082 = vrot.slane %v8081, 2
        %v8083 = vadd.f32 %v8081, %v8082
        %v8084 = vrot.slane %v8083, 1
        %v8085 = vadd.f32 %v8083, %v8084
        %s8086 = vtos %v8085
        %v8087 = vstv %s8086
        %v8088 = vmul.f32 %v8087, 0.00048828125
        %v8090 = vrot.slane %v8045, 4
        %v8092 = vsel %vm3600, %v8090, 0.0
        %8093 = vadd.xlane.f32.xlu0 %v8092
        %v8094 = vpop.xlane.xlu0 %8093
        %v8095 = vrot.slane %v8094, 4
        %v8096 = vadd.f32 %v8094, %v8095
        %v8097 = vrot.slane %v8096, 2
        %v8098 = vadd.f32 %v8096, %v8097
        %v8099 = vrot.slane %v8098, 1
        %v8100 = vadd.f32 %v8098, %v8099
        %s8101 = vtos %v8100
        %v8102 = vstv %s8101
        %v8103 = vmul.f32 %v8102, 0.00048828125
        %v8104 = vmul.f32 %v8088, %v8088
        %v8105 = vsub.f32 %v8103, %v8104
        %v8106 = vsel %vm3666, %v8088, %v8072
        %v8107 = vsel %vm3666, %v8105, %v8073
        %v8108 = vsub.f32 %v7829, %v8106
        %v8109 = vsub.f32 %v7855, %v8106
        %v8110 = vsub.f32 %v7881, %v8106
        %v8111 = vsub.f32 %v7907, %v8106
        %v8112 = vadd.f32 %v8107, 1e-05
        %v8113 = vrsqrt.pop %v8112
        %v8114 = vmul.f32 %v8113, %v8112
        %v8115 = vmul.f32 %v8114, %v8113
        %v8116 = vmul.f32 0.5, %v8115
        %v8117 = vsub.f32 1.5, %v8116
        %v8118 = vmul.f32 %v8113, %v8117
        %vm8119 = vweird.f32 %v8112
        %vm8120 = vweird.f32 %v8113
        %vm8121 = vmor %vm8119, %vm8120
        %v8122 = vsel %vm8121, %v8113, %v8118
        %v8123 = vmul.f32 %v8108, %v8122
        %v8124 = vmul.f32 %v8109, %v8122
        %v8125 = vmul.f32 %v8110, %v8122
        %v8126 = vmul.f32 %v8111, %v8122
        %8128 = vset.pattern.permute.xlu0 2
        %8129 = vperm.xlu0 %8128, %v8031
        %v8130 = vpop.permute.xlu0 %8129
        %v8132 = vmul.f32 %v8123, %v8130
        %v8133 = vmul.f32 %v8124, %v8130
        %v8134 = vmul.f32 %v8125, %v8130
        %v8135 = vmul.f32 %v8126, %v8130
        %8136 = vset.pattern.permute.xlu0 3
        %8137 = vperm.xlu0 %8136, %v8031
        %v8138 = vpop.permute.xlu0 %8137
        %v8140 = vadd.f32 %v8132, %v8138
        %v8141 = vadd.f32 %v8133, %v8138
        %v8142 = vadd.f32 %v8134, %v8138
        %v8143 = vadd.f32 %v8135, %v8138
        %v8144 = vmax.f32 %v8140, 0.0
        %v8145 = vmax.f32 %v8141, 0.0
        %v8146 = vmax.f32 %v8142, 0.0
        %v8147 = vmax.f32 %v8143, 0.0
        %s8148 = scalar_lea.vmem %s262, 32 [#allocation9]
        %8149 = vst [vmem:[%s8148] sm:$0xff] %v8144
        %8150 = vst [vmem:[%s8148 + $0x8] sm:$0xff] %v8145
        %8151 = vst [vmem:[%s8148 + $0x10] sm:$0xff] %v8146
        %8152 = vst [vmem:[%s8148 + $0x18] sm:$0xff] %v8147
        %s8153 = sand.u32 %s141, 1
        %s8154 = scalar_lea.sflag [#allocation6], %s8153
        %s8155 = sand.u32 %s141, 1
        %s8156 = smul.addr %s8155, 64
        %s8157 = scalar_lea.vmem [#allocation9], %s8156
        // Predicated region
        $region49: #{tpu_custom_call.1} parent=39 // pred_check
          %p8158 = pneg %p151
        $region50: #{tpu_custom_call.1} parent=39 // pred_check_branch
          %8160 = sbr.rel (%p8158) target = $region52
        $region51: #{tpu_custom_call.1} parent=39 // pred_region
          %s8161 = smul.u32 2, %s23
          %8163 = vsyncadd %s8154, 0
          %s8164 = smul.addr %s8161, 4
          %s8165 = smul.addr %s8164, 8
          %s8166 = scalar_lea.hbm %s5, %s8165
          %s8167 = sshll.u32 %s8157, 4
          %s8168 = int_to_ptr.vmem [resolvable:$true] %s8167
          %s8169 = sshll.u32 %s8166, 4
          %s8170 = int_to_ptr.hbm [resolvable:$true] %s8169
          %8175 = dma.vmem_to_hbm [thread:$0]  %s8168, 1024, %s8170, %s8154, 512, 512, 32
        $region52: #{tpu_custom_call.1} parent=39 // pred_fallthru
          _
      $region40: #{tpu_custom_call.1} parent=5 // pred_fallthru
        _
      %p8176 = scmp.le.s32.totalorder 2, %s18
      // Predicated region
      $region53: #{tpu_custom_call.1} parent=5 // pred_check
        %p8177 = pneg %p8176
      $region54: #{tpu_custom_call.1} parent=5 // pred_check_branch
        %8179 = sbr.rel (%p8177) target = $region56
      $region55: #{tpu_custom_call.1} parent=5 // pred_region
        %s8180 = ssub.s32 %s18, 2
        // Predicated region
        $region57: #{tpu_custom_call.1} parent=55 // pred_check
          %p8181 = pneg %p157
        $region58: #{tpu_custom_call.1} parent=55 // pred_check_branch
          %8183 = sbr.rel (%p8181) target = $region60
        $region59: #{tpu_custom_call.1} parent=55 // pred_region
          %s8184 = sand.u32 %s142, 1
          %s8185 = scalar_lea.sflag [#allocation6], %s8184
          %s8186 = sand.u32 %s142, 1
          %s8187 = smul.addr %s8186, 64
          %s8188 = scalar_lea.vmem [#allocation9], %s8187
          %8190 = dma.done %s8185, 1024
        $region60: #{tpu_custom_call.1} parent=55 // pred_fallthru
          _
      $region56: #{tpu_custom_call.1} parent=5 // pred_fallthru
        _
    $region6: #{tpu_custom_call.1} parent=1 // loop_footer
      %s22 = sadd.s32 1, %s18
    $region7: #{tpu_custom_call.1} parent=1 // loop_footer_branch
      %17 = sbr.rel target = $region3
    $region8: #{tpu_custom_call.1} parent=1 // loop_exit
      _
    %8191 = vsyncpa [#allocation5], 1
    %s8192 = scalar_lea.sflag [#allocation5], 1
    %8193 = vsyncpa %s8192, 1
    %8194 = vsyncpa [#allocation8], 1
    %8195 = vsyncpa [#allocation6], 1
    %s8196 = scalar_lea.sflag [#allocation6], 1
    %8197 = vsyncpa %s8196, 1

</llo_original>
